<compile_context>
chip_gen: v6e
topology: v6e:2x2x1
jax: 0.10.0
libtpu: 0.0.40
codegen_flags: <defaults>
</compile_context>

<pallas_src>
import jax
import jax.numpy as jnp
from jax import lax
from jax.experimental import pallas as pl
from jax.experimental.pallas import tpu as pltpu

# ----------------------------- configuration --------------------------------
IN_CH = 4
OUT_CH = 8
KSIZE = 3
EMB_DIM = 32
NUM_HEADS = 4
DIM_HEAD = OUT_CH                      # Attention: dim_head defaults to dim
CG = OUT_CH // NUM_HEADS               # per-head input channels (grouped 1x1)
D_HEAD = DIM_HEAD // NUM_HEADS         # per-head output channels
ATTN_SCALE = (DIM_HEAD / NUM_HEADS) ** (-0.5)
LN_EPS = 1e-5                          # float32 path of the file's LayerNorm

B, H, W = 2, 16, 16
N = H * W
R = KSIZE * KSIZE * IN_CH


# ------------------------------- kernel -------------------------------------
def _ln_channels(x, eps=LN_EPS):
    # channel-wise LayerNorm (torch.var unbiased=False); channels on sublanes
    # (axis 0) of a (C, N) tile -> cheap 8-row sublane reduction.
    mean = jnp.mean(x, axis=0, keepdims=True)
    var = jnp.mean((x - mean) ** 2, axis=0, keepdims=True)
    return (x - mean) * lax.rsqrt(var + eps)


def conv_block_kernel(patches_ref, ss_ref, wc_ref, ga_ref,
                      wq_ref, wk_ref, wv_ref, wo_ref, bo_ref, out_ref):
    # One grid step == one batch element.  Activation layout is (C, N) so the
    # 256-pixel axis sits on lanes: loads / elementwise ops / the final store
    # are lane-dense (no masked vst.msk partial stores).
    patches = patches_ref[0]                                     # (R, N)

    # BaseBlock2D: 3x3 'same' conv (bias=False) as an im2col matmul, (C,R)@(R,N)
    conv = jnp.dot(wc_ref[...], patches,
                   preferred_element_type=jnp.float32)           # (C, N)

    # channel LayerNorm; the learnable gain g is folded into the per-batch
    # effective scale computed in the wrapper (LayerNorm bias b is None -> +0).
    ss = ss_ref[0]                                               # (2C, 1)
    eff_scale = ss[:OUT_CH, :]                                   # g * (scale + 1)
    shift = ss[OUT_CH:, :]
    normed = _ln_channels(conv) * eff_scale + shift

    # activation (DEFAULT_ACT assumed SiLU)
    act = jax.nn.silu(normed)                                    # (C, N)

    # ---------------- Attention (full_attn=True) ----------------
    xn = _ln_channels(act) * ga_ref[...]                         # prenorm, (C, N)

    # single tile-aligned transpose, then block-diagonal grouped-1x1 q/k/v:
    # three (N, C) @ (C, DIM_HEAD) matmuls (attention scale folded into wq).
    xnt = xn.T                                                   # (N, C)
    q = jnp.dot(xnt, wq_ref[...], preferred_element_type=jnp.float32)
    k = jnp.dot(xnt, wk_ref[...], preferred_element_type=jnp.float32)
    v = jnp.dot(xnt, wv_ref[...], preferred_element_type=jnp.float32)

    wo = wo_ref[...]                                             # (C, DIM_HEAD)
    # residual with the prenormed x + to_out bias; per-head to_out
    # contributions are accumulated directly (no concat / scratch assembly).
    y = xn + bo_ref[...]                                         # (C, N)
    for h in range(NUM_HEADS):
        sl = slice(h * D_HEAD, (h + 1) * D_HEAD)
        qh, kh, vh = q[:, sl], k[:, sl], v[:, sl]                # (N, D_HEAD)
        sim = lax.dot_general(qh, kh, (((1,), (1,)), ((), ())),
                              preferred_element_type=jnp.float32)    # (N, N)
        m = jnp.max(sim, axis=-1, keepdims=True)
        p = jnp.exp(sim - m)
        l = jnp.sum(p, axis=-1, keepdims=True)
        attn = p * pl.reciprocal(l, approx=True)                 # EUP recip
        o_h = jnp.dot(attn, vh,
                      preferred_element_type=jnp.float32)        # (N, D_HEAD)
        y = y + lax.dot_general(wo[:, sl], o_h, (((1,), (1,)), ((), ())),
                                preferred_element_type=jnp.float32)  # (C, N)

    out_ref[0] = y.astype(out_ref.dtype)                         # lane-dense store


# ------------------------------- wrapper -------------------------------------
def _block_diag(blocks):
    # blocks: (H, a, b) -> (H*a, H*b) block-diagonal (tiny, runs in XLA).
    nh, a, bdim = blocks.shape
    out = jnp.zeros((nh * a, nh * bdim), blocks.dtype)
    for i in range(nh):
        out = out.at[i * a:(i + 1) * a, i * bdim:(i + 1) * bdim].set(blocks[i])
    return out


@jax.jit
def conv_block_2d(x_nchw, t_emb, params):
    b, cin, h, w = x_nchw.shape
    n = h * w
    r = KSIZE * KSIZE * cin
    c = OUT_CH

    x = x_nchw.astype(jnp.float32)
    pad = KSIZE // 2
    xp = jnp.pad(x, ((0, 0), (0, 0), (pad, pad), (pad, pad)))
    # im2col (XLA glue), staying in NCHW: taps ordered (kh, kw, cin), pixels on
    # the last (lane) axis.
    cols = [xp[:, :, kh:kh + h, kw:kw + w]
            for kh in range(KSIZE) for kw in range(KSIZE)]
    patches = jnp.concatenate(cols, axis=1).reshape(b, r, n)     # (B, R, N)

    # 'seq' embedding block hoisted to XLA: SiLU -> Linear(emb_dim, 2C)
    e = jax.nn.silu(t_emb.astype(jnp.float32)) @ params["w_emb"] + params["b_emb"]
    scale, shift = e[:, :c], e[:, c:]
    # fold the conv-LayerNorm gain into the per-batch effective scale:
    #   LN(conv) * g * (scale + 1) + shift == LN(conv) * eff_scale + shift
    eff_scale = params["g_conv"] * (scale + 1.0)                 # (B, C)
    scale_shift = jnp.concatenate([eff_scale, shift], axis=1)[:, :, None]  # (B, 2C, 1)

    # parameter repacking for the channels-on-sublane layout (tiny, inside jit)
    wc_t = params["w_conv"].T                                    # (C, R)
    ga = params["g_attn"].reshape(c, 1)
    wq_bd = _block_diag(params["w_q"]) * ATTN_SCALE              # (C, DIM_HEAD)
    wk_bd = _block_diag(params["w_k"])
    wv_bd = _block_diag(params["w_v"])
    wo_t = params["w_out"].T                                     # (C, DIM_HEAD)
    bo = params["b_out"].reshape(c, 1)

    grid_spec = pltpu.PrefetchScalarGridSpec(
        num_scalar_prefetch=0,
        grid=(b,),
        in_specs=[
            pl.BlockSpec((1, r, n), lambda i: (i, 0, 0)),        # patches
            pl.BlockSpec((1, 2 * c, 1), lambda i: (i, 0, 0)),    # eff_scale/shift
            pl.BlockSpec((c, r), lambda i: (0, 0)),              # w_conv^T
            pl.BlockSpec((c, 1), lambda i: (0, 0)),              # g_attn
            pl.BlockSpec((c, DIM_HEAD), lambda i: (0, 0)),       # w_q (block diag)
            pl.BlockSpec((c, DIM_HEAD), lambda i: (0, 0)),       # w_k (block diag)
            pl.BlockSpec((c, DIM_HEAD), lambda i: (0, 0)),       # w_v (block diag)
            pl.BlockSpec((c, DIM_HEAD), lambda i: (0, 0)),       # w_out^T
            pl.BlockSpec((c, 1), lambda i: (0, 0)),              # b_out
        ],
        out_specs=pl.BlockSpec((1, c, n), lambda i: (i, 0, 0)),
    )

    out_flat = pl.pallas_call(
        conv_block_kernel,
        out_shape=jax.ShapeDtypeStruct((b, c, n), jnp.float32),
        grid_spec=grid_spec,
        compiler_params=pltpu.CompilerParams(
            dimension_semantics=("parallel",)),
    )(patches, scale_shift, wc_t, ga, wq_bd, wk_bd, wv_bd, wo_t, bo)

    # (B, C, N) -> (B, C, H, W) is already NCHW: no output transpose needed.
    return out_flat.reshape(b, c, h, w)


# --------------------------- pure-JAX reference ------------------------------
def reference(x_nchw, t_emb, p, w_hwio):
    x = jnp.transpose(x_nchw, (0, 2, 3, 1)).astype(jnp.float32)
    conv = lax.conv_general_dilated(
        x, w_hwio, (1, 1), "SAME",
        dimension_numbers=("NHWC", "HWIO", "NHWC"))

    def ln(t):
        mean = jnp.mean(t, axis=-1, keepdims=True)
        var = jnp.mean((t - mean) ** 2, axis=-1, keepdims=True)
        return (t - mean) * lax.rsqrt(var + LN_EPS)

    normed = ln(conv) * p["g_conv"][0]
    e = jax.nn.silu(t_emb) @ p["w_emb"] + p["b_emb"][0]
    scale, shift = e[:, :OUT_CH], e[:, OUT_CH:]
    normed = normed * (scale[:, None, None, :] + 1.0) + shift[:, None, None, :]
    act = jax.nn.silu(normed)

    xn = ln(act) * p["g_attn"][0]                                 # (B,H,W,C)
    bb, hh, ww, cc = xn.shape
    xn_f = xn.reshape(bb, hh * ww, NUM_HEADS, CG)
    q = jnp.einsum("bnhc,hcd->bhnd", xn_f, p["w_q"]) * ATTN_SCALE
    k = jnp.einsum("bnhc,hcd->bhnd", xn_f, p["w_k"])
    v = jnp.einsum("bnhc,hcd->bhnd", xn_f, p["w_v"])
    sim = jnp.einsum("bhnd,bhmd->bhnm", q, k)
    attn = jax.nn.softmax(sim, axis=-1)
    o = jnp.einsum("bhnm,bhmd->bhnd", attn, v)
    o = jnp.transpose(o, (0, 2, 1, 3)).reshape(bb, hh * ww, DIM_HEAD)
    y = o @ p["w_out"] + p["b_out"][0]
    res = (y + xn.reshape(bb, hh * ww, cc)).reshape(bb, hh, ww, cc)
    return jnp.transpose(res, (0, 3, 1, 2))


# --------------------------------- main --------------------------------------
if __name__ == "__main__":
    key = jax.random.PRNGKey(0)
    keys = jax.random.split(key, 10)

    # deterministic synthetic parameters (shapes dictated by the module)
    w_hwio = jax.random.normal(keys[0], (KSIZE, KSIZE, IN_CH, OUT_CH),
                               jnp.float32) * 0.2
    params = {
        "w_conv": w_hwio.reshape(R, OUT_CH),                      # im2col matmul weight
        "g_conv": jnp.ones((1, OUT_CH), jnp.float32),             # LayerNorm g init
        "w_emb": jax.random.normal(keys[1], (EMB_DIM, 2 * OUT_CH),
                                   jnp.float32) * 0.2,
        "b_emb": jax.random.normal(keys[2], (1, 2 * OUT_CH),
                                   jnp.float32) * 0.1,
        "g_attn": jnp.ones((1, OUT_CH), jnp.float32),             # Attention prenorm g
        "w_q": jax.random.normal(keys[3], (NUM_HEADS, CG, D_HEAD),
                                 jnp.float32) * 0.3,
        "w_k": jax.random.normal(keys[4], (NUM_HEADS, CG, D_HEAD),
                                 jnp.float32) * 0.3,
        "w_v": jax.random.normal(keys[5], (NUM_HEADS, CG, D_HEAD),
                                 jnp.float32) * 0.3,
        "w_out": jax.random.normal(keys[6], (DIM_HEAD, OUT_CH),
                                   jnp.float32) * 0.3,
        "b_out": jax.random.normal(keys[7], (1, OUT_CH),
                                   jnp.float32) * 0.1,
    }

    x = jax.random.normal(keys[8], (B, IN_CH, H, W), jnp.float32)   # NCHW input
    t_emb = jax.random.normal(keys[9], (B, EMB_DIM), jnp.float32)   # time embedding

    out = conv_block_2d(x, t_emb, params)
    out = jax.block_until_ready(out)
    assert out.shape == (B, OUT_CH, H, W), out.shape

    ref = jax.block_until_ready(reference(x, t_emb, params, w_hwio))
    # loose-ish tolerance: MXU default-precision f32 matmuls + approx reciprocal
    # may differ slightly from the XLA reference path.
    assert jnp.allclose(out, ref, atol=2e-2, rtol=2e-2), (
        float(jnp.max(jnp.abs(out - ref))))

    print("KERNEL_OK")
</pallas_src>

<mosaic_0001>
module attributes {stable_mosaic.version = 11 : i64} {
  func.func @conv_block_kernel(%arg0: i32, %arg1: memref<1x36x256xf32, #tpu.memory_space<vmem>>, %arg2: memref<1x16x1xf32, #tpu.memory_space<vmem>>, %arg3: memref<8x36xf32, #tpu.memory_space<vmem>>, %arg4: memref<8x1xf32, #tpu.memory_space<vmem>>, %arg5: memref<8x8xf32, #tpu.memory_space<vmem>>, %arg6: memref<8x8xf32, #tpu.memory_space<vmem>>, %arg7: memref<8x8xf32, #tpu.memory_space<vmem>>, %arg8: memref<8x8xf32, #tpu.memory_space<vmem>>, %arg9: memref<8x1xf32, #tpu.memory_space<vmem>>, %arg10: memref<1x8x256xf32, #tpu.memory_space<vmem>>) attributes {dimension_semantics = [#tpu.dimension_semantics<parallel>], iteration_bounds = array<i64: 2>, scalar_prefetch = 0 : i64, scratch_operands = 0 : i64, tpu.core_type = #tpu.core_type<tc>, window_params = [{transform_indices = @transform_0, window_bounds = array<i64: 1, 36, 256>}, {transform_indices = @transform_1, window_bounds = array<i64: 1, 16, 1>}, {pipeline_mode = #tpu.pipeline_mode<synchronous>, transform_indices = @transform_2, window_bounds = array<i64: 8, 36>}, {pipeline_mode = #tpu.pipeline_mode<synchronous>, transform_indices = @transform_3, window_bounds = array<i64: 8, 1>}, {pipeline_mode = #tpu.pipeline_mode<synchronous>, transform_indices = @transform_4, window_bounds = array<i64: 8, 8>}, {pipeline_mode = #tpu.pipeline_mode<synchronous>, transform_indices = @transform_5, window_bounds = array<i64: 8, 8>}, {pipeline_mode = #tpu.pipeline_mode<synchronous>, transform_indices = @transform_6, window_bounds = array<i64: 8, 8>}, {pipeline_mode = #tpu.pipeline_mode<synchronous>, transform_indices = @transform_7, window_bounds = array<i64: 8, 8>}, {pipeline_mode = #tpu.pipeline_mode<synchronous>, transform_indices = @transform_8, window_bounds = array<i64: 8, 1>}, {transform_indices = @transform_9, window_bounds = array<i64: 1, 8, 256>}]} {
    %c0 = arith.constant 0 : index
    %c0_0 = arith.constant 0 : index
    %c0_1 = arith.constant 0 : index
    %0 = vector.load %arg1[%c0, %c0_0, %c0_1] : memref<1x36x256xf32, #tpu.memory_space<vmem>>, vector<1x36x256xf32>
    %1 = vector.shape_cast %0 : vector<1x36x256xf32> to vector<36x256xf32>
    %c0_2 = arith.constant 0 : index
    %c0_3 = arith.constant 0 : index
    %2 = vector.load %arg3[%c0_2, %c0_3] : memref<8x36xf32, #tpu.memory_space<vmem>>, vector<8x36xf32>
    %cst = arith.constant dense<0.000000e+00> : vector<8x256xf32>
    %3 = tpu.matmul %2, %1, %cst {dimension_numbers = #tpu.dot_dimension_numbers<[1], [0], [0], [1], [0, 0, 1, 1], [], []>} : vector<8x36xf32>, vector<36x256xf32>, vector<8x256xf32> -> vector<8x256xf32>
    %c0_4 = arith.constant 0 : index
    %c0_5 = arith.constant 0 : index
    %c0_6 = arith.constant 0 : index
    %4 = vector.load %arg2[%c0_4, %c0_5, %c0_6] : memref<1x16x1xf32, #tpu.memory_space<vmem>>, vector<1x16x1xf32>
    %5 = vector.shape_cast %4 : vector<1x16x1xf32> to vector<16x1xf32>
    %6 = vector.extract_strided_slice %5 {offsets = [0, 0], sizes = [8, 1], strides = [1, 1]} : vector<16x1xf32> to vector<8x1xf32>
    %7 = vector.extract_strided_slice %5 {offsets = [8, 0], sizes = [8, 1], strides = [1, 1]} : vector<16x1xf32> to vector<8x1xf32>
    %cst_7 = arith.constant dense<0.000000e+00> : vector<256xf32>
    %8 = vector.multi_reduction <add>, %3, %cst_7 [0] : vector<8x256xf32> to vector<256xf32>
    %9 = vector.shape_cast %8 : vector<256xf32> to vector<1x256xf32>
    %cst_8 = arith.constant 8.000000e+00 : f32
    %10 = vector.broadcast %cst_8 : f32 to vector<1x256xf32>
    %11 = arith.divf %9, %10 : vector<1x256xf32>
    %12 = vector.broadcast %11 : vector<1x256xf32> to vector<8x256xf32>
    %13 = arith.subf %3, %12 : vector<8x256xf32>
    %14 = arith.mulf %13, %13 : vector<8x256xf32>
    %cst_9 = arith.constant dense<0.000000e+00> : vector<256xf32>
    %15 = vector.multi_reduction <add>, %14, %cst_9 [0] : vector<8x256xf32> to vector<256xf32>
    %16 = vector.shape_cast %15 : vector<256xf32> to vector<1x256xf32>
    %cst_10 = arith.constant 8.000000e+00 : f32
    %17 = vector.broadcast %cst_10 : f32 to vector<1x256xf32>
    %18 = arith.divf %16, %17 : vector<1x256xf32>
    %19 = vector.broadcast %11 : vector<1x256xf32> to vector<8x256xf32>
    %20 = arith.subf %3, %19 : vector<8x256xf32>
    %cst_11 = arith.constant 9.99999974E-6 : f32
    %21 = vector.broadcast %cst_11 : f32 to vector<1x256xf32>
    %22 = arith.addf %18, %21 : vector<1x256xf32>
    %23 = math.rsqrt %22 : vector<1x256xf32>
    %24 = vector.broadcast %23 : vector<1x256xf32> to vector<8x256xf32>
    %25 = arith.mulf %20, %24 : vector<8x256xf32>
    %26 = vector.broadcast %6 : vector<8x1xf32> to vector<8x256xf32>
    %27 = arith.mulf %25, %26 : vector<8x256xf32>
    %28 = vector.broadcast %7 : vector<8x1xf32> to vector<8x256xf32>
    %29 = arith.addf %27, %28 : vector<8x256xf32>
    %30 = arith.negf %29 : vector<8x256xf32>
    %31 = math.exp %30 : vector<8x256xf32>
    %cst_12 = arith.constant 1.000000e+00 : f32
    %32 = vector.broadcast %cst_12 : f32 to vector<8x256xf32>
    %33 = arith.addf %32, %31 : vector<8x256xf32>
    %34 = arith.divf %32, %33 : vector<8x256xf32>
    %35 = arith.mulf %29, %34 : vector<8x256xf32>
    %cst_13 = arith.constant dense<0.000000e+00> : vector<256xf32>
    %36 = vector.multi_reduction <add>, %35, %cst_13 [0] : vector<8x256xf32> to vector<256xf32>
    %37 = vector.shape_cast %36 : vector<256xf32> to vector<1x256xf32>
    %cst_14 = arith.constant 8.000000e+00 : f32
    %38 = vector.broadcast %cst_14 : f32 to vector<1x256xf32>
    %39 = arith.divf %37, %38 : vector<1x256xf32>
    %40 = vector.broadcast %39 : vector<1x256xf32> to vector<8x256xf32>
    %41 = arith.subf %35, %40 : vector<8x256xf32>
    %42 = arith.mulf %41, %41 : vector<8x256xf32>
    %cst_15 = arith.constant dense<0.000000e+00> : vector<256xf32>
    %43 = vector.multi_reduction <add>, %42, %cst_15 [0] : vector<8x256xf32> to vector<256xf32>
    %44 = vector.shape_cast %43 : vector<256xf32> to vector<1x256xf32>
    %cst_16 = arith.constant 8.000000e+00 : f32
    %45 = vector.broadcast %cst_16 : f32 to vector<1x256xf32>
    %46 = arith.divf %44, %45 : vector<1x256xf32>
    %47 = vector.broadcast %39 : vector<1x256xf32> to vector<8x256xf32>
    %48 = arith.subf %35, %47 : vector<8x256xf32>
    %cst_17 = arith.constant 9.99999974E-6 : f32
    %49 = vector.broadcast %cst_17 : f32 to vector<1x256xf32>
    %50 = arith.addf %46, %49 : vector<1x256xf32>
    %51 = math.rsqrt %50 : vector<1x256xf32>
    %52 = vector.broadcast %51 : vector<1x256xf32> to vector<8x256xf32>
    %53 = arith.mulf %48, %52 : vector<8x256xf32>
    %c0_18 = arith.constant 0 : index
    %c0_19 = arith.constant 0 : index
    %54 = vector.load %arg4[%c0_18, %c0_19] : memref<8x1xf32, #tpu.memory_space<vmem>>, vector<8x1xf32>
    %55 = vector.broadcast %54 : vector<8x1xf32> to vector<8x256xf32>
    %56 = arith.mulf %53, %55 : vector<8x256xf32>
    %57 = tpu.transpose %56, [1, 0] : vector<8x256xf32> -> vector<256x8xf32>
    %c0_20 = arith.constant 0 : index
    %c0_21 = arith.constant 0 : index
    %58 = vector.load %arg5[%c0_20, %c0_21] : memref<8x8xf32, #tpu.memory_space<vmem>>, vector<8x8xf32>
    %cst_22 = arith.constant dense<0.000000e+00> : vector<256x8xf32>
    %59 = tpu.matmul %57, %58, %cst_22 {dimension_numbers = #tpu.dot_dimension_numbers<[1], [0], [0], [1], [0, 0, 1, 1], [], []>} : vector<256x8xf32>, vector<8x8xf32>, vector<256x8xf32> -> vector<256x8xf32>
    %c0_23 = arith.constant 0 : index
    %c0_24 = arith.constant 0 : index
    %60 = vector.load %arg6[%c0_23, %c0_24] : memref<8x8xf32, #tpu.memory_space<vmem>>, vector<8x8xf32>
    %cst_25 = arith.constant dense<0.000000e+00> : vector<256x8xf32>
    %61 = tpu.matmul %57, %60, %cst_25 {dimension_numbers = #tpu.dot_dimension_numbers<[1], [0], [0], [1], [0, 0, 1, 1], [], []>} : vector<256x8xf32>, vector<8x8xf32>, vector<256x8xf32> -> vector<256x8xf32>
    %c0_26 = arith.constant 0 : index
    %c0_27 = arith.constant 0 : index
    %62 = vector.load %arg7[%c0_26, %c0_27] : memref<8x8xf32, #tpu.memory_space<vmem>>, vector<8x8xf32>
    %cst_28 = arith.constant dense<0.000000e+00> : vector<256x8xf32>
    %63 = tpu.matmul %57, %62, %cst_28 {dimension_numbers = #tpu.dot_dimension_numbers<[1], [0], [0], [1], [0, 0, 1, 1], [], []>} : vector<256x8xf32>, vector<8x8xf32>, vector<256x8xf32> -> vector<256x8xf32>
    %c0_29 = arith.constant 0 : index
    %c0_30 = arith.constant 0 : index
    %64 = vector.load %arg8[%c0_29, %c0_30] : memref<8x8xf32, #tpu.memory_space<vmem>>, vector<8x8xf32>
    %c0_31 = arith.constant 0 : index
    %c0_32 = arith.constant 0 : index
    %65 = vector.load %arg9[%c0_31, %c0_32] : memref<8x1xf32, #tpu.memory_space<vmem>>, vector<8x1xf32>
    %66 = vector.broadcast %65 : vector<8x1xf32> to vector<8x256xf32>
    %67 = arith.addf %56, %66 : vector<8x256xf32>
    %68 = vector.extract_strided_slice %59 {offsets = [0, 0], sizes = [256, 2], strides = [1, 1]} : vector<256x8xf32> to vector<256x2xf32>
    %69 = vector.extract_strided_slice %61 {offsets = [0, 0], sizes = [256, 2], strides = [1, 1]} : vector<256x8xf32> to vector<256x2xf32>
    %70 = vector.extract_strided_slice %63 {offsets = [0, 0], sizes = [256, 2], strides = [1, 1]} : vector<256x8xf32> to vector<256x2xf32>
    %cst_33 = arith.constant dense<0.000000e+00> : vector<256x256xf32>
    %71 = tpu.matmul %68, %69, %cst_33 {dimension_numbers = #tpu.dot_dimension_numbers<[1], [1], [0], [0], [0, 0, 1, 0], [], []>} : vector<256x2xf32>, vector<256x2xf32>, vector<256x256xf32> -> vector<256x256xf32>
    %cst_34 = arith.constant dense<0xFF800000> : vector<256xf32>
    %72 = vector.multi_reduction <maximumf>, %71, %cst_34 [1] : vector<256x256xf32> to vector<256xf32>
    %73 = vector.shape_cast %72 : vector<256xf32> to vector<256x1xf32>
    %74 = vector.broadcast %73 : vector<256x1xf32> to vector<256x256xf32>
    %75 = arith.subf %71, %74 : vector<256x256xf32>
    %76 = math.exp %75 : vector<256x256xf32>
    %cst_35 = arith.constant dense<0.000000e+00> : vector<256xf32>
    %77 = vector.multi_reduction <add>, %76, %cst_35 [1] : vector<256x256xf32> to vector<256xf32>
    %78 = vector.shape_cast %77 : vector<256xf32> to vector<256x1xf32>
    %79 = tpu.reciprocal %78 {approx = true} : vector<256x1xf32> -> vector<256x1xf32>
    %80 = vector.broadcast %79 : vector<256x1xf32> to vector<256x256xf32>
    %81 = arith.mulf %76, %80 : vector<256x256xf32>
    %cst_36 = arith.constant dense<0.000000e+00> : vector<256x2xf32>
    %82 = tpu.matmul %81, %70, %cst_36 {dimension_numbers = #tpu.dot_dimension_numbers<[1], [0], [0], [1], [0, 0, 1, 1], [], []>} : vector<256x256xf32>, vector<256x2xf32>, vector<256x2xf32> -> vector<256x2xf32>
    %83 = vector.extract_strided_slice %64 {offsets = [0, 0], sizes = [8, 2], strides = [1, 1]} : vector<8x8xf32> to vector<8x2xf32>
    %cst_37 = arith.constant dense<0.000000e+00> : vector<8x256xf32>
    %84 = tpu.matmul %83, %82, %cst_37 {dimension_numbers = #tpu.dot_dimension_numbers<[1], [1], [0], [0], [0, 0, 1, 0], [], []>} : vector<8x2xf32>, vector<256x2xf32>, vector<8x256xf32> -> vector<8x256xf32>
    %85 = arith.addf %67, %84 : vector<8x256xf32>
    %86 = vector.extract_strided_slice %59 {offsets = [0, 2], sizes = [256, 2], strides = [1, 1]} : vector<256x8xf32> to vector<256x2xf32>
    %87 = vector.extract_strided_slice %61 {offsets = [0, 2], sizes = [256, 2], strides = [1, 1]} : vector<256x8xf32> to vector<256x2xf32>
    %88 = vector.extract_strided_slice %63 {offsets = [0, 2], sizes = [256, 2], strides = [1, 1]} : vector<256x8xf32> to vector<256x2xf32>
    %cst_38 = arith.constant dense<0.000000e+00> : vector<256x256xf32>
    %89 = tpu.matmul %86, %87, %cst_38 {dimension_numbers = #tpu.dot_dimension_numbers<[1], [1], [0], [0], [0, 0, 1, 0], [], []>} : vector<256x2xf32>, vector<256x2xf32>, vector<256x256xf32> -> vector<256x256xf32>
    %cst_39 = arith.constant dense<0xFF800000> : vector<256xf32>
    %90 = vector.multi_reduction <maximumf>, %89, %cst_39 [1] : vector<256x256xf32> to vector<256xf32>
    %91 = vector.shape_cast %90 : vector<256xf32> to vector<256x1xf32>
    %92 = vector.broadcast %91 : vector<256x1xf32> to vector<256x256xf32>
    %93 = arith.subf %89, %92 : vector<256x256xf32>
    %94 = math.exp %93 : vector<256x256xf32>
    %cst_40 = arith.constant dense<0.000000e+00> : vector<256xf32>
    %95 = vector.multi_reduction <add>, %94, %cst_40 [1] : vector<256x256xf32> to vector<256xf32>
    %96 = vector.shape_cast %95 : vector<256xf32> to vector<256x1xf32>
    %97 = tpu.reciprocal %96 {approx = true} : vector<256x1xf32> -> vector<256x1xf32>
    %98 = vector.broadcast %97 : vector<256x1xf32> to vector<256x256xf32>
    %99 = arith.mulf %94, %98 : vector<256x256xf32>
    %cst_41 = arith.constant dense<0.000000e+00> : vector<256x2xf32>
    %100 = tpu.matmul %99, %88, %cst_41 {dimension_numbers = #tpu.dot_dimension_numbers<[1], [0], [0], [1], [0, 0, 1, 1], [], []>} : vector<256x256xf32>, vector<256x2xf32>, vector<256x2xf32> -> vector<256x2xf32>
    %101 = vector.extract_strided_slice %64 {offsets = [0, 2], sizes = [8, 2], strides = [1, 1]} : vector<8x8xf32> to vector<8x2xf32>
    %cst_42 = arith.constant dense<0.000000e+00> : vector<8x256xf32>
    %102 = tpu.matmul %101, %100, %cst_42 {dimension_numbers = #tpu.dot_dimension_numbers<[1], [1], [0], [0], [0, 0, 1, 0], [], []>} : vector<8x2xf32>, vector<256x2xf32>, vector<8x256xf32> -> vector<8x256xf32>
    %103 = arith.addf %85, %102 : vector<8x256xf32>
    %104 = vector.extract_strided_slice %59 {offsets = [0, 4], sizes = [256, 2], strides = [1, 1]} : vector<256x8xf32> to vector<256x2xf32>
    %105 = vector.extract_strided_slice %61 {offsets = [0, 4], sizes = [256, 2], strides = [1, 1]} : vector<256x8xf32> to vector<256x2xf32>
    %106 = vector.extract_strided_slice %63 {offsets = [0, 4], sizes = [256, 2], strides = [1, 1]} : vector<256x8xf32> to vector<256x2xf32>
    %cst_43 = arith.constant dense<0.000000e+00> : vector<256x256xf32>
    %107 = tpu.matmul %104, %105, %cst_43 {dimension_numbers = #tpu.dot_dimension_numbers<[1], [1], [0], [0], [0, 0, 1, 0], [], []>} : vector<256x2xf32>, vector<256x2xf32>, vector<256x256xf32> -> vector<256x256xf32>
    %cst_44 = arith.constant dense<0xFF800000> : vector<256xf32>
    %108 = vector.multi_reduction <maximumf>, %107, %cst_44 [1] : vector<256x256xf32> to vector<256xf32>
    %109 = vector.shape_cast %108 : vector<256xf32> to vector<256x1xf32>
    %110 = vector.broadcast %109 : vector<256x1xf32> to vector<256x256xf32>
    %111 = arith.subf %107, %110 : vector<256x256xf32>
    %112 = math.exp %111 : vector<256x256xf32>
    %cst_45 = arith.constant dense<0.000000e+00> : vector<256xf32>
    %113 = vector.multi_reduction <add>, %112, %cst_45 [1] : vector<256x256xf32> to vector<256xf32>
    %114 = vector.shape_cast %113 : vector<256xf32> to vector<256x1xf32>
    %115 = tpu.reciprocal %114 {approx = true} : vector<256x1xf32> -> vector<256x1xf32>
    %116 = vector.broadcast %115 : vector<256x1xf32> to vector<256x256xf32>
    %117 = arith.mulf %112, %116 : vector<256x256xf32>
    %cst_46 = arith.constant dense<0.000000e+00> : vector<256x2xf32>
    %118 = tpu.matmul %117, %106, %cst_46 {dimension_numbers = #tpu.dot_dimension_numbers<[1], [0], [0], [1], [0, 0, 1, 1], [], []>} : vector<256x256xf32>, vector<256x2xf32>, vector<256x2xf32> -> vector<256x2xf32>
    %119 = vector.extract_strided_slice %64 {offsets = [0, 4], sizes = [8, 2], strides = [1, 1]} : vector<8x8xf32> to vector<8x2xf32>
    %cst_47 = arith.constant dense<0.000000e+00> : vector<8x256xf32>
    %120 = tpu.matmul %119, %118, %cst_47 {dimension_numbers = #tpu.dot_dimension_numbers<[1], [1], [0], [0], [0, 0, 1, 0], [], []>} : vector<8x2xf32>, vector<256x2xf32>, vector<8x256xf32> -> vector<8x256xf32>
    %121 = arith.addf %103, %120 : vector<8x256xf32>
    %122 = vector.extract_strided_slice %59 {offsets = [0, 6], sizes = [256, 2], strides = [1, 1]} : vector<256x8xf32> to vector<256x2xf32>
    %123 = vector.extract_strided_slice %61 {offsets = [0, 6], sizes = [256, 2], strides = [1, 1]} : vector<256x8xf32> to vector<256x2xf32>
    %124 = vector.extract_strided_slice %63 {offsets = [0, 6], sizes = [256, 2], strides = [1, 1]} : vector<256x8xf32> to vector<256x2xf32>
    %cst_48 = arith.constant dense<0.000000e+00> : vector<256x256xf32>
    %125 = tpu.matmul %122, %123, %cst_48 {dimension_numbers = #tpu.dot_dimension_numbers<[1], [1], [0], [0], [0, 0, 1, 0], [], []>} : vector<256x2xf32>, vector<256x2xf32>, vector<256x256xf32> -> vector<256x256xf32>
    %cst_49 = arith.constant dense<0xFF800000> : vector<256xf32>
    %126 = vector.multi_reduction <maximumf>, %125, %cst_49 [1] : vector<256x256xf32> to vector<256xf32>
    %127 = vector.shape_cast %126 : vector<256xf32> to vector<256x1xf32>
    %128 = vector.broadcast %127 : vector<256x1xf32> to vector<256x256xf32>
    %129 = arith.subf %125, %128 : vector<256x256xf32>
    %130 = math.exp %129 : vector<256x256xf32>
    %cst_50 = arith.constant dense<0.000000e+00> : vector<256xf32>
    %131 = vector.multi_reduction <add>, %130, %cst_50 [1] : vector<256x256xf32> to vector<256xf32>
    %132 = vector.shape_cast %131 : vector<256xf32> to vector<256x1xf32>
    %133 = tpu.reciprocal %132 {approx = true} : vector<256x1xf32> -> vector<256x1xf32>
    %134 = vector.broadcast %133 : vector<256x1xf32> to vector<256x256xf32>
    %135 = arith.mulf %130, %134 : vector<256x256xf32>
    %cst_51 = arith.constant dense<0.000000e+00> : vector<256x2xf32>
    %136 = tpu.matmul %135, %124, %cst_51 {dimension_numbers = #tpu.dot_dimension_numbers<[1], [0], [0], [1], [0, 0, 1, 1], [], []>} : vector<256x256xf32>, vector<256x2xf32>, vector<256x2xf32> -> vector<256x2xf32>
    %137 = vector.extract_strided_slice %64 {offsets = [0, 6], sizes = [8, 2], strides = [1, 1]} : vector<8x8xf32> to vector<8x2xf32>
    %cst_52 = arith.constant dense<0.000000e+00> : vector<8x256xf32>
    %138 = tpu.matmul %137, %136, %cst_52 {dimension_numbers = #tpu.dot_dimension_numbers<[1], [1], [0], [0], [0, 0, 1, 0], [], []>} : vector<8x2xf32>, vector<256x2xf32>, vector<8x256xf32> -> vector<8x256xf32>
    %139 = arith.addf %121, %138 : vector<8x256xf32>
    %c0_53 = arith.constant 0 : index
    %c0_54 = arith.constant 0 : index
    %c0_55 = arith.constant 0 : index
    %140 = vector.load %arg10[%c0_53, %c0_54, %c0_55] : memref<1x8x256xf32, #tpu.memory_space<vmem>>, vector<1x8x256xf32>
    %141 = vector.shape_cast %140 : vector<1x8x256xf32> to vector<8x256xf32>
    %142 = vector.shape_cast %139 : vector<8x256xf32> to vector<1x8x256xf32>
    tpu.vector_store %arg10[%c0_53, %c0_54, %c0_55], %142 {strides = array<i32>} : memref<1x8x256xf32, #tpu.memory_space<vmem>>, vector<1x8x256xf32>,
    return
  }
  func.func @transform_0(%arg0: i32) -> (i32, i32, i32) {
    %c0_i32 = arith.constant 0 : i32
    %c0_i32_0 = arith.constant 0 : i32
    %c0_i32_1 = arith.constant 0 : i32
    return %arg0, %c0_i32, %c0_i32_0 : i32, i32, i32
  }
  func.func @transform_1(%arg0: i32) -> (i32, i32, i32) {
    %c0_i32 = arith.constant 0 : i32
    %c0_i32_0 = arith.constant 0 : i32
    %c0_i32_1 = arith.constant 0 : i32
    return %arg0, %c0_i32, %c0_i32_0 : i32, i32, i32
  }
  func.func @transform_2(%arg0: i32) -> (i32, i32) {
    %c0_i32 = arith.constant 0 : i32
    %c0_i32_0 = arith.constant 0 : i32
    %c0_i32_1 = arith.constant 0 : i32
    return %c0_i32, %c0_i32_0 : i32, i32
  }
  func.func @transform_3(%arg0: i32) -> (i32, i32) {
    %c0_i32 = arith.constant 0 : i32
    %c0_i32_0 = arith.constant 0 : i32
    %c0_i32_1 = arith.constant 0 : i32
    return %c0_i32, %c0_i32_0 : i32, i32
  }
  func.func @transform_4(%arg0: i32) -> (i32, i32) {
    %c0_i32 = arith.constant 0 : i32
    %c0_i32_0 = arith.constant 0 : i32
    %c0_i32_1 = arith.constant 0 : i32
    return %c0_i32, %c0_i32_0 : i32, i32
  }
  func.func @transform_5(%arg0: i32) -> (i32, i32) {
    %c0_i32 = arith.constant 0 : i32
    %c0_i32_0 = arith.constant 0 : i32
    %c0_i32_1 = arith.constant 0 : i32
    return %c0_i32, %c0_i32_0 : i32, i32
  }
  func.func @transform_6(%arg0: i32) -> (i32, i32) {
    %c0_i32 = arith.constant 0 : i32
    %c0_i32_0 = arith.constant 0 : i32
    %c0_i32_1 = arith.constant 0 : i32
    return %c0_i32, %c0_i32_0 : i32, i32
  }
  func.func @transform_7(%arg0: i32) -> (i32, i32) {
    %c0_i32 = arith.constant 0 : i32
    %c0_i32_0 = arith.constant 0 : i32
    %c0_i32_1 = arith.constant 0 : i32
    return %c0_i32, %c0_i32_0 : i32, i32
  }
  func.func @transform_8(%arg0: i32) -> (i32, i32) {
    %c0_i32 = arith.constant 0 : i32
    %c0_i32_0 = arith.constant 0 : i32
    %c0_i32_1 = arith.constant 0 : i32
    return %c0_i32, %c0_i32_0 : i32, i32
  }
  func.func @transform_9(%arg0: i32) -> (i32, i32, i32) {
    %c0_i32 = arith.constant 0 : i32
    %c0_i32_0 = arith.constant 0 : i32
    %c0_i32_1 = arith.constant 0 : i32
    return %arg0, %c0_i32, %c0_i32_0 : i32, i32, i32
  }
}

</mosaic_0001>

<llo_original>
// kernel: conv_block_2d.1
$region0: #{conv_block_2d.1}
  #allocation0 [shape = 'u32[]', space=smem, size = 0x4, offset = 0x4, fixed_abs, tag = 'smem constant byte address 0x4 - core index']
  #allocation1 [shape = 'u32[144,128]{1,0:T(1,128)}', space=vmem, size = 0x12000, scoped, tag = 'internal scratch']
  %s0 = inlined_call_operand.vmem [shape: f32[2,36,256], index: 0, kind: input, shape index: {}]
  %s1 = inlined_call_operand.vmem [shape: f32[2,16,1], index: 1, kind: input, shape index: {}]
  %s2 = inlined_call_operand.vmem [shape: f32[8,36], index: 2, kind: input, shape index: {}]
  %s3 = inlined_call_operand.vmem [shape: f32[8,1], index: 3, kind: input, shape index: {}]
  %s4 = inlined_call_operand.vmem [shape: f32[8,8], index: 4, kind: input, shape index: {}]
  %s5 = inlined_call_operand.vmem [shape: f32[8,8], index: 5, kind: input, shape index: {}]
  %s6 = inlined_call_operand.vmem [shape: f32[8,8], index: 6, kind: input, shape index: {}]
  %s7 = inlined_call_operand.vmem [shape: f32[8,8], index: 7, kind: input, shape index: {}]
  %s8 = inlined_call_operand.vmem [shape: f32[8,1], index: 8, kind: input, shape index: {}]
  %s9 = inlined_call_operand.vmem [shape: f32[2,8,256], index: 9, kind: output, shape index: {}]
  %s10 = sld [smem:[#allocation0]]
  $region69: #{conv_block_2d.1} parent=0
    _
  %s12 = ssub.s32 1, %s10
  %s13 = scalar_select 0, %s12, %s10
  loop: start=0, step=1, limit=4
  $region2: #{conv_block_2d.1} parent=0 // loop_pre_header
    _
  $region3: #{conv_block_2d.1} parent=0 // loop_header
    %s15 = sphi 0, %s19
    %p16 = scmp.ge.s32.totalorder %s15, 4
    %s25 = sphi 0, %s27
    %s28 = sphi 0, %s25
    %s29 = sphi 0, %s28
    %s45 = sphi 0, %s29
    %s51 = sphi 0, %s53
    %s54 = sphi 0, %s51
    %s55 = sphi 0, %s54
    %s71 = sphi 0, %s55
    %s75 = sphi 0, %s75
    %s77 = sphi 0, %s75
    %s78 = sphi 0, %s77
    %s92 = sphi 0, %s78
    %s96 = sphi 0, %s96
    %s98 = sphi 0, %s96
    %s99 = sphi 0, %s98
    %s113 = sphi 0, %s99
    %s117 = sphi 0, %s117
    %s119 = sphi 0, %s117
    %s120 = sphi 0, %s119
    %s134 = sphi 0, %s120
    %s138 = sphi 0, %s138
    %s140 = sphi 0, %s138
    %s141 = sphi 0, %s140
    %s155 = sphi 0, %s141
    %s159 = sphi 0, %s159
    %s161 = sphi 0, %s159
    %s162 = sphi 0, %s161
    %s176 = sphi 0, %s162
    %s180 = sphi 0, %s180
    %s182 = sphi 0, %s180
    %s183 = sphi 0, %s182
    %s197 = sphi 0, %s183
    %s201 = sphi 0, %s201
    %s203 = sphi 0, %s201
    %s204 = sphi 0, %s203
    %s218 = sphi 0, %s204
    %s224 = sphi 0, %s226
    %s227 = sphi 0, %s224
    %s228 = sphi 0, %s227
    %s244 = sphi 0, %s228
  $region4: #{conv_block_2d.1} parent=0 // loop_header_branch
    %18 = sbr.rel (%p16) target = $region8
  $region5: #{conv_block_2d.1} parent=0 // loop_body
    %s20 = ssub.s32 %s15, 1
    %s21 = ssub.s32 %s15, 2
    %s22 = sadd.s32 %s15, 1
    %s23 = ssub.s32 %s15, %s22
    %p24 = scmp.eq.s32.totalorder %s23, 0
    %s26 = sadd.s32 %s25, 1
    %s27 = scalar_select %p24, %s25, %s26
    %p30 = pneg %p24
    %p31 = scmp.eq.s32.totalorder %s15, 1
    %p32 = por %p30, %p31
    %p33 = scmp.ne.s32.totalorder %s25, %s28
    %p34 = scmp.eq.s32.totalorder %s15, 0
    %p35 = por %p33, %p34
    %p36 = scmp.ne.s32.totalorder %s25, %s28
    %p37 = scmp.eq.s32.totalorder %s20, 1
    %p38 = por %p36, %p37
    %p39 = scmp.ne.s32.totalorder %s28, %s29
    %p40 = scmp.eq.s32.totalorder %s20, 0
    %p41 = por %p39, %p40
    %p42 = scmp.ne.s32.totalorder %s28, %s29
    %p43 = scmp.eq.s32.totalorder %s21, 1
    %p44 = por %p42, %p43
    %p46 = scmp.ne.s32.totalorder %s29, %s45
    %p47 = scmp.eq.s32.totalorder %s21, 0
    %p48 = por %p46, %p47
    %s49 = ssub.s32 %s15, %s22
    %p50 = scmp.eq.s32.totalorder %s49, 0
    %s52 = sadd.s32 %s51, 1
    %s53 = scalar_select %p50, %s51, %s52
    %p56 = pneg %p50
    %p57 = scmp.eq.s32.totalorder %s15, 1
    %p58 = por %p56, %p57
    %p59 = scmp.ne.s32.totalorder %s51, %s54
    %p60 = scmp.eq.s32.totalorder %s15, 0
    %p61 = por %p59, %p60
    %p62 = scmp.ne.s32.totalorder %s51, %s54
    %p63 = scmp.eq.s32.totalorder %s20, 1
    %p64 = por %p62, %p63
    %p65 = scmp.ne.s32.totalorder %s54, %s55
    %p66 = scmp.eq.s32.totalorder %s20, 0
    %p67 = por %p65, %p66
    %p68 = scmp.ne.s32.totalorder %s54, %s55
    %p69 = scmp.eq.s32.totalorder %s21, 1
    %p70 = por %p68, %p69
    %p72 = scmp.ne.s32.totalorder %s55, %s71
    %p73 = scmp.eq.s32.totalorder %s21, 0
    %p74 = por %p72, %p73
    %s76 = sadd.s32 %s75, 1
    %p79 = scmp.eq.s32.totalorder %s15, 1
    %p80 = scmp.ne.s32.totalorder %s75, %s77
    %p81 = scmp.eq.s32.totalorder %s15, 0
    %p82 = por %p80, %p81
    %p83 = scmp.ne.s32.totalorder %s75, %s77
    %p84 = scmp.eq.s32.totalorder %s20, 1
    %p85 = por %p83, %p84
    %p86 = scmp.ne.s32.totalorder %s77, %s78
    %p87 = scmp.eq.s32.totalorder %s20, 0
    %p88 = por %p86, %p87
    %p89 = scmp.ne.s32.totalorder %s77, %s78
    %p90 = scmp.eq.s32.totalorder %s21, 1
    %p91 = por %p89, %p90
    %p93 = scmp.ne.s32.totalorder %s78, %s92
    %p94 = scmp.eq.s32.totalorder %s21, 0
    %p95 = por %p93, %p94
    %s97 = sadd.s32 %s96, 1
    %p100 = scmp.eq.s32.totalorder %s15, 1
    %p101 = scmp.ne.s32.totalorder %s96, %s98
    %p102 = scmp.eq.s32.totalorder %s15, 0
    %p103 = por %p101, %p102
    %p104 = scmp.ne.s32.totalorder %s96, %s98
    %p105 = scmp.eq.s32.totalorder %s20, 1
    %p106 = por %p104, %p105
    %p107 = scmp.ne.s32.totalorder %s98, %s99
    %p108 = scmp.eq.s32.totalorder %s20, 0
    %p109 = por %p107, %p108
    %p110 = scmp.ne.s32.totalorder %s98, %s99
    %p111 = scmp.eq.s32.totalorder %s21, 1
    %p112 = por %p110, %p111
    %p114 = scmp.ne.s32.totalorder %s99, %s113
    %p115 = scmp.eq.s32.totalorder %s21, 0
    %p116 = por %p114, %p115
    %s118 = sadd.s32 %s117, 1
    %p121 = scmp.eq.s32.totalorder %s15, 1
    %p122 = scmp.ne.s32.totalorder %s117, %s119
    %p123 = scmp.eq.s32.totalorder %s15, 0
    %p124 = por %p122, %p123
    %p125 = scmp.ne.s32.totalorder %s117, %s119
    %p126 = scmp.eq.s32.totalorder %s20, 1
    %p127 = por %p125, %p126
    %p128 = scmp.ne.s32.totalorder %s119, %s120
    %p129 = scmp.eq.s32.totalorder %s20, 0
    %p130 = por %p128, %p129
    %p131 = scmp.ne.s32.totalorder %s119, %s120
    %p132 = scmp.eq.s32.totalorder %s21, 1
    %p133 = por %p131, %p132
    %p135 = scmp.ne.s32.totalorder %s120, %s134
    %p136 = scmp.eq.s32.totalorder %s21, 0
    %p137 = por %p135, %p136
    %s139 = sadd.s32 %s138, 1
    %p142 = scmp.eq.s32.totalorder %s15, 1
    %p143 = scmp.ne.s32.totalorder %s138, %s140
    %p144 = scmp.eq.s32.totalorder %s15, 0
    %p145 = por %p143, %p144
    %p146 = scmp.ne.s32.totalorder %s138, %s140
    %p147 = scmp.eq.s32.totalorder %s20, 1
    %p148 = por %p146, %p147
    %p149 = scmp.ne.s32.totalorder %s140, %s141
    %p150 = scmp.eq.s32.totalorder %s20, 0
    %p151 = por %p149, %p150
    %p152 = scmp.ne.s32.totalorder %s140, %s141
    %p153 = scmp.eq.s32.totalorder %s21, 1
    %p154 = por %p152, %p153
    %p156 = scmp.ne.s32.totalorder %s141, %s155
    %p157 = scmp.eq.s32.totalorder %s21, 0
    %p158 = por %p156, %p157
    %s160 = sadd.s32 %s159, 1
    %p163 = scmp.eq.s32.totalorder %s15, 1
    %p164 = scmp.ne.s32.totalorder %s159, %s161
    %p165 = scmp.eq.s32.totalorder %s15, 0
    %p166 = por %p164, %p165
    %p167 = scmp.ne.s32.totalorder %s159, %s161
    %p168 = scmp.eq.s32.totalorder %s20, 1
    %p169 = por %p167, %p168
    %p170 = scmp.ne.s32.totalorder %s161, %s162
    %p171 = scmp.eq.s32.totalorder %s20, 0
    %p172 = por %p170, %p171
    %p173 = scmp.ne.s32.totalorder %s161, %s162
    %p174 = scmp.eq.s32.totalorder %s21, 1
    %p175 = por %p173, %p174
    %p177 = scmp.ne.s32.totalorder %s162, %s176
    %p178 = scmp.eq.s32.totalorder %s21, 0
    %p179 = por %p177, %p178
    %s181 = sadd.s32 %s180, 1
    %p184 = scmp.eq.s32.totalorder %s15, 1
    %p185 = scmp.ne.s32.totalorder %s180, %s182
    %p186 = scmp.eq.s32.totalorder %s15, 0
    %p187 = por %p185, %p186
    %p188 = scmp.ne.s32.totalorder %s180, %s182
    %p189 = scmp.eq.s32.totalorder %s20, 1
    %p190 = por %p188, %p189
    %p191 = scmp.ne.s32.totalorder %s182, %s183
    %p192 = scmp.eq.s32.totalorder %s20, 0
    %p193 = por %p191, %p192
    %p194 = scmp.ne.s32.totalorder %s182, %s183
    %p195 = scmp.eq.s32.totalorder %s21, 1
    %p196 = por %p194, %p195
    %p198 = scmp.ne.s32.totalorder %s183, %s197
    %p199 = scmp.eq.s32.totalorder %s21, 0
    %p200 = por %p198, %p199
    %s202 = sadd.s32 %s201, 1
    %p205 = scmp.eq.s32.totalorder %s15, 1
    %p206 = scmp.ne.s32.totalorder %s201, %s203
    %p207 = scmp.eq.s32.totalorder %s15, 0
    %p208 = por %p206, %p207
    %p209 = scmp.ne.s32.totalorder %s201, %s203
    %p210 = scmp.eq.s32.totalorder %s20, 1
    %p211 = por %p209, %p210
    %p212 = scmp.ne.s32.totalorder %s203, %s204
    %p213 = scmp.eq.s32.totalorder %s20, 0
    %p214 = por %p212, %p213
    %p215 = scmp.ne.s32.totalorder %s203, %s204
    %p216 = scmp.eq.s32.totalorder %s21, 1
    %p217 = por %p215, %p216
    %p219 = scmp.ne.s32.totalorder %s204, %s218
    %p220 = scmp.eq.s32.totalorder %s21, 0
    %p221 = por %p219, %p220
    %s222 = ssub.s32 %s15, %s22
    %p223 = scmp.eq.s32.totalorder %s222, 0
    %s225 = sadd.s32 %s224, 1
    %s226 = scalar_select %p223, %s224, %s225
    %p229 = pneg %p223
    %p230 = scmp.eq.s32.totalorder %s15, 1
    %p231 = por %p229, %p230
    %p232 = scmp.ne.s32.totalorder %s224, %s227
    %p233 = scmp.eq.s32.totalorder %s15, 0
    %p234 = por %p232, %p233
    %p235 = scmp.ne.s32.totalorder %s224, %s227
    %p236 = scmp.eq.s32.totalorder %s20, 1
    %p237 = por %p235, %p236
    %p238 = scmp.ne.s32.totalorder %s227, %s228
    %p239 = scmp.eq.s32.totalorder %s20, 0
    %p240 = por %p238, %p239
    %p241 = scmp.ne.s32.totalorder %s227, %s228
    %p242 = scmp.eq.s32.totalorder %s21, 1
    %p243 = por %p241, %p242
    %p245 = scmp.ne.s32.totalorder %s228, %s244
    %p246 = scmp.eq.s32.totalorder %s21, 0
    %p247 = por %p245, %p246
    %p248 = scmp.le.s32.totalorder 1, %s15
    %p249 = scmp.lt.s32.totalorder %s15, 3
    %p250 = pnand %p248, %p249
    %p251 = pneg %p250
    // Predicated region
    $region9: #{conv_block_2d.1} parent=5 // pred_check
      _
    $region10: #{conv_block_2d.1} parent=5 // pred_check_branch
      %253 = sbr.rel (%p250) target = $region12
    $region11: #{conv_block_2d.1} parent=5 // pred_region
      %s254 = ssub.s32 %s15, 1
      // Predicated region
      $region13: #{conv_block_2d.1} parent=11 // pred_check
        %p255 = pneg %p88
      $region14: #{conv_block_2d.1} parent=11 // pred_check_branch
        %257 = sbr.rel (%p255) target = $region16
      $region15: #{conv_block_2d.1} parent=11 // pred_region
        _
      $region16: #{conv_block_2d.1} parent=11 // pred_fallthru
        _
      // Predicated region
      $region17: #{conv_block_2d.1} parent=11 // pred_check
        %p258 = pneg %p109
      $region18: #{conv_block_2d.1} parent=11 // pred_check_branch
        %260 = sbr.rel (%p258) target = $region20
      $region19: #{conv_block_2d.1} parent=11 // pred_region
        _
      $region20: #{conv_block_2d.1} parent=11 // pred_fallthru
        _
      // Predicated region
      $region21: #{conv_block_2d.1} parent=11 // pred_check
        %p261 = pneg %p130
      $region22: #{conv_block_2d.1} parent=11 // pred_check_branch
        %263 = sbr.rel (%p261) target = $region24
      $region23: #{conv_block_2d.1} parent=11 // pred_region
        _
      $region24: #{conv_block_2d.1} parent=11 // pred_fallthru
        _
      // Predicated region
      $region25: #{conv_block_2d.1} parent=11 // pred_check
        %p264 = pneg %p151
      $region26: #{conv_block_2d.1} parent=11 // pred_check_branch
        %266 = sbr.rel (%p264) target = $region28
      $region27: #{conv_block_2d.1} parent=11 // pred_region
        _
      $region28: #{conv_block_2d.1} parent=11 // pred_fallthru
        _
      // Predicated region
      $region29: #{conv_block_2d.1} parent=11 // pred_check
        %p267 = pneg %p172
      $region30: #{conv_block_2d.1} parent=11 // pred_check_branch
        %269 = sbr.rel (%p267) target = $region32
      $region31: #{conv_block_2d.1} parent=11 // pred_region
        _
      $region32: #{conv_block_2d.1} parent=11 // pred_fallthru
        _
      // Predicated region
      $region33: #{conv_block_2d.1} parent=11 // pred_check
        %p270 = pneg %p193
      $region34: #{conv_block_2d.1} parent=11 // pred_check_branch
        %272 = sbr.rel (%p270) target = $region36
      $region35: #{conv_block_2d.1} parent=11 // pred_region
        _
      $region36: #{conv_block_2d.1} parent=11 // pred_fallthru
        _
      // Predicated region
      $region37: #{conv_block_2d.1} parent=11 // pred_check
        %p273 = pneg %p214
      $region38: #{conv_block_2d.1} parent=11 // pred_check_branch
        %275 = sbr.rel (%p273) target = $region40
      $region39: #{conv_block_2d.1} parent=11 // pred_region
        _
      $region40: #{conv_block_2d.1} parent=11 // pred_fallthru
        _
    $region12: #{conv_block_2d.1} parent=5 // pred_fallthru
      _
    %p276 = scmp.lt.s32.totalorder %s15, 2
    // Predicated region
    $region41: #{conv_block_2d.1} parent=5 // pred_check
      %p277 = pneg %p276
    $region42: #{conv_block_2d.1} parent=5 // pred_check_branch
      %279 = sbr.rel (%p277) target = $region44
    $region43: #{conv_block_2d.1} parent=5 // pred_region
      // Predicated region
      $region45: #{conv_block_2d.1} parent=43 // pred_check
        %p280 = pneg %p35
      $region46: #{conv_block_2d.1} parent=43 // pred_check_branch
        %282 = sbr.rel (%p280) target = $region48
      $region47: #{conv_block_2d.1} parent=43 // pred_region
        %p283 = scmp.lt.s32.totalorder %s15, 1
        %s284 = scalar_select %p283, %s15, 1
        %s285 = smul.addr %s284, 10
        %s286 = smul.addr %s285, 8
        %s287 = scalar_lea.vmem %s0, %s286
      $region48: #{conv_block_2d.1} parent=43 // pred_fallthru
        _
      // Predicated region
      $region49: #{conv_block_2d.1} parent=43 // pred_check
        %p288 = pneg %p61
      $region50: #{conv_block_2d.1} parent=43 // pred_check_branch
        %290 = sbr.rel (%p288) target = $region52
      $region51: #{conv_block_2d.1} parent=43 // pred_region
        %p291 = scmp.lt.s32.totalorder %s15, 1
        %s292 = scalar_select %p291, %s15, 1
        %s293 = smul.addr %s292, 2
        %s294 = smul.addr %s293, 8
        %s295 = scalar_lea.vmem %s1, %s294
      $region52: #{conv_block_2d.1} parent=43 // pred_fallthru
        _
    $region44: #{conv_block_2d.1} parent=5 // pred_fallthru
      _
    %p296 = scmp.le.s32.totalorder 1, %s15
    %p297 = scmp.lt.s32.totalorder %s15, 3
    %p298 = pnand %p296, %p297
    %p299 = pneg %p298
    // Predicated region
    $region53: #{conv_block_2d.1} parent=5 // pred_check
      _
    $region54: #{conv_block_2d.1} parent=5 // pred_check_branch
      %301 = sbr.rel (%p298) target = $region56
    $region55: #{conv_block_2d.1} parent=5 // pred_region
      %s302 = ssub.s32 %s15, 1
      %p303 = scmp.lt.s32.totalorder %s20, 1
      %s304 = scalar_select %p303, %s20, 1
      %s305 = smul.addr %s304, 10
      %s306 = smul.addr %s305, 8
      %s307 = scalar_lea.vmem %s0, %s306
      %p308 = pneg %p41
      %p309 = pneg %p38
      %p310 = scmp.lt.s32.totalorder %s20, 1
      %s311 = scalar_select %p310, %s20, 1
      %s312 = smul.addr %s311, 2
      %s313 = smul.addr %s312, 8
      %s314 = scalar_lea.vmem %s1, %s313
      %p315 = pneg %p67
      %p316 = pneg %p64
      %p317 = pneg %p88
      %p318 = pneg %p85
      %p319 = pneg %p109
      %p320 = pneg %p106
      %p321 = pneg %p130
      %p322 = pneg %p127
      %p323 = pneg %p151
      %p324 = pneg %p148
      %p325 = pneg %p172
      %p326 = pneg %p169
      %p327 = pneg %p193
      %p328 = pneg %p190
      %p329 = pneg %p214
      %p330 = pneg %p211
      %p331 = pneg %p240
      %p332 = pneg %p237
      %p333 = scmp.lt.s32.totalorder %s20, 1
      %s334 = scalar_select %p333, %s20, 1
      %s335 = smul.addr %s334, 2
      %s336 = smul.addr %s335, 8
      %s337 = scalar_lea.vmem %s9, %s336
      %p338 = scmp.lt.s32.totalorder %s20, 1
      %s339 = scalar_select %p338, %s20, 1
      %s340 = smul.addr %s339, 10
      %s341 = smul.addr %s340, 8
      %s342 = scalar_lea.vmem %s0, %s341
      %p343 = scmp.lt.s32.totalorder %s20, 1
      %s344 = scalar_select %p343, %s20, 1
      %s345 = smul.addr %s344, 2
      %s346 = smul.addr %s345, 8
      %s347 = scalar_lea.vmem %s1, %s346
      %p348 = scmp.lt.s32.totalorder %s20, 1
      %s349 = scalar_select %p348, %s20, 1
      %s350 = smul.addr %s349, 2
      %s351 = smul.addr %s350, 8
      %s352 = scalar_lea.vmem %s9, %s351
      %v353 = vld [vmem:[%s342] sm:$0xff]
      %v354 = vld [vmem:[%s342 + $0x8] sm:$0xff]
      %v355 = vld [vmem:[%s342 + $0x10] sm:$0xff]
      %v356 = vld [vmem:[%s342 + $0x18] sm:$0xff]
      %v357 = vld [vmem:[%s342 + $0x20] sm:$0xff]
      %v358 = vld [vmem:[%s342 + $0x28] sm:$0xff]
      %v359 = vld [vmem:[%s342 + $0x30] sm:$0xff]
      %v360 = vld [vmem:[%s342 + $0x38] sm:$0xff]
      %v361 = vld [vmem:[%s342 + $0x40] sm:$0xf]
      %v362 = vld [vmem:[%s342 + $0x48] sm:$0xf]
      %v363 = vld [vmem:[%s2] sm:$0xff]
      %vm364 = vcmask 293888
      %v366 = vsel %vm364, %v363, 0
      %vm368 = vcmask 1043456
      %v370 = vsel %vm368, %v361, 0
      %v373 = vsel %vm368, %v362, 0
      %375 = vmatprep.subr.mxu0 0.0
      %376 = vmatpush1.msra.mxu0 0.0
      %377 = vmatprep.subr.mxu0 0.0
      %378 = vmatpush1.msra.mxu0 0.0
      %379 = vmatprep.subr.mxu0 0.0
      %380 = vmatpush1.msra.mxu0 0.0
      %381 = vmatprep.subr.mxu0 0.0
      %382 = vmatpush1.msra.mxu0 0.0
      %383 = vmatprep.subr.mxu0 0.0
      %384 = vmatpush1.msra.mxu0 0.0
      %385 = vmatprep.subr.mxu0 0.0
      %386 = vmatpush1.msra.mxu0 0.0
      %387 = vmatprep.subr.mxu0 0.0
      %388 = vmatpush1.msra.mxu0 0.0
      %389 = vmatprep.subr.mxu0 0.0
      %390 = vmatpush1.msra.mxu0 0.0
      %391 = vmatprep.subr.mxu0 0.0
      %392 = vmatpush1.msra.mxu0 0.0
      %393 = vmatprep.subr.mxu0 0.0
      %394 = vmatpush1.msra.mxu0 0.0
      %395 = vmatprep.subr.mxu0 0.0
      %396 = vmatpush1.msra.mxu0 0.0
      %397 = vmatprep.subr.mxu0 %v373
      %398 = vmatpush1.msra.mxu0 %v370
      %399 = vmatprep.subr.mxu0 %v360
      %400 = vmatpush1.msra.mxu0 %v359
      %401 = vmatprep.subr.mxu0 %v358
      %402 = vmatpush1.msra.mxu0 %v357
      %403 = vmatprep.subr.mxu0 %v356
      %404 = vmatpush1.msra.mxu0 %v355
      %405 = vmatprep.subr.mxu0 %v354
      %406 = vmatpush1.msra.mxu0 %v353
      %407 = vmatprep.subr.mxu0 0.0
      %408 = vmatpush2.msra.mxu0 0.0
      %409 = vmatprep.subr.mxu0 0.0
      %410 = vmatpush2.msra.mxu0 0.0
      %411 = vmatprep.subr.mxu0 0.0
      %412 = vmatpush2.msra.mxu0 0.0
      %413 = vmatprep.subr.mxu0 0.0
      %414 = vmatpush2.msra.mxu0 0.0
      %415 = vmatprep.subr.mxu0 0.0
      %416 = vmatpush2.msra.mxu0 0.0
      %417 = vmatprep.subr.mxu0 0.0
      %418 = vmatpush2.msra.mxu0 0.0
      %419 = vmatprep.subr.mxu0 0.0
      %420 = vmatpush2.msra.mxu0 0.0
      %421 = vmatprep.subr.mxu0 0.0
      %422 = vmatpush2.msra.mxu0 0.0
      %423 = vmatprep.subr.mxu0 0.0
      %424 = vmatpush2.msra.mxu0 0.0
      %425 = vmatprep.subr.mxu0 0.0
      %426 = vmatpush2.msra.mxu0 0.0
      %427 = vmatprep.subr.mxu0 0.0
      %428 = vmatpush2.msra.mxu0 0.0
      %429 = vmatprep.subr.mxu0 0.0
      %430 = vmatpush2.msra.mxu0 0.0
      %431 = vmatprep.subr.mxu0 0.0
      %432 = vmatpush2.msra.mxu0 0.0
      %433 = vmatprep.subr.mxu0 0.0
      %434 = vmatpush2.msra.mxu0 0.0
      %435 = vmatprep.subr.mxu0 0.0
      %436 = vmatpush2.msra.mxu0 0.0
      %437 = vmatprep.subr.mxu0 0.0
      %438 = vmatpush2.msra.mxu0 0.0
      %439 = vmatprep.mubr.f32.mxu0 0.0
      %440 = vmatmul.mubr.f32.gmra.mxu0 %v366
      %v441 = vpop.f32.mrf.mxu0
      %v442 = vadd.f32 0.0, %v441
      %v443 = vpop.f32.mrf.mxu0
      %v444 = vadd.f32 0.0, %v443
      %445 = vdwg.mxu0
      %v446 = vld [vmem:[%s347] sm:$0xff]
      %v447 = vld [vmem:[%s347 + $0x8] sm:$0xff]
      %v448 = vrot.slane %v442, 4
      %v449 = vadd.f32 %v442, %v448
      %v450 = vrot.slane %v449, 2
      %v451 = vadd.f32 %v449, %v450
      %v452 = vrot.slane %v451, 1
      %v453 = vadd.f32 %v451, %v452
      %v454 = vrot.slane %v444, 4
      %v455 = vadd.f32 %v444, %v454
      %v456 = vrot.slane %v455, 2
      %v457 = vadd.f32 %v455, %v456
      %v458 = vrot.slane %v457, 1
      %v459 = vadd.f32 %v457, %v458
      %v460 = vrcp.pop 8.0
      %v461 = vmul.f32 %v453, %v460
      %v462 = vmul.f32 %v459, %v460
      %v463 = vsub.f32 %v442, %v461
      %v464 = vsub.f32 %v444, %v462
      %v465 = vmul.f32 %v463, %v463
      %v466 = vmul.f32 %v464, %v464
      %v467 = vrot.slane %v465, 4
      %v468 = vadd.f32 %v465, %v467
      %v469 = vrot.slane %v468, 2
      %v470 = vadd.f32 %v468, %v469
      %v471 = vrot.slane %v470, 1
      %v472 = vadd.f32 %v470, %v471
      %v473 = vrot.slane %v466, 4
      %v474 = vadd.f32 %v466, %v473
      %v475 = vrot.slane %v474, 2
      %v476 = vadd.f32 %v474, %v475
      %v477 = vrot.slane %v476, 1
      %v478 = vadd.f32 %v476, %v477
      %v479 = vmul.f32 %v472, %v460
      %v480 = vmul.f32 %v478, %v460
      %v481 = vadd.f32 %v479, 1e-05
      %v482 = vadd.f32 %v480, 1e-05
      %v483 = vrsqrt.pop %v481
      %v484 = vrsqrt.pop %v482
      %v485 = vmul.f32 %v463, %v483
      %v486 = vmul.f32 %v464, %v484
      %488 = vset.pattern.permute.xlu0 0
      %489 = vperm.xlu0 %488, %v446
      %v490 = vpop.permute.xlu0 %489
      %v492 = vmul.f32 %v485, %v490
      %v493 = vmul.f32 %v486, %v490
      %495 = vset.pattern.permute.xlu0 0
      %496 = vperm.xlu0 %495, %v447
      %v497 = vpop.permute.xlu0 %496
      %v499 = vadd.f32 %v492, %v497
      %v500 = vadd.f32 %v493, %v497
      %v501 = vxor.u32 %v499, 2147483648
      %v502 = vxor.u32 %v500, 2147483648
      %v503 = vmul.f32 %v501, 1.442695
      %v504 = vpow.pop %v503
      %v505 = vmul.f32 %v502, 1.442695
      %v506 = vpow.pop %v505
      %v507 = vadd.f32 %v504, 1.0
      %v508 = vadd.f32 %v506, 1.0
      %v509 = vrcp.pop %v507
      %v510 = vmul.f32 1.0, %v509
      %v511 = vrcp.pop %v508
      %v512 = vmul.f32 1.0, %v511
      %v513 = vmul.f32 %v499, %v510
      %v514 = vmul.f32 %v500, %v512
      %v515 = vrot.slane %v513, 4
      %v516 = vadd.f32 %v513, %v515
      %v517 = vrot.slane %v516, 2
      %v518 = vadd.f32 %v516, %v517
      %v519 = vrot.slane %v518, 1
      %v520 = vadd.f32 %v518, %v519
      %v521 = vrot.slane %v514, 4
      %v522 = vadd.f32 %v514, %v521
      %v523 = vrot.slane %v522, 2
      %v524 = vadd.f32 %v522, %v523
      %v525 = vrot.slane %v524, 1
      %v526 = vadd.f32 %v524, %v525
      %v527 = vmul.f32 %v520, %v460
      %v528 = vmul.f32 %v526, %v460
      %v529 = vsub.f32 %v513, %v527
      %v530 = vsub.f32 %v514, %v528
      %v531 = vmul.f32 %v529, %v529
      %v532 = vmul.f32 %v530, %v530
      %v533 = vrot.slane %v531, 4
      %v534 = vadd.f32 %v531, %v533
      %v535 = vrot.slane %v534, 2
      %v536 = vadd.f32 %v534, %v535
      %v537 = vrot.slane %v536, 1
      %v538 = vadd.f32 %v536, %v537
      %v539 = vrot.slane %v532, 4
      %v540 = vadd.f32 %v532, %v539
      %v541 = vrot.slane %v540, 2
      %v542 = vadd.f32 %v540, %v541
      %v543 = vrot.slane %v542, 1
      %v544 = vadd.f32 %v542, %v543
      %v545 = vmul.f32 %v538, %v460
      %v546 = vmul.f32 %v544, %v460
      %v547 = vadd.f32 %v545, 1e-05
      %v548 = vadd.f32 %v546, 1e-05
      %v549 = vrsqrt.pop %v547
      %v550 = vrsqrt.pop %v548
      %v551 = vmul.f32 %v529, %v549
      %v552 = vmul.f32 %v530, %v550
      %v553 = vld [vmem:[%s3] sm:$0xff]
      %555 = vset.pattern.permute.xlu0 0
      %556 = vperm.xlu0 %555, %v553
      %v557 = vpop.permute.xlu0 %556
      %v559 = vmul.f32 %v551, %v557
      %v560 = vmul.f32 %v552, %v557
      %561 = vxpose.xlu0.b32.start [1/16] %v559, 128
      %562 = vxpose.xlu0.b32.cont [2/16] 0.0, 128
      %563 = vxpose.xlu0.b32.cont [3/16] 0.0, 128
      %564 = vxpose.xlu0.b32.cont [4/16] 0.0, 128
      %565 = vxpose.xlu0.b32.cont [5/16] 0.0, 128
      %566 = vxpose.xlu0.b32.cont [6/16] 0.0, 128
      %567 = vxpose.xlu0.b32.cont [7/16] 0.0, 128
      %568 = vxpose.xlu0.b32.cont [8/16] 0.0, 128
      %569 = vxpose.xlu0.b32.cont [9/16] 0.0, 128
      %570 = vxpose.xlu0.b32.cont [10/16] 0.0, 128
      %571 = vxpose.xlu0.b32.cont [11/16] 0.0, 128
      %572 = vxpose.xlu0.b32.cont [12/16] 0.0, 128
      %573 = vxpose.xlu0.b32.cont [13/16] 0.0, 128
      %574 = vxpose.xlu0.b32.cont [14/16] 0.0, 128
      %575 = vxpose.xlu0.b32.cont [15/16] 0.0, 128
      %576 = vxpose.xlu0.b32.end [16/16] 0.0, 128
      %v577 = vpop.trf.xlu0
      %v578 = vpop.trf.xlu0
      %v579 = vpop.trf.xlu0
      %v580 = vpop.trf.xlu0
      %v581 = vpop.trf.xlu0
      %v582 = vpop.trf.xlu0
      %v583 = vpop.trf.xlu0
      %v584 = vpop.trf.xlu0
      %v585 = vpop.trf.xlu0
      %v586 = vpop.trf.xlu0
      %v587 = vpop.trf.xlu0
      %v588 = vpop.trf.xlu0
      %v589 = vpop.trf.xlu0
      %v590 = vpop.trf.xlu0
      %v591 = vpop.trf.xlu0
      %v592 = vpop.trf.xlu0
      %593 = vxpose.xlu0.b32.start [1/16] %v560, 128
      %594 = vxpose.xlu0.b32.cont [2/16] 0.0, 128
      %595 = vxpose.xlu0.b32.cont [3/16] 0.0, 128
      %596 = vxpose.xlu0.b32.cont [4/16] 0.0, 128
      %597 = vxpose.xlu0.b32.cont [5/16] 0.0, 128
      %598 = vxpose.xlu0.b32.cont [6/16] 0.0, 128
      %599 = vxpose.xlu0.b32.cont [7/16] 0.0, 128
      %600 = vxpose.xlu0.b32.cont [8/16] 0.0, 128
      %601 = vxpose.xlu0.b32.cont [9/16] 0.0, 128
      %602 = vxpose.xlu0.b32.cont [10/16] 0.0, 128
      %603 = vxpose.xlu0.b32.cont [11/16] 0.0, 128
      %604 = vxpose.xlu0.b32.cont [12/16] 0.0, 128
      %605 = vxpose.xlu0.b32.cont [13/16] 0.0, 128
      %606 = vxpose.xlu0.b32.cont [14/16] 0.0, 128
      %607 = vxpose.xlu0.b32.cont [15/16] 0.0, 128
      %608 = vxpose.xlu0.b32.end [16/16] 0.0, 128
      %v609 = vpop.trf.xlu0
      %v610 = vpop.trf.xlu0
      %v611 = vpop.trf.xlu0
      %v612 = vpop.trf.xlu0
      %v613 = vpop.trf.xlu0
      %v614 = vpop.trf.xlu0
      %v615 = vpop.trf.xlu0
      %v616 = vpop.trf.xlu0
      %v617 = vpop.trf.xlu0
      %v618 = vpop.trf.xlu0
      %v619 = vpop.trf.xlu0
      %v620 = vpop.trf.xlu0
      %v621 = vpop.trf.xlu0
      %v622 = vpop.trf.xlu0
      %v623 = vpop.trf.xlu0
      %v624 = vpop.trf.xlu0
      %v625 = vld [vmem:[%s4] sm:$0xff]
      %vm626 = vcmask 64512
      %v628 = vsel %vm626, %v577, 0
      %v631 = vsel %vm626, %v578, 0
      %v634 = vsel %vm626, %v579, 0
      %v637 = vsel %vm626, %v580, 0
      %v640 = vsel %vm626, %v581, 0
      %v643 = vsel %vm626, %v582, 0
      %v646 = vsel %vm626, %v583, 0
      %v649 = vsel %vm626, %v584, 0
      %v652 = vsel %vm626, %v585, 0
      %v655 = vsel %vm626, %v586, 0
      %v658 = vsel %vm626, %v587, 0
      %v661 = vsel %vm626, %v588, 0
      %v664 = vsel %vm626, %v589, 0
      %v667 = vsel %vm626, %v590, 0
      %v670 = vsel %vm626, %v591, 0
      %v673 = vsel %vm626, %v592, 0
      %v676 = vsel %vm626, %v609, 0
      %v679 = vsel %vm626, %v610, 0
      %v682 = vsel %vm626, %v611, 0
      %v685 = vsel %vm626, %v612, 0
      %v688 = vsel %vm626, %v613, 0
      %v691 = vsel %vm626, %v614, 0
      %v694 = vsel %vm626, %v615, 0
      %v697 = vsel %vm626, %v616, 0
      %v700 = vsel %vm626, %v617, 0
      %v703 = vsel %vm626, %v618, 0
      %v706 = vsel %vm626, %v619, 0
      %v709 = vsel %vm626, %v620, 0
      %v712 = vsel %vm626, %v621, 0
      %v715 = vsel %vm626, %v622, 0
      %v718 = vsel %vm626, %v623, 0
      %v721 = vsel %vm626, %v624, 0
      %723 = vmatprep.subr.mxu0 0.0
      %724 = vmatpush1.msra.mxu0 0.0
      %725 = vmatprep.subr.mxu0 0.0
      %726 = vmatpush1.msra.mxu0 0.0
      %727 = vmatprep.subr.mxu0 0.0
      %728 = vmatpush1.msra.mxu0 0.0
      %729 = vmatprep.subr.mxu0 0.0
      %730 = vmatpush1.msra.mxu0 0.0
      %731 = vmatprep.subr.mxu0 0.0
      %732 = vmatpush1.msra.mxu0 0.0
      %733 = vmatprep.subr.mxu0 0.0
      %734 = vmatpush1.msra.mxu0 0.0
      %735 = vmatprep.subr.mxu0 0.0
      %736 = vmatpush1.msra.mxu0 0.0
      %737 = vmatprep.subr.mxu0 0.0
      %738 = vmatpush1.msra.mxu0 0.0
      %739 = vmatprep.subr.mxu0 0.0
      %740 = vmatpush1.msra.mxu0 0.0
      %741 = vmatprep.subr.mxu0 0.0
      %742 = vmatpush1.msra.mxu0 0.0
      %743 = vmatprep.subr.mxu0 0.0
      %744 = vmatpush1.msra.mxu0 0.0
      %745 = vmatprep.subr.mxu0 0.0
      %746 = vmatpush1.msra.mxu0 0.0
      %747 = vmatprep.subr.mxu0 0.0
      %748 = vmatpush1.msra.mxu0 0.0
      %749 = vmatprep.subr.mxu0 0.0
      %750 = vmatpush1.msra.mxu0 0.0
      %751 = vmatprep.subr.mxu0 0.0
      %752 = vmatpush1.msra.mxu0 0.0
      %753 = vmatprep.subr.mxu0 0.0
      %754 = vmatpush1.msra.mxu0 %v625
      %755 = vmatprep.subr.mxu0 0.0
      %756 = vmatpush2.msra.mxu0 0.0
      %757 = vmatprep.subr.mxu0 0.0
      %758 = vmatpush2.msra.mxu0 0.0
      %759 = vmatprep.subr.mxu0 0.0
      %760 = vmatpush2.msra.mxu0 0.0
      %761 = vmatprep.subr.mxu0 0.0
      %762 = vmatpush2.msra.mxu0 0.0
      %763 = vmatprep.subr.mxu0 0.0
      %764 = vmatpush2.msra.mxu0 0.0
      %765 = vmatprep.subr.mxu0 0.0
      %766 = vmatpush2.msra.mxu0 0.0
      %767 = vmatprep.subr.mxu0 0.0
      %768 = vmatpush2.msra.mxu0 0.0
      %769 = vmatprep.subr.mxu0 0.0
      %770 = vmatpush2.msra.mxu0 0.0
      %771 = vmatprep.subr.mxu0 0.0
      %772 = vmatpush2.msra.mxu0 0.0
      %773 = vmatprep.subr.mxu0 0.0
      %774 = vmatpush2.msra.mxu0 0.0
      %775 = vmatprep.subr.mxu0 0.0
      %776 = vmatpush2.msra.mxu0 0.0
      %777 = vmatprep.subr.mxu0 0.0
      %778 = vmatpush2.msra.mxu0 0.0
      %779 = vmatprep.subr.mxu0 0.0
      %780 = vmatpush2.msra.mxu0 0.0
      %781 = vmatprep.subr.mxu0 0.0
      %782 = vmatpush2.msra.mxu0 0.0
      %783 = vmatprep.subr.mxu0 0.0
      %784 = vmatpush2.msra.mxu0 0.0
      %785 = vmatprep.subr.mxu0 0.0
      %786 = vmatpush2.msra.mxu0 0.0
      %787 = vmatprep.mubr.f32.mxu0 0.0
      %788 = vmatmul.mubr.f32.gmra.mxu0 %v628
      %v789 = vpop.f32.mrf.mxu0
      %v790 = vadd.f32 0.0, %v789
      %v791 = vpop.f32.mrf.mxu0
      %792 = vmatprep.mubr.f32.mxu0 0.0
      %793 = vmatmul.mubr.f32.gmra.mxu0 %v631
      %v794 = vpop.f32.mrf.mxu0
      %v795 = vadd.f32 0.0, %v794
      %v796 = vpop.f32.mrf.mxu0
      %797 = vmatprep.mubr.f32.mxu0 0.0
      %798 = vmatmul.mubr.f32.gmra.mxu0 %v634
      %v799 = vpop.f32.mrf.mxu0
      %v800 = vadd.f32 0.0, %v799
      %v801 = vpop.f32.mrf.mxu0
      %802 = vmatprep.mubr.f32.mxu0 0.0
      %803 = vmatmul.mubr.f32.gmra.mxu0 %v637
      %v804 = vpop.f32.mrf.mxu0
      %v805 = vadd.f32 0.0, %v804
      %v806 = vpop.f32.mrf.mxu0
      %807 = vmatprep.mubr.f32.mxu0 0.0
      %808 = vmatmul.mubr.f32.gmra.mxu0 %v640
      %v809 = vpop.f32.mrf.mxu0
      %v810 = vadd.f32 0.0, %v809
      %v811 = vpop.f32.mrf.mxu0
      %812 = vmatprep.mubr.f32.mxu0 0.0
      %813 = vmatmul.mubr.f32.gmra.mxu0 %v643
      %v814 = vpop.f32.mrf.mxu0
      %v815 = vadd.f32 0.0, %v814
      %v816 = vpop.f32.mrf.mxu0
      %817 = vmatprep.mubr.f32.mxu0 0.0
      %818 = vmatmul.mubr.f32.gmra.mxu0 %v646
      %v819 = vpop.f32.mrf.mxu0
      %v820 = vadd.f32 0.0, %v819
      %v821 = vpop.f32.mrf.mxu0
      %822 = vmatprep.mubr.f32.mxu0 0.0
      %823 = vmatmul.mubr.f32.gmra.mxu0 %v649
      %v824 = vpop.f32.mrf.mxu0
      %v825 = vadd.f32 0.0, %v824
      %v826 = vpop.f32.mrf.mxu0
      %827 = vmatprep.mubr.f32.mxu0 0.0
      %828 = vmatmul.mubr.f32.gmra.mxu0 %v652
      %v829 = vpop.f32.mrf.mxu0
      %v830 = vadd.f32 0.0, %v829
      %v831 = vpop.f32.mrf.mxu0
      %832 = vmatprep.mubr.f32.mxu0 0.0
      %833 = vmatmul.mubr.f32.gmra.mxu0 %v655
      %v834 = vpop.f32.mrf.mxu0
      %v835 = vadd.f32 0.0, %v834
      %v836 = vpop.f32.mrf.mxu0
      %837 = vmatprep.mubr.f32.mxu0 0.0
      %838 = vmatmul.mubr.f32.gmra.mxu0 %v658
      %v839 = vpop.f32.mrf.mxu0
      %v840 = vadd.f32 0.0, %v839
      %v841 = vpop.f32.mrf.mxu0
      %842 = vmatprep.mubr.f32.mxu0 0.0
      %843 = vmatmul.mubr.f32.gmra.mxu0 %v661
      %v844 = vpop.f32.mrf.mxu0
      %v845 = vadd.f32 0.0, %v844
      %v846 = vpop.f32.mrf.mxu0
      %847 = vmatprep.mubr.f32.mxu0 0.0
      %848 = vmatmul.mubr.f32.gmra.mxu0 %v664
      %v849 = vpop.f32.mrf.mxu0
      %v850 = vadd.f32 0.0, %v849
      %v851 = vpop.f32.mrf.mxu0
      %852 = vmatprep.mubr.f32.mxu0 0.0
      %853 = vmatmul.mubr.f32.gmra.mxu0 %v667
      %v854 = vpop.f32.mrf.mxu0
      %v855 = vadd.f32 0.0, %v854
      %v856 = vpop.f32.mrf.mxu0
      %857 = vmatprep.mubr.f32.mxu0 0.0
      %858 = vmatmul.mubr.f32.gmra.mxu0 %v670
      %v859 = vpop.f32.mrf.mxu0
      %v860 = vadd.f32 0.0, %v859
      %v861 = vpop.f32.mrf.mxu0
      %862 = vmatprep.mubr.f32.mxu0 0.0
      %863 = vmatmul.mubr.f32.gmra.mxu0 %v673
      %v864 = vpop.f32.mrf.mxu0
      %v865 = vadd.f32 0.0, %v864
      %v866 = vpop.f32.mrf.mxu0
      %867 = vmatprep.mubr.f32.mxu0 0.0
      %868 = vmatmul.mubr.f32.gmra.mxu0 %v676
      %v869 = vpop.f32.mrf.mxu0
      %v870 = vadd.f32 0.0, %v869
      %v871 = vpop.f32.mrf.mxu0
      %872 = vmatprep.mubr.f32.mxu0 0.0
      %873 = vmatmul.mubr.f32.gmra.mxu0 %v679
      %v874 = vpop.f32.mrf.mxu0
      %v875 = vadd.f32 0.0, %v874
      %v876 = vpop.f32.mrf.mxu0
      %877 = vmatprep.mubr.f32.mxu0 0.0
      %878 = vmatmul.mubr.f32.gmra.mxu0 %v682
      %v879 = vpop.f32.mrf.mxu0
      %v880 = vadd.f32 0.0, %v879
      %v881 = vpop.f32.mrf.mxu0
      %882 = vmatprep.mubr.f32.mxu0 0.0
      %883 = vmatmul.mubr.f32.gmra.mxu0 %v685
      %v884 = vpop.f32.mrf.mxu0
      %v885 = vadd.f32 0.0, %v884
      %v886 = vpop.f32.mrf.mxu0
      %887 = vmatprep.mubr.f32.mxu0 0.0
      %888 = vmatmul.mubr.f32.gmra.mxu0 %v688
      %v889 = vpop.f32.mrf.mxu0
      %v890 = vadd.f32 0.0, %v889
      %v891 = vpop.f32.mrf.mxu0
      %892 = vmatprep.mubr.f32.mxu0 0.0
      %893 = vmatmul.mubr.f32.gmra.mxu0 %v691
      %v894 = vpop.f32.mrf.mxu0
      %v895 = vadd.f32 0.0, %v894
      %v896 = vpop.f32.mrf.mxu0
      %897 = vmatprep.mubr.f32.mxu0 0.0
      %898 = vmatmul.mubr.f32.gmra.mxu0 %v694
      %v899 = vpop.f32.mrf.mxu0
      %v900 = vadd.f32 0.0, %v899
      %v901 = vpop.f32.mrf.mxu0
      %902 = vmatprep.mubr.f32.mxu0 0.0
      %903 = vmatmul.mubr.f32.gmra.mxu0 %v697
      %v904 = vpop.f32.mrf.mxu0
      %v905 = vadd.f32 0.0, %v904
      %v906 = vpop.f32.mrf.mxu0
      %907 = vmatprep.mubr.f32.mxu0 0.0
      %908 = vmatmul.mubr.f32.gmra.mxu0 %v700
      %v909 = vpop.f32.mrf.mxu0
      %v910 = vadd.f32 0.0, %v909
      %v911 = vpop.f32.mrf.mxu0
      %912 = vmatprep.mubr.f32.mxu0 0.0
      %913 = vmatmul.mubr.f32.gmra.mxu0 %v703
      %v914 = vpop.f32.mrf.mxu0
      %v915 = vadd.f32 0.0, %v914
      %v916 = vpop.f32.mrf.mxu0
      %917 = vmatprep.mubr.f32.mxu0 0.0
      %918 = vmatmul.mubr.f32.gmra.mxu0 %v706
      %v919 = vpop.f32.mrf.mxu0
      %v920 = vadd.f32 0.0, %v919
      %v921 = vpop.f32.mrf.mxu0
      %922 = vmatprep.mubr.f32.mxu0 0.0
      %923 = vmatmul.mubr.f32.gmra.mxu0 %v709
      %v924 = vpop.f32.mrf.mxu0
      %v925 = vadd.f32 0.0, %v924
      %v926 = vpop.f32.mrf.mxu0
      %927 = vmatprep.mubr.f32.mxu0 0.0
      %928 = vmatmul.mubr.f32.gmra.mxu0 %v712
      %v929 = vpop.f32.mrf.mxu0
      %v930 = vadd.f32 0.0, %v929
      %v931 = vpop.f32.mrf.mxu0
      %932 = vmatprep.mubr.f32.mxu0 0.0
      %933 = vmatmul.mubr.f32.gmra.mxu0 %v715
      %v934 = vpop.f32.mrf.mxu0
      %v935 = vadd.f32 0.0, %v934
      %v936 = vpop.f32.mrf.mxu0
      %937 = vmatprep.mubr.f32.mxu0 0.0
      %938 = vmatmul.mubr.f32.gmra.mxu0 %v718
      %v939 = vpop.f32.mrf.mxu0
      %v940 = vadd.f32 0.0, %v939
      %v941 = vpop.f32.mrf.mxu0
      %942 = vmatprep.mubr.f32.mxu0 0.0
      %943 = vmatmul.mubr.f32.gmra.mxu0 %v721
      %v944 = vpop.f32.mrf.mxu0
      %v945 = vadd.f32 0.0, %v944
      %v946 = vpop.f32.mrf.mxu0
      %947 = vdwg.mxu0
      %v948 = vld [vmem:[%s5] sm:$0xff]
      %949 = vmatprep.subr.mxu0 0.0
      %950 = vmatpush1.msra.mxu0 0.0
      %951 = vmatprep.subr.mxu0 0.0
      %952 = vmatpush1.msra.mxu0 0.0
      %953 = vmatprep.subr.mxu0 0.0
      %954 = vmatpush1.msra.mxu0 0.0
      %955 = vmatprep.subr.mxu0 0.0
      %956 = vmatpush1.msra.mxu0 0.0
      %957 = vmatprep.subr.mxu0 0.0
      %958 = vmatpush1.msra.mxu0 0.0
      %959 = vmatprep.subr.mxu0 0.0
      %960 = vmatpush1.msra.mxu0 0.0
      %961 = vmatprep.subr.mxu0 0.0
      %962 = vmatpush1.msra.mxu0 0.0
      %963 = vmatprep.subr.mxu0 0.0
      %964 = vmatpush1.msra.mxu0 0.0
      %965 = vmatprep.subr.mxu0 0.0
      %966 = vmatpush1.msra.mxu0 0.0
      %967 = vmatprep.subr.mxu0 0.0
      %968 = vmatpush1.msra.mxu0 0.0
      %969 = vmatprep.subr.mxu0 0.0
      %970 = vmatpush1.msra.mxu0 0.0
      %971 = vmatprep.subr.mxu0 0.0
      %972 = vmatpush1.msra.mxu0 0.0
      %973 = vmatprep.subr.mxu0 0.0
      %974 = vmatpush1.msra.mxu0 0.0
      %975 = vmatprep.subr.mxu0 0.0
      %976 = vmatpush1.msra.mxu0 0.0
      %977 = vmatprep.subr.mxu0 0.0
      %978 = vmatpush1.msra.mxu0 0.0
      %979 = vmatprep.subr.mxu0 0.0
      %980 = vmatpush1.msra.mxu0 %v948
      %981 = vmatprep.subr.mxu0 0.0
      %982 = vmatpush2.msra.mxu0 0.0
      %983 = vmatprep.subr.mxu0 0.0
      %984 = vmatpush2.msra.mxu0 0.0
      %985 = vmatprep.subr.mxu0 0.0
      %986 = vmatpush2.msra.mxu0 0.0
      %987 = vmatprep.subr.mxu0 0.0
      %988 = vmatpush2.msra.mxu0 0.0
      %989 = vmatprep.subr.mxu0 0.0
      %990 = vmatpush2.msra.mxu0 0.0
      %991 = vmatprep.subr.mxu0 0.0
      %992 = vmatpush2.msra.mxu0 0.0
      %993 = vmatprep.subr.mxu0 0.0
      %994 = vmatpush2.msra.mxu0 0.0
      %995 = vmatprep.subr.mxu0 0.0
      %996 = vmatpush2.msra.mxu0 0.0
      %997 = vmatprep.subr.mxu0 0.0
      %998 = vmatpush2.msra.mxu0 0.0
      %999 = vmatprep.subr.mxu0 0.0
      %1000 = vmatpush2.msra.mxu0 0.0
      %1001 = vmatprep.subr.mxu0 0.0
      %1002 = vmatpush2.msra.mxu0 0.0
      %1003 = vmatprep.subr.mxu0 0.0
      %1004 = vmatpush2.msra.mxu0 0.0
      %1005 = vmatprep.subr.mxu0 0.0
      %1006 = vmatpush2.msra.mxu0 0.0
      %1007 = vmatprep.subr.mxu0 0.0
      %1008 = vmatpush2.msra.mxu0 0.0
      %1009 = vmatprep.subr.mxu0 0.0
      %1010 = vmatpush2.msra.mxu0 0.0
      %1011 = vmatprep.subr.mxu0 0.0
      %1012 = vmatpush2.msra.mxu0 0.0
      %1013 = vmatprep.mubr.f32.mxu0 0.0
      %1014 = vmatmul.mubr.f32.gmra.mxu0 %v628
      %v1015 = vpop.f32.mrf.mxu0
      %v1016 = vadd.f32 0.0, %v1015
      %v1017 = vpop.f32.mrf.mxu0
      %1018 = vmatprep.mubr.f32.mxu0 0.0
      %1019 = vmatmul.mubr.f32.gmra.mxu0 %v631
      %v1020 = vpop.f32.mrf.mxu0
      %v1021 = vadd.f32 0.0, %v1020
      %v1022 = vpop.f32.mrf.mxu0
      %1023 = vmatprep.mubr.f32.mxu0 0.0
      %1024 = vmatmul.mubr.f32.gmra.mxu0 %v634
      %v1025 = vpop.f32.mrf.mxu0
      %v1026 = vadd.f32 0.0, %v1025
      %v1027 = vpop.f32.mrf.mxu0
      %1028 = vmatprep.mubr.f32.mxu0 0.0
      %1029 = vmatmul.mubr.f32.gmra.mxu0 %v637
      %v1030 = vpop.f32.mrf.mxu0
      %v1031 = vadd.f32 0.0, %v1030
      %v1032 = vpop.f32.mrf.mxu0
      %1033 = vmatprep.mubr.f32.mxu0 0.0
      %1034 = vmatmul.mubr.f32.gmra.mxu0 %v640
      %v1035 = vpop.f32.mrf.mxu0
      %v1036 = vadd.f32 0.0, %v1035
      %v1037 = vpop.f32.mrf.mxu0
      %1038 = vmatprep.mubr.f32.mxu0 0.0
      %1039 = vmatmul.mubr.f32.gmra.mxu0 %v643
      %v1040 = vpop.f32.mrf.mxu0
      %v1041 = vadd.f32 0.0, %v1040
      %v1042 = vpop.f32.mrf.mxu0
      %1043 = vmatprep.mubr.f32.mxu0 0.0
      %1044 = vmatmul.mubr.f32.gmra.mxu0 %v646
      %v1045 = vpop.f32.mrf.mxu0
      %v1046 = vadd.f32 0.0, %v1045
      %v1047 = vpop.f32.mrf.mxu0
      %1048 = vmatprep.mubr.f32.mxu0 0.0
      %1049 = vmatmul.mubr.f32.gmra.mxu0 %v649
      %v1050 = vpop.f32.mrf.mxu0
      %v1051 = vadd.f32 0.0, %v1050
      %v1052 = vpop.f32.mrf.mxu0
      %1053 = vmatprep.mubr.f32.mxu0 0.0
      %1054 = vmatmul.mubr.f32.gmra.mxu0 %v652
      %v1055 = vpop.f32.mrf.mxu0
      %v1056 = vadd.f32 0.0, %v1055
      %v1057 = vpop.f32.mrf.mxu0
      %1058 = vmatprep.mubr.f32.mxu0 0.0
      %1059 = vmatmul.mubr.f32.gmra.mxu0 %v655
      %v1060 = vpop.f32.mrf.mxu0
      %v1061 = vadd.f32 0.0, %v1060
      %v1062 = vpop.f32.mrf.mxu0
      %1063 = vmatprep.mubr.f32.mxu0 0.0
      %1064 = vmatmul.mubr.f32.gmra.mxu0 %v658
      %v1065 = vpop.f32.mrf.mxu0
      %v1066 = vadd.f32 0.0, %v1065
      %v1067 = vpop.f32.mrf.mxu0
      %1068 = vmatprep.mubr.f32.mxu0 0.0
      %1069 = vmatmul.mubr.f32.gmra.mxu0 %v661
      %v1070 = vpop.f32.mrf.mxu0
      %v1071 = vadd.f32 0.0, %v1070
      %v1072 = vpop.f32.mrf.mxu0
      %1073 = vmatprep.mubr.f32.mxu0 0.0
      %1074 = vmatmul.mubr.f32.gmra.mxu0 %v664
      %v1075 = vpop.f32.mrf.mxu0
      %v1076 = vadd.f32 0.0, %v1075
      %v1077 = vpop.f32.mrf.mxu0
      %1078 = vmatprep.mubr.f32.mxu0 0.0
      %1079 = vmatmul.mubr.f32.gmra.mxu0 %v667
      %v1080 = vpop.f32.mrf.mxu0
      %v1081 = vadd.f32 0.0, %v1080
      %v1082 = vpop.f32.mrf.mxu0
      %1083 = vmatprep.mubr.f32.mxu0 0.0
      %1084 = vmatmul.mubr.f32.gmra.mxu0 %v670
      %v1085 = vpop.f32.mrf.mxu0
      %v1086 = vadd.f32 0.0, %v1085
      %v1087 = vpop.f32.mrf.mxu0
      %1088 = vmatprep.mubr.f32.mxu0 0.0
      %1089 = vmatmul.mubr.f32.gmra.mxu0 %v673
      %v1090 = vpop.f32.mrf.mxu0
      %v1091 = vadd.f32 0.0, %v1090
      %v1092 = vpop.f32.mrf.mxu0
      %1093 = vmatprep.mubr.f32.mxu0 0.0
      %1094 = vmatmul.mubr.f32.gmra.mxu0 %v676
      %v1095 = vpop.f32.mrf.mxu0
      %v1096 = vadd.f32 0.0, %v1095
      %v1097 = vpop.f32.mrf.mxu0
      %1098 = vmatprep.mubr.f32.mxu0 0.0
      %1099 = vmatmul.mubr.f32.gmra.mxu0 %v679
      %v1100 = vpop.f32.mrf.mxu0
      %v1101 = vadd.f32 0.0, %v1100
      %v1102 = vpop.f32.mrf.mxu0
      %1103 = vmatprep.mubr.f32.mxu0 0.0
      %1104 = vmatmul.mubr.f32.gmra.mxu0 %v682
      %v1105 = vpop.f32.mrf.mxu0
      %v1106 = vadd.f32 0.0, %v1105
      %v1107 = vpop.f32.mrf.mxu0
      %1108 = vmatprep.mubr.f32.mxu0 0.0
      %1109 = vmatmul.mubr.f32.gmra.mxu0 %v685
      %v1110 = vpop.f32.mrf.mxu0
      %v1111 = vadd.f32 0.0, %v1110
      %v1112 = vpop.f32.mrf.mxu0
      %1113 = vmatprep.mubr.f32.mxu0 0.0
      %1114 = vmatmul.mubr.f32.gmra.mxu0 %v688
      %v1115 = vpop.f32.mrf.mxu0
      %v1116 = vadd.f32 0.0, %v1115
      %v1117 = vpop.f32.mrf.mxu0
      %1118 = vmatprep.mubr.f32.mxu0 0.0
      %1119 = vmatmul.mubr.f32.gmra.mxu0 %v691
      %v1120 = vpop.f32.mrf.mxu0
      %v1121 = vadd.f32 0.0, %v1120
      %v1122 = vpop.f32.mrf.mxu0
      %1123 = vmatprep.mubr.f32.mxu0 0.0
      %1124 = vmatmul.mubr.f32.gmra.mxu0 %v694
      %v1125 = vpop.f32.mrf.mxu0
      %v1126 = vadd.f32 0.0, %v1125
      %v1127 = vpop.f32.mrf.mxu0
      %1128 = vmatprep.mubr.f32.mxu0 0.0
      %1129 = vmatmul.mubr.f32.gmra.mxu0 %v697
      %v1130 = vpop.f32.mrf.mxu0
      %v1131 = vadd.f32 0.0, %v1130
      %v1132 = vpop.f32.mrf.mxu0
      %1133 = vmatprep.mubr.f32.mxu0 0.0
      %1134 = vmatmul.mubr.f32.gmra.mxu0 %v700
      %v1135 = vpop.f32.mrf.mxu0
      %v1136 = vadd.f32 0.0, %v1135
      %v1137 = vpop.f32.mrf.mxu0
      %1138 = vmatprep.mubr.f32.mxu0 0.0
      %1139 = vmatmul.mubr.f32.gmra.mxu0 %v703
      %v1140 = vpop.f32.mrf.mxu0
      %v1141 = vadd.f32 0.0, %v1140
      %v1142 = vpop.f32.mrf.mxu0
      %1143 = vmatprep.mubr.f32.mxu0 0.0
      %1144 = vmatmul.mubr.f32.gmra.mxu0 %v706
      %v1145 = vpop.f32.mrf.mxu0
      %v1146 = vadd.f32 0.0, %v1145
      %v1147 = vpop.f32.mrf.mxu0
      %1148 = vmatprep.mubr.f32.mxu0 0.0
      %1149 = vmatmul.mubr.f32.gmra.mxu0 %v709
      %v1150 = vpop.f32.mrf.mxu0
      %v1151 = vadd.f32 0.0, %v1150
      %v1152 = vpop.f32.mrf.mxu0
      %1153 = vmatprep.mubr.f32.mxu0 0.0
      %1154 = vmatmul.mubr.f32.gmra.mxu0 %v712
      %v1155 = vpop.f32.mrf.mxu0
      %v1156 = vadd.f32 0.0, %v1155
      %v1157 = vpop.f32.mrf.mxu0
      %1158 = vmatprep.mubr.f32.mxu0 0.0
      %1159 = vmatmul.mubr.f32.gmra.mxu0 %v715
      %v1160 = vpop.f32.mrf.mxu0
      %v1161 = vadd.f32 0.0, %v1160
      %v1162 = vpop.f32.mrf.mxu0
      %1163 = vmatprep.mubr.f32.mxu0 0.0
      %1164 = vmatmul.mubr.f32.gmra.mxu0 %v718
      %v1165 = vpop.f32.mrf.mxu0
      %v1166 = vadd.f32 0.0, %v1165
      %v1167 = vpop.f32.mrf.mxu0
      %1168 = vmatprep.mubr.f32.mxu0 0.0
      %1169 = vmatmul.mubr.f32.gmra.mxu0 %v721
      %v1170 = vpop.f32.mrf.mxu0
      %v1171 = vadd.f32 0.0, %v1170
      %v1172 = vpop.f32.mrf.mxu0
      %1173 = vdwg.mxu0
      %v1174 = vld [vmem:[%s6] sm:$0xff]
      %1175 = vmatprep.subr.mxu0 0.0
      %1176 = vmatpush1.msra.mxu0 0.0
      %1177 = vmatprep.subr.mxu0 0.0
      %1178 = vmatpush1.msra.mxu0 0.0
      %1179 = vmatprep.subr.mxu0 0.0
      %1180 = vmatpush1.msra.mxu0 0.0
      %1181 = vmatprep.subr.mxu0 0.0
      %1182 = vmatpush1.msra.mxu0 0.0
      %1183 = vmatprep.subr.mxu0 0.0
      %1184 = vmatpush1.msra.mxu0 0.0
      %1185 = vmatprep.subr.mxu0 0.0
      %1186 = vmatpush1.msra.mxu0 0.0
      %1187 = vmatprep.subr.mxu0 0.0
      %1188 = vmatpush1.msra.mxu0 0.0
      %1189 = vmatprep.subr.mxu0 0.0
      %1190 = vmatpush1.msra.mxu0 0.0
      %1191 = vmatprep.subr.mxu0 0.0
      %1192 = vmatpush1.msra.mxu0 0.0
      %1193 = vmatprep.subr.mxu0 0.0
      %1194 = vmatpush1.msra.mxu0 0.0
      %1195 = vmatprep.subr.mxu0 0.0
      %1196 = vmatpush1.msra.mxu0 0.0
      %1197 = vmatprep.subr.mxu0 0.0
      %1198 = vmatpush1.msra.mxu0 0.0
      %1199 = vmatprep.subr.mxu0 0.0
      %1200 = vmatpush1.msra.mxu0 0.0
      %1201 = vmatprep.subr.mxu0 0.0
      %1202 = vmatpush1.msra.mxu0 0.0
      %1203 = vmatprep.subr.mxu0 0.0
      %1204 = vmatpush1.msra.mxu0 0.0
      %1205 = vmatprep.subr.mxu0 0.0
      %1206 = vmatpush1.msra.mxu0 %v1174
      %1207 = vmatprep.subr.mxu0 0.0
      %1208 = vmatpush2.msra.mxu0 0.0
      %1209 = vmatprep.subr.mxu0 0.0
      %1210 = vmatpush2.msra.mxu0 0.0
      %1211 = vmatprep.subr.mxu0 0.0
      %1212 = vmatpush2.msra.mxu0 0.0
      %1213 = vmatprep.subr.mxu0 0.0
      %1214 = vmatpush2.msra.mxu0 0.0
      %1215 = vmatprep.subr.mxu0 0.0
      %1216 = vmatpush2.msra.mxu0 0.0
      %1217 = vmatprep.subr.mxu0 0.0
      %1218 = vmatpush2.msra.mxu0 0.0
      %1219 = vmatprep.subr.mxu0 0.0
      %1220 = vmatpush2.msra.mxu0 0.0
      %1221 = vmatprep.subr.mxu0 0.0
      %1222 = vmatpush2.msra.mxu0 0.0
      %1223 = vmatprep.subr.mxu0 0.0
      %1224 = vmatpush2.msra.mxu0 0.0
      %1225 = vmatprep.subr.mxu0 0.0
      %1226 = vmatpush2.msra.mxu0 0.0
      %1227 = vmatprep.subr.mxu0 0.0
      %1228 = vmatpush2.msra.mxu0 0.0
      %1229 = vmatprep.subr.mxu0 0.0
      %1230 = vmatpush2.msra.mxu0 0.0
      %1231 = vmatprep.subr.mxu0 0.0
      %1232 = vmatpush2.msra.mxu0 0.0
      %1233 = vmatprep.subr.mxu0 0.0
      %1234 = vmatpush2.msra.mxu0 0.0
      %1235 = vmatprep.subr.mxu0 0.0
      %1236 = vmatpush2.msra.mxu0 0.0
      %1237 = vmatprep.subr.mxu0 0.0
      %1238 = vmatpush2.msra.mxu0 0.0
      %1239 = vmatprep.mubr.f32.mxu0 0.0
      %1240 = vmatmul.mubr.f32.gmra.mxu0 %v628
      %v1241 = vpop.f32.mrf.mxu0
      %v1242 = vadd.f32 0.0, %v1241
      %v1243 = vpop.f32.mrf.mxu0
      %1244 = vmatprep.mubr.f32.mxu0 0.0
      %1245 = vmatmul.mubr.f32.gmra.mxu0 %v631
      %v1246 = vpop.f32.mrf.mxu0
      %v1247 = vadd.f32 0.0, %v1246
      %v1248 = vpop.f32.mrf.mxu0
      %1249 = vmatprep.mubr.f32.mxu0 0.0
      %1250 = vmatmul.mubr.f32.gmra.mxu0 %v634
      %v1251 = vpop.f32.mrf.mxu0
      %v1252 = vadd.f32 0.0, %v1251
      %v1253 = vpop.f32.mrf.mxu0
      %1254 = vmatprep.mubr.f32.mxu0 0.0
      %1255 = vmatmul.mubr.f32.gmra.mxu0 %v637
      %v1256 = vpop.f32.mrf.mxu0
      %v1257 = vadd.f32 0.0, %v1256
      %v1258 = vpop.f32.mrf.mxu0
      %1259 = vmatprep.mubr.f32.mxu0 0.0
      %1260 = vmatmul.mubr.f32.gmra.mxu0 %v640
      %v1261 = vpop.f32.mrf.mxu0
      %v1262 = vadd.f32 0.0, %v1261
      %v1263 = vpop.f32.mrf.mxu0
      %1264 = vmatprep.mubr.f32.mxu0 0.0
      %1265 = vmatmul.mubr.f32.gmra.mxu0 %v643
      %v1266 = vpop.f32.mrf.mxu0
      %v1267 = vadd.f32 0.0, %v1266
      %v1268 = vpop.f32.mrf.mxu0
      %1269 = vmatprep.mubr.f32.mxu0 0.0
      %1270 = vmatmul.mubr.f32.gmra.mxu0 %v646
      %v1271 = vpop.f32.mrf.mxu0
      %v1272 = vadd.f32 0.0, %v1271
      %v1273 = vpop.f32.mrf.mxu0
      %1274 = vmatprep.mubr.f32.mxu0 0.0
      %1275 = vmatmul.mubr.f32.gmra.mxu0 %v649
      %v1276 = vpop.f32.mrf.mxu0
      %v1277 = vadd.f32 0.0, %v1276
      %v1278 = vpop.f32.mrf.mxu0
      %1279 = vmatprep.mubr.f32.mxu0 0.0
      %1280 = vmatmul.mubr.f32.gmra.mxu0 %v652
      %v1281 = vpop.f32.mrf.mxu0
      %v1282 = vadd.f32 0.0, %v1281
      %v1283 = vpop.f32.mrf.mxu0
      %1284 = vmatprep.mubr.f32.mxu0 0.0
      %1285 = vmatmul.mubr.f32.gmra.mxu0 %v655
      %v1286 = vpop.f32.mrf.mxu0
      %v1287 = vadd.f32 0.0, %v1286
      %v1288 = vpop.f32.mrf.mxu0
      %1289 = vmatprep.mubr.f32.mxu0 0.0
      %1290 = vmatmul.mubr.f32.gmra.mxu0 %v658
      %v1291 = vpop.f32.mrf.mxu0
      %v1292 = vadd.f32 0.0, %v1291
      %v1293 = vpop.f32.mrf.mxu0
      %1294 = vmatprep.mubr.f32.mxu0 0.0
      %1295 = vmatmul.mubr.f32.gmra.mxu0 %v661
      %v1296 = vpop.f32.mrf.mxu0
      %v1297 = vadd.f32 0.0, %v1296
      %v1298 = vpop.f32.mrf.mxu0
      %1299 = vmatprep.mubr.f32.mxu0 0.0
      %1300 = vmatmul.mubr.f32.gmra.mxu0 %v664
      %v1301 = vpop.f32.mrf.mxu0
      %v1302 = vadd.f32 0.0, %v1301
      %v1303 = vpop.f32.mrf.mxu0
      %1304 = vmatprep.mubr.f32.mxu0 0.0
      %1305 = vmatmul.mubr.f32.gmra.mxu0 %v667
      %v1306 = vpop.f32.mrf.mxu0
      %v1307 = vadd.f32 0.0, %v1306
      %v1308 = vpop.f32.mrf.mxu0
      %1309 = vmatprep.mubr.f32.mxu0 0.0
      %1310 = vmatmul.mubr.f32.gmra.mxu0 %v670
      %v1311 = vpop.f32.mrf.mxu0
      %v1312 = vadd.f32 0.0, %v1311
      %v1313 = vpop.f32.mrf.mxu0
      %1314 = vmatprep.mubr.f32.mxu0 0.0
      %1315 = vmatmul.mubr.f32.gmra.mxu0 %v673
      %v1316 = vpop.f32.mrf.mxu0
      %v1317 = vadd.f32 0.0, %v1316
      %v1318 = vpop.f32.mrf.mxu0
      %1319 = vmatprep.mubr.f32.mxu0 0.0
      %1320 = vmatmul.mubr.f32.gmra.mxu0 %v676
      %v1321 = vpop.f32.mrf.mxu0
      %v1322 = vadd.f32 0.0, %v1321
      %v1323 = vpop.f32.mrf.mxu0
      %1324 = vmatprep.mubr.f32.mxu0 0.0
      %1325 = vmatmul.mubr.f32.gmra.mxu0 %v679
      %v1326 = vpop.f32.mrf.mxu0
      %v1327 = vadd.f32 0.0, %v1326
      %v1328 = vpop.f32.mrf.mxu0
      %1329 = vmatprep.mubr.f32.mxu0 0.0
      %1330 = vmatmul.mubr.f32.gmra.mxu0 %v682
      %v1331 = vpop.f32.mrf.mxu0
      %v1332 = vadd.f32 0.0, %v1331
      %v1333 = vpop.f32.mrf.mxu0
      %1334 = vmatprep.mubr.f32.mxu0 0.0
      %1335 = vmatmul.mubr.f32.gmra.mxu0 %v685
      %v1336 = vpop.f32.mrf.mxu0
      %v1337 = vadd.f32 0.0, %v1336
      %v1338 = vpop.f32.mrf.mxu0
      %1339 = vmatprep.mubr.f32.mxu0 0.0
      %1340 = vmatmul.mubr.f32.gmra.mxu0 %v688
      %v1341 = vpop.f32.mrf.mxu0
      %v1342 = vadd.f32 0.0, %v1341
      %v1343 = vpop.f32.mrf.mxu0
      %1344 = vmatprep.mubr.f32.mxu0 0.0
      %1345 = vmatmul.mubr.f32.gmra.mxu0 %v691
      %v1346 = vpop.f32.mrf.mxu0
      %v1347 = vadd.f32 0.0, %v1346
      %v1348 = vpop.f32.mrf.mxu0
      %1349 = vmatprep.mubr.f32.mxu0 0.0
      %1350 = vmatmul.mubr.f32.gmra.mxu0 %v694
      %v1351 = vpop.f32.mrf.mxu0
      %v1352 = vadd.f32 0.0, %v1351
      %v1353 = vpop.f32.mrf.mxu0
      %1354 = vmatprep.mubr.f32.mxu0 0.0
      %1355 = vmatmul.mubr.f32.gmra.mxu0 %v697
      %v1356 = vpop.f32.mrf.mxu0
      %v1357 = vadd.f32 0.0, %v1356
      %v1358 = vpop.f32.mrf.mxu0
      %1359 = vmatprep.mubr.f32.mxu0 0.0
      %1360 = vmatmul.mubr.f32.gmra.mxu0 %v700
      %v1361 = vpop.f32.mrf.mxu0
      %v1362 = vadd.f32 0.0, %v1361
      %v1363 = vpop.f32.mrf.mxu0
      %1364 = vmatprep.mubr.f32.mxu0 0.0
      %1365 = vmatmul.mubr.f32.gmra.mxu0 %v703
      %v1366 = vpop.f32.mrf.mxu0
      %v1367 = vadd.f32 0.0, %v1366
      %v1368 = vpop.f32.mrf.mxu0
      %1369 = vmatprep.mubr.f32.mxu0 0.0
      %1370 = vmatmul.mubr.f32.gmra.mxu0 %v706
      %v1371 = vpop.f32.mrf.mxu0
      %v1372 = vadd.f32 0.0, %v1371
      %v1373 = vpop.f32.mrf.mxu0
      %1374 = vmatprep.mubr.f32.mxu0 0.0
      %1375 = vmatmul.mubr.f32.gmra.mxu0 %v709
      %v1376 = vpop.f32.mrf.mxu0
      %v1377 = vadd.f32 0.0, %v1376
      %v1378 = vpop.f32.mrf.mxu0
      %1379 = vmatprep.mubr.f32.mxu0 0.0
      %1380 = vmatmul.mubr.f32.gmra.mxu0 %v712
      %v1381 = vpop.f32.mrf.mxu0
      %v1382 = vadd.f32 0.0, %v1381
      %v1383 = vpop.f32.mrf.mxu0
      %1384 = vmatprep.mubr.f32.mxu0 0.0
      %1385 = vmatmul.mubr.f32.gmra.mxu0 %v715
      %v1386 = vpop.f32.mrf.mxu0
      %v1387 = vadd.f32 0.0, %v1386
      %v1388 = vpop.f32.mrf.mxu0
      %1389 = vmatprep.mubr.f32.mxu0 0.0
      %1390 = vmatmul.mubr.f32.gmra.mxu0 %v718
      %v1391 = vpop.f32.mrf.mxu0
      %v1392 = vadd.f32 0.0, %v1391
      %v1393 = vpop.f32.mrf.mxu0
      %1394 = vmatprep.mubr.f32.mxu0 0.0
      %1395 = vmatmul.mubr.f32.gmra.mxu0 %v721
      %v1396 = vpop.f32.mrf.mxu0
      %v1397 = vadd.f32 0.0, %v1396
      %v1398 = vpop.f32.mrf.mxu0
      %1399 = vdwg.mxu0
      %v1400 = vld [vmem:[%s7] sm:$0xff]
      %v1401 = vld [vmem:[%s8] sm:$0xff]
      %1403 = vset.pattern.permute.xlu0 0
      %1404 = vperm.xlu0 %1403, %v1401
      %v1405 = vpop.permute.xlu0 %1404
      %v1407 = vadd.f32 %v559, %v1405
      %v1408 = vadd.f32 %v560, %v1405
      %vm1409 = vcmask 15360
      %v1411 = vsel %vm1409, %v790, 0
      %v1414 = vsel %vm1409, %v795, 0
      %v1417 = vsel %vm1409, %v800, 0
      %v1420 = vsel %vm1409, %v805, 0
      %v1423 = vsel %vm1409, %v810, 0
      %v1426 = vsel %vm1409, %v815, 0
      %v1429 = vsel %vm1409, %v820, 0
      %v1432 = vsel %vm1409, %v825, 0
      %v1435 = vsel %vm1409, %v830, 0
      %v1438 = vsel %vm1409, %v835, 0
      %v1441 = vsel %vm1409, %v840, 0
      %v1444 = vsel %vm1409, %v845, 0
      %v1447 = vsel %vm1409, %v850, 0
      %v1450 = vsel %vm1409, %v855, 0
      %v1453 = vsel %vm1409, %v860, 0
      %v1456 = vsel %vm1409, %v865, 0
      %v1459 = vsel %vm1409, %v870, 0
      %v1462 = vsel %vm1409, %v875, 0
      %v1465 = vsel %vm1409, %v880, 0
      %v1468 = vsel %vm1409, %v885, 0
      %v1471 = vsel %vm1409, %v890, 0
      %v1474 = vsel %vm1409, %v895, 0
      %v1477 = vsel %vm1409, %v900, 0
      %v1480 = vsel %vm1409, %v905, 0
      %v1483 = vsel %vm1409, %v910, 0
      %v1486 = vsel %vm1409, %v915, 0
      %v1489 = vsel %vm1409, %v920, 0
      %v1492 = vsel %vm1409, %v925, 0
      %v1495 = vsel %vm1409, %v930, 0
      %v1498 = vsel %vm1409, %v935, 0
      %v1501 = vsel %vm1409, %v940, 0
      %v1504 = vsel %vm1409, %v945, 0
      %v1507 = vsel %vm1409, %v1016, 0
      %v1510 = vsel %vm1409, %v1021, 0
      %v1513 = vsel %vm1409, %v1026, 0
      %v1516 = vsel %vm1409, %v1031, 0
      %v1519 = vsel %vm1409, %v1036, 0
      %v1522 = vsel %vm1409, %v1041, 0
      %v1525 = vsel %vm1409, %v1046, 0
      %v1528 = vsel %vm1409, %v1051, 0
      %v1531 = vsel %vm1409, %v1056, 0
      %v1534 = vsel %vm1409, %v1061, 0
      %v1537 = vsel %vm1409, %v1066, 0
      %v1540 = vsel %vm1409, %v1071, 0
      %v1543 = vsel %vm1409, %v1076, 0
      %v1546 = vsel %vm1409, %v1081, 0
      %v1549 = vsel %vm1409, %v1086, 0
      %v1552 = vsel %vm1409, %v1091, 0
      %v1555 = vsel %vm1409, %v1096, 0
      %v1558 = vsel %vm1409, %v1101, 0
      %v1561 = vsel %vm1409, %v1106, 0
      %v1564 = vsel %vm1409, %v1111, 0
      %v1567 = vsel %vm1409, %v1116, 0
      %v1570 = vsel %vm1409, %v1121, 0
      %v1573 = vsel %vm1409, %v1126, 0
      %v1576 = vsel %vm1409, %v1131, 0
      %v1579 = vsel %vm1409, %v1136, 0
      %v1582 = vsel %vm1409, %v1141, 0
      %v1585 = vsel %vm1409, %v1146, 0
      %v1588 = vsel %vm1409, %v1151, 0
      %v1591 = vsel %vm1409, %v1156, 0
      %v1594 = vsel %vm1409, %v1161, 0
      %v1597 = vsel %vm1409, %v1166, 0
      %v1600 = vsel %vm1409, %v1171, 0
      %1602 = vmatprep.subr.mxu0 0.0
      %1603 = vmatpush1.xpose.msra.mxu0 %v1552
      %1604 = vmatprep.subr.mxu0 0.0
      %1605 = vmatpush1.xpose.msra.mxu0 %v1549
      %1606 = vmatprep.subr.mxu0 0.0
      %1607 = vmatpush1.xpose.msra.mxu0 %v1546
      %1608 = vmatprep.subr.mxu0 0.0
      %1609 = vmatpush1.xpose.msra.mxu0 %v1543
      %1610 = vmatprep.subr.mxu0 0.0
      %1611 = vmatpush1.xpose.msra.mxu0 %v1540
      %1612 = vmatprep.subr.mxu0 0.0
      %1613 = vmatpush1.xpose.msra.mxu0 %v1537
      %1614 = vmatprep.subr.mxu0 0.0
      %1615 = vmatpush1.xpose.msra.mxu0 %v1534
      %1616 = vmatprep.subr.mxu0 0.0
      %1617 = vmatpush1.xpose.msra.mxu0 %v1531
      %1618 = vmatprep.subr.mxu0 0.0
      %1619 = vmatpush1.xpose.msra.mxu0 %v1528
      %1620 = vmatprep.subr.mxu0 0.0
      %1621 = vmatpush1.xpose.msra.mxu0 %v1525
      %1622 = vmatprep.subr.mxu0 0.0
      %1623 = vmatpush1.xpose.msra.mxu0 %v1522
      %1624 = vmatprep.subr.mxu0 0.0
      %1625 = vmatpush1.xpose.msra.mxu0 %v1519
      %1626 = vmatprep.subr.mxu0 0.0
      %1627 = vmatpush1.xpose.msra.mxu0 %v1516
      %1628 = vmatprep.subr.mxu0 0.0
      %1629 = vmatpush1.xpose.msra.mxu0 %v1513
      %1630 = vmatprep.subr.mxu0 0.0
      %1631 = vmatpush1.xpose.msra.mxu0 %v1510
      %1632 = vmatprep.subr.mxu0 0.0
      %1633 = vmatpush1.xpose.msra.mxu0 %v1507
      %1634 = vmatprep.subr.mxu0 0.0
      %1635 = vmatpush2.xpose.msra.mxu0 %v1600
      %1636 = vmatprep.subr.mxu0 0.0
      %1637 = vmatpush2.xpose.msra.mxu0 %v1597
      %1638 = vmatprep.subr.mxu0 0.0
      %1639 = vmatpush2.xpose.msra.mxu0 %v1594
      %1640 = vmatprep.subr.mxu0 0.0
      %1641 = vmatpush2.xpose.msra.mxu0 %v1591
      %1642 = vmatprep.subr.mxu0 0.0
      %1643 = vmatpush2.xpose.msra.mxu0 %v1588
      %1644 = vmatprep.subr.mxu0 0.0
      %1645 = vmatpush2.xpose.msra.mxu0 %v1585
      %1646 = vmatprep.subr.mxu0 0.0
      %1647 = vmatpush2.xpose.msra.mxu0 %v1582
      %1648 = vmatprep.subr.mxu0 0.0
      %1649 = vmatpush2.xpose.msra.mxu0 %v1579
      %1650 = vmatprep.subr.mxu0 0.0
      %1651 = vmatpush2.xpose.msra.mxu0 %v1576
      %1652 = vmatprep.subr.mxu0 0.0
      %1653 = vmatpush2.xpose.msra.mxu0 %v1573
      %1654 = vmatprep.subr.mxu0 0.0
      %1655 = vmatpush2.xpose.msra.mxu0 %v1570
      %1656 = vmatprep.subr.mxu0 0.0
      %1657 = vmatpush2.xpose.msra.mxu0 %v1567
      %1658 = vmatprep.subr.mxu0 0.0
      %1659 = vmatpush2.xpose.msra.mxu0 %v1564
      %1660 = vmatprep.subr.mxu0 0.0
      %1661 = vmatpush2.xpose.msra.mxu0 %v1561
      %1662 = vmatprep.subr.mxu0 0.0
      %1663 = vmatpush2.xpose.msra.mxu0 %v1558
      %1664 = vmatprep.subr.mxu0 0.0
      %1665 = vmatpush2.xpose.msra.mxu0 %v1555
      %1666 = vmatprep.mubr.f32.mxu0 0.0
      %1667 = vmatmul.mubr.f32.gmra.mxu0 %v1411
      %v1668 = vpop.f32.mrf.mxu0
      %v1669 = vadd.f32 0.0, %v1668
      %v1670 = vpop.f32.mrf.mxu0
      %v1671 = vadd.f32 0.0, %v1670
      %1672 = vmatprep.mubr.f32.mxu0 0.0
      %1673 = vmatmul.mubr.f32.gmra.mxu0 %v1414
      %v1674 = vpop.f32.mrf.mxu0
      %v1675 = vadd.f32 0.0, %v1674
      %v1676 = vpop.f32.mrf.mxu0
      %v1677 = vadd.f32 0.0, %v1676
      %1678 = vmatprep.mubr.f32.mxu0 0.0
      %1679 = vmatmul.mubr.f32.gmra.mxu0 %v1417
      %v1680 = vpop.f32.mrf.mxu0
      %v1681 = vadd.f32 0.0, %v1680
      %v1682 = vpop.f32.mrf.mxu0
      %v1683 = vadd.f32 0.0, %v1682
      %1684 = vmatprep.mubr.f32.mxu0 0.0
      %1685 = vmatmul.mubr.f32.gmra.mxu0 %v1420
      %v1686 = vpop.f32.mrf.mxu0
      %v1687 = vadd.f32 0.0, %v1686
      %v1688 = vpop.f32.mrf.mxu0
      %v1689 = vadd.f32 0.0, %v1688
      %1690 = vmatprep.mubr.f32.mxu0 0.0
      %1691 = vmatmul.mubr.f32.gmra.mxu0 %v1423
      %v1692 = vpop.f32.mrf.mxu0
      %v1693 = vadd.f32 0.0, %v1692
      %v1694 = vpop.f32.mrf.mxu0
      %v1695 = vadd.f32 0.0, %v1694
      %1696 = vmatprep.mubr.f32.mxu0 0.0
      %1697 = vmatmul.mubr.f32.gmra.mxu0 %v1426
      %v1698 = vpop.f32.mrf.mxu0
      %v1699 = vadd.f32 0.0, %v1698
      %v1700 = vpop.f32.mrf.mxu0
      %v1701 = vadd.f32 0.0, %v1700
      %1702 = vmatprep.mubr.f32.mxu0 0.0
      %1703 = vmatmul.mubr.f32.gmra.mxu0 %v1429
      %v1704 = vpop.f32.mrf.mxu0
      %v1705 = vadd.f32 0.0, %v1704
      %v1706 = vpop.f32.mrf.mxu0
      %v1707 = vadd.f32 0.0, %v1706
      %1708 = vmatprep.mubr.f32.mxu0 0.0
      %1709 = vmatmul.mubr.f32.gmra.mxu0 %v1432
      %v1710 = vpop.f32.mrf.mxu0
      %v1711 = vadd.f32 0.0, %v1710
      %v1712 = vpop.f32.mrf.mxu0
      %v1713 = vadd.f32 0.0, %v1712
      %1714 = vmatprep.mubr.f32.mxu0 0.0
      %1715 = vmatmul.mubr.f32.gmra.mxu0 %v1435
      %v1716 = vpop.f32.mrf.mxu0
      %v1717 = vadd.f32 0.0, %v1716
      %v1718 = vpop.f32.mrf.mxu0
      %v1719 = vadd.f32 0.0, %v1718
      %1720 = vmatprep.mubr.f32.mxu0 0.0
      %1721 = vmatmul.mubr.f32.gmra.mxu0 %v1438
      %v1722 = vpop.f32.mrf.mxu0
      %v1723 = vadd.f32 0.0, %v1722
      %v1724 = vpop.f32.mrf.mxu0
      %v1725 = vadd.f32 0.0, %v1724
      %1726 = vmatprep.mubr.f32.mxu0 0.0
      %1727 = vmatmul.mubr.f32.gmra.mxu0 %v1441
      %v1728 = vpop.f32.mrf.mxu0
      %v1729 = vadd.f32 0.0, %v1728
      %v1730 = vpop.f32.mrf.mxu0
      %v1731 = vadd.f32 0.0, %v1730
      %1732 = vmatprep.mubr.f32.mxu0 0.0
      %1733 = vmatmul.mubr.f32.gmra.mxu0 %v1444
      %v1734 = vpop.f32.mrf.mxu0
      %v1735 = vadd.f32 0.0, %v1734
      %v1736 = vpop.f32.mrf.mxu0
      %v1737 = vadd.f32 0.0, %v1736
      %1738 = vmatprep.mubr.f32.mxu0 0.0
      %1739 = vmatmul.mubr.f32.gmra.mxu0 %v1447
      %v1740 = vpop.f32.mrf.mxu0
      %v1741 = vadd.f32 0.0, %v1740
      %v1742 = vpop.f32.mrf.mxu0
      %v1743 = vadd.f32 0.0, %v1742
      %1744 = vmatprep.mubr.f32.mxu0 0.0
      %1745 = vmatmul.mubr.f32.gmra.mxu0 %v1450
      %v1746 = vpop.f32.mrf.mxu0
      %v1747 = vadd.f32 0.0, %v1746
      %v1748 = vpop.f32.mrf.mxu0
      %v1749 = vadd.f32 0.0, %v1748
      %1750 = vmatprep.mubr.f32.mxu0 0.0
      %1751 = vmatmul.mubr.f32.gmra.mxu0 %v1453
      %v1752 = vpop.f32.mrf.mxu0
      %v1753 = vadd.f32 0.0, %v1752
      %v1754 = vpop.f32.mrf.mxu0
      %v1755 = vadd.f32 0.0, %v1754
      %1756 = vmatprep.mubr.f32.mxu0 0.0
      %1757 = vmatmul.mubr.f32.gmra.mxu0 %v1456
      %v1758 = vpop.f32.mrf.mxu0
      %v1759 = vadd.f32 0.0, %v1758
      %v1760 = vpop.f32.mrf.mxu0
      %v1761 = vadd.f32 0.0, %v1760
      %1762 = vmatprep.mubr.f32.mxu0 0.0
      %1763 = vmatmul.mubr.f32.gmra.mxu0 %v1459
      %v1764 = vpop.f32.mrf.mxu0
      %v1765 = vadd.f32 0.0, %v1764
      %v1766 = vpop.f32.mrf.mxu0
      %v1767 = vadd.f32 0.0, %v1766
      %1768 = vmatprep.mubr.f32.mxu0 0.0
      %1769 = vmatmul.mubr.f32.gmra.mxu0 %v1462
      %v1770 = vpop.f32.mrf.mxu0
      %v1771 = vadd.f32 0.0, %v1770
      %v1772 = vpop.f32.mrf.mxu0
      %v1773 = vadd.f32 0.0, %v1772
      %1774 = vmatprep.mubr.f32.mxu0 0.0
      %1775 = vmatmul.mubr.f32.gmra.mxu0 %v1465
      %v1776 = vpop.f32.mrf.mxu0
      %v1777 = vadd.f32 0.0, %v1776
      %v1778 = vpop.f32.mrf.mxu0
      %v1779 = vadd.f32 0.0, %v1778
      %1780 = vmatprep.mubr.f32.mxu0 0.0
      %1781 = vmatmul.mubr.f32.gmra.mxu0 %v1468
      %v1782 = vpop.f32.mrf.mxu0
      %v1783 = vadd.f32 0.0, %v1782
      %v1784 = vpop.f32.mrf.mxu0
      %v1785 = vadd.f32 0.0, %v1784
      %1786 = vmatprep.mubr.f32.mxu0 0.0
      %1787 = vmatmul.mubr.f32.gmra.mxu0 %v1471
      %v1788 = vpop.f32.mrf.mxu0
      %v1789 = vadd.f32 0.0, %v1788
      %v1790 = vpop.f32.mrf.mxu0
      %v1791 = vadd.f32 0.0, %v1790
      %1792 = vmatprep.mubr.f32.mxu0 0.0
      %1793 = vmatmul.mubr.f32.gmra.mxu0 %v1474
      %v1794 = vpop.f32.mrf.mxu0
      %v1795 = vadd.f32 0.0, %v1794
      %v1796 = vpop.f32.mrf.mxu0
      %v1797 = vadd.f32 0.0, %v1796
      %1798 = vmatprep.mubr.f32.mxu0 0.0
      %1799 = vmatmul.mubr.f32.gmra.mxu0 %v1477
      %v1800 = vpop.f32.mrf.mxu0
      %v1801 = vadd.f32 0.0, %v1800
      %v1802 = vpop.f32.mrf.mxu0
      %v1803 = vadd.f32 0.0, %v1802
      %1804 = vmatprep.mubr.f32.mxu0 0.0
      %1805 = vmatmul.mubr.f32.gmra.mxu0 %v1480
      %v1806 = vpop.f32.mrf.mxu0
      %v1807 = vadd.f32 0.0, %v1806
      %v1808 = vpop.f32.mrf.mxu0
      %v1809 = vadd.f32 0.0, %v1808
      %1810 = vmatprep.mubr.f32.mxu0 0.0
      %1811 = vmatmul.mubr.f32.gmra.mxu0 %v1483
      %v1812 = vpop.f32.mrf.mxu0
      %v1813 = vadd.f32 0.0, %v1812
      %v1814 = vpop.f32.mrf.mxu0
      %v1815 = vadd.f32 0.0, %v1814
      %1816 = vmatprep.mubr.f32.mxu0 0.0
      %1817 = vmatmul.mubr.f32.gmra.mxu0 %v1486
      %v1818 = vpop.f32.mrf.mxu0
      %v1819 = vadd.f32 0.0, %v1818
      %v1820 = vpop.f32.mrf.mxu0
      %v1821 = vadd.f32 0.0, %v1820
      %1822 = vmatprep.mubr.f32.mxu0 0.0
      %1823 = vmatmul.mubr.f32.gmra.mxu0 %v1489
      %v1824 = vpop.f32.mrf.mxu0
      %v1825 = vadd.f32 0.0, %v1824
      %v1826 = vpop.f32.mrf.mxu0
      %v1827 = vadd.f32 0.0, %v1826
      %1828 = vmatprep.mubr.f32.mxu0 0.0
      %1829 = vmatmul.mubr.f32.gmra.mxu0 %v1492
      %v1830 = vpop.f32.mrf.mxu0
      %v1831 = vadd.f32 0.0, %v1830
      %v1832 = vpop.f32.mrf.mxu0
      %v1833 = vadd.f32 0.0, %v1832
      %1834 = vmatprep.mubr.f32.mxu0 0.0
      %1835 = vmatmul.mubr.f32.gmra.mxu0 %v1495
      %v1836 = vpop.f32.mrf.mxu0
      %v1837 = vadd.f32 0.0, %v1836
      %v1838 = vpop.f32.mrf.mxu0
      %v1839 = vadd.f32 0.0, %v1838
      %1840 = vmatprep.mubr.f32.mxu0 0.0
      %1841 = vmatmul.mubr.f32.gmra.mxu0 %v1498
      %v1842 = vpop.f32.mrf.mxu0
      %v1843 = vadd.f32 0.0, %v1842
      %v1844 = vpop.f32.mrf.mxu0
      %v1845 = vadd.f32 0.0, %v1844
      %1846 = vmatprep.mubr.f32.mxu0 0.0
      %1847 = vmatmul.mubr.f32.gmra.mxu0 %v1501
      %v1848 = vpop.f32.mrf.mxu0
      %v1849 = vadd.f32 0.0, %v1848
      %v1850 = vpop.f32.mrf.mxu0
      %v1851 = vadd.f32 0.0, %v1850
      %1852 = vmatprep.mubr.f32.mxu0 0.0
      %1853 = vmatmul.mubr.f32.gmra.mxu0 %v1504
      %v1854 = vpop.f32.mrf.mxu0
      %v1855 = vadd.f32 0.0, %v1854
      %v1856 = vpop.f32.mrf.mxu0
      %v1857 = vadd.f32 0.0, %v1856
      %1858 = vdwg.mxu0
      %v1859 = vmax.f32 %v1669, %v1671
      %1860 = vmax.xlane.f32.xlu0 %v1859
      %v1861 = vpop.xlane.xlu0 %1860
      %v1862 = vmax.f32 %v1675, %v1677
      %1863 = vmax.xlane.f32.xlu0 %v1862
      %v1864 = vpop.xlane.xlu0 %1863
      %v1865 = vmax.f32 %v1681, %v1683
      %1866 = vmax.xlane.f32.xlu0 %v1865
      %v1867 = vpop.xlane.xlu0 %1866
      %v1868 = vmax.f32 %v1687, %v1689
      %1869 = vmax.xlane.f32.xlu0 %v1868
      %v1870 = vpop.xlane.xlu0 %1869
      %v1871 = vmax.f32 %v1693, %v1695
      %1872 = vmax.xlane.f32.xlu0 %v1871
      %v1873 = vpop.xlane.xlu0 %1872
      %v1874 = vmax.f32 %v1699, %v1701
      %1875 = vmax.xlane.f32.xlu0 %v1874
      %v1876 = vpop.xlane.xlu0 %1875
      %v1877 = vmax.f32 %v1705, %v1707
      %1878 = vmax.xlane.f32.xlu0 %v1877
      %v1879 = vpop.xlane.xlu0 %1878
      %v1880 = vmax.f32 %v1711, %v1713
      %1881 = vmax.xlane.f32.xlu0 %v1880
      %v1882 = vpop.xlane.xlu0 %1881
      %v1883 = vmax.f32 %v1717, %v1719
      %1884 = vmax.xlane.f32.xlu0 %v1883
      %v1885 = vpop.xlane.xlu0 %1884
      %v1886 = vmax.f32 %v1723, %v1725
      %1887 = vmax.xlane.f32.xlu0 %v1886
      %v1888 = vpop.xlane.xlu0 %1887
      %v1889 = vmax.f32 %v1729, %v1731
      %1890 = vmax.xlane.f32.xlu0 %v1889
      %v1891 = vpop.xlane.xlu0 %1890
      %v1892 = vmax.f32 %v1735, %v1737
      %1893 = vmax.xlane.f32.xlu0 %v1892
      %v1894 = vpop.xlane.xlu0 %1893
      %v1895 = vmax.f32 %v1741, %v1743
      %1896 = vmax.xlane.f32.xlu0 %v1895
      %v1897 = vpop.xlane.xlu0 %1896
      %v1898 = vmax.f32 %v1747, %v1749
      %1899 = vmax.xlane.f32.xlu0 %v1898
      %v1900 = vpop.xlane.xlu0 %1899
      %v1901 = vmax.f32 %v1753, %v1755
      %1902 = vmax.xlane.f32.xlu0 %v1901
      %v1903 = vpop.xlane.xlu0 %1902
      %v1904 = vmax.f32 %v1759, %v1761
      %1905 = vmax.xlane.f32.xlu0 %v1904
      %v1906 = vpop.xlane.xlu0 %1905
      %v1907 = vmax.f32 %v1765, %v1767
      %1908 = vmax.xlane.f32.xlu0 %v1907
      %v1909 = vpop.xlane.xlu0 %1908
      %v1910 = vmax.f32 %v1771, %v1773
      %1911 = vmax.xlane.f32.xlu0 %v1910
      %v1912 = vpop.xlane.xlu0 %1911
      %v1913 = vmax.f32 %v1777, %v1779
      %1914 = vmax.xlane.f32.xlu0 %v1913
      %v1915 = vpop.xlane.xlu0 %1914
      %v1916 = vmax.f32 %v1783, %v1785
      %1917 = vmax.xlane.f32.xlu0 %v1916
      %v1918 = vpop.xlane.xlu0 %1917
      %v1919 = vmax.f32 %v1789, %v1791
      %1920 = vmax.xlane.f32.xlu0 %v1919
      %v1921 = vpop.xlane.xlu0 %1920
      %v1922 = vmax.f32 %v1795, %v1797
      %1923 = vmax.xlane.f32.xlu0 %v1922
      %v1924 = vpop.xlane.xlu0 %1923
      %v1925 = vmax.f32 %v1801, %v1803
      %1926 = vmax.xlane.f32.xlu0 %v1925
      %v1927 = vpop.xlane.xlu0 %1926
      %v1928 = vmax.f32 %v1807, %v1809
      %1929 = vmax.xlane.f32.xlu0 %v1928
      %v1930 = vpop.xlane.xlu0 %1929
      %v1931 = vmax.f32 %v1813, %v1815
      %1932 = vmax.xlane.f32.xlu0 %v1931
      %v1933 = vpop.xlane.xlu0 %1932
      %v1934 = vmax.f32 %v1819, %v1821
      %1935 = vmax.xlane.f32.xlu0 %v1934
      %v1936 = vpop.xlane.xlu0 %1935
      %v1937 = vmax.f32 %v1825, %v1827
      %1938 = vmax.xlane.f32.xlu0 %v1937
      %v1939 = vpop.xlane.xlu0 %1938
      %v1940 = vmax.f32 %v1831, %v1833
      %1941 = vmax.xlane.f32.xlu0 %v1940
      %v1942 = vpop.xlane.xlu0 %1941
      %v1943 = vmax.f32 %v1837, %v1839
      %1944 = vmax.xlane.f32.xlu0 %v1943
      %v1945 = vpop.xlane.xlu0 %1944
      %v1946 = vmax.f32 %v1843, %v1845
      %1947 = vmax.xlane.f32.xlu0 %v1946
      %v1948 = vpop.xlane.xlu0 %1947
      %v1949 = vmax.f32 %v1849, %v1851
      %1950 = vmax.xlane.f32.xlu0 %v1949
      %v1951 = vpop.xlane.xlu0 %1950
      %v1952 = vmax.f32 %v1855, %v1857
      %1953 = vmax.xlane.f32.xlu0 %v1952
      %v1954 = vpop.xlane.xlu0 %1953
      %v1955 = vsub.f32 %v1669, %v1861
      %v1956 = vsub.f32 %v1671, %v1861
      %v1957 = vsub.f32 %v1675, %v1864
      %v1958 = vsub.f32 %v1677, %v1864
      %v1959 = vsub.f32 %v1681, %v1867
      %v1960 = vsub.f32 %v1683, %v1867
      %v1961 = vsub.f32 %v1687, %v1870
      %v1962 = vsub.f32 %v1689, %v1870
      %v1963 = vsub.f32 %v1693, %v1873
      %v1964 = vsub.f32 %v1695, %v1873
      %v1965 = vsub.f32 %v1699, %v1876
      %v1966 = vsub.f32 %v1701, %v1876
      %v1967 = vsub.f32 %v1705, %v1879
      %v1968 = vsub.f32 %v1707, %v1879
      %v1969 = vsub.f32 %v1711, %v1882
      %v1970 = vsub.f32 %v1713, %v1882
      %v1971 = vsub.f32 %v1717, %v1885
      %v1972 = vsub.f32 %v1719, %v1885
      %v1973 = vsub.f32 %v1723, %v1888
      %v1974 = vsub.f32 %v1725, %v1888
      %v1975 = vsub.f32 %v1729, %v1891
      %v1976 = vsub.f32 %v1731, %v1891
      %v1977 = vsub.f32 %v1735, %v1894
      %v1978 = vsub.f32 %v1737, %v1894
      %v1979 = vsub.f32 %v1741, %v1897
      %v1980 = vsub.f32 %v1743, %v1897
      %v1981 = vsub.f32 %v1747, %v1900
      %v1982 = vsub.f32 %v1749, %v1900
      %v1983 = vsub.f32 %v1753, %v1903
      %v1984 = vsub.f32 %v1755, %v1903
      %v1985 = vsub.f32 %v1759, %v1906
      %v1986 = vsub.f32 %v1761, %v1906
      %v1987 = vsub.f32 %v1765, %v1909
      %v1988 = vsub.f32 %v1767, %v1909
      %v1989 = vsub.f32 %v1771, %v1912
      %v1990 = vsub.f32 %v1773, %v1912
      %v1991 = vsub.f32 %v1777, %v1915
      %v1992 = vsub.f32 %v1779, %v1915
      %v1993 = vsub.f32 %v1783, %v1918
      %v1994 = vsub.f32 %v1785, %v1918
      %v1995 = vsub.f32 %v1789, %v1921
      %v1996 = vsub.f32 %v1791, %v1921
      %v1997 = vsub.f32 %v1795, %v1924
      %v1998 = vsub.f32 %v1797, %v1924
      %v1999 = vsub.f32 %v1801, %v1927
      %v2000 = vsub.f32 %v1803, %v1927
      %v2001 = vsub.f32 %v1807, %v1930
      %v2002 = vsub.f32 %v1809, %v1930
      %v2003 = vsub.f32 %v1813, %v1933
      %v2004 = vsub.f32 %v1815, %v1933
      %v2005 = vsub.f32 %v1819, %v1936
      %v2006 = vsub.f32 %v1821, %v1936
      %v2007 = vsub.f32 %v1825, %v1939
      %v2008 = vsub.f32 %v1827, %v1939
      %v2009 = vsub.f32 %v1831, %v1942
      %v2010 = vsub.f32 %v1833, %v1942
      %v2011 = vsub.f32 %v1837, %v1945
      %v2012 = vsub.f32 %v1839, %v1945
      %v2013 = vsub.f32 %v1843, %v1948
      %v2014 = vsub.f32 %v1845, %v1948
      %v2015 = vsub.f32 %v1849, %v1951
      %v2016 = vsub.f32 %v1851, %v1951
      %v2017 = vsub.f32 %v1855, %v1954
      %v2018 = vsub.f32 %v1857, %v1954
      %v2019 = vmul.f32 %v1955, 1.442695
      %v2020 = vpow.pop %v2019
      %v2021 = vmul.f32 %v1956, 1.442695
      %v2022 = vpow.pop %v2021
      %v2023 = vmul.f32 %v1957, 1.442695
      %v2024 = vpow.pop %v2023
      %v2025 = vmul.f32 %v1958, 1.442695
      %v2026 = vpow.pop %v2025
      %v2027 = vmul.f32 %v1959, 1.442695
      %v2028 = vpow.pop %v2027
      %v2029 = vmul.f32 %v1960, 1.442695
      %v2030 = vpow.pop %v2029
      %v2031 = vmul.f32 %v1961, 1.442695
      %v2032 = vpow.pop %v2031
      %v2033 = vmul.f32 %v1962, 1.442695
      %v2034 = vpow.pop %v2033
      %v2035 = vmul.f32 %v1963, 1.442695
      %v2036 = vpow.pop %v2035
      %v2037 = vmul.f32 %v1964, 1.442695
      %v2038 = vpow.pop %v2037
      %v2039 = vmul.f32 %v1965, 1.442695
      %v2040 = vpow.pop %v2039
      %v2041 = vmul.f32 %v1966, 1.442695
      %v2042 = vpow.pop %v2041
      %v2043 = vmul.f32 %v1967, 1.442695
      %v2044 = vpow.pop %v2043
      %v2045 = vmul.f32 %v1968, 1.442695
      %v2046 = vpow.pop %v2045
      %v2047 = vmul.f32 %v1969, 1.442695
      %v2048 = vpow.pop %v2047
      %v2049 = vmul.f32 %v1970, 1.442695
      %v2050 = vpow.pop %v2049
      %v2051 = vmul.f32 %v1971, 1.442695
      %v2052 = vpow.pop %v2051
      %v2053 = vmul.f32 %v1972, 1.442695
      %v2054 = vpow.pop %v2053
      %v2055 = vmul.f32 %v1973, 1.442695
      %v2056 = vpow.pop %v2055
      %v2057 = vmul.f32 %v1974, 1.442695
      %v2058 = vpow.pop %v2057
      %v2059 = vmul.f32 %v1975, 1.442695
      %v2060 = vpow.pop %v2059
      %v2061 = vmul.f32 %v1976, 1.442695
      %v2062 = vpow.pop %v2061
      %v2063 = vmul.f32 %v1977, 1.442695
      %v2064 = vpow.pop %v2063
      %v2065 = vmul.f32 %v1978, 1.442695
      %v2066 = vpow.pop %v2065
      %v2067 = vmul.f32 %v1979, 1.442695
      %v2068 = vpow.pop %v2067
      %v2069 = vmul.f32 %v1980, 1.442695
      %v2070 = vpow.pop %v2069
      %v2071 = vmul.f32 %v1981, 1.442695
      %v2072 = vpow.pop %v2071
      %v2073 = vmul.f32 %v1982, 1.442695
      %v2074 = vpow.pop %v2073
      %v2075 = vmul.f32 %v1983, 1.442695
      %v2076 = vpow.pop %v2075
      %v2077 = vmul.f32 %v1984, 1.442695
      %v2078 = vpow.pop %v2077
      %v2079 = vmul.f32 %v1985, 1.442695
      %v2080 = vpow.pop %v2079
      %v2081 = vmul.f32 %v1986, 1.442695
      %v2082 = vpow.pop %v2081
      %v2083 = vmul.f32 %v1987, 1.442695
      %v2084 = vpow.pop %v2083
      %v2085 = vmul.f32 %v1988, 1.442695
      %v2086 = vpow.pop %v2085
      %v2087 = vmul.f32 %v1989, 1.442695
      %v2088 = vpow.pop %v2087
      %v2089 = vmul.f32 %v1990, 1.442695
      %v2090 = vpow.pop %v2089
      %v2091 = vmul.f32 %v1991, 1.442695
      %v2092 = vpow.pop %v2091
      %v2093 = vmul.f32 %v1992, 1.442695
      %v2094 = vpow.pop %v2093
      %v2095 = vmul.f32 %v1993, 1.442695
      %v2096 = vpow.pop %v2095
      %v2097 = vmul.f32 %v1994, 1.442695
      %v2098 = vpow.pop %v2097
      %v2099 = vmul.f32 %v1995, 1.442695
      %v2100 = vpow.pop %v2099
      %v2101 = vmul.f32 %v1996, 1.442695
      %v2102 = vpow.pop %v2101
      %v2103 = vmul.f32 %v1997, 1.442695
      %v2104 = vpow.pop %v2103
      %v2105 = vmul.f32 %v1998, 1.442695
      %v2106 = vpow.pop %v2105
      %v2107 = vmul.f32 %v1999, 1.442695
      %v2108 = vpow.pop %v2107
      %v2109 = vmul.f32 %v2000, 1.442695
      %v2110 = vpow.pop %v2109
      %v2111 = vmul.f32 %v2001, 1.442695
      %v2112 = vpow.pop %v2111
      %v2113 = vmul.f32 %v2002, 1.442695
      %v2114 = vpow.pop %v2113
      %v2115 = vmul.f32 %v2003, 1.442695
      %v2116 = vpow.pop %v2115
      %v2117 = vmul.f32 %v2004, 1.442695
      %v2118 = vpow.pop %v2117
      %v2119 = vmul.f32 %v2005, 1.442695
      %v2120 = vpow.pop %v2119
      %v2121 = vmul.f32 %v2006, 1.442695
      %v2122 = vpow.pop %v2121
      %v2123 = vmul.f32 %v2007, 1.442695
      %v2124 = vpow.pop %v2123
      %v2125 = vmul.f32 %v2008, 1.442695
      %v2126 = vpow.pop %v2125
      %v2127 = vmul.f32 %v2009, 1.442695
      %v2128 = vpow.pop %v2127
      %v2129 = vmul.f32 %v2010, 1.442695
      %v2130 = vpow.pop %v2129
      %v2131 = vmul.f32 %v2011, 1.442695
      %v2132 = vpow.pop %v2131
      %v2133 = vmul.f32 %v2012, 1.442695
      %v2134 = vpow.pop %v2133
      %v2135 = vmul.f32 %v2013, 1.442695
      %v2136 = vpow.pop %v2135
      %v2137 = vmul.f32 %v2014, 1.442695
      %v2138 = vpow.pop %v2137
      %v2139 = vmul.f32 %v2015, 1.442695
      %v2140 = vpow.pop %v2139
      %v2141 = vmul.f32 %v2016, 1.442695
      %v2142 = vpow.pop %v2141
      %v2143 = vmul.f32 %v2017, 1.442695
      %v2144 = vpow.pop %v2143
      %v2145 = vmul.f32 %v2018, 1.442695
      %v2146 = vpow.pop %v2145
      %v2147 = vadd.f32 %v2020, %v2022
      %2148 = vadd.xlane.f32.xlu0 %v2147
      %v2149 = vpop.xlane.xlu0 %2148
      %v2150 = vadd.f32 %v2024, %v2026
      %2151 = vadd.xlane.f32.xlu0 %v2150
      %v2152 = vpop.xlane.xlu0 %2151
      %v2153 = vadd.f32 %v2028, %v2030
      %2154 = vadd.xlane.f32.xlu0 %v2153
      %v2155 = vpop.xlane.xlu0 %2154
      %v2156 = vadd.f32 %v2032, %v2034
      %2157 = vadd.xlane.f32.xlu0 %v2156
      %v2158 = vpop.xlane.xlu0 %2157
      %v2159 = vadd.f32 %v2036, %v2038
      %2160 = vadd.xlane.f32.xlu0 %v2159
      %v2161 = vpop.xlane.xlu0 %2160
      %v2162 = vadd.f32 %v2040, %v2042
      %2163 = vadd.xlane.f32.xlu0 %v2162
      %v2164 = vpop.xlane.xlu0 %2163
      %v2165 = vadd.f32 %v2044, %v2046
      %2166 = vadd.xlane.f32.xlu0 %v2165
      %v2167 = vpop.xlane.xlu0 %2166
      %v2168 = vadd.f32 %v2048, %v2050
      %2169 = vadd.xlane.f32.xlu0 %v2168
      %v2170 = vpop.xlane.xlu0 %2169
      %v2171 = vadd.f32 %v2052, %v2054
      %2172 = vadd.xlane.f32.xlu0 %v2171
      %v2173 = vpop.xlane.xlu0 %2172
      %v2174 = vadd.f32 %v2056, %v2058
      %2175 = vadd.xlane.f32.xlu0 %v2174
      %v2176 = vpop.xlane.xlu0 %2175
      %v2177 = vadd.f32 %v2060, %v2062
      %2178 = vadd.xlane.f32.xlu0 %v2177
      %v2179 = vpop.xlane.xlu0 %2178
      %v2180 = vadd.f32 %v2064, %v2066
      %2181 = vadd.xlane.f32.xlu0 %v2180
      %v2182 = vpop.xlane.xlu0 %2181
      %v2183 = vadd.f32 %v2068, %v2070
      %2184 = vadd.xlane.f32.xlu0 %v2183
      %v2185 = vpop.xlane.xlu0 %2184
      %v2186 = vadd.f32 %v2072, %v2074
      %2187 = vadd.xlane.f32.xlu0 %v2186
      %v2188 = vpop.xlane.xlu0 %2187
      %v2189 = vadd.f32 %v2076, %v2078
      %2190 = vadd.xlane.f32.xlu0 %v2189
      %v2191 = vpop.xlane.xlu0 %2190
      %v2192 = vadd.f32 %v2080, %v2082
      %2193 = vadd.xlane.f32.xlu0 %v2192
      %v2194 = vpop.xlane.xlu0 %2193
      %v2195 = vadd.f32 %v2084, %v2086
      %2196 = vadd.xlane.f32.xlu0 %v2195
      %v2197 = vpop.xlane.xlu0 %2196
      %v2198 = vadd.f32 %v2088, %v2090
      %2199 = vadd.xlane.f32.xlu0 %v2198
      %v2200 = vpop.xlane.xlu0 %2199
      %v2201 = vadd.f32 %v2092, %v2094
      %2202 = vadd.xlane.f32.xlu0 %v2201
      %v2203 = vpop.xlane.xlu0 %2202
      %v2204 = vadd.f32 %v2096, %v2098
      %2205 = vadd.xlane.f32.xlu0 %v2204
      %v2206 = vpop.xlane.xlu0 %2205
      %v2207 = vadd.f32 %v2100, %v2102
      %2208 = vadd.xlane.f32.xlu0 %v2207
      %v2209 = vpop.xlane.xlu0 %2208
      %v2210 = vadd.f32 %v2104, %v2106
      %2211 = vadd.xlane.f32.xlu0 %v2210
      %v2212 = vpop.xlane.xlu0 %2211
      %v2213 = vadd.f32 %v2108, %v2110
      %2214 = vadd.xlane.f32.xlu0 %v2213
      %v2215 = vpop.xlane.xlu0 %2214
      %v2216 = vadd.f32 %v2112, %v2114
      %2217 = vadd.xlane.f32.xlu0 %v2216
      %v2218 = vpop.xlane.xlu0 %2217
      %v2219 = vadd.f32 %v2116, %v2118
      %2220 = vadd.xlane.f32.xlu0 %v2219
      %v2221 = vpop.xlane.xlu0 %2220
      %v2222 = vadd.f32 %v2120, %v2122
      %2223 = vadd.xlane.f32.xlu0 %v2222
      %v2224 = vpop.xlane.xlu0 %2223
      %v2225 = vadd.f32 %v2124, %v2126
      %2226 = vadd.xlane.f32.xlu0 %v2225
      %v2227 = vpop.xlane.xlu0 %2226
      %v2228 = vadd.f32 %v2128, %v2130
      %2229 = vadd.xlane.f32.xlu0 %v2228
      %v2230 = vpop.xlane.xlu0 %2229
      %v2231 = vadd.f32 %v2132, %v2134
      %2232 = vadd.xlane.f32.xlu0 %v2231
      %v2233 = vpop.xlane.xlu0 %2232
      %v2234 = vadd.f32 %v2136, %v2138
      %2235 = vadd.xlane.f32.xlu0 %v2234
      %v2236 = vpop.xlane.xlu0 %2235
      %v2237 = vadd.f32 %v2140, %v2142
      %2238 = vadd.xlane.f32.xlu0 %v2237
      %v2239 = vpop.xlane.xlu0 %2238
      %v2240 = vadd.f32 %v2144, %v2146
      %2241 = vadd.xlane.f32.xlu0 %v2240
      %v2242 = vpop.xlane.xlu0 %2241
      %v2243 = vrcp.pop %v2149
      %v2244 = vrcp.pop %v2152
      %v2245 = vrcp.pop %v2155
      %v2246 = vrcp.pop %v2158
      %v2247 = vrcp.pop %v2161
      %v2248 = vrcp.pop %v2164
      %v2249 = vrcp.pop %v2167
      %v2250 = vrcp.pop %v2170
      %v2251 = vrcp.pop %v2173
      %v2252 = vrcp.pop %v2176
      %v2253 = vrcp.pop %v2179
      %v2254 = vrcp.pop %v2182
      %v2255 = vrcp.pop %v2185
      %v2256 = vrcp.pop %v2188
      %v2257 = vrcp.pop %v2191
      %v2258 = vrcp.pop %v2194
      %v2259 = vrcp.pop %v2197
      %v2260 = vrcp.pop %v2200
      %v2261 = vrcp.pop %v2203
      %v2262 = vrcp.pop %v2206
      %v2263 = vrcp.pop %v2209
      %v2264 = vrcp.pop %v2212
      %v2265 = vrcp.pop %v2215
      %v2266 = vrcp.pop %v2218
      %v2267 = vrcp.pop %v2221
      %v2268 = vrcp.pop %v2224
      %v2269 = vrcp.pop %v2227
      %v2270 = vrcp.pop %v2230
      %v2271 = vrcp.pop %v2233
      %v2272 = vrcp.pop %v2236
      %v2273 = vrcp.pop %v2239
      %v2274 = vrcp.pop %v2242
      %v2275 = vmul.f32 %v2020, %v2243
      %v2276 = vmul.f32 %v2022, %v2243
      %v2277 = vmul.f32 %v2024, %v2244
      %v2278 = vmul.f32 %v2026, %v2244
      %v2279 = vmul.f32 %v2028, %v2245
      %v2280 = vmul.f32 %v2030, %v2245
      %v2281 = vmul.f32 %v2032, %v2246
      %v2282 = vmul.f32 %v2034, %v2246
      %v2283 = vmul.f32 %v2036, %v2247
      %v2284 = vmul.f32 %v2038, %v2247
      %v2285 = vmul.f32 %v2040, %v2248
      %v2286 = vmul.f32 %v2042, %v2248
      %v2287 = vmul.f32 %v2044, %v2249
      %v2288 = vmul.f32 %v2046, %v2249
      %v2289 = vmul.f32 %v2048, %v2250
      %v2290 = vmul.f32 %v2050, %v2250
      %v2291 = vmul.f32 %v2052, %v2251
      %v2292 = vmul.f32 %v2054, %v2251
      %v2293 = vmul.f32 %v2056, %v2252
      %v2294 = vmul.f32 %v2058, %v2252
      %v2295 = vmul.f32 %v2060, %v2253
      %v2296 = vmul.f32 %v2062, %v2253
      %v2297 = vmul.f32 %v2064, %v2254
      %v2298 = vmul.f32 %v2066, %v2254
      %v2299 = vmul.f32 %v2068, %v2255
      %v2300 = vmul.f32 %v2070, %v2255
      %v2301 = vmul.f32 %v2072, %v2256
      %v2302 = vmul.f32 %v2074, %v2256
      %v2303 = vmul.f32 %v2076, %v2257
      %v2304 = vmul.f32 %v2078, %v2257
      %v2305 = vmul.f32 %v2080, %v2258
      %v2306 = vmul.f32 %v2082, %v2258
      %v2307 = vmul.f32 %v2084, %v2259
      %v2308 = vmul.f32 %v2086, %v2259
      %v2309 = vmul.f32 %v2088, %v2260
      %v2310 = vmul.f32 %v2090, %v2260
      %v2311 = vmul.f32 %v2092, %v2261
      %v2312 = vmul.f32 %v2094, %v2261
      %v2313 = vmul.f32 %v2096, %v2262
      %v2314 = vmul.f32 %v2098, %v2262
      %v2315 = vmul.f32 %v2100, %v2263
      %v2316 = vmul.f32 %v2102, %v2263
      %v2317 = vmul.f32 %v2104, %v2264
      %v2318 = vmul.f32 %v2106, %v2264
      %v2319 = vmul.f32 %v2108, %v2265
      %v2320 = vmul.f32 %v2110, %v2265
      %v2321 = vmul.f32 %v2112, %v2266
      %v2322 = vmul.f32 %v2114, %v2266
      %v2323 = vmul.f32 %v2116, %v2267
      %v2324 = vmul.f32 %v2118, %v2267
      %v2325 = vmul.f32 %v2120, %v2268
      %v2326 = vmul.f32 %v2122, %v2268
      %v2327 = vmul.f32 %v2124, %v2269
      %v2328 = vmul.f32 %v2126, %v2269
      %v2329 = vmul.f32 %v2128, %v2270
      %v2330 = vmul.f32 %v2130, %v2270
      %v2331 = vmul.f32 %v2132, %v2271
      %v2332 = vmul.f32 %v2134, %v2271
      %v2333 = vmul.f32 %v2136, %v2272
      %v2334 = vmul.f32 %v2138, %v2272
      %v2335 = vmul.f32 %v2140, %v2273
      %v2336 = vmul.f32 %v2142, %v2273
      %v2337 = vmul.f32 %v2144, %v2274
      %v2338 = vmul.f32 %v2146, %v2274
      %2339 = vmatprep.subr.mxu0 0.0
      %2340 = vmatpush1.msra.mxu0 %v1317
      %2341 = vmatprep.subr.mxu0 0.0
      %2342 = vmatpush1.msra.mxu0 %v1312
      %2343 = vmatprep.subr.mxu0 0.0
      %2344 = vmatpush1.msra.mxu0 %v1307
      %2345 = vmatprep.subr.mxu0 0.0
      %2346 = vmatpush1.msra.mxu0 %v1302
      %2347 = vmatprep.subr.mxu0 0.0
      %2348 = vmatpush1.msra.mxu0 %v1297
      %2349 = vmatprep.subr.mxu0 0.0
      %2350 = vmatpush1.msra.mxu0 %v1292
      %2351 = vmatprep.subr.mxu0 0.0
      %2352 = vmatpush1.msra.mxu0 %v1287
      %2353 = vmatprep.subr.mxu0 0.0
      %2354 = vmatpush1.msra.mxu0 %v1282
      %2355 = vmatprep.subr.mxu0 0.0
      %2356 = vmatpush1.msra.mxu0 %v1277
      %2357 = vmatprep.subr.mxu0 0.0
      %2358 = vmatpush1.msra.mxu0 %v1272
      %2359 = vmatprep.subr.mxu0 0.0
      %2360 = vmatpush1.msra.mxu0 %v1267
      %2361 = vmatprep.subr.mxu0 0.0
      %2362 = vmatpush1.msra.mxu0 %v1262
      %2363 = vmatprep.subr.mxu0 0.0
      %2364 = vmatpush1.msra.mxu0 %v1257
      %2365 = vmatprep.subr.mxu0 0.0
      %2366 = vmatpush1.msra.mxu0 %v1252
      %2367 = vmatprep.subr.mxu0 0.0
      %2368 = vmatpush1.msra.mxu0 %v1247
      %2369 = vmatprep.subr.mxu0 0.0
      %2370 = vmatpush1.msra.mxu0 %v1242
      %2371 = vmatprep.subr.mxu0 0.0
      %2372 = vmatpush2.msra.mxu0 %v1397
      %2373 = vmatprep.subr.mxu0 0.0
      %2374 = vmatpush2.msra.mxu0 %v1392
      %2375 = vmatprep.subr.mxu0 0.0
      %2376 = vmatpush2.msra.mxu0 %v1387
      %2377 = vmatprep.subr.mxu0 0.0
      %2378 = vmatpush2.msra.mxu0 %v1382
      %2379 = vmatprep.subr.mxu0 0.0
      %2380 = vmatpush2.msra.mxu0 %v1377
      %2381 = vmatprep.subr.mxu0 0.0
      %2382 = vmatpush2.msra.mxu0 %v1372
      %2383 = vmatprep.subr.mxu0 0.0
      %2384 = vmatpush2.msra.mxu0 %v1367
      %2385 = vmatprep.subr.mxu0 0.0
      %2386 = vmatpush2.msra.mxu0 %v1362
      %2387 = vmatprep.subr.mxu0 0.0
      %2388 = vmatpush2.msra.mxu0 %v1357
      %2389 = vmatprep.subr.mxu0 0.0
      %2390 = vmatpush2.msra.mxu0 %v1352
      %2391 = vmatprep.subr.mxu0 0.0
      %2392 = vmatpush2.msra.mxu0 %v1347
      %2393 = vmatprep.subr.mxu0 0.0
      %2394 = vmatpush2.msra.mxu0 %v1342
      %2395 = vmatprep.subr.mxu0 0.0
      %2396 = vmatpush2.msra.mxu0 %v1337
      %2397 = vmatprep.subr.mxu0 0.0
      %2398 = vmatpush2.msra.mxu0 %v1332
      %2399 = vmatprep.subr.mxu0 0.0
      %2400 = vmatpush2.msra.mxu0 %v1327
      %2401 = vmatprep.subr.mxu0 0.0
      %2402 = vmatpush2.msra.mxu0 %v1322
      %2403 = vmatprep.mubr.f32.mxu0 %v2276
      %2404 = vmatmul.mubr.f32.gmra.mxu0 %v2275
      %v2405 = vpop.f32.mrf.mxu0
      %v2406 = vadd.f32 0.0, %v2405
      %v2407 = vpop.f32.mrf.mxu0
      %2408 = vmatprep.mubr.f32.mxu0 %v2278
      %2409 = vmatmul.mubr.f32.gmra.mxu0 %v2277
      %v2410 = vpop.f32.mrf.mxu0
      %v2411 = vadd.f32 0.0, %v2410
      %v2412 = vpop.f32.mrf.mxu0
      %2413 = vmatprep.mubr.f32.mxu0 %v2280
      %2414 = vmatmul.mubr.f32.gmra.mxu0 %v2279
      %v2415 = vpop.f32.mrf.mxu0
      %v2416 = vadd.f32 0.0, %v2415
      %v2417 = vpop.f32.mrf.mxu0
      %2418 = vmatprep.mubr.f32.mxu0 %v2282
      %2419 = vmatmul.mubr.f32.gmra.mxu0 %v2281
      %v2420 = vpop.f32.mrf.mxu0
      %v2421 = vadd.f32 0.0, %v2420
      %v2422 = vpop.f32.mrf.mxu0
      %2423 = vmatprep.mubr.f32.mxu0 %v2284
      %2424 = vmatmul.mubr.f32.gmra.mxu0 %v2283
      %v2425 = vpop.f32.mrf.mxu0
      %v2426 = vadd.f32 0.0, %v2425
      %v2427 = vpop.f32.mrf.mxu0
      %2428 = vmatprep.mubr.f32.mxu0 %v2286
      %2429 = vmatmul.mubr.f32.gmra.mxu0 %v2285
      %v2430 = vpop.f32.mrf.mxu0
      %v2431 = vadd.f32 0.0, %v2430
      %v2432 = vpop.f32.mrf.mxu0
      %2433 = vmatprep.mubr.f32.mxu0 %v2288
      %2434 = vmatmul.mubr.f32.gmra.mxu0 %v2287
      %v2435 = vpop.f32.mrf.mxu0
      %v2436 = vadd.f32 0.0, %v2435
      %v2437 = vpop.f32.mrf.mxu0
      %2438 = vmatprep.mubr.f32.mxu0 %v2290
      %2439 = vmatmul.mubr.f32.gmra.mxu0 %v2289
      %v2440 = vpop.f32.mrf.mxu0
      %v2441 = vadd.f32 0.0, %v2440
      %v2442 = vpop.f32.mrf.mxu0
      %2443 = vmatprep.mubr.f32.mxu0 %v2292
      %2444 = vmatmul.mubr.f32.gmra.mxu0 %v2291
      %v2445 = vpop.f32.mrf.mxu0
      %v2446 = vadd.f32 0.0, %v2445
      %v2447 = vpop.f32.mrf.mxu0
      %2448 = vmatprep.mubr.f32.mxu0 %v2294
      %2449 = vmatmul.mubr.f32.gmra.mxu0 %v2293
      %v2450 = vpop.f32.mrf.mxu0
      %v2451 = vadd.f32 0.0, %v2450
      %v2452 = vpop.f32.mrf.mxu0
      %2453 = vmatprep.mubr.f32.mxu0 %v2296
      %2454 = vmatmul.mubr.f32.gmra.mxu0 %v2295
      %v2455 = vpop.f32.mrf.mxu0
      %v2456 = vadd.f32 0.0, %v2455
      %v2457 = vpop.f32.mrf.mxu0
      %2458 = vmatprep.mubr.f32.mxu0 %v2298
      %2459 = vmatmul.mubr.f32.gmra.mxu0 %v2297
      %v2460 = vpop.f32.mrf.mxu0
      %v2461 = vadd.f32 0.0, %v2460
      %v2462 = vpop.f32.mrf.mxu0
      %2463 = vmatprep.mubr.f32.mxu0 %v2300
      %2464 = vmatmul.mubr.f32.gmra.mxu0 %v2299
      %v2465 = vpop.f32.mrf.mxu0
      %v2466 = vadd.f32 0.0, %v2465
      %v2467 = vpop.f32.mrf.mxu0
      %2468 = vmatprep.mubr.f32.mxu0 %v2302
      %2469 = vmatmul.mubr.f32.gmra.mxu0 %v2301
      %v2470 = vpop.f32.mrf.mxu0
      %v2471 = vadd.f32 0.0, %v2470
      %v2472 = vpop.f32.mrf.mxu0
      %2473 = vmatprep.mubr.f32.mxu0 %v2304
      %2474 = vmatmul.mubr.f32.gmra.mxu0 %v2303
      %v2475 = vpop.f32.mrf.mxu0
      %v2476 = vadd.f32 0.0, %v2475
      %v2477 = vpop.f32.mrf.mxu0
      %2478 = vmatprep.mubr.f32.mxu0 %v2306
      %2479 = vmatmul.mubr.f32.gmra.mxu0 %v2305
      %v2480 = vpop.f32.mrf.mxu0
      %v2481 = vadd.f32 0.0, %v2480
      %v2482 = vpop.f32.mrf.mxu0
      %2483 = vmatprep.mubr.f32.mxu0 %v2308
      %2484 = vmatmul.mubr.f32.gmra.mxu0 %v2307
      %v2485 = vpop.f32.mrf.mxu0
      %v2486 = vadd.f32 0.0, %v2485
      %v2487 = vpop.f32.mrf.mxu0
      %2488 = vmatprep.mubr.f32.mxu0 %v2310
      %2489 = vmatmul.mubr.f32.gmra.mxu0 %v2309
      %v2490 = vpop.f32.mrf.mxu0
      %v2491 = vadd.f32 0.0, %v2490
      %v2492 = vpop.f32.mrf.mxu0
      %2493 = vmatprep.mubr.f32.mxu0 %v2312
      %2494 = vmatmul.mubr.f32.gmra.mxu0 %v2311
      %v2495 = vpop.f32.mrf.mxu0
      %v2496 = vadd.f32 0.0, %v2495
      %v2497 = vpop.f32.mrf.mxu0
      %2498 = vmatprep.mubr.f32.mxu0 %v2314
      %2499 = vmatmul.mubr.f32.gmra.mxu0 %v2313
      %v2500 = vpop.f32.mrf.mxu0
      %v2501 = vadd.f32 0.0, %v2500
      %v2502 = vpop.f32.mrf.mxu0
      %2503 = vmatprep.mubr.f32.mxu0 %v2316
      %2504 = vmatmul.mubr.f32.gmra.mxu0 %v2315
      %v2505 = vpop.f32.mrf.mxu0
      %v2506 = vadd.f32 0.0, %v2505
      %v2507 = vpop.f32.mrf.mxu0
      %2508 = vmatprep.mubr.f32.mxu0 %v2318
      %2509 = vmatmul.mubr.f32.gmra.mxu0 %v2317
      %v2510 = vpop.f32.mrf.mxu0
      %v2511 = vadd.f32 0.0, %v2510
      %v2512 = vpop.f32.mrf.mxu0
      %2513 = vmatprep.mubr.f32.mxu0 %v2320
      %2514 = vmatmul.mubr.f32.gmra.mxu0 %v2319
      %v2515 = vpop.f32.mrf.mxu0
      %v2516 = vadd.f32 0.0, %v2515
      %v2517 = vpop.f32.mrf.mxu0
      %2518 = vmatprep.mubr.f32.mxu0 %v2322
      %2519 = vmatmul.mubr.f32.gmra.mxu0 %v2321
      %v2520 = vpop.f32.mrf.mxu0
      %v2521 = vadd.f32 0.0, %v2520
      %v2522 = vpop.f32.mrf.mxu0
      %2523 = vmatprep.mubr.f32.mxu0 %v2324
      %2524 = vmatmul.mubr.f32.gmra.mxu0 %v2323
      %v2525 = vpop.f32.mrf.mxu0
      %v2526 = vadd.f32 0.0, %v2525
      %v2527 = vpop.f32.mrf.mxu0
      %2528 = vmatprep.mubr.f32.mxu0 %v2326
      %2529 = vmatmul.mubr.f32.gmra.mxu0 %v2325
      %v2530 = vpop.f32.mrf.mxu0
      %v2531 = vadd.f32 0.0, %v2530
      %v2532 = vpop.f32.mrf.mxu0
      %2533 = vmatprep.mubr.f32.mxu0 %v2328
      %2534 = vmatmul.mubr.f32.gmra.mxu0 %v2327
      %v2535 = vpop.f32.mrf.mxu0
      %v2536 = vadd.f32 0.0, %v2535
      %v2537 = vpop.f32.mrf.mxu0
      %2538 = vmatprep.mubr.f32.mxu0 %v2330
      %2539 = vmatmul.mubr.f32.gmra.mxu0 %v2329
      %v2540 = vpop.f32.mrf.mxu0
      %v2541 = vadd.f32 0.0, %v2540
      %v2542 = vpop.f32.mrf.mxu0
      %2543 = vmatprep.mubr.f32.mxu0 %v2332
      %2544 = vmatmul.mubr.f32.gmra.mxu0 %v2331
      %v2545 = vpop.f32.mrf.mxu0
      %v2546 = vadd.f32 0.0, %v2545
      %v2547 = vpop.f32.mrf.mxu0
      %2548 = vmatprep.mubr.f32.mxu0 %v2334
      %2549 = vmatmul.mubr.f32.gmra.mxu0 %v2333
      %v2550 = vpop.f32.mrf.mxu0
      %v2551 = vadd.f32 0.0, %v2550
      %v2552 = vpop.f32.mrf.mxu0
      %2553 = vmatprep.mubr.f32.mxu0 %v2336
      %2554 = vmatmul.mubr.f32.gmra.mxu0 %v2335
      %v2555 = vpop.f32.mrf.mxu0
      %v2556 = vadd.f32 0.0, %v2555
      %v2557 = vpop.f32.mrf.mxu0
      %2558 = vmatprep.mubr.f32.mxu0 %v2338
      %2559 = vmatmul.mubr.f32.gmra.mxu0 %v2337
      %v2560 = vpop.f32.mrf.mxu0
      %v2561 = vadd.f32 0.0, %v2560
      %v2562 = vpop.f32.mrf.mxu0
      %2563 = vdwg.mxu0
      %v2565 = vsel %vm1409, %v1400, 0
      %v2568 = vsel %vm1409, %v2406, 0
      %v2571 = vsel %vm1409, %v2411, 0
      %v2574 = vsel %vm1409, %v2416, 0
      %v2577 = vsel %vm1409, %v2421, 0
      %v2580 = vsel %vm1409, %v2426, 0
      %v2583 = vsel %vm1409, %v2431, 0
      %v2586 = vsel %vm1409, %v2436, 0
      %v2589 = vsel %vm1409, %v2441, 0
      %v2592 = vsel %vm1409, %v2446, 0
      %v2595 = vsel %vm1409, %v2451, 0
      %v2598 = vsel %vm1409, %v2456, 0
      %v2601 = vsel %vm1409, %v2461, 0
      %v2604 = vsel %vm1409, %v2466, 0
      %v2607 = vsel %vm1409, %v2471, 0
      %v2610 = vsel %vm1409, %v2476, 0
      %v2613 = vsel %vm1409, %v2481, 0
      %v2616 = vsel %vm1409, %v2486, 0
      %v2619 = vsel %vm1409, %v2491, 0
      %v2622 = vsel %vm1409, %v2496, 0
      %v2625 = vsel %vm1409, %v2501, 0
      %v2628 = vsel %vm1409, %v2506, 0
      %v2631 = vsel %vm1409, %v2511, 0
      %v2634 = vsel %vm1409, %v2516, 0
      %v2637 = vsel %vm1409, %v2521, 0
      %v2640 = vsel %vm1409, %v2526, 0
      %v2643 = vsel %vm1409, %v2531, 0
      %v2646 = vsel %vm1409, %v2536, 0
      %v2649 = vsel %vm1409, %v2541, 0
      %v2652 = vsel %vm1409, %v2546, 0
      %v2655 = vsel %vm1409, %v2551, 0
      %v2658 = vsel %vm1409, %v2556, 0
      %v2661 = vsel %vm1409, %v2561, 0
      %2663 = vmatprep.subr.mxu0 0.0
      %2664 = vmatpush1.xpose.msra.mxu0 %v2613
      %2665 = vmatprep.subr.mxu0 0.0
      %2666 = vmatpush1.xpose.msra.mxu0 %v2610
      %2667 = vmatprep.subr.mxu0 0.0
      %2668 = vmatpush1.xpose.msra.mxu0 %v2607
      %2669 = vmatprep.subr.mxu0 0.0
      %2670 = vmatpush1.xpose.msra.mxu0 %v2604
      %2671 = vmatprep.subr.mxu0 0.0
      %2672 = vmatpush1.xpose.msra.mxu0 %v2601
      %2673 = vmatprep.subr.mxu0 0.0
      %2674 = vmatpush1.xpose.msra.mxu0 %v2598
      %2675 = vmatprep.subr.mxu0 0.0
      %2676 = vmatpush1.xpose.msra.mxu0 %v2595
      %2677 = vmatprep.subr.mxu0 0.0
      %2678 = vmatpush1.xpose.msra.mxu0 %v2592
      %2679 = vmatprep.subr.mxu0 0.0
      %2680 = vmatpush1.xpose.msra.mxu0 %v2589
      %2681 = vmatprep.subr.mxu0 0.0
      %2682 = vmatpush1.xpose.msra.mxu0 %v2586
      %2683 = vmatprep.subr.mxu0 0.0
      %2684 = vmatpush1.xpose.msra.mxu0 %v2583
      %2685 = vmatprep.subr.mxu0 0.0
      %2686 = vmatpush1.xpose.msra.mxu0 %v2580
      %2687 = vmatprep.subr.mxu0 0.0
      %2688 = vmatpush1.xpose.msra.mxu0 %v2577
      %2689 = vmatprep.subr.mxu0 0.0
      %2690 = vmatpush1.xpose.msra.mxu0 %v2574
      %2691 = vmatprep.subr.mxu0 0.0
      %2692 = vmatpush1.xpose.msra.mxu0 %v2571
      %2693 = vmatprep.subr.mxu0 0.0
      %2694 = vmatpush1.xpose.msra.mxu0 %v2568
      %2695 = vmatprep.subr.mxu0 0.0
      %2696 = vmatpush2.xpose.msra.mxu0 %v2661
      %2697 = vmatprep.subr.mxu0 0.0
      %2698 = vmatpush2.xpose.msra.mxu0 %v2658
      %2699 = vmatprep.subr.mxu0 0.0
      %2700 = vmatpush2.xpose.msra.mxu0 %v2655
      %2701 = vmatprep.subr.mxu0 0.0
      %2702 = vmatpush2.xpose.msra.mxu0 %v2652
      %2703 = vmatprep.subr.mxu0 0.0
      %2704 = vmatpush2.xpose.msra.mxu0 %v2649
      %2705 = vmatprep.subr.mxu0 0.0
      %2706 = vmatpush2.xpose.msra.mxu0 %v2646
      %2707 = vmatprep.subr.mxu0 0.0
      %2708 = vmatpush2.xpose.msra.mxu0 %v2643
      %2709 = vmatprep.subr.mxu0 0.0
      %2710 = vmatpush2.xpose.msra.mxu0 %v2640
      %2711 = vmatprep.subr.mxu0 0.0
      %2712 = vmatpush2.xpose.msra.mxu0 %v2637
      %2713 = vmatprep.subr.mxu0 0.0
      %2714 = vmatpush2.xpose.msra.mxu0 %v2634
      %2715 = vmatprep.subr.mxu0 0.0
      %2716 = vmatpush2.xpose.msra.mxu0 %v2631
      %2717 = vmatprep.subr.mxu0 0.0
      %2718 = vmatpush2.xpose.msra.mxu0 %v2628
      %2719 = vmatprep.subr.mxu0 0.0
      %2720 = vmatpush2.xpose.msra.mxu0 %v2625
      %2721 = vmatprep.subr.mxu0 0.0
      %2722 = vmatpush2.xpose.msra.mxu0 %v2622
      %2723 = vmatprep.subr.mxu0 0.0
      %2724 = vmatpush2.xpose.msra.mxu0 %v2619
      %2725 = vmatprep.subr.mxu0 0.0
      %2726 = vmatpush2.xpose.msra.mxu0 %v2616
      %2727 = vmatprep.mubr.f32.mxu0 0.0
      %2728 = vmatmul.mubr.f32.gmra.mxu0 %v2565
      %v2729 = vpop.f32.mrf.mxu0
      %v2730 = vadd.f32 0.0, %v2729
      %v2731 = vpop.f32.mrf.mxu0
      %v2732 = vadd.f32 0.0, %v2731
      %2733 = vdwg.mxu0
      %v2734 = vadd.f32 %v1407, %v2730
      %v2735 = vadd.f32 %v1408, %v2732
      %2736 = vrot.lane.b32.xlu0 %v790, 126
      %v2737 = vpop.permute.xlu0 %2736
      %2738 = vrot.lane.b32.xlu0 %v795, 126
      %v2739 = vpop.permute.xlu0 %2738
      %2740 = vrot.lane.b32.xlu0 %v800, 126
      %v2741 = vpop.permute.xlu0 %2740
      %2742 = vrot.lane.b32.xlu0 %v805, 126
      %v2743 = vpop.permute.xlu0 %2742
      %2744 = vrot.lane.b32.xlu0 %v810, 126
      %v2745 = vpop.permute.xlu0 %2744
      %2746 = vrot.lane.b32.xlu0 %v815, 126
      %v2747 = vpop.permute.xlu0 %2746
      %2748 = vrot.lane.b32.xlu0 %v820, 126
      %v2749 = vpop.permute.xlu0 %2748
      %2750 = vrot.lane.b32.xlu0 %v825, 126
      %v2751 = vpop.permute.xlu0 %2750
      %2752 = vrot.lane.b32.xlu0 %v830, 126
      %v2753 = vpop.permute.xlu0 %2752
      %2754 = vrot.lane.b32.xlu0 %v835, 126
      %v2755 = vpop.permute.xlu0 %2754
      %2756 = vrot.lane.b32.xlu0 %v840, 126
      %v2757 = vpop.permute.xlu0 %2756
      %2758 = vrot.lane.b32.xlu0 %v845, 126
      %v2759 = vpop.permute.xlu0 %2758
      %2760 = vrot.lane.b32.xlu0 %v850, 126
      %v2761 = vpop.permute.xlu0 %2760
      %2762 = vrot.lane.b32.xlu0 %v855, 126
      %v2763 = vpop.permute.xlu0 %2762
      %2764 = vrot.lane.b32.xlu0 %v860, 126
      %v2765 = vpop.permute.xlu0 %2764
      %2766 = vrot.lane.b32.xlu0 %v865, 126
      %v2767 = vpop.permute.xlu0 %2766
      %2768 = vrot.lane.b32.xlu0 %v870, 126
      %v2769 = vpop.permute.xlu0 %2768
      %2770 = vrot.lane.b32.xlu0 %v875, 126
      %v2771 = vpop.permute.xlu0 %2770
      %2772 = vrot.lane.b32.xlu0 %v880, 126
      %v2773 = vpop.permute.xlu0 %2772
      %2774 = vrot.lane.b32.xlu0 %v885, 126
      %v2775 = vpop.permute.xlu0 %2774
      %2776 = vrot.lane.b32.xlu0 %v890, 126
      %v2777 = vpop.permute.xlu0 %2776
      %2778 = vrot.lane.b32.xlu0 %v895, 126
      %v2779 = vpop.permute.xlu0 %2778
      %2780 = vrot.lane.b32.xlu0 %v900, 126
      %v2781 = vpop.permute.xlu0 %2780
      %2782 = vrot.lane.b32.xlu0 %v905, 126
      %v2783 = vpop.permute.xlu0 %2782
      %2784 = vrot.lane.b32.xlu0 %v910, 126
      %v2785 = vpop.permute.xlu0 %2784
      %2786 = vrot.lane.b32.xlu0 %v915, 126
      %v2787 = vpop.permute.xlu0 %2786
      %2788 = vrot.lane.b32.xlu0 %v920, 126
      %v2789 = vpop.permute.xlu0 %2788
      %2790 = vrot.lane.b32.xlu0 %v925, 126
      %v2791 = vpop.permute.xlu0 %2790
      %2792 = vrot.lane.b32.xlu0 %v930, 126
      %v2793 = vpop.permute.xlu0 %2792
      %2794 = vrot.lane.b32.xlu0 %v935, 126
      %v2795 = vpop.permute.xlu0 %2794
      %2796 = vrot.lane.b32.xlu0 %v940, 126
      %v2797 = vpop.permute.xlu0 %2796
      %2798 = vrot.lane.b32.xlu0 %v945, 126
      %v2799 = vpop.permute.xlu0 %2798
      %2800 = vrot.lane.b32.xlu0 %v1016, 126
      %v2801 = vpop.permute.xlu0 %2800
      %2802 = vrot.lane.b32.xlu0 %v1021, 126
      %v2803 = vpop.permute.xlu0 %2802
      %2804 = vrot.lane.b32.xlu0 %v1026, 126
      %v2805 = vpop.permute.xlu0 %2804
      %2806 = vrot.lane.b32.xlu0 %v1031, 126
      %v2807 = vpop.permute.xlu0 %2806
      %2808 = vrot.lane.b32.xlu0 %v1036, 126
      %v2809 = vpop.permute.xlu0 %2808
      %2810 = vrot.lane.b32.xlu0 %v1041, 126
      %v2811 = vpop.permute.xlu0 %2810
      %2812 = vrot.lane.b32.xlu0 %v1046, 126
      %v2813 = vpop.permute.xlu0 %2812
      %2814 = vrot.lane.b32.xlu0 %v1051, 126
      %v2815 = vpop.permute.xlu0 %2814
      %2816 = vrot.lane.b32.xlu0 %v1056, 126
      %v2817 = vpop.permute.xlu0 %2816
      %2818 = vrot.lane.b32.xlu0 %v1061, 126
      %v2819 = vpop.permute.xlu0 %2818
      %2820 = vrot.lane.b32.xlu0 %v1066, 126
      %v2821 = vpop.permute.xlu0 %2820
      %2822 = vrot.lane.b32.xlu0 %v1071, 126
      %v2823 = vpop.permute.xlu0 %2822
      %2824 = vrot.lane.b32.xlu0 %v1076, 126
      %v2825 = vpop.permute.xlu0 %2824
      %2826 = vrot.lane.b32.xlu0 %v1081, 126
      %v2827 = vpop.permute.xlu0 %2826
      %2828 = vrot.lane.b32.xlu0 %v1086, 126
      %v2829 = vpop.permute.xlu0 %2828
      %2830 = vrot.lane.b32.xlu0 %v1091, 126
      %v2831 = vpop.permute.xlu0 %2830
      %2832 = vrot.lane.b32.xlu0 %v1096, 126
      %v2833 = vpop.permute.xlu0 %2832
      %2834 = vrot.lane.b32.xlu0 %v1101, 126
      %v2835 = vpop.permute.xlu0 %2834
      %2836 = vrot.lane.b32.xlu0 %v1106, 126
      %v2837 = vpop.permute.xlu0 %2836
      %2838 = vrot.lane.b32.xlu0 %v1111, 126
      %v2839 = vpop.permute.xlu0 %2838
      %2840 = vrot.lane.b32.xlu0 %v1116, 126
      %v2841 = vpop.permute.xlu0 %2840
      %2842 = vrot.lane.b32.xlu0 %v1121, 126
      %v2843 = vpop.permute.xlu0 %2842
      %2844 = vrot.lane.b32.xlu0 %v1126, 126
      %v2845 = vpop.permute.xlu0 %2844
      %2846 = vrot.lane.b32.xlu0 %v1131, 126
      %v2847 = vpop.permute.xlu0 %2846
      %2848 = vrot.lane.b32.xlu0 %v1136, 126
      %v2849 = vpop.permute.xlu0 %2848
      %2850 = vrot.lane.b32.xlu0 %v1141, 126
      %v2851 = vpop.permute.xlu0 %2850
      %2852 = vrot.lane.b32.xlu0 %v1146, 126
      %v2853 = vpop.permute.xlu0 %2852
      %2854 = vrot.lane.b32.xlu0 %v1151, 126
      %v2855 = vpop.permute.xlu0 %2854
      %2856 = vrot.lane.b32.xlu0 %v1156, 126
      %v2857 = vpop.permute.xlu0 %2856
      %2858 = vrot.lane.b32.xlu0 %v1161, 126
      %v2859 = vpop.permute.xlu0 %2858
      %2860 = vrot.lane.b32.xlu0 %v1166, 126
      %v2861 = vpop.permute.xlu0 %2860
      %2862 = vrot.lane.b32.xlu0 %v1171, 126
      %v2863 = vpop.permute.xlu0 %2862
      %v2864 = vsel %vm1409, %v2737, 0
      %v2866 = vsel %vm1409, %v2739, 0
      %v2868 = vsel %vm1409, %v2741, 0
      %v2870 = vsel %vm1409, %v2743, 0
      %v2872 = vsel %vm1409, %v2745, 0
      %v2874 = vsel %vm1409, %v2747, 0
      %v2876 = vsel %vm1409, %v2749, 0
      %v2878 = vsel %vm1409, %v2751, 0
      %v2880 = vsel %vm1409, %v2753, 0
      %v2882 = vsel %vm1409, %v2755, 0
      %v2884 = vsel %vm1409, %v2757, 0
      %v2886 = vsel %vm1409, %v2759, 0
      %v2888 = vsel %vm1409, %v2761, 0
      %v2890 = vsel %vm1409, %v2763, 0
      %v2892 = vsel %vm1409, %v2765, 0
      %v2894 = vsel %vm1409, %v2767, 0
      %v2896 = vsel %vm1409, %v2769, 0
      %v2898 = vsel %vm1409, %v2771, 0
      %v2900 = vsel %vm1409, %v2773, 0
      %v2902 = vsel %vm1409, %v2775, 0
      %v2904 = vsel %vm1409, %v2777, 0
      %v2906 = vsel %vm1409, %v2779, 0
      %v2908 = vsel %vm1409, %v2781, 0
      %v2910 = vsel %vm1409, %v2783, 0
      %v2912 = vsel %vm1409, %v2785, 0
      %v2914 = vsel %vm1409, %v2787, 0
      %v2916 = vsel %vm1409, %v2789, 0
      %v2918 = vsel %vm1409, %v2791, 0
      %v2920 = vsel %vm1409, %v2793, 0
      %v2922 = vsel %vm1409, %v2795, 0
      %v2924 = vsel %vm1409, %v2797, 0
      %v2926 = vsel %vm1409, %v2799, 0
      %v2928 = vsel %vm1409, %v2801, 0
      %v2930 = vsel %vm1409, %v2803, 0
      %v2932 = vsel %vm1409, %v2805, 0
      %v2934 = vsel %vm1409, %v2807, 0
      %v2936 = vsel %vm1409, %v2809, 0
      %v2938 = vsel %vm1409, %v2811, 0
      %v2940 = vsel %vm1409, %v2813, 0
      %v2942 = vsel %vm1409, %v2815, 0
      %v2944 = vsel %vm1409, %v2817, 0
      %v2946 = vsel %vm1409, %v2819, 0
      %v2948 = vsel %vm1409, %v2821, 0
      %v2950 = vsel %vm1409, %v2823, 0
      %v2952 = vsel %vm1409, %v2825, 0
      %v2954 = vsel %vm1409, %v2827, 0
      %v2956 = vsel %vm1409, %v2829, 0
      %v2958 = vsel %vm1409, %v2831, 0
      %v2960 = vsel %vm1409, %v2833, 0
      %v2962 = vsel %vm1409, %v2835, 0
      %v2964 = vsel %vm1409, %v2837, 0
      %v2966 = vsel %vm1409, %v2839, 0
      %v2968 = vsel %vm1409, %v2841, 0
      %v2970 = vsel %vm1409, %v2843, 0
      %v2972 = vsel %vm1409, %v2845, 0
      %v2974 = vsel %vm1409, %v2847, 0
      %v2976 = vsel %vm1409, %v2849, 0
      %v2978 = vsel %vm1409, %v2851, 0
      %v2980 = vsel %vm1409, %v2853, 0
      %v2982 = vsel %vm1409, %v2855, 0
      %v2984 = vsel %vm1409, %v2857, 0
      %v2986 = vsel %vm1409, %v2859, 0
      %v2988 = vsel %vm1409, %v2861, 0
      %v2990 = vsel %vm1409, %v2863, 0
      %2992 = vmatprep.subr.mxu0 0.0
      %2993 = vmatpush1.xpose.msra.mxu0 %v2958
      %2994 = vmatprep.subr.mxu0 0.0
      %2995 = vmatpush1.xpose.msra.mxu0 %v2956
      %2996 = vmatprep.subr.mxu0 0.0
      %2997 = vmatpush1.xpose.msra.mxu0 %v2954
      %2998 = vmatprep.subr.mxu0 0.0
      %2999 = vmatpush1.xpose.msra.mxu0 %v2952
      %3000 = vmatprep.subr.mxu0 0.0
      %3001 = vmatpush1.xpose.msra.mxu0 %v2950
      %3002 = vmatprep.subr.mxu0 0.0
      %3003 = vmatpush1.xpose.msra.mxu0 %v2948
      %3004 = vmatprep.subr.mxu0 0.0
      %3005 = vmatpush1.xpose.msra.mxu0 %v2946
      %3006 = vmatprep.subr.mxu0 0.0
      %3007 = vmatpush1.xpose.msra.mxu0 %v2944
      %3008 = vmatprep.subr.mxu0 0.0
      %3009 = vmatpush1.xpose.msra.mxu0 %v2942
      %3010 = vmatprep.subr.mxu0 0.0
      %3011 = vmatpush1.xpose.msra.mxu0 %v2940
      %3012 = vmatprep.subr.mxu0 0.0
      %3013 = vmatpush1.xpose.msra.mxu0 %v2938
      %3014 = vmatprep.subr.mxu0 0.0
      %3015 = vmatpush1.xpose.msra.mxu0 %v2936
      %3016 = vmatprep.subr.mxu0 0.0
      %3017 = vmatpush1.xpose.msra.mxu0 %v2934
      %3018 = vmatprep.subr.mxu0 0.0
      %3019 = vmatpush1.xpose.msra.mxu0 %v2932
      %3020 = vmatprep.subr.mxu0 0.0
      %3021 = vmatpush1.xpose.msra.mxu0 %v2930
      %3022 = vmatprep.subr.mxu0 0.0
      %3023 = vmatpush1.xpose.msra.mxu0 %v2928
      %3024 = vmatprep.subr.mxu0 0.0
      %3025 = vmatpush2.xpose.msra.mxu0 %v2990
      %3026 = vmatprep.subr.mxu0 0.0
      %3027 = vmatpush2.xpose.msra.mxu0 %v2988
      %3028 = vmatprep.subr.mxu0 0.0
      %3029 = vmatpush2.xpose.msra.mxu0 %v2986
      %3030 = vmatprep.subr.mxu0 0.0
      %3031 = vmatpush2.xpose.msra.mxu0 %v2984
      %3032 = vmatprep.subr.mxu0 0.0
      %3033 = vmatpush2.xpose.msra.mxu0 %v2982
      %3034 = vmatprep.subr.mxu0 0.0
      %3035 = vmatpush2.xpose.msra.mxu0 %v2980
      %3036 = vmatprep.subr.mxu0 0.0
      %3037 = vmatpush2.xpose.msra.mxu0 %v2978
      %3038 = vmatprep.subr.mxu0 0.0
      %3039 = vmatpush2.xpose.msra.mxu0 %v2976
      %3040 = vmatprep.subr.mxu0 0.0
      %3041 = vmatpush2.xpose.msra.mxu0 %v2974
      %3042 = vmatprep.subr.mxu0 0.0
      %3043 = vmatpush2.xpose.msra.mxu0 %v2972
      %3044 = vmatprep.subr.mxu0 0.0
      %3045 = vmatpush2.xpose.msra.mxu0 %v2970
      %3046 = vmatprep.subr.mxu0 0.0
      %3047 = vmatpush2.xpose.msra.mxu0 %v2968
      %3048 = vmatprep.subr.mxu0 0.0
      %3049 = vmatpush2.xpose.msra.mxu0 %v2966
      %3050 = vmatprep.subr.mxu0 0.0
      %3051 = vmatpush2.xpose.msra.mxu0 %v2964
      %3052 = vmatprep.subr.mxu0 0.0
      %3053 = vmatpush2.xpose.msra.mxu0 %v2962
      %3054 = vmatprep.subr.mxu0 0.0
      %3055 = vmatpush2.xpose.msra.mxu0 %v2960
      %3056 = vmatprep.mubr.f32.mxu0 0.0
      %3057 = vmatmul.mubr.f32.gmra.mxu0 %v2864
      %v3058 = vpop.f32.mrf.mxu0
      %v3059 = vadd.f32 0.0, %v3058
      %v3060 = vpop.f32.mrf.mxu0
      %v3061 = vadd.f32 0.0, %v3060
      %3062 = vmatprep.mubr.f32.mxu0 0.0
      %3063 = vmatmul.mubr.f32.gmra.mxu0 %v2866
      %v3064 = vpop.f32.mrf.mxu0
      %v3065 = vadd.f32 0.0, %v3064
      %v3066 = vpop.f32.mrf.mxu0
      %v3067 = vadd.f32 0.0, %v3066
      %3068 = vmatprep.mubr.f32.mxu0 0.0
      %3069 = vmatmul.mubr.f32.gmra.mxu0 %v2868
      %v3070 = vpop.f32.mrf.mxu0
      %v3071 = vadd.f32 0.0, %v3070
      %v3072 = vpop.f32.mrf.mxu0
      %v3073 = vadd.f32 0.0, %v3072
      %3074 = vmatprep.mubr.f32.mxu0 0.0
      %3075 = vmatmul.mubr.f32.gmra.mxu0 %v2870
      %v3076 = vpop.f32.mrf.mxu0
      %v3077 = vadd.f32 0.0, %v3076
      %v3078 = vpop.f32.mrf.mxu0
      %v3079 = vadd.f32 0.0, %v3078
      %3080 = vmatprep.mubr.f32.mxu0 0.0
      %3081 = vmatmul.mubr.f32.gmra.mxu0 %v2872
      %v3082 = vpop.f32.mrf.mxu0
      %v3083 = vadd.f32 0.0, %v3082
      %v3084 = vpop.f32.mrf.mxu0
      %v3085 = vadd.f32 0.0, %v3084
      %3086 = vmatprep.mubr.f32.mxu0 0.0
      %3087 = vmatmul.mubr.f32.gmra.mxu0 %v2874
      %v3088 = vpop.f32.mrf.mxu0
      %v3089 = vadd.f32 0.0, %v3088
      %v3090 = vpop.f32.mrf.mxu0
      %v3091 = vadd.f32 0.0, %v3090
      %3092 = vmatprep.mubr.f32.mxu0 0.0
      %3093 = vmatmul.mubr.f32.gmra.mxu0 %v2876
      %v3094 = vpop.f32.mrf.mxu0
      %v3095 = vadd.f32 0.0, %v3094
      %v3096 = vpop.f32.mrf.mxu0
      %v3097 = vadd.f32 0.0, %v3096
      %3098 = vmatprep.mubr.f32.mxu0 0.0
      %3099 = vmatmul.mubr.f32.gmra.mxu0 %v2878
      %v3100 = vpop.f32.mrf.mxu0
      %v3101 = vadd.f32 0.0, %v3100
      %v3102 = vpop.f32.mrf.mxu0
      %v3103 = vadd.f32 0.0, %v3102
      %3104 = vmatprep.mubr.f32.mxu0 0.0
      %3105 = vmatmul.mubr.f32.gmra.mxu0 %v2880
      %v3106 = vpop.f32.mrf.mxu0
      %v3107 = vadd.f32 0.0, %v3106
      %v3108 = vpop.f32.mrf.mxu0
      %v3109 = vadd.f32 0.0, %v3108
      %3110 = vmatprep.mubr.f32.mxu0 0.0
      %3111 = vmatmul.mubr.f32.gmra.mxu0 %v2882
      %v3112 = vpop.f32.mrf.mxu0
      %v3113 = vadd.f32 0.0, %v3112
      %v3114 = vpop.f32.mrf.mxu0
      %v3115 = vadd.f32 0.0, %v3114
      %3116 = vmatprep.mubr.f32.mxu0 0.0
      %3117 = vmatmul.mubr.f32.gmra.mxu0 %v2884
      %v3118 = vpop.f32.mrf.mxu0
      %v3119 = vadd.f32 0.0, %v3118
      %v3120 = vpop.f32.mrf.mxu0
      %v3121 = vadd.f32 0.0, %v3120
      %3122 = vmatprep.mubr.f32.mxu0 0.0
      %3123 = vmatmul.mubr.f32.gmra.mxu0 %v2886
      %v3124 = vpop.f32.mrf.mxu0
      %v3125 = vadd.f32 0.0, %v3124
      %v3126 = vpop.f32.mrf.mxu0
      %v3127 = vadd.f32 0.0, %v3126
      %3128 = vmatprep.mubr.f32.mxu0 0.0
      %3129 = vmatmul.mubr.f32.gmra.mxu0 %v2888
      %v3130 = vpop.f32.mrf.mxu0
      %v3131 = vadd.f32 0.0, %v3130
      %v3132 = vpop.f32.mrf.mxu0
      %v3133 = vadd.f32 0.0, %v3132
      %3134 = vmatprep.mubr.f32.mxu0 0.0
      %3135 = vmatmul.mubr.f32.gmra.mxu0 %v2890
      %v3136 = vpop.f32.mrf.mxu0
      %v3137 = vadd.f32 0.0, %v3136
      %v3138 = vpop.f32.mrf.mxu0
      %v3139 = vadd.f32 0.0, %v3138
      %3140 = vmatprep.mubr.f32.mxu0 0.0
      %3141 = vmatmul.mubr.f32.gmra.mxu0 %v2892
      %v3142 = vpop.f32.mrf.mxu0
      %v3143 = vadd.f32 0.0, %v3142
      %v3144 = vpop.f32.mrf.mxu0
      %v3145 = vadd.f32 0.0, %v3144
      %3146 = vmatprep.mubr.f32.mxu0 0.0
      %3147 = vmatmul.mubr.f32.gmra.mxu0 %v2894
      %v3148 = vpop.f32.mrf.mxu0
      %v3149 = vadd.f32 0.0, %v3148
      %v3150 = vpop.f32.mrf.mxu0
      %v3151 = vadd.f32 0.0, %v3150
      %3152 = vmatprep.mubr.f32.mxu0 0.0
      %3153 = vmatmul.mubr.f32.gmra.mxu0 %v2896
      %v3154 = vpop.f32.mrf.mxu0
      %v3155 = vadd.f32 0.0, %v3154
      %v3156 = vpop.f32.mrf.mxu0
      %v3157 = vadd.f32 0.0, %v3156
      %3158 = vmatprep.mubr.f32.mxu0 0.0
      %3159 = vmatmul.mubr.f32.gmra.mxu0 %v2898
      %v3160 = vpop.f32.mrf.mxu0
      %v3161 = vadd.f32 0.0, %v3160
      %v3162 = vpop.f32.mrf.mxu0
      %v3163 = vadd.f32 0.0, %v3162
      %3164 = vmatprep.mubr.f32.mxu0 0.0
      %3165 = vmatmul.mubr.f32.gmra.mxu0 %v2900
      %v3166 = vpop.f32.mrf.mxu0
      %v3167 = vadd.f32 0.0, %v3166
      %v3168 = vpop.f32.mrf.mxu0
      %v3169 = vadd.f32 0.0, %v3168
      %3170 = vmatprep.mubr.f32.mxu0 0.0
      %3171 = vmatmul.mubr.f32.gmra.mxu0 %v2902
      %v3172 = vpop.f32.mrf.mxu0
      %v3173 = vadd.f32 0.0, %v3172
      %v3174 = vpop.f32.mrf.mxu0
      %v3175 = vadd.f32 0.0, %v3174
      %3176 = vmatprep.mubr.f32.mxu0 0.0
      %3177 = vmatmul.mubr.f32.gmra.mxu0 %v2904
      %v3178 = vpop.f32.mrf.mxu0
      %v3179 = vadd.f32 0.0, %v3178
      %v3180 = vpop.f32.mrf.mxu0
      %v3181 = vadd.f32 0.0, %v3180
      %3182 = vmatprep.mubr.f32.mxu0 0.0
      %3183 = vmatmul.mubr.f32.gmra.mxu0 %v2906
      %v3184 = vpop.f32.mrf.mxu0
      %v3185 = vadd.f32 0.0, %v3184
      %v3186 = vpop.f32.mrf.mxu0
      %v3187 = vadd.f32 0.0, %v3186
      %3188 = vmatprep.mubr.f32.mxu0 0.0
      %3189 = vmatmul.mubr.f32.gmra.mxu0 %v2908
      %v3190 = vpop.f32.mrf.mxu0
      %v3191 = vadd.f32 0.0, %v3190
      %v3192 = vpop.f32.mrf.mxu0
      %v3193 = vadd.f32 0.0, %v3192
      %3194 = vmatprep.mubr.f32.mxu0 0.0
      %3195 = vmatmul.mubr.f32.gmra.mxu0 %v2910
      %v3196 = vpop.f32.mrf.mxu0
      %v3197 = vadd.f32 0.0, %v3196
      %v3198 = vpop.f32.mrf.mxu0
      %v3199 = vadd.f32 0.0, %v3198
      %3200 = vmatprep.mubr.f32.mxu0 0.0
      %3201 = vmatmul.mubr.f32.gmra.mxu0 %v2912
      %v3202 = vpop.f32.mrf.mxu0
      %v3203 = vadd.f32 0.0, %v3202
      %v3204 = vpop.f32.mrf.mxu0
      %v3205 = vadd.f32 0.0, %v3204
      %3206 = vmatprep.mubr.f32.mxu0 0.0
      %3207 = vmatmul.mubr.f32.gmra.mxu0 %v2914
      %v3208 = vpop.f32.mrf.mxu0
      %v3209 = vadd.f32 0.0, %v3208
      %v3210 = vpop.f32.mrf.mxu0
      %v3211 = vadd.f32 0.0, %v3210
      %3212 = vmatprep.mubr.f32.mxu0 0.0
      %3213 = vmatmul.mubr.f32.gmra.mxu0 %v2916
      %v3214 = vpop.f32.mrf.mxu0
      %v3215 = vadd.f32 0.0, %v3214
      %v3216 = vpop.f32.mrf.mxu0
      %v3217 = vadd.f32 0.0, %v3216
      %3218 = vmatprep.mubr.f32.mxu0 0.0
      %3219 = vmatmul.mubr.f32.gmra.mxu0 %v2918
      %v3220 = vpop.f32.mrf.mxu0
      %v3221 = vadd.f32 0.0, %v3220
      %v3222 = vpop.f32.mrf.mxu0
      %v3223 = vadd.f32 0.0, %v3222
      %3224 = vmatprep.mubr.f32.mxu0 0.0
      %3225 = vmatmul.mubr.f32.gmra.mxu0 %v2920
      %v3226 = vpop.f32.mrf.mxu0
      %v3227 = vadd.f32 0.0, %v3226
      %v3228 = vpop.f32.mrf.mxu0
      %v3229 = vadd.f32 0.0, %v3228
      %3230 = vmatprep.mubr.f32.mxu0 0.0
      %3231 = vmatmul.mubr.f32.gmra.mxu0 %v2922
      %v3232 = vpop.f32.mrf.mxu0
      %v3233 = vadd.f32 0.0, %v3232
      %v3234 = vpop.f32.mrf.mxu0
      %v3235 = vadd.f32 0.0, %v3234
      %3236 = vmatprep.mubr.f32.mxu0 0.0
      %3237 = vmatmul.mubr.f32.gmra.mxu0 %v2924
      %v3238 = vpop.f32.mrf.mxu0
      %v3239 = vadd.f32 0.0, %v3238
      %v3240 = vpop.f32.mrf.mxu0
      %v3241 = vadd.f32 0.0, %v3240
      %3242 = vmatprep.mubr.f32.mxu0 0.0
      %3243 = vmatmul.mubr.f32.gmra.mxu0 %v2926
      %v3244 = vpop.f32.mrf.mxu0
      %v3245 = vadd.f32 0.0, %v3244
      %v3246 = vpop.f32.mrf.mxu0
      %v3247 = vadd.f32 0.0, %v3246
      %3248 = vdwg.mxu0
      %v3249 = vmax.f32 %v3059, %v3061
      %3250 = vmax.xlane.f32.xlu0 %v3249
      %v3251 = vpop.xlane.xlu0 %3250
      %v3252 = vmax.f32 %v3065, %v3067
      %3253 = vmax.xlane.f32.xlu0 %v3252
      %v3254 = vpop.xlane.xlu0 %3253
      %v3255 = vmax.f32 %v3071, %v3073
      %3256 = vmax.xlane.f32.xlu0 %v3255
      %v3257 = vpop.xlane.xlu0 %3256
      %v3258 = vmax.f32 %v3077, %v3079
      %3259 = vmax.xlane.f32.xlu0 %v3258
      %v3260 = vpop.xlane.xlu0 %3259
      %v3261 = vmax.f32 %v3083, %v3085
      %3262 = vmax.xlane.f32.xlu0 %v3261
      %v3263 = vpop.xlane.xlu0 %3262
      %v3264 = vmax.f32 %v3089, %v3091
      %3265 = vmax.xlane.f32.xlu0 %v3264
      %v3266 = vpop.xlane.xlu0 %3265
      %v3267 = vmax.f32 %v3095, %v3097
      %3268 = vmax.xlane.f32.xlu0 %v3267
      %v3269 = vpop.xlane.xlu0 %3268
      %v3270 = vmax.f32 %v3101, %v3103
      %3271 = vmax.xlane.f32.xlu0 %v3270
      %v3272 = vpop.xlane.xlu0 %3271
      %v3273 = vmax.f32 %v3107, %v3109
      %3274 = vmax.xlane.f32.xlu0 %v3273
      %v3275 = vpop.xlane.xlu0 %3274
      %v3276 = vmax.f32 %v3113, %v3115
      %3277 = vmax.xlane.f32.xlu0 %v3276
      %v3278 = vpop.xlane.xlu0 %3277
      %v3279 = vmax.f32 %v3119, %v3121
      %3280 = vmax.xlane.f32.xlu0 %v3279
      %v3281 = vpop.xlane.xlu0 %3280
      %v3282 = vmax.f32 %v3125, %v3127
      %3283 = vmax.xlane.f32.xlu0 %v3282
      %v3284 = vpop.xlane.xlu0 %3283
      %v3285 = vmax.f32 %v3131, %v3133
      %3286 = vmax.xlane.f32.xlu0 %v3285
      %v3287 = vpop.xlane.xlu0 %3286
      %v3288 = vmax.f32 %v3137, %v3139
      %3289 = vmax.xlane.f32.xlu0 %v3288
      %v3290 = vpop.xlane.xlu0 %3289
      %v3291 = vmax.f32 %v3143, %v3145
      %3292 = vmax.xlane.f32.xlu0 %v3291
      %v3293 = vpop.xlane.xlu0 %3292
      %v3294 = vmax.f32 %v3149, %v3151
      %3295 = vmax.xlane.f32.xlu0 %v3294
      %v3296 = vpop.xlane.xlu0 %3295
      %v3297 = vmax.f32 %v3155, %v3157
      %3298 = vmax.xlane.f32.xlu0 %v3297
      %v3299 = vpop.xlane.xlu0 %3298
      %v3300 = vmax.f32 %v3161, %v3163
      %3301 = vmax.xlane.f32.xlu0 %v3300
      %v3302 = vpop.xlane.xlu0 %3301
      %v3303 = vmax.f32 %v3167, %v3169
      %3304 = vmax.xlane.f32.xlu0 %v3303
      %v3305 = vpop.xlane.xlu0 %3304
      %v3306 = vmax.f32 %v3173, %v3175
      %3307 = vmax.xlane.f32.xlu0 %v3306
      %v3308 = vpop.xlane.xlu0 %3307
      %v3309 = vmax.f32 %v3179, %v3181
      %3310 = vmax.xlane.f32.xlu0 %v3309
      %v3311 = vpop.xlane.xlu0 %3310
      %v3312 = vmax.f32 %v3185, %v3187
      %3313 = vmax.xlane.f32.xlu0 %v3312
      %v3314 = vpop.xlane.xlu0 %3313
      %v3315 = vmax.f32 %v3191, %v3193
      %3316 = vmax.xlane.f32.xlu0 %v3315
      %v3317 = vpop.xlane.xlu0 %3316
      %v3318 = vmax.f32 %v3197, %v3199
      %3319 = vmax.xlane.f32.xlu0 %v3318
      %v3320 = vpop.xlane.xlu0 %3319
      %v3321 = vmax.f32 %v3203, %v3205
      %3322 = vmax.xlane.f32.xlu0 %v3321
      %v3323 = vpop.xlane.xlu0 %3322
      %v3324 = vmax.f32 %v3209, %v3211
      %3325 = vmax.xlane.f32.xlu0 %v3324
      %v3326 = vpop.xlane.xlu0 %3325
      %v3327 = vmax.f32 %v3215, %v3217
      %3328 = vmax.xlane.f32.xlu0 %v3327
      %v3329 = vpop.xlane.xlu0 %3328
      %v3330 = vmax.f32 %v3221, %v3223
      %3331 = vmax.xlane.f32.xlu0 %v3330
      %v3332 = vpop.xlane.xlu0 %3331
      %v3333 = vmax.f32 %v3227, %v3229
      %3334 = vmax.xlane.f32.xlu0 %v3333
      %v3335 = vpop.xlane.xlu0 %3334
      %v3336 = vmax.f32 %v3233, %v3235
      %3337 = vmax.xlane.f32.xlu0 %v3336
      %v3338 = vpop.xlane.xlu0 %3337
      %v3339 = vmax.f32 %v3239, %v3241
      %3340 = vmax.xlane.f32.xlu0 %v3339
      %v3341 = vpop.xlane.xlu0 %3340
      %v3342 = vmax.f32 %v3245, %v3247
      %3343 = vmax.xlane.f32.xlu0 %v3342
      %v3344 = vpop.xlane.xlu0 %3343
      %v3345 = vsub.f32 %v3059, %v3251
      %v3346 = vsub.f32 %v3061, %v3251
      %v3347 = vsub.f32 %v3065, %v3254
      %v3348 = vsub.f32 %v3067, %v3254
      %v3349 = vsub.f32 %v3071, %v3257
      %v3350 = vsub.f32 %v3073, %v3257
      %v3351 = vsub.f32 %v3077, %v3260
      %v3352 = vsub.f32 %v3079, %v3260
      %v3353 = vsub.f32 %v3083, %v3263
      %v3354 = vsub.f32 %v3085, %v3263
      %v3355 = vsub.f32 %v3089, %v3266
      %v3356 = vsub.f32 %v3091, %v3266
      %v3357 = vsub.f32 %v3095, %v3269
      %v3358 = vsub.f32 %v3097, %v3269
      %v3359 = vsub.f32 %v3101, %v3272
      %v3360 = vsub.f32 %v3103, %v3272
      %v3361 = vsub.f32 %v3107, %v3275
      %v3362 = vsub.f32 %v3109, %v3275
      %v3363 = vsub.f32 %v3113, %v3278
      %v3364 = vsub.f32 %v3115, %v3278
      %v3365 = vsub.f32 %v3119, %v3281
      %v3366 = vsub.f32 %v3121, %v3281
      %v3367 = vsub.f32 %v3125, %v3284
      %v3368 = vsub.f32 %v3127, %v3284
      %v3369 = vsub.f32 %v3131, %v3287
      %v3370 = vsub.f32 %v3133, %v3287
      %v3371 = vsub.f32 %v3137, %v3290
      %v3372 = vsub.f32 %v3139, %v3290
      %v3373 = vsub.f32 %v3143, %v3293
      %v3374 = vsub.f32 %v3145, %v3293
      %v3375 = vsub.f32 %v3149, %v3296
      %v3376 = vsub.f32 %v3151, %v3296
      %v3377 = vsub.f32 %v3155, %v3299
      %v3378 = vsub.f32 %v3157, %v3299
      %v3379 = vsub.f32 %v3161, %v3302
      %v3380 = vsub.f32 %v3163, %v3302
      %v3381 = vsub.f32 %v3167, %v3305
      %v3382 = vsub.f32 %v3169, %v3305
      %v3383 = vsub.f32 %v3173, %v3308
      %v3384 = vsub.f32 %v3175, %v3308
      %v3385 = vsub.f32 %v3179, %v3311
      %v3386 = vsub.f32 %v3181, %v3311
      %v3387 = vsub.f32 %v3185, %v3314
      %v3388 = vsub.f32 %v3187, %v3314
      %v3389 = vsub.f32 %v3191, %v3317
      %v3390 = vsub.f32 %v3193, %v3317
      %v3391 = vsub.f32 %v3197, %v3320
      %v3392 = vsub.f32 %v3199, %v3320
      %v3393 = vsub.f32 %v3203, %v3323
      %v3394 = vsub.f32 %v3205, %v3323
      %v3395 = vsub.f32 %v3209, %v3326
      %v3396 = vsub.f32 %v3211, %v3326
      %v3397 = vsub.f32 %v3215, %v3329
      %v3398 = vsub.f32 %v3217, %v3329
      %v3399 = vsub.f32 %v3221, %v3332
      %v3400 = vsub.f32 %v3223, %v3332
      %v3401 = vsub.f32 %v3227, %v3335
      %v3402 = vsub.f32 %v3229, %v3335
      %v3403 = vsub.f32 %v3233, %v3338
      %v3404 = vsub.f32 %v3235, %v3338
      %v3405 = vsub.f32 %v3239, %v3341
      %v3406 = vsub.f32 %v3241, %v3341
      %v3407 = vsub.f32 %v3245, %v3344
      %v3408 = vsub.f32 %v3247, %v3344
      %v3409 = vmul.f32 %v3345, 1.442695
      %v3410 = vpow.pop %v3409
      %v3411 = vmul.f32 %v3346, 1.442695
      %v3412 = vpow.pop %v3411
      %v3413 = vmul.f32 %v3347, 1.442695
      %v3414 = vpow.pop %v3413
      %v3415 = vmul.f32 %v3348, 1.442695
      %v3416 = vpow.pop %v3415
      %v3417 = vmul.f32 %v3349, 1.442695
      %v3418 = vpow.pop %v3417
      %v3419 = vmul.f32 %v3350, 1.442695
      %v3420 = vpow.pop %v3419
      %v3421 = vmul.f32 %v3351, 1.442695
      %v3422 = vpow.pop %v3421
      %v3423 = vmul.f32 %v3352, 1.442695
      %v3424 = vpow.pop %v3423
      %v3425 = vmul.f32 %v3353, 1.442695
      %v3426 = vpow.pop %v3425
      %v3427 = vmul.f32 %v3354, 1.442695
      %v3428 = vpow.pop %v3427
      %v3429 = vmul.f32 %v3355, 1.442695
      %v3430 = vpow.pop %v3429
      %v3431 = vmul.f32 %v3356, 1.442695
      %v3432 = vpow.pop %v3431
      %v3433 = vmul.f32 %v3357, 1.442695
      %v3434 = vpow.pop %v3433
      %v3435 = vmul.f32 %v3358, 1.442695
      %v3436 = vpow.pop %v3435
      %v3437 = vmul.f32 %v3359, 1.442695
      %v3438 = vpow.pop %v3437
      %v3439 = vmul.f32 %v3360, 1.442695
      %v3440 = vpow.pop %v3439
      %v3441 = vmul.f32 %v3361, 1.442695
      %v3442 = vpow.pop %v3441
      %v3443 = vmul.f32 %v3362, 1.442695
      %v3444 = vpow.pop %v3443
      %v3445 = vmul.f32 %v3363, 1.442695
      %v3446 = vpow.pop %v3445
      %v3447 = vmul.f32 %v3364, 1.442695
      %v3448 = vpow.pop %v3447
      %v3449 = vmul.f32 %v3365, 1.442695
      %v3450 = vpow.pop %v3449
      %v3451 = vmul.f32 %v3366, 1.442695
      %v3452 = vpow.pop %v3451
      %v3453 = vmul.f32 %v3367, 1.442695
      %v3454 = vpow.pop %v3453
      %v3455 = vmul.f32 %v3368, 1.442695
      %v3456 = vpow.pop %v3455
      %v3457 = vmul.f32 %v3369, 1.442695
      %v3458 = vpow.pop %v3457
      %v3459 = vmul.f32 %v3370, 1.442695
      %v3460 = vpow.pop %v3459
      %v3461 = vmul.f32 %v3371, 1.442695
      %v3462 = vpow.pop %v3461
      %v3463 = vmul.f32 %v3372, 1.442695
      %v3464 = vpow.pop %v3463
      %v3465 = vmul.f32 %v3373, 1.442695
      %v3466 = vpow.pop %v3465
      %v3467 = vmul.f32 %v3374, 1.442695
      %v3468 = vpow.pop %v3467
      %v3469 = vmul.f32 %v3375, 1.442695
      %v3470 = vpow.pop %v3469
      %v3471 = vmul.f32 %v3376, 1.442695
      %v3472 = vpow.pop %v3471
      %v3473 = vmul.f32 %v3377, 1.442695
      %v3474 = vpow.pop %v3473
      %v3475 = vmul.f32 %v3378, 1.442695
      %v3476 = vpow.pop %v3475
      %v3477 = vmul.f32 %v3379, 1.442695
      %v3478 = vpow.pop %v3477
      %v3479 = vmul.f32 %v3380, 1.442695
      %v3480 = vpow.pop %v3479
      %v3481 = vmul.f32 %v3381, 1.442695
      %v3482 = vpow.pop %v3481
      %v3483 = vmul.f32 %v3382, 1.442695
      %v3484 = vpow.pop %v3483
      %v3485 = vmul.f32 %v3383, 1.442695
      %v3486 = vpow.pop %v3485
      %v3487 = vmul.f32 %v3384, 1.442695
      %v3488 = vpow.pop %v3487
      %v3489 = vmul.f32 %v3385, 1.442695
      %v3490 = vpow.pop %v3489
      %v3491 = vmul.f32 %v3386, 1.442695
      %v3492 = vpow.pop %v3491
      %v3493 = vmul.f32 %v3387, 1.442695
      %v3494 = vpow.pop %v3493
      %v3495 = vmul.f32 %v3388, 1.442695
      %v3496 = vpow.pop %v3495
      %v3497 = vmul.f32 %v3389, 1.442695
      %v3498 = vpow.pop %v3497
      %v3499 = vmul.f32 %v3390, 1.442695
      %v3500 = vpow.pop %v3499
      %v3501 = vmul.f32 %v3391, 1.442695
      %v3502 = vpow.pop %v3501
      %v3503 = vmul.f32 %v3392, 1.442695
      %v3504 = vpow.pop %v3503
      %v3505 = vmul.f32 %v3393, 1.442695
      %v3506 = vpow.pop %v3505
      %v3507 = vmul.f32 %v3394, 1.442695
      %v3508 = vpow.pop %v3507
      %v3509 = vmul.f32 %v3395, 1.442695
      %v3510 = vpow.pop %v3509
      %v3511 = vmul.f32 %v3396, 1.442695
      %v3512 = vpow.pop %v3511
      %v3513 = vmul.f32 %v3397, 1.442695
      %v3514 = vpow.pop %v3513
      %v3515 = vmul.f32 %v3398, 1.442695
      %v3516 = vpow.pop %v3515
      %v3517 = vmul.f32 %v3399, 1.442695
      %v3518 = vpow.pop %v3517
      %v3519 = vmul.f32 %v3400, 1.442695
      %v3520 = vpow.pop %v3519
      %v3521 = vmul.f32 %v3401, 1.442695
      %v3522 = vpow.pop %v3521
      %v3523 = vmul.f32 %v3402, 1.442695
      %v3524 = vpow.pop %v3523
      %v3525 = vmul.f32 %v3403, 1.442695
      %v3526 = vpow.pop %v3525
      %v3527 = vmul.f32 %v3404, 1.442695
      %v3528 = vpow.pop %v3527
      %v3529 = vmul.f32 %v3405, 1.442695
      %v3530 = vpow.pop %v3529
      %v3531 = vmul.f32 %v3406, 1.442695
      %v3532 = vpow.pop %v3531
      %v3533 = vmul.f32 %v3407, 1.442695
      %v3534 = vpow.pop %v3533
      %v3535 = vmul.f32 %v3408, 1.442695
      %v3536 = vpow.pop %v3535
      %v3537 = vadd.f32 %v3410, %v3412
      %3538 = vadd.xlane.f32.xlu0 %v3537
      %v3539 = vpop.xlane.xlu0 %3538
      %v3540 = vadd.f32 %v3414, %v3416
      %3541 = vadd.xlane.f32.xlu0 %v3540
      %v3542 = vpop.xlane.xlu0 %3541
      %v3543 = vadd.f32 %v3418, %v3420
      %3544 = vadd.xlane.f32.xlu0 %v3543
      %v3545 = vpop.xlane.xlu0 %3544
      %v3546 = vadd.f32 %v3422, %v3424
      %3547 = vadd.xlane.f32.xlu0 %v3546
      %v3548 = vpop.xlane.xlu0 %3547
      %v3549 = vadd.f32 %v3426, %v3428
      %3550 = vadd.xlane.f32.xlu0 %v3549
      %v3551 = vpop.xlane.xlu0 %3550
      %v3552 = vadd.f32 %v3430, %v3432
      %3553 = vadd.xlane.f32.xlu0 %v3552
      %v3554 = vpop.xlane.xlu0 %3553
      %v3555 = vadd.f32 %v3434, %v3436
      %3556 = vadd.xlane.f32.xlu0 %v3555
      %v3557 = vpop.xlane.xlu0 %3556
      %v3558 = vadd.f32 %v3438, %v3440
      %3559 = vadd.xlane.f32.xlu0 %v3558
      %v3560 = vpop.xlane.xlu0 %3559
      %v3561 = vadd.f32 %v3442, %v3444
      %3562 = vadd.xlane.f32.xlu0 %v3561
      %v3563 = vpop.xlane.xlu0 %3562
      %v3564 = vadd.f32 %v3446, %v3448
      %3565 = vadd.xlane.f32.xlu0 %v3564
      %v3566 = vpop.xlane.xlu0 %3565
      %v3567 = vadd.f32 %v3450, %v3452
      %3568 = vadd.xlane.f32.xlu0 %v3567
      %v3569 = vpop.xlane.xlu0 %3568
      %v3570 = vadd.f32 %v3454, %v3456
      %3571 = vadd.xlane.f32.xlu0 %v3570
      %v3572 = vpop.xlane.xlu0 %3571
      %v3573 = vadd.f32 %v3458, %v3460
      %3574 = vadd.xlane.f32.xlu0 %v3573
      %v3575 = vpop.xlane.xlu0 %3574
      %v3576 = vadd.f32 %v3462, %v3464
      %3577 = vadd.xlane.f32.xlu0 %v3576
      %v3578 = vpop.xlane.xlu0 %3577
      %v3579 = vadd.f32 %v3466, %v3468
      %3580 = vadd.xlane.f32.xlu0 %v3579
      %v3581 = vpop.xlane.xlu0 %3580
      %v3582 = vadd.f32 %v3470, %v3472
      %3583 = vadd.xlane.f32.xlu0 %v3582
      %v3584 = vpop.xlane.xlu0 %3583
      %v3585 = vadd.f32 %v3474, %v3476
      %3586 = vadd.xlane.f32.xlu0 %v3585
      %v3587 = vpop.xlane.xlu0 %3586
      %v3588 = vadd.f32 %v3478, %v3480
      %3589 = vadd.xlane.f32.xlu0 %v3588
      %v3590 = vpop.xlane.xlu0 %3589
      %v3591 = vadd.f32 %v3482, %v3484
      %3592 = vadd.xlane.f32.xlu0 %v3591
      %v3593 = vpop.xlane.xlu0 %3592
      %v3594 = vadd.f32 %v3486, %v3488
      %3595 = vadd.xlane.f32.xlu0 %v3594
      %v3596 = vpop.xlane.xlu0 %3595
      %v3597 = vadd.f32 %v3490, %v3492
      %3598 = vadd.xlane.f32.xlu0 %v3597
      %v3599 = vpop.xlane.xlu0 %3598
      %v3600 = vadd.f32 %v3494, %v3496
      %3601 = vadd.xlane.f32.xlu0 %v3600
      %v3602 = vpop.xlane.xlu0 %3601
      %v3603 = vadd.f32 %v3498, %v3500
      %3604 = vadd.xlane.f32.xlu0 %v3603
      %v3605 = vpop.xlane.xlu0 %3604
      %v3606 = vadd.f32 %v3502, %v3504
      %3607 = vadd.xlane.f32.xlu0 %v3606
      %v3608 = vpop.xlane.xlu0 %3607
      %v3609 = vadd.f32 %v3506, %v3508
      %3610 = vadd.xlane.f32.xlu0 %v3609
      %v3611 = vpop.xlane.xlu0 %3610
      %v3612 = vadd.f32 %v3510, %v3512
      %3613 = vadd.xlane.f32.xlu0 %v3612
      %v3614 = vpop.xlane.xlu0 %3613
      %v3615 = vadd.f32 %v3514, %v3516
      %3616 = vadd.xlane.f32.xlu0 %v3615
      %v3617 = vpop.xlane.xlu0 %3616
      %v3618 = vadd.f32 %v3518, %v3520
      %3619 = vadd.xlane.f32.xlu0 %v3618
      %v3620 = vpop.xlane.xlu0 %3619
      %v3621 = vadd.f32 %v3522, %v3524
      %3622 = vadd.xlane.f32.xlu0 %v3621
      %v3623 = vpop.xlane.xlu0 %3622
      %v3624 = vadd.f32 %v3526, %v3528
      %3625 = vadd.xlane.f32.xlu0 %v3624
      %v3626 = vpop.xlane.xlu0 %3625
      %v3627 = vadd.f32 %v3530, %v3532
      %3628 = vadd.xlane.f32.xlu0 %v3627
      %v3629 = vpop.xlane.xlu0 %3628
      %v3630 = vadd.f32 %v3534, %v3536
      %3631 = vadd.xlane.f32.xlu0 %v3630
      %v3632 = vpop.xlane.xlu0 %3631
      %v3633 = vrcp.pop %v3539
      %v3634 = vrcp.pop %v3542
      %v3635 = vrcp.pop %v3545
      %v3636 = vrcp.pop %v3548
      %v3637 = vrcp.pop %v3551
      %v3638 = vrcp.pop %v3554
      %v3639 = vrcp.pop %v3557
      %v3640 = vrcp.pop %v3560
      %v3641 = vrcp.pop %v3563
      %v3642 = vrcp.pop %v3566
      %v3643 = vrcp.pop %v3569
      %v3644 = vrcp.pop %v3572
      %v3645 = vrcp.pop %v3575
      %v3646 = vrcp.pop %v3578
      %v3647 = vrcp.pop %v3581
      %v3648 = vrcp.pop %v3584
      %v3649 = vrcp.pop %v3587
      %v3650 = vrcp.pop %v3590
      %v3651 = vrcp.pop %v3593
      %v3652 = vrcp.pop %v3596
      %v3653 = vrcp.pop %v3599
      %v3654 = vrcp.pop %v3602
      %v3655 = vrcp.pop %v3605
      %v3656 = vrcp.pop %v3608
      %v3657 = vrcp.pop %v3611
      %v3658 = vrcp.pop %v3614
      %v3659 = vrcp.pop %v3617
      %v3660 = vrcp.pop %v3620
      %v3661 = vrcp.pop %v3623
      %v3662 = vrcp.pop %v3626
      %v3663 = vrcp.pop %v3629
      %v3664 = vrcp.pop %v3632
      %v3665 = vmul.f32 %v3410, %v3633
      %v3666 = vmul.f32 %v3412, %v3633
      %v3667 = vmul.f32 %v3414, %v3634
      %v3668 = vmul.f32 %v3416, %v3634
      %v3669 = vmul.f32 %v3418, %v3635
      %v3670 = vmul.f32 %v3420, %v3635
      %v3671 = vmul.f32 %v3422, %v3636
      %v3672 = vmul.f32 %v3424, %v3636
      %v3673 = vmul.f32 %v3426, %v3637
      %v3674 = vmul.f32 %v3428, %v3637
      %v3675 = vmul.f32 %v3430, %v3638
      %v3676 = vmul.f32 %v3432, %v3638
      %v3677 = vmul.f32 %v3434, %v3639
      %v3678 = vmul.f32 %v3436, %v3639
      %v3679 = vmul.f32 %v3438, %v3640
      %v3680 = vmul.f32 %v3440, %v3640
      %v3681 = vmul.f32 %v3442, %v3641
      %v3682 = vmul.f32 %v3444, %v3641
      %v3683 = vmul.f32 %v3446, %v3642
      %v3684 = vmul.f32 %v3448, %v3642
      %v3685 = vmul.f32 %v3450, %v3643
      %v3686 = vmul.f32 %v3452, %v3643
      %v3687 = vmul.f32 %v3454, %v3644
      %v3688 = vmul.f32 %v3456, %v3644
      %v3689 = vmul.f32 %v3458, %v3645
      %v3690 = vmul.f32 %v3460, %v3645
      %v3691 = vmul.f32 %v3462, %v3646
      %v3692 = vmul.f32 %v3464, %v3646
      %v3693 = vmul.f32 %v3466, %v3647
      %v3694 = vmul.f32 %v3468, %v3647
      %v3695 = vmul.f32 %v3470, %v3648
      %v3696 = vmul.f32 %v3472, %v3648
      %v3697 = vmul.f32 %v3474, %v3649
      %v3698 = vmul.f32 %v3476, %v3649
      %v3699 = vmul.f32 %v3478, %v3650
      %v3700 = vmul.f32 %v3480, %v3650
      %v3701 = vmul.f32 %v3482, %v3651
      %v3702 = vmul.f32 %v3484, %v3651
      %v3703 = vmul.f32 %v3486, %v3652
      %v3704 = vmul.f32 %v3488, %v3652
      %v3705 = vmul.f32 %v3490, %v3653
      %v3706 = vmul.f32 %v3492, %v3653
      %v3707 = vmul.f32 %v3494, %v3654
      %v3708 = vmul.f32 %v3496, %v3654
      %v3709 = vmul.f32 %v3498, %v3655
      %v3710 = vmul.f32 %v3500, %v3655
      %v3711 = vmul.f32 %v3502, %v3656
      %v3712 = vmul.f32 %v3504, %v3656
      %v3713 = vmul.f32 %v3506, %v3657
      %v3714 = vmul.f32 %v3508, %v3657
      %v3715 = vmul.f32 %v3510, %v3658
      %v3716 = vmul.f32 %v3512, %v3658
      %v3717 = vmul.f32 %v3514, %v3659
      %v3718 = vmul.f32 %v3516, %v3659
      %v3719 = vmul.f32 %v3518, %v3660
      %v3720 = vmul.f32 %v3520, %v3660
      %v3721 = vmul.f32 %v3522, %v3661
      %v3722 = vmul.f32 %v3524, %v3661
      %v3723 = vmul.f32 %v3526, %v3662
      %v3724 = vmul.f32 %v3528, %v3662
      %v3725 = vmul.f32 %v3530, %v3663
      %v3726 = vmul.f32 %v3532, %v3663
      %v3727 = vmul.f32 %v3534, %v3664
      %v3728 = vmul.f32 %v3536, %v3664
      %3761 = vrot.lane.b32.xlu0 %v1242, 126
      %v3762 = vpop.permute.xlu0 %3761
      %3763 = vrot.lane.b32.xlu0 %v1247, 126
      %v3764 = vpop.permute.xlu0 %3763
      %3765 = vrot.lane.b32.xlu0 %v1252, 126
      %v3766 = vpop.permute.xlu0 %3765
      %3767 = vrot.lane.b32.xlu0 %v1257, 126
      %v3768 = vpop.permute.xlu0 %3767
      %3769 = vrot.lane.b32.xlu0 %v1262, 126
      %v3770 = vpop.permute.xlu0 %3769
      %3771 = vrot.lane.b32.xlu0 %v1267, 126
      %v3772 = vpop.permute.xlu0 %3771
      %3773 = vrot.lane.b32.xlu0 %v1272, 126
      %v3774 = vpop.permute.xlu0 %3773
      %3775 = vrot.lane.b32.xlu0 %v1277, 126
      %v3776 = vpop.permute.xlu0 %3775
      %3777 = vrot.lane.b32.xlu0 %v1282, 126
      %v3778 = vpop.permute.xlu0 %3777
      %3779 = vrot.lane.b32.xlu0 %v1287, 126
      %v3780 = vpop.permute.xlu0 %3779
      %3781 = vrot.lane.b32.xlu0 %v1292, 126
      %v3782 = vpop.permute.xlu0 %3781
      %3783 = vrot.lane.b32.xlu0 %v1297, 126
      %v3784 = vpop.permute.xlu0 %3783
      %3785 = vrot.lane.b32.xlu0 %v1302, 126
      %v3786 = vpop.permute.xlu0 %3785
      %3787 = vrot.lane.b32.xlu0 %v1307, 126
      %v3788 = vpop.permute.xlu0 %3787
      %3789 = vrot.lane.b32.xlu0 %v1312, 126
      %v3790 = vpop.permute.xlu0 %3789
      %3791 = vrot.lane.b32.xlu0 %v1317, 126
      %v3792 = vpop.permute.xlu0 %3791
      %3793 = vrot.lane.b32.xlu0 %v1322, 126
      %v3794 = vpop.permute.xlu0 %3793
      %3795 = vrot.lane.b32.xlu0 %v1327, 126
      %v3796 = vpop.permute.xlu0 %3795
      %3797 = vrot.lane.b32.xlu0 %v1332, 126
      %v3798 = vpop.permute.xlu0 %3797
      %3799 = vrot.lane.b32.xlu0 %v1337, 126
      %v3800 = vpop.permute.xlu0 %3799
      %3801 = vrot.lane.b32.xlu0 %v1342, 126
      %v3802 = vpop.permute.xlu0 %3801
      %3803 = vrot.lane.b32.xlu0 %v1347, 126
      %v3804 = vpop.permute.xlu0 %3803
      %3805 = vrot.lane.b32.xlu0 %v1352, 126
      %v3806 = vpop.permute.xlu0 %3805
      %3807 = vrot.lane.b32.xlu0 %v1357, 126
      %v3808 = vpop.permute.xlu0 %3807
      %3809 = vrot.lane.b32.xlu0 %v1362, 126
      %v3810 = vpop.permute.xlu0 %3809
      %3811 = vrot.lane.b32.xlu0 %v1367, 126
      %v3812 = vpop.permute.xlu0 %3811
      %3813 = vrot.lane.b32.xlu0 %v1372, 126
      %v3814 = vpop.permute.xlu0 %3813
      %3815 = vrot.lane.b32.xlu0 %v1377, 126
      %v3816 = vpop.permute.xlu0 %3815
      %3817 = vrot.lane.b32.xlu0 %v1382, 126
      %v3818 = vpop.permute.xlu0 %3817
      %3819 = vrot.lane.b32.xlu0 %v1387, 126
      %v3820 = vpop.permute.xlu0 %3819
      %3821 = vrot.lane.b32.xlu0 %v1392, 126
      %v3822 = vpop.permute.xlu0 %3821
      %3823 = vrot.lane.b32.xlu0 %v1397, 126
      %v3824 = vpop.permute.xlu0 %3823
      %3857 = vmatprep.subr.mxu0 0.0
      %3858 = vmatpush1.msra.mxu0 %v3792
      %3859 = vmatprep.subr.mxu0 0.0
      %3860 = vmatpush1.msra.mxu0 %v3790
      %3861 = vmatprep.subr.mxu0 0.0
      %3862 = vmatpush1.msra.mxu0 %v3788
      %3863 = vmatprep.subr.mxu0 0.0
      %3864 = vmatpush1.msra.mxu0 %v3786
      %3865 = vmatprep.subr.mxu0 0.0
      %3866 = vmatpush1.msra.mxu0 %v3784
      %3867 = vmatprep.subr.mxu0 0.0
      %3868 = vmatpush1.msra.mxu0 %v3782
      %3869 = vmatprep.subr.mxu0 0.0
      %3870 = vmatpush1.msra.mxu0 %v3780
      %3871 = vmatprep.subr.mxu0 0.0
      %3872 = vmatpush1.msra.mxu0 %v3778
      %3873 = vmatprep.subr.mxu0 0.0
      %3874 = vmatpush1.msra.mxu0 %v3776
      %3875 = vmatprep.subr.mxu0 0.0
      %3876 = vmatpush1.msra.mxu0 %v3774
      %3877 = vmatprep.subr.mxu0 0.0
      %3878 = vmatpush1.msra.mxu0 %v3772
      %3879 = vmatprep.subr.mxu0 0.0
      %3880 = vmatpush1.msra.mxu0 %v3770
      %3881 = vmatprep.subr.mxu0 0.0
      %3882 = vmatpush1.msra.mxu0 %v3768
      %3883 = vmatprep.subr.mxu0 0.0
      %3884 = vmatpush1.msra.mxu0 %v3766
      %3885 = vmatprep.subr.mxu0 0.0
      %3886 = vmatpush1.msra.mxu0 %v3764
      %3887 = vmatprep.subr.mxu0 0.0
      %3888 = vmatpush1.msra.mxu0 %v3762
      %3889 = vmatprep.subr.mxu0 0.0
      %3890 = vmatpush2.msra.mxu0 %v3824
      %3891 = vmatprep.subr.mxu0 0.0
      %3892 = vmatpush2.msra.mxu0 %v3822
      %3893 = vmatprep.subr.mxu0 0.0
      %3894 = vmatpush2.msra.mxu0 %v3820
      %3895 = vmatprep.subr.mxu0 0.0
      %3896 = vmatpush2.msra.mxu0 %v3818
      %3897 = vmatprep.subr.mxu0 0.0
      %3898 = vmatpush2.msra.mxu0 %v3816
      %3899 = vmatprep.subr.mxu0 0.0
      %3900 = vmatpush2.msra.mxu0 %v3814
      %3901 = vmatprep.subr.mxu0 0.0
      %3902 = vmatpush2.msra.mxu0 %v3812
      %3903 = vmatprep.subr.mxu0 0.0
      %3904 = vmatpush2.msra.mxu0 %v3810
      %3905 = vmatprep.subr.mxu0 0.0
      %3906 = vmatpush2.msra.mxu0 %v3808
      %3907 = vmatprep.subr.mxu0 0.0
      %3908 = vmatpush2.msra.mxu0 %v3806
      %3909 = vmatprep.subr.mxu0 0.0
      %3910 = vmatpush2.msra.mxu0 %v3804
      %3911 = vmatprep.subr.mxu0 0.0
      %3912 = vmatpush2.msra.mxu0 %v3802
      %3913 = vmatprep.subr.mxu0 0.0
      %3914 = vmatpush2.msra.mxu0 %v3800
      %3915 = vmatprep.subr.mxu0 0.0
      %3916 = vmatpush2.msra.mxu0 %v3798
      %3917 = vmatprep.subr.mxu0 0.0
      %3918 = vmatpush2.msra.mxu0 %v3796
      %3919 = vmatprep.subr.mxu0 0.0
      %3920 = vmatpush2.msra.mxu0 %v3794
      %3921 = vmatprep.mubr.f32.mxu0 %v3666
      %3922 = vmatmul.mubr.f32.gmra.mxu0 %v3665
      %v3923 = vpop.f32.mrf.mxu0
      %v3924 = vadd.f32 0.0, %v3923
      %v3925 = vpop.f32.mrf.mxu0
      %3926 = vmatprep.mubr.f32.mxu0 %v3668
      %3927 = vmatmul.mubr.f32.gmra.mxu0 %v3667
      %v3928 = vpop.f32.mrf.mxu0
      %v3929 = vadd.f32 0.0, %v3928
      %v3930 = vpop.f32.mrf.mxu0
      %3931 = vmatprep.mubr.f32.mxu0 %v3670
      %3932 = vmatmul.mubr.f32.gmra.mxu0 %v3669
      %v3933 = vpop.f32.mrf.mxu0
      %v3934 = vadd.f32 0.0, %v3933
      %v3935 = vpop.f32.mrf.mxu0
      %3936 = vmatprep.mubr.f32.mxu0 %v3672
      %3937 = vmatmul.mubr.f32.gmra.mxu0 %v3671
      %v3938 = vpop.f32.mrf.mxu0
      %v3939 = vadd.f32 0.0, %v3938
      %v3940 = vpop.f32.mrf.mxu0
      %3941 = vmatprep.mubr.f32.mxu0 %v3674
      %3942 = vmatmul.mubr.f32.gmra.mxu0 %v3673
      %v3943 = vpop.f32.mrf.mxu0
      %v3944 = vadd.f32 0.0, %v3943
      %v3945 = vpop.f32.mrf.mxu0
      %3946 = vmatprep.mubr.f32.mxu0 %v3676
      %3947 = vmatmul.mubr.f32.gmra.mxu0 %v3675
      %v3948 = vpop.f32.mrf.mxu0
      %v3949 = vadd.f32 0.0, %v3948
      %v3950 = vpop.f32.mrf.mxu0
      %3951 = vmatprep.mubr.f32.mxu0 %v3678
      %3952 = vmatmul.mubr.f32.gmra.mxu0 %v3677
      %v3953 = vpop.f32.mrf.mxu0
      %v3954 = vadd.f32 0.0, %v3953
      %v3955 = vpop.f32.mrf.mxu0
      %3956 = vmatprep.mubr.f32.mxu0 %v3680
      %3957 = vmatmul.mubr.f32.gmra.mxu0 %v3679
      %v3958 = vpop.f32.mrf.mxu0
      %v3959 = vadd.f32 0.0, %v3958
      %v3960 = vpop.f32.mrf.mxu0
      %3961 = vmatprep.mubr.f32.mxu0 %v3682
      %3962 = vmatmul.mubr.f32.gmra.mxu0 %v3681
      %v3963 = vpop.f32.mrf.mxu0
      %v3964 = vadd.f32 0.0, %v3963
      %v3965 = vpop.f32.mrf.mxu0
      %3966 = vmatprep.mubr.f32.mxu0 %v3684
      %3967 = vmatmul.mubr.f32.gmra.mxu0 %v3683
      %v3968 = vpop.f32.mrf.mxu0
      %v3969 = vadd.f32 0.0, %v3968
      %v3970 = vpop.f32.mrf.mxu0
      %3971 = vmatprep.mubr.f32.mxu0 %v3686
      %3972 = vmatmul.mubr.f32.gmra.mxu0 %v3685
      %v3973 = vpop.f32.mrf.mxu0
      %v3974 = vadd.f32 0.0, %v3973
      %v3975 = vpop.f32.mrf.mxu0
      %3976 = vmatprep.mubr.f32.mxu0 %v3688
      %3977 = vmatmul.mubr.f32.gmra.mxu0 %v3687
      %v3978 = vpop.f32.mrf.mxu0
      %v3979 = vadd.f32 0.0, %v3978
      %v3980 = vpop.f32.mrf.mxu0
      %3981 = vmatprep.mubr.f32.mxu0 %v3690
      %3982 = vmatmul.mubr.f32.gmra.mxu0 %v3689
      %v3983 = vpop.f32.mrf.mxu0
      %v3984 = vadd.f32 0.0, %v3983
      %v3985 = vpop.f32.mrf.mxu0
      %3986 = vmatprep.mubr.f32.mxu0 %v3692
      %3987 = vmatmul.mubr.f32.gmra.mxu0 %v3691
      %v3988 = vpop.f32.mrf.mxu0
      %v3989 = vadd.f32 0.0, %v3988
      %v3990 = vpop.f32.mrf.mxu0
      %3991 = vmatprep.mubr.f32.mxu0 %v3694
      %3992 = vmatmul.mubr.f32.gmra.mxu0 %v3693
      %v3993 = vpop.f32.mrf.mxu0
      %v3994 = vadd.f32 0.0, %v3993
      %v3995 = vpop.f32.mrf.mxu0
      %3996 = vmatprep.mubr.f32.mxu0 %v3696
      %3997 = vmatmul.mubr.f32.gmra.mxu0 %v3695
      %v3998 = vpop.f32.mrf.mxu0
      %v3999 = vadd.f32 0.0, %v3998
      %v4000 = vpop.f32.mrf.mxu0
      %4001 = vmatprep.mubr.f32.mxu0 %v3698
      %4002 = vmatmul.mubr.f32.gmra.mxu0 %v3697
      %v4003 = vpop.f32.mrf.mxu0
      %v4004 = vadd.f32 0.0, %v4003
      %v4005 = vpop.f32.mrf.mxu0
      %4006 = vmatprep.mubr.f32.mxu0 %v3700
      %4007 = vmatmul.mubr.f32.gmra.mxu0 %v3699
      %v4008 = vpop.f32.mrf.mxu0
      %v4009 = vadd.f32 0.0, %v4008
      %v4010 = vpop.f32.mrf.mxu0
      %4011 = vmatprep.mubr.f32.mxu0 %v3702
      %4012 = vmatmul.mubr.f32.gmra.mxu0 %v3701
      %v4013 = vpop.f32.mrf.mxu0
      %v4014 = vadd.f32 0.0, %v4013
      %v4015 = vpop.f32.mrf.mxu0
      %4016 = vmatprep.mubr.f32.mxu0 %v3704
      %4017 = vmatmul.mubr.f32.gmra.mxu0 %v3703
      %v4018 = vpop.f32.mrf.mxu0
      %v4019 = vadd.f32 0.0, %v4018
      %v4020 = vpop.f32.mrf.mxu0
      %4021 = vmatprep.mubr.f32.mxu0 %v3706
      %4022 = vmatmul.mubr.f32.gmra.mxu0 %v3705
      %v4023 = vpop.f32.mrf.mxu0
      %v4024 = vadd.f32 0.0, %v4023
      %v4025 = vpop.f32.mrf.mxu0
      %4026 = vmatprep.mubr.f32.mxu0 %v3708
      %4027 = vmatmul.mubr.f32.gmra.mxu0 %v3707
      %v4028 = vpop.f32.mrf.mxu0
      %v4029 = vadd.f32 0.0, %v4028
      %v4030 = vpop.f32.mrf.mxu0
      %4031 = vmatprep.mubr.f32.mxu0 %v3710
      %4032 = vmatmul.mubr.f32.gmra.mxu0 %v3709
      %v4033 = vpop.f32.mrf.mxu0
      %v4034 = vadd.f32 0.0, %v4033
      %v4035 = vpop.f32.mrf.mxu0
      %4036 = vmatprep.mubr.f32.mxu0 %v3712
      %4037 = vmatmul.mubr.f32.gmra.mxu0 %v3711
      %v4038 = vpop.f32.mrf.mxu0
      %v4039 = vadd.f32 0.0, %v4038
      %v4040 = vpop.f32.mrf.mxu0
      %4041 = vmatprep.mubr.f32.mxu0 %v3714
      %4042 = vmatmul.mubr.f32.gmra.mxu0 %v3713
      %v4043 = vpop.f32.mrf.mxu0
      %v4044 = vadd.f32 0.0, %v4043
      %v4045 = vpop.f32.mrf.mxu0
      %4046 = vmatprep.mubr.f32.mxu0 %v3716
      %4047 = vmatmul.mubr.f32.gmra.mxu0 %v3715
      %v4048 = vpop.f32.mrf.mxu0
      %v4049 = vadd.f32 0.0, %v4048
      %v4050 = vpop.f32.mrf.mxu0
      %4051 = vmatprep.mubr.f32.mxu0 %v3718
      %4052 = vmatmul.mubr.f32.gmra.mxu0 %v3717
      %v4053 = vpop.f32.mrf.mxu0
      %v4054 = vadd.f32 0.0, %v4053
      %v4055 = vpop.f32.mrf.mxu0
      %4056 = vmatprep.mubr.f32.mxu0 %v3720
      %4057 = vmatmul.mubr.f32.gmra.mxu0 %v3719
      %v4058 = vpop.f32.mrf.mxu0
      %v4059 = vadd.f32 0.0, %v4058
      %v4060 = vpop.f32.mrf.mxu0
      %4061 = vmatprep.mubr.f32.mxu0 %v3722
      %4062 = vmatmul.mubr.f32.gmra.mxu0 %v3721
      %v4063 = vpop.f32.mrf.mxu0
      %v4064 = vadd.f32 0.0, %v4063
      %v4065 = vpop.f32.mrf.mxu0
      %4066 = vmatprep.mubr.f32.mxu0 %v3724
      %4067 = vmatmul.mubr.f32.gmra.mxu0 %v3723
      %v4068 = vpop.f32.mrf.mxu0
      %v4069 = vadd.f32 0.0, %v4068
      %v4070 = vpop.f32.mrf.mxu0
      %4071 = vmatprep.mubr.f32.mxu0 %v3726
      %4072 = vmatmul.mubr.f32.gmra.mxu0 %v3725
      %v4073 = vpop.f32.mrf.mxu0
      %v4074 = vadd.f32 0.0, %v4073
      %v4075 = vpop.f32.mrf.mxu0
      %4076 = vmatprep.mubr.f32.mxu0 %v3728
      %4077 = vmatmul.mubr.f32.gmra.mxu0 %v3727
      %v4078 = vpop.f32.mrf.mxu0
      %v4079 = vadd.f32 0.0, %v4078
      %v4080 = vpop.f32.mrf.mxu0
      %4081 = vdwg.mxu0
      %4082 = vrot.lane.b32.xlu0 %v1400, 126
      %v4083 = vpop.permute.xlu0 %4082
      %v4084 = vsel %vm1409, %v4083, 0
      %v4087 = vsel %vm1409, %v3924, 0
      %v4090 = vsel %vm1409, %v3929, 0
      %v4093 = vsel %vm1409, %v3934, 0
      %v4096 = vsel %vm1409, %v3939, 0
      %v4099 = vsel %vm1409, %v3944, 0
      %v4102 = vsel %vm1409, %v3949, 0
      %v4105 = vsel %vm1409, %v3954, 0
      %v4108 = vsel %vm1409, %v3959, 0
      %v4111 = vsel %vm1409, %v3964, 0
      %v4114 = vsel %vm1409, %v3969, 0
      %v4117 = vsel %vm1409, %v3974, 0
      %v4120 = vsel %vm1409, %v3979, 0
      %v4123 = vsel %vm1409, %v3984, 0
      %v4126 = vsel %vm1409, %v3989, 0
      %v4129 = vsel %vm1409, %v3994, 0
      %v4132 = vsel %vm1409, %v3999, 0
      %v4135 = vsel %vm1409, %v4004, 0
      %v4138 = vsel %vm1409, %v4009, 0
      %v4141 = vsel %vm1409, %v4014, 0
      %v4144 = vsel %vm1409, %v4019, 0
      %v4147 = vsel %vm1409, %v4024, 0
      %v4150 = vsel %vm1409, %v4029, 0
      %v4153 = vsel %vm1409, %v4034, 0
      %v4156 = vsel %vm1409, %v4039, 0
      %v4159 = vsel %vm1409, %v4044, 0
      %v4162 = vsel %vm1409, %v4049, 0
      %v4165 = vsel %vm1409, %v4054, 0
      %v4168 = vsel %vm1409, %v4059, 0
      %v4171 = vsel %vm1409, %v4064, 0
      %v4174 = vsel %vm1409, %v4069, 0
      %v4177 = vsel %vm1409, %v4074, 0
      %v4180 = vsel %vm1409, %v4079, 0
      %4182 = vmatprep.subr.mxu0 0.0
      %4183 = vmatpush1.xpose.msra.mxu0 %v4132
      %4184 = vmatprep.subr.mxu0 0.0
      %4185 = vmatpush1.xpose.msra.mxu0 %v4129
      %4186 = vmatprep.subr.mxu0 0.0
      %4187 = vmatpush1.xpose.msra.mxu0 %v4126
      %4188 = vmatprep.subr.mxu0 0.0
      %4189 = vmatpush1.xpose.msra.mxu0 %v4123
      %4190 = vmatprep.subr.mxu0 0.0
      %4191 = vmatpush1.xpose.msra.mxu0 %v4120
      %4192 = vmatprep.subr.mxu0 0.0
      %4193 = vmatpush1.xpose.msra.mxu0 %v4117
      %4194 = vmatprep.subr.mxu0 0.0
      %4195 = vmatpush1.xpose.msra.mxu0 %v4114
      %4196 = vmatprep.subr.mxu0 0.0
      %4197 = vmatpush1.xpose.msra.mxu0 %v4111
      %4198 = vmatprep.subr.mxu0 0.0
      %4199 = vmatpush1.xpose.msra.mxu0 %v4108
      %4200 = vmatprep.subr.mxu0 0.0
      %4201 = vmatpush1.xpose.msra.mxu0 %v4105
      %4202 = vmatprep.subr.mxu0 0.0
      %4203 = vmatpush1.xpose.msra.mxu0 %v4102
      %4204 = vmatprep.subr.mxu0 0.0
      %4205 = vmatpush1.xpose.msra.mxu0 %v4099
      %4206 = vmatprep.subr.mxu0 0.0
      %4207 = vmatpush1.xpose.msra.mxu0 %v4096
      %4208 = vmatprep.subr.mxu0 0.0
      %4209 = vmatpush1.xpose.msra.mxu0 %v4093
      %4210 = vmatprep.subr.mxu0 0.0
      %4211 = vmatpush1.xpose.msra.mxu0 %v4090
      %4212 = vmatprep.subr.mxu0 0.0
      %4213 = vmatpush1.xpose.msra.mxu0 %v4087
      %4214 = vmatprep.subr.mxu0 0.0
      %4215 = vmatpush2.xpose.msra.mxu0 %v4180
      %4216 = vmatprep.subr.mxu0 0.0
      %4217 = vmatpush2.xpose.msra.mxu0 %v4177
      %4218 = vmatprep.subr.mxu0 0.0
      %4219 = vmatpush2.xpose.msra.mxu0 %v4174
      %4220 = vmatprep.subr.mxu0 0.0
      %4221 = vmatpush2.xpose.msra.mxu0 %v4171
      %4222 = vmatprep.subr.mxu0 0.0
      %4223 = vmatpush2.xpose.msra.mxu0 %v4168
      %4224 = vmatprep.subr.mxu0 0.0
      %4225 = vmatpush2.xpose.msra.mxu0 %v4165
      %4226 = vmatprep.subr.mxu0 0.0
      %4227 = vmatpush2.xpose.msra.mxu0 %v4162
      %4228 = vmatprep.subr.mxu0 0.0
      %4229 = vmatpush2.xpose.msra.mxu0 %v4159
      %4230 = vmatprep.subr.mxu0 0.0
      %4231 = vmatpush2.xpose.msra.mxu0 %v4156
      %4232 = vmatprep.subr.mxu0 0.0
      %4233 = vmatpush2.xpose.msra.mxu0 %v4153
      %4234 = vmatprep.subr.mxu0 0.0
      %4235 = vmatpush2.xpose.msra.mxu0 %v4150
      %4236 = vmatprep.subr.mxu0 0.0
      %4237 = vmatpush2.xpose.msra.mxu0 %v4147
      %4238 = vmatprep.subr.mxu0 0.0
      %4239 = vmatpush2.xpose.msra.mxu0 %v4144
      %4240 = vmatprep.subr.mxu0 0.0
      %4241 = vmatpush2.xpose.msra.mxu0 %v4141
      %4242 = vmatprep.subr.mxu0 0.0
      %4243 = vmatpush2.xpose.msra.mxu0 %v4138
      %4244 = vmatprep.subr.mxu0 0.0
      %4245 = vmatpush2.xpose.msra.mxu0 %v4135
      %4246 = vmatprep.mubr.f32.mxu0 0.0
      %4247 = vmatmul.mubr.f32.gmra.mxu0 %v4084
      %v4248 = vpop.f32.mrf.mxu0
      %v4249 = vadd.f32 0.0, %v4248
      %v4250 = vpop.f32.mrf.mxu0
      %v4251 = vadd.f32 0.0, %v4250
      %4252 = vdwg.mxu0
      %v4253 = vadd.f32 %v2734, %v4249
      %v4254 = vadd.f32 %v2735, %v4251
      %4255 = vrot.lane.b32.xlu0 %v790, 124
      %v4256 = vpop.permute.xlu0 %4255
      %4257 = vrot.lane.b32.xlu0 %v795, 124
      %v4258 = vpop.permute.xlu0 %4257
      %4259 = vrot.lane.b32.xlu0 %v800, 124
      %v4260 = vpop.permute.xlu0 %4259
      %4261 = vrot.lane.b32.xlu0 %v805, 124
      %v4262 = vpop.permute.xlu0 %4261
      %4263 = vrot.lane.b32.xlu0 %v810, 124
      %v4264 = vpop.permute.xlu0 %4263
      %4265 = vrot.lane.b32.xlu0 %v815, 124
      %v4266 = vpop.permute.xlu0 %4265
      %4267 = vrot.lane.b32.xlu0 %v820, 124
      %v4268 = vpop.permute.xlu0 %4267
      %4269 = vrot.lane.b32.xlu0 %v825, 124
      %v4270 = vpop.permute.xlu0 %4269
      %4271 = vrot.lane.b32.xlu0 %v830, 124
      %v4272 = vpop.permute.xlu0 %4271
      %4273 = vrot.lane.b32.xlu0 %v835, 124
      %v4274 = vpop.permute.xlu0 %4273
      %4275 = vrot.lane.b32.xlu0 %v840, 124
      %v4276 = vpop.permute.xlu0 %4275
      %4277 = vrot.lane.b32.xlu0 %v845, 124
      %v4278 = vpop.permute.xlu0 %4277
      %4279 = vrot.lane.b32.xlu0 %v850, 124
      %v4280 = vpop.permute.xlu0 %4279
      %4281 = vrot.lane.b32.xlu0 %v855, 124
      %v4282 = vpop.permute.xlu0 %4281
      %4283 = vrot.lane.b32.xlu0 %v860, 124
      %v4284 = vpop.permute.xlu0 %4283
      %4285 = vrot.lane.b32.xlu0 %v865, 124
      %v4286 = vpop.permute.xlu0 %4285
      %4287 = vrot.lane.b32.xlu0 %v870, 124
      %v4288 = vpop.permute.xlu0 %4287
      %4289 = vrot.lane.b32.xlu0 %v875, 124
      %v4290 = vpop.permute.xlu0 %4289
      %4291 = vrot.lane.b32.xlu0 %v880, 124
      %v4292 = vpop.permute.xlu0 %4291
      %4293 = vrot.lane.b32.xlu0 %v885, 124
      %v4294 = vpop.permute.xlu0 %4293
      %4295 = vrot.lane.b32.xlu0 %v890, 124
      %v4296 = vpop.permute.xlu0 %4295
      %4297 = vrot.lane.b32.xlu0 %v895, 124
      %v4298 = vpop.permute.xlu0 %4297
      %4299 = vrot.lane.b32.xlu0 %v900, 124
      %v4300 = vpop.permute.xlu0 %4299
      %4301 = vrot.lane.b32.xlu0 %v905, 124
      %v4302 = vpop.permute.xlu0 %4301
      %4303 = vrot.lane.b32.xlu0 %v910, 124
      %v4304 = vpop.permute.xlu0 %4303
      %4305 = vrot.lane.b32.xlu0 %v915, 124
      %v4306 = vpop.permute.xlu0 %4305
      %4307 = vrot.lane.b32.xlu0 %v920, 124
      %v4308 = vpop.permute.xlu0 %4307
      %4309 = vrot.lane.b32.xlu0 %v925, 124
      %v4310 = vpop.permute.xlu0 %4309
      %4311 = vrot.lane.b32.xlu0 %v930, 124
      %v4312 = vpop.permute.xlu0 %4311
      %4313 = vrot.lane.b32.xlu0 %v935, 124
      %v4314 = vpop.permute.xlu0 %4313
      %4315 = vrot.lane.b32.xlu0 %v940, 124
      %v4316 = vpop.permute.xlu0 %4315
      %4317 = vrot.lane.b32.xlu0 %v945, 124
      %v4318 = vpop.permute.xlu0 %4317
      %4319 = vrot.lane.b32.xlu0 %v1016, 124
      %v4320 = vpop.permute.xlu0 %4319
      %4321 = vrot.lane.b32.xlu0 %v1021, 124
      %v4322 = vpop.permute.xlu0 %4321
      %4323 = vrot.lane.b32.xlu0 %v1026, 124
      %v4324 = vpop.permute.xlu0 %4323
      %4325 = vrot.lane.b32.xlu0 %v1031, 124
      %v4326 = vpop.permute.xlu0 %4325
      %4327 = vrot.lane.b32.xlu0 %v1036, 124
      %v4328 = vpop.permute.xlu0 %4327
      %4329 = vrot.lane.b32.xlu0 %v1041, 124
      %v4330 = vpop.permute.xlu0 %4329
      %4331 = vrot.lane.b32.xlu0 %v1046, 124
      %v4332 = vpop.permute.xlu0 %4331
      %4333 = vrot.lane.b32.xlu0 %v1051, 124
      %v4334 = vpop.permute.xlu0 %4333
      %4335 = vrot.lane.b32.xlu0 %v1056, 124
      %v4336 = vpop.permute.xlu0 %4335
      %4337 = vrot.lane.b32.xlu0 %v1061, 124
      %v4338 = vpop.permute.xlu0 %4337
      %4339 = vrot.lane.b32.xlu0 %v1066, 124
      %v4340 = vpop.permute.xlu0 %4339
      %4341 = vrot.lane.b32.xlu0 %v1071, 124
      %v4342 = vpop.permute.xlu0 %4341
      %4343 = vrot.lane.b32.xlu0 %v1076, 124
      %v4344 = vpop.permute.xlu0 %4343
      %4345 = vrot.lane.b32.xlu0 %v1081, 124
      %v4346 = vpop.permute.xlu0 %4345
      %4347 = vrot.lane.b32.xlu0 %v1086, 124
      %v4348 = vpop.permute.xlu0 %4347
      %4349 = vrot.lane.b32.xlu0 %v1091, 124
      %v4350 = vpop.permute.xlu0 %4349
      %4351 = vrot.lane.b32.xlu0 %v1096, 124
      %v4352 = vpop.permute.xlu0 %4351
      %4353 = vrot.lane.b32.xlu0 %v1101, 124
      %v4354 = vpop.permute.xlu0 %4353
      %4355 = vrot.lane.b32.xlu0 %v1106, 124
      %v4356 = vpop.permute.xlu0 %4355
      %4357 = vrot.lane.b32.xlu0 %v1111, 124
      %v4358 = vpop.permute.xlu0 %4357
      %4359 = vrot.lane.b32.xlu0 %v1116, 124
      %v4360 = vpop.permute.xlu0 %4359
      %4361 = vrot.lane.b32.xlu0 %v1121, 124
      %v4362 = vpop.permute.xlu0 %4361
      %4363 = vrot.lane.b32.xlu0 %v1126, 124
      %v4364 = vpop.permute.xlu0 %4363
      %4365 = vrot.lane.b32.xlu0 %v1131, 124
      %v4366 = vpop.permute.xlu0 %4365
      %4367 = vrot.lane.b32.xlu0 %v1136, 124
      %v4368 = vpop.permute.xlu0 %4367
      %4369 = vrot.lane.b32.xlu0 %v1141, 124
      %v4370 = vpop.permute.xlu0 %4369
      %4371 = vrot.lane.b32.xlu0 %v1146, 124
      %v4372 = vpop.permute.xlu0 %4371
      %4373 = vrot.lane.b32.xlu0 %v1151, 124
      %v4374 = vpop.permute.xlu0 %4373
      %4375 = vrot.lane.b32.xlu0 %v1156, 124
      %v4376 = vpop.permute.xlu0 %4375
      %4377 = vrot.lane.b32.xlu0 %v1161, 124
      %v4378 = vpop.permute.xlu0 %4377
      %4379 = vrot.lane.b32.xlu0 %v1166, 124
      %v4380 = vpop.permute.xlu0 %4379
      %4381 = vrot.lane.b32.xlu0 %v1171, 124
      %v4382 = vpop.permute.xlu0 %4381
      %v4383 = vsel %vm1409, %v4256, 0
      %v4385 = vsel %vm1409, %v4258, 0
      %v4387 = vsel %vm1409, %v4260, 0
      %v4389 = vsel %vm1409, %v4262, 0
      %v4391 = vsel %vm1409, %v4264, 0
      %v4393 = vsel %vm1409, %v4266, 0
      %v4395 = vsel %vm1409, %v4268, 0
      %v4397 = vsel %vm1409, %v4270, 0
      %v4399 = vsel %vm1409, %v4272, 0
      %v4401 = vsel %vm1409, %v4274, 0
      %v4403 = vsel %vm1409, %v4276, 0
      %v4405 = vsel %vm1409, %v4278, 0
      %v4407 = vsel %vm1409, %v4280, 0
      %v4409 = vsel %vm1409, %v4282, 0
      %v4411 = vsel %vm1409, %v4284, 0
      %v4413 = vsel %vm1409, %v4286, 0
      %v4415 = vsel %vm1409, %v4288, 0
      %v4417 = vsel %vm1409, %v4290, 0
      %v4419 = vsel %vm1409, %v4292, 0
      %v4421 = vsel %vm1409, %v4294, 0
      %v4423 = vsel %vm1409, %v4296, 0
      %v4425 = vsel %vm1409, %v4298, 0
      %v4427 = vsel %vm1409, %v4300, 0
      %v4429 = vsel %vm1409, %v4302, 0
      %v4431 = vsel %vm1409, %v4304, 0
      %v4433 = vsel %vm1409, %v4306, 0
      %v4435 = vsel %vm1409, %v4308, 0
      %v4437 = vsel %vm1409, %v4310, 0
      %v4439 = vsel %vm1409, %v4312, 0
      %v4441 = vsel %vm1409, %v4314, 0
      %v4443 = vsel %vm1409, %v4316, 0
      %v4445 = vsel %vm1409, %v4318, 0
      %v4447 = vsel %vm1409, %v4320, 0
      %v4449 = vsel %vm1409, %v4322, 0
      %v4451 = vsel %vm1409, %v4324, 0
      %v4453 = vsel %vm1409, %v4326, 0
      %v4455 = vsel %vm1409, %v4328, 0
      %v4457 = vsel %vm1409, %v4330, 0
      %v4459 = vsel %vm1409, %v4332, 0
      %v4461 = vsel %vm1409, %v4334, 0
      %v4463 = vsel %vm1409, %v4336, 0
      %v4465 = vsel %vm1409, %v4338, 0
      %v4467 = vsel %vm1409, %v4340, 0
      %v4469 = vsel %vm1409, %v4342, 0
      %v4471 = vsel %vm1409, %v4344, 0
      %v4473 = vsel %vm1409, %v4346, 0
      %v4475 = vsel %vm1409, %v4348, 0
      %v4477 = vsel %vm1409, %v4350, 0
      %v4479 = vsel %vm1409, %v4352, 0
      %v4481 = vsel %vm1409, %v4354, 0
      %v4483 = vsel %vm1409, %v4356, 0
      %v4485 = vsel %vm1409, %v4358, 0
      %v4487 = vsel %vm1409, %v4360, 0
      %v4489 = vsel %vm1409, %v4362, 0
      %v4491 = vsel %vm1409, %v4364, 0
      %v4493 = vsel %vm1409, %v4366, 0
      %v4495 = vsel %vm1409, %v4368, 0
      %v4497 = vsel %vm1409, %v4370, 0
      %v4499 = vsel %vm1409, %v4372, 0
      %v4501 = vsel %vm1409, %v4374, 0
      %v4503 = vsel %vm1409, %v4376, 0
      %v4505 = vsel %vm1409, %v4378, 0
      %v4507 = vsel %vm1409, %v4380, 0
      %v4509 = vsel %vm1409, %v4382, 0
      %4511 = vmatprep.subr.mxu0 0.0
      %4512 = vmatpush1.xpose.msra.mxu0 %v4477
      %4513 = vmatprep.subr.mxu0 0.0
      %4514 = vmatpush1.xpose.msra.mxu0 %v4475
      %4515 = vmatprep.subr.mxu0 0.0
      %4516 = vmatpush1.xpose.msra.mxu0 %v4473
      %4517 = vmatprep.subr.mxu0 0.0
      %4518 = vmatpush1.xpose.msra.mxu0 %v4471
      %4519 = vmatprep.subr.mxu0 0.0
      %4520 = vmatpush1.xpose.msra.mxu0 %v4469
      %4521 = vmatprep.subr.mxu0 0.0
      %4522 = vmatpush1.xpose.msra.mxu0 %v4467
      %4523 = vmatprep.subr.mxu0 0.0
      %4524 = vmatpush1.xpose.msra.mxu0 %v4465
      %4525 = vmatprep.subr.mxu0 0.0
      %4526 = vmatpush1.xpose.msra.mxu0 %v4463
      %4527 = vmatprep.subr.mxu0 0.0
      %4528 = vmatpush1.xpose.msra.mxu0 %v4461
      %4529 = vmatprep.subr.mxu0 0.0
      %4530 = vmatpush1.xpose.msra.mxu0 %v4459
      %4531 = vmatprep.subr.mxu0 0.0
      %4532 = vmatpush1.xpose.msra.mxu0 %v4457
      %4533 = vmatprep.subr.mxu0 0.0
      %4534 = vmatpush1.xpose.msra.mxu0 %v4455
      %4535 = vmatprep.subr.mxu0 0.0
      %4536 = vmatpush1.xpose.msra.mxu0 %v4453
      %4537 = vmatprep.subr.mxu0 0.0
      %4538 = vmatpush1.xpose.msra.mxu0 %v4451
      %4539 = vmatprep.subr.mxu0 0.0
      %4540 = vmatpush1.xpose.msra.mxu0 %v4449
      %4541 = vmatprep.subr.mxu0 0.0
      %4542 = vmatpush1.xpose.msra.mxu0 %v4447
      %4543 = vmatprep.subr.mxu0 0.0
      %4544 = vmatpush2.xpose.msra.mxu0 %v4509
      %4545 = vmatprep.subr.mxu0 0.0
      %4546 = vmatpush2.xpose.msra.mxu0 %v4507
      %4547 = vmatprep.subr.mxu0 0.0
      %4548 = vmatpush2.xpose.msra.mxu0 %v4505
      %4549 = vmatprep.subr.mxu0 0.0
      %4550 = vmatpush2.xpose.msra.mxu0 %v4503
      %4551 = vmatprep.subr.mxu0 0.0
      %4552 = vmatpush2.xpose.msra.mxu0 %v4501
      %4553 = vmatprep.subr.mxu0 0.0
      %4554 = vmatpush2.xpose.msra.mxu0 %v4499
      %4555 = vmatprep.subr.mxu0 0.0
      %4556 = vmatpush2.xpose.msra.mxu0 %v4497
      %4557 = vmatprep.subr.mxu0 0.0
      %4558 = vmatpush2.xpose.msra.mxu0 %v4495
      %4559 = vmatprep.subr.mxu0 0.0
      %4560 = vmatpush2.xpose.msra.mxu0 %v4493
      %4561 = vmatprep.subr.mxu0 0.0
      %4562 = vmatpush2.xpose.msra.mxu0 %v4491
      %4563 = vmatprep.subr.mxu0 0.0
      %4564 = vmatpush2.xpose.msra.mxu0 %v4489
      %4565 = vmatprep.subr.mxu0 0.0
      %4566 = vmatpush2.xpose.msra.mxu0 %v4487
      %4567 = vmatprep.subr.mxu0 0.0
      %4568 = vmatpush2.xpose.msra.mxu0 %v4485
      %4569 = vmatprep.subr.mxu0 0.0
      %4570 = vmatpush2.xpose.msra.mxu0 %v4483
      %4571 = vmatprep.subr.mxu0 0.0
      %4572 = vmatpush2.xpose.msra.mxu0 %v4481
      %4573 = vmatprep.subr.mxu0 0.0
      %4574 = vmatpush2.xpose.msra.mxu0 %v4479
      %4575 = vmatprep.mubr.f32.mxu0 0.0
      %4576 = vmatmul.mubr.f32.gmra.mxu0 %v4383
      %v4577 = vpop.f32.mrf.mxu0
      %v4578 = vadd.f32 0.0, %v4577
      %v4579 = vpop.f32.mrf.mxu0
      %v4580 = vadd.f32 0.0, %v4579
      %4581 = vmatprep.mubr.f32.mxu0 0.0
      %4582 = vmatmul.mubr.f32.gmra.mxu0 %v4385
      %v4583 = vpop.f32.mrf.mxu0
      %v4584 = vadd.f32 0.0, %v4583
      %v4585 = vpop.f32.mrf.mxu0
      %v4586 = vadd.f32 0.0, %v4585
      %4587 = vmatprep.mubr.f32.mxu0 0.0
      %4588 = vmatmul.mubr.f32.gmra.mxu0 %v4387
      %v4589 = vpop.f32.mrf.mxu0
      %v4590 = vadd.f32 0.0, %v4589
      %v4591 = vpop.f32.mrf.mxu0
      %v4592 = vadd.f32 0.0, %v4591
      %4593 = vmatprep.mubr.f32.mxu0 0.0
      %4594 = vmatmul.mubr.f32.gmra.mxu0 %v4389
      %v4595 = vpop.f32.mrf.mxu0
      %v4596 = vadd.f32 0.0, %v4595
      %v4597 = vpop.f32.mrf.mxu0
      %v4598 = vadd.f32 0.0, %v4597
      %4599 = vmatprep.mubr.f32.mxu0 0.0
      %4600 = vmatmul.mubr.f32.gmra.mxu0 %v4391
      %v4601 = vpop.f32.mrf.mxu0
      %v4602 = vadd.f32 0.0, %v4601
      %v4603 = vpop.f32.mrf.mxu0
      %v4604 = vadd.f32 0.0, %v4603
      %4605 = vmatprep.mubr.f32.mxu0 0.0
      %4606 = vmatmul.mubr.f32.gmra.mxu0 %v4393
      %v4607 = vpop.f32.mrf.mxu0
      %v4608 = vadd.f32 0.0, %v4607
      %v4609 = vpop.f32.mrf.mxu0
      %v4610 = vadd.f32 0.0, %v4609
      %4611 = vmatprep.mubr.f32.mxu0 0.0
      %4612 = vmatmul.mubr.f32.gmra.mxu0 %v4395
      %v4613 = vpop.f32.mrf.mxu0
      %v4614 = vadd.f32 0.0, %v4613
      %v4615 = vpop.f32.mrf.mxu0
      %v4616 = vadd.f32 0.0, %v4615
      %4617 = vmatprep.mubr.f32.mxu0 0.0
      %4618 = vmatmul.mubr.f32.gmra.mxu0 %v4397
      %v4619 = vpop.f32.mrf.mxu0
      %v4620 = vadd.f32 0.0, %v4619
      %v4621 = vpop.f32.mrf.mxu0
      %v4622 = vadd.f32 0.0, %v4621
      %4623 = vmatprep.mubr.f32.mxu0 0.0
      %4624 = vmatmul.mubr.f32.gmra.mxu0 %v4399
      %v4625 = vpop.f32.mrf.mxu0
      %v4626 = vadd.f32 0.0, %v4625
      %v4627 = vpop.f32.mrf.mxu0
      %v4628 = vadd.f32 0.0, %v4627
      %4629 = vmatprep.mubr.f32.mxu0 0.0
      %4630 = vmatmul.mubr.f32.gmra.mxu0 %v4401
      %v4631 = vpop.f32.mrf.mxu0
      %v4632 = vadd.f32 0.0, %v4631
      %v4633 = vpop.f32.mrf.mxu0
      %v4634 = vadd.f32 0.0, %v4633
      %4635 = vmatprep.mubr.f32.mxu0 0.0
      %4636 = vmatmul.mubr.f32.gmra.mxu0 %v4403
      %v4637 = vpop.f32.mrf.mxu0
      %v4638 = vadd.f32 0.0, %v4637
      %v4639 = vpop.f32.mrf.mxu0
      %v4640 = vadd.f32 0.0, %v4639
      %4641 = vmatprep.mubr.f32.mxu0 0.0
      %4642 = vmatmul.mubr.f32.gmra.mxu0 %v4405
      %v4643 = vpop.f32.mrf.mxu0
      %v4644 = vadd.f32 0.0, %v4643
      %v4645 = vpop.f32.mrf.mxu0
      %v4646 = vadd.f32 0.0, %v4645
      %4647 = vmatprep.mubr.f32.mxu0 0.0
      %4648 = vmatmul.mubr.f32.gmra.mxu0 %v4407
      %v4649 = vpop.f32.mrf.mxu0
      %v4650 = vadd.f32 0.0, %v4649
      %v4651 = vpop.f32.mrf.mxu0
      %v4652 = vadd.f32 0.0, %v4651
      %4653 = vmatprep.mubr.f32.mxu0 0.0
      %4654 = vmatmul.mubr.f32.gmra.mxu0 %v4409
      %v4655 = vpop.f32.mrf.mxu0
      %v4656 = vadd.f32 0.0, %v4655
      %v4657 = vpop.f32.mrf.mxu0
      %v4658 = vadd.f32 0.0, %v4657
      %4659 = vmatprep.mubr.f32.mxu0 0.0
      %4660 = vmatmul.mubr.f32.gmra.mxu0 %v4411
      %v4661 = vpop.f32.mrf.mxu0
      %v4662 = vadd.f32 0.0, %v4661
      %v4663 = vpop.f32.mrf.mxu0
      %v4664 = vadd.f32 0.0, %v4663
      %4665 = vmatprep.mubr.f32.mxu0 0.0
      %4666 = vmatmul.mubr.f32.gmra.mxu0 %v4413
      %v4667 = vpop.f32.mrf.mxu0
      %v4668 = vadd.f32 0.0, %v4667
      %v4669 = vpop.f32.mrf.mxu0
      %v4670 = vadd.f32 0.0, %v4669
      %4671 = vmatprep.mubr.f32.mxu0 0.0
      %4672 = vmatmul.mubr.f32.gmra.mxu0 %v4415
      %v4673 = vpop.f32.mrf.mxu0
      %v4674 = vadd.f32 0.0, %v4673
      %v4675 = vpop.f32.mrf.mxu0
      %v4676 = vadd.f32 0.0, %v4675
      %4677 = vmatprep.mubr.f32.mxu0 0.0
      %4678 = vmatmul.mubr.f32.gmra.mxu0 %v4417
      %v4679 = vpop.f32.mrf.mxu0
      %v4680 = vadd.f32 0.0, %v4679
      %v4681 = vpop.f32.mrf.mxu0
      %v4682 = vadd.f32 0.0, %v4681
      %4683 = vmatprep.mubr.f32.mxu0 0.0
      %4684 = vmatmul.mubr.f32.gmra.mxu0 %v4419
      %v4685 = vpop.f32.mrf.mxu0
      %v4686 = vadd.f32 0.0, %v4685
      %v4687 = vpop.f32.mrf.mxu0
      %v4688 = vadd.f32 0.0, %v4687
      %4689 = vmatprep.mubr.f32.mxu0 0.0
      %4690 = vmatmul.mubr.f32.gmra.mxu0 %v4421
      %v4691 = vpop.f32.mrf.mxu0
      %v4692 = vadd.f32 0.0, %v4691
      %v4693 = vpop.f32.mrf.mxu0
      %v4694 = vadd.f32 0.0, %v4693
      %4695 = vmatprep.mubr.f32.mxu0 0.0
      %4696 = vmatmul.mubr.f32.gmra.mxu0 %v4423
      %v4697 = vpop.f32.mrf.mxu0
      %v4698 = vadd.f32 0.0, %v4697
      %v4699 = vpop.f32.mrf.mxu0
      %v4700 = vadd.f32 0.0, %v4699
      %4701 = vmatprep.mubr.f32.mxu0 0.0
      %4702 = vmatmul.mubr.f32.gmra.mxu0 %v4425
      %v4703 = vpop.f32.mrf.mxu0
      %v4704 = vadd.f32 0.0, %v4703
      %v4705 = vpop.f32.mrf.mxu0
      %v4706 = vadd.f32 0.0, %v4705
      %4707 = vmatprep.mubr.f32.mxu0 0.0
      %4708 = vmatmul.mubr.f32.gmra.mxu0 %v4427
      %v4709 = vpop.f32.mrf.mxu0
      %v4710 = vadd.f32 0.0, %v4709
      %v4711 = vpop.f32.mrf.mxu0
      %v4712 = vadd.f32 0.0, %v4711
      %4713 = vmatprep.mubr.f32.mxu0 0.0
      %4714 = vmatmul.mubr.f32.gmra.mxu0 %v4429
      %v4715 = vpop.f32.mrf.mxu0
      %v4716 = vadd.f32 0.0, %v4715
      %v4717 = vpop.f32.mrf.mxu0
      %v4718 = vadd.f32 0.0, %v4717
      %4719 = vmatprep.mubr.f32.mxu0 0.0
      %4720 = vmatmul.mubr.f32.gmra.mxu0 %v4431
      %v4721 = vpop.f32.mrf.mxu0
      %v4722 = vadd.f32 0.0, %v4721
      %v4723 = vpop.f32.mrf.mxu0
      %v4724 = vadd.f32 0.0, %v4723
      %4725 = vmatprep.mubr.f32.mxu0 0.0
      %4726 = vmatmul.mubr.f32.gmra.mxu0 %v4433
      %v4727 = vpop.f32.mrf.mxu0
      %v4728 = vadd.f32 0.0, %v4727
      %v4729 = vpop.f32.mrf.mxu0
      %v4730 = vadd.f32 0.0, %v4729
      %4731 = vmatprep.mubr.f32.mxu0 0.0
      %4732 = vmatmul.mubr.f32.gmra.mxu0 %v4435
      %v4733 = vpop.f32.mrf.mxu0
      %v4734 = vadd.f32 0.0, %v4733
      %v4735 = vpop.f32.mrf.mxu0
      %v4736 = vadd.f32 0.0, %v4735
      %4737 = vmatprep.mubr.f32.mxu0 0.0
      %4738 = vmatmul.mubr.f32.gmra.mxu0 %v4437
      %v4739 = vpop.f32.mrf.mxu0
      %v4740 = vadd.f32 0.0, %v4739
      %v4741 = vpop.f32.mrf.mxu0
      %v4742 = vadd.f32 0.0, %v4741
      %4743 = vmatprep.mubr.f32.mxu0 0.0
      %4744 = vmatmul.mubr.f32.gmra.mxu0 %v4439
      %v4745 = vpop.f32.mrf.mxu0
      %v4746 = vadd.f32 0.0, %v4745
      %v4747 = vpop.f32.mrf.mxu0
      %v4748 = vadd.f32 0.0, %v4747
      %4749 = vmatprep.mubr.f32.mxu0 0.0
      %4750 = vmatmul.mubr.f32.gmra.mxu0 %v4441
      %v4751 = vpop.f32.mrf.mxu0
      %v4752 = vadd.f32 0.0, %v4751
      %v4753 = vpop.f32.mrf.mxu0
      %v4754 = vadd.f32 0.0, %v4753
      %4755 = vmatprep.mubr.f32.mxu0 0.0
      %4756 = vmatmul.mubr.f32.gmra.mxu0 %v4443
      %v4757 = vpop.f32.mrf.mxu0
      %v4758 = vadd.f32 0.0, %v4757
      %v4759 = vpop.f32.mrf.mxu0
      %v4760 = vadd.f32 0.0, %v4759
      %4761 = vmatprep.mubr.f32.mxu0 0.0
      %4762 = vmatmul.mubr.f32.gmra.mxu0 %v4445
      %v4763 = vpop.f32.mrf.mxu0
      %v4764 = vadd.f32 0.0, %v4763
      %v4765 = vpop.f32.mrf.mxu0
      %v4766 = vadd.f32 0.0, %v4765
      %4767 = vdwg.mxu0
      %v4768 = vmax.f32 %v4578, %v4580
      %4769 = vmax.xlane.f32.xlu0 %v4768
      %v4770 = vpop.xlane.xlu0 %4769
      %v4771 = vmax.f32 %v4584, %v4586
      %4772 = vmax.xlane.f32.xlu0 %v4771
      %v4773 = vpop.xlane.xlu0 %4772
      %v4774 = vmax.f32 %v4590, %v4592
      %4775 = vmax.xlane.f32.xlu0 %v4774
      %v4776 = vpop.xlane.xlu0 %4775
      %v4777 = vmax.f32 %v4596, %v4598
      %4778 = vmax.xlane.f32.xlu0 %v4777
      %v4779 = vpop.xlane.xlu0 %4778
      %v4780 = vmax.f32 %v4602, %v4604
      %4781 = vmax.xlane.f32.xlu0 %v4780
      %v4782 = vpop.xlane.xlu0 %4781
      %v4783 = vmax.f32 %v4608, %v4610
      %4784 = vmax.xlane.f32.xlu0 %v4783
      %v4785 = vpop.xlane.xlu0 %4784
      %v4786 = vmax.f32 %v4614, %v4616
      %4787 = vmax.xlane.f32.xlu0 %v4786
      %v4788 = vpop.xlane.xlu0 %4787
      %v4789 = vmax.f32 %v4620, %v4622
      %4790 = vmax.xlane.f32.xlu0 %v4789
      %v4791 = vpop.xlane.xlu0 %4790
      %v4792 = vmax.f32 %v4626, %v4628
      %4793 = vmax.xlane.f32.xlu0 %v4792
      %v4794 = vpop.xlane.xlu0 %4793
      %v4795 = vmax.f32 %v4632, %v4634
      %4796 = vmax.xlane.f32.xlu0 %v4795
      %v4797 = vpop.xlane.xlu0 %4796
      %v4798 = vmax.f32 %v4638, %v4640
      %4799 = vmax.xlane.f32.xlu0 %v4798
      %v4800 = vpop.xlane.xlu0 %4799
      %v4801 = vmax.f32 %v4644, %v4646
      %4802 = vmax.xlane.f32.xlu0 %v4801
      %v4803 = vpop.xlane.xlu0 %4802
      %v4804 = vmax.f32 %v4650, %v4652
      %4805 = vmax.xlane.f32.xlu0 %v4804
      %v4806 = vpop.xlane.xlu0 %4805
      %v4807 = vmax.f32 %v4656, %v4658
      %4808 = vmax.xlane.f32.xlu0 %v4807
      %v4809 = vpop.xlane.xlu0 %4808
      %v4810 = vmax.f32 %v4662, %v4664
      %4811 = vmax.xlane.f32.xlu0 %v4810
      %v4812 = vpop.xlane.xlu0 %4811
      %v4813 = vmax.f32 %v4668, %v4670
      %4814 = vmax.xlane.f32.xlu0 %v4813
      %v4815 = vpop.xlane.xlu0 %4814
      %v4816 = vmax.f32 %v4674, %v4676
      %4817 = vmax.xlane.f32.xlu0 %v4816
      %v4818 = vpop.xlane.xlu0 %4817
      %v4819 = vmax.f32 %v4680, %v4682
      %4820 = vmax.xlane.f32.xlu0 %v4819
      %v4821 = vpop.xlane.xlu0 %4820
      %v4822 = vmax.f32 %v4686, %v4688
      %4823 = vmax.xlane.f32.xlu0 %v4822
      %v4824 = vpop.xlane.xlu0 %4823
      %v4825 = vmax.f32 %v4692, %v4694
      %4826 = vmax.xlane.f32.xlu0 %v4825
      %v4827 = vpop.xlane.xlu0 %4826
      %v4828 = vmax.f32 %v4698, %v4700
      %4829 = vmax.xlane.f32.xlu0 %v4828
      %v4830 = vpop.xlane.xlu0 %4829
      %v4831 = vmax.f32 %v4704, %v4706
      %4832 = vmax.xlane.f32.xlu0 %v4831
      %v4833 = vpop.xlane.xlu0 %4832
      %v4834 = vmax.f32 %v4710, %v4712
      %4835 = vmax.xlane.f32.xlu0 %v4834
      %v4836 = vpop.xlane.xlu0 %4835
      %v4837 = vmax.f32 %v4716, %v4718
      %4838 = vmax.xlane.f32.xlu0 %v4837
      %v4839 = vpop.xlane.xlu0 %4838
      %v4840 = vmax.f32 %v4722, %v4724
      %4841 = vmax.xlane.f32.xlu0 %v4840
      %v4842 = vpop.xlane.xlu0 %4841
      %v4843 = vmax.f32 %v4728, %v4730
      %4844 = vmax.xlane.f32.xlu0 %v4843
      %v4845 = vpop.xlane.xlu0 %4844
      %v4846 = vmax.f32 %v4734, %v4736
      %4847 = vmax.xlane.f32.xlu0 %v4846
      %v4848 = vpop.xlane.xlu0 %4847
      %v4849 = vmax.f32 %v4740, %v4742
      %4850 = vmax.xlane.f32.xlu0 %v4849
      %v4851 = vpop.xlane.xlu0 %4850
      %v4852 = vmax.f32 %v4746, %v4748
      %4853 = vmax.xlane.f32.xlu0 %v4852
      %v4854 = vpop.xlane.xlu0 %4853
      %v4855 = vmax.f32 %v4752, %v4754
      %4856 = vmax.xlane.f32.xlu0 %v4855
      %v4857 = vpop.xlane.xlu0 %4856
      %v4858 = vmax.f32 %v4758, %v4760
      %4859 = vmax.xlane.f32.xlu0 %v4858
      %v4860 = vpop.xlane.xlu0 %4859
      %v4861 = vmax.f32 %v4764, %v4766
      %4862 = vmax.xlane.f32.xlu0 %v4861
      %v4863 = vpop.xlane.xlu0 %4862
      %v4864 = vsub.f32 %v4578, %v4770
      %v4865 = vsub.f32 %v4580, %v4770
      %v4866 = vsub.f32 %v4584, %v4773
      %v4867 = vsub.f32 %v4586, %v4773
      %v4868 = vsub.f32 %v4590, %v4776
      %v4869 = vsub.f32 %v4592, %v4776
      %v4870 = vsub.f32 %v4596, %v4779
      %v4871 = vsub.f32 %v4598, %v4779
      %v4872 = vsub.f32 %v4602, %v4782
      %v4873 = vsub.f32 %v4604, %v4782
      %v4874 = vsub.f32 %v4608, %v4785
      %v4875 = vsub.f32 %v4610, %v4785
      %v4876 = vsub.f32 %v4614, %v4788
      %v4877 = vsub.f32 %v4616, %v4788
      %v4878 = vsub.f32 %v4620, %v4791
      %v4879 = vsub.f32 %v4622, %v4791
      %v4880 = vsub.f32 %v4626, %v4794
      %v4881 = vsub.f32 %v4628, %v4794
      %v4882 = vsub.f32 %v4632, %v4797
      %v4883 = vsub.f32 %v4634, %v4797
      %v4884 = vsub.f32 %v4638, %v4800
      %v4885 = vsub.f32 %v4640, %v4800
      %v4886 = vsub.f32 %v4644, %v4803
      %v4887 = vsub.f32 %v4646, %v4803
      %v4888 = vsub.f32 %v4650, %v4806
      %v4889 = vsub.f32 %v4652, %v4806
      %v4890 = vsub.f32 %v4656, %v4809
      %v4891 = vsub.f32 %v4658, %v4809
      %v4892 = vsub.f32 %v4662, %v4812
      %v4893 = vsub.f32 %v4664, %v4812
      %v4894 = vsub.f32 %v4668, %v4815
      %v4895 = vsub.f32 %v4670, %v4815
      %v4896 = vsub.f32 %v4674, %v4818
      %v4897 = vsub.f32 %v4676, %v4818
      %v4898 = vsub.f32 %v4680, %v4821
      %v4899 = vsub.f32 %v4682, %v4821
      %v4900 = vsub.f32 %v4686, %v4824
      %v4901 = vsub.f32 %v4688, %v4824
      %v4902 = vsub.f32 %v4692, %v4827
      %v4903 = vsub.f32 %v4694, %v4827
      %v4904 = vsub.f32 %v4698, %v4830
      %v4905 = vsub.f32 %v4700, %v4830
      %v4906 = vsub.f32 %v4704, %v4833
      %v4907 = vsub.f32 %v4706, %v4833
      %v4908 = vsub.f32 %v4710, %v4836
      %v4909 = vsub.f32 %v4712, %v4836
      %v4910 = vsub.f32 %v4716, %v4839
      %v4911 = vsub.f32 %v4718, %v4839
      %v4912 = vsub.f32 %v4722, %v4842
      %v4913 = vsub.f32 %v4724, %v4842
      %v4914 = vsub.f32 %v4728, %v4845
      %v4915 = vsub.f32 %v4730, %v4845
      %v4916 = vsub.f32 %v4734, %v4848
      %v4917 = vsub.f32 %v4736, %v4848
      %v4918 = vsub.f32 %v4740, %v4851
      %v4919 = vsub.f32 %v4742, %v4851
      %v4920 = vsub.f32 %v4746, %v4854
      %v4921 = vsub.f32 %v4748, %v4854
      %v4922 = vsub.f32 %v4752, %v4857
      %v4923 = vsub.f32 %v4754, %v4857
      %v4924 = vsub.f32 %v4758, %v4860
      %v4925 = vsub.f32 %v4760, %v4860
      %v4926 = vsub.f32 %v4764, %v4863
      %v4927 = vsub.f32 %v4766, %v4863
      %v4928 = vmul.f32 %v4864, 1.442695
      %v4929 = vpow.pop %v4928
      %v4930 = vmul.f32 %v4865, 1.442695
      %v4931 = vpow.pop %v4930
      %v4932 = vmul.f32 %v4866, 1.442695
      %v4933 = vpow.pop %v4932
      %v4934 = vmul.f32 %v4867, 1.442695
      %v4935 = vpow.pop %v4934
      %v4936 = vmul.f32 %v4868, 1.442695
      %v4937 = vpow.pop %v4936
      %v4938 = vmul.f32 %v4869, 1.442695
      %v4939 = vpow.pop %v4938
      %v4940 = vmul.f32 %v4870, 1.442695
      %v4941 = vpow.pop %v4940
      %v4942 = vmul.f32 %v4871, 1.442695
      %v4943 = vpow.pop %v4942
      %v4944 = vmul.f32 %v4872, 1.442695
      %v4945 = vpow.pop %v4944
      %v4946 = vmul.f32 %v4873, 1.442695
      %v4947 = vpow.pop %v4946
      %v4948 = vmul.f32 %v4874, 1.442695
      %v4949 = vpow.pop %v4948
      %v4950 = vmul.f32 %v4875, 1.442695
      %v4951 = vpow.pop %v4950
      %v4952 = vmul.f32 %v4876, 1.442695
      %v4953 = vpow.pop %v4952
      %v4954 = vmul.f32 %v4877, 1.442695
      %v4955 = vpow.pop %v4954
      %v4956 = vmul.f32 %v4878, 1.442695
      %v4957 = vpow.pop %v4956
      %v4958 = vmul.f32 %v4879, 1.442695
      %v4959 = vpow.pop %v4958
      %v4960 = vmul.f32 %v4880, 1.442695
      %v4961 = vpow.pop %v4960
      %v4962 = vmul.f32 %v4881, 1.442695
      %v4963 = vpow.pop %v4962
      %v4964 = vmul.f32 %v4882, 1.442695
      %v4965 = vpow.pop %v4964
      %v4966 = vmul.f32 %v4883, 1.442695
      %v4967 = vpow.pop %v4966
      %v4968 = vmul.f32 %v4884, 1.442695
      %v4969 = vpow.pop %v4968
      %v4970 = vmul.f32 %v4885, 1.442695
      %v4971 = vpow.pop %v4970
      %v4972 = vmul.f32 %v4886, 1.442695
      %v4973 = vpow.pop %v4972
      %v4974 = vmul.f32 %v4887, 1.442695
      %v4975 = vpow.pop %v4974
      %v4976 = vmul.f32 %v4888, 1.442695
      %v4977 = vpow.pop %v4976
      %v4978 = vmul.f32 %v4889, 1.442695
      %v4979 = vpow.pop %v4978
      %v4980 = vmul.f32 %v4890, 1.442695
      %v4981 = vpow.pop %v4980
      %v4982 = vmul.f32 %v4891, 1.442695
      %v4983 = vpow.pop %v4982
      %v4984 = vmul.f32 %v4892, 1.442695
      %v4985 = vpow.pop %v4984
      %v4986 = vmul.f32 %v4893, 1.442695
      %v4987 = vpow.pop %v4986
      %v4988 = vmul.f32 %v4894, 1.442695
      %v4989 = vpow.pop %v4988
      %v4990 = vmul.f32 %v4895, 1.442695
      %v4991 = vpow.pop %v4990
      %v4992 = vmul.f32 %v4896, 1.442695
      %v4993 = vpow.pop %v4992
      %v4994 = vmul.f32 %v4897, 1.442695
      %v4995 = vpow.pop %v4994
      %v4996 = vmul.f32 %v4898, 1.442695
      %v4997 = vpow.pop %v4996
      %v4998 = vmul.f32 %v4899, 1.442695
      %v4999 = vpow.pop %v4998
      %v5000 = vmul.f32 %v4900, 1.442695
      %v5001 = vpow.pop %v5000
      %v5002 = vmul.f32 %v4901, 1.442695
      %v5003 = vpow.pop %v5002
      %v5004 = vmul.f32 %v4902, 1.442695
      %v5005 = vpow.pop %v5004
      %v5006 = vmul.f32 %v4903, 1.442695
      %v5007 = vpow.pop %v5006
      %v5008 = vmul.f32 %v4904, 1.442695
      %v5009 = vpow.pop %v5008
      %v5010 = vmul.f32 %v4905, 1.442695
      %v5011 = vpow.pop %v5010
      %v5012 = vmul.f32 %v4906, 1.442695
      %v5013 = vpow.pop %v5012
      %v5014 = vmul.f32 %v4907, 1.442695
      %v5015 = vpow.pop %v5014
      %v5016 = vmul.f32 %v4908, 1.442695
      %v5017 = vpow.pop %v5016
      %v5018 = vmul.f32 %v4909, 1.442695
      %v5019 = vpow.pop %v5018
      %v5020 = vmul.f32 %v4910, 1.442695
      %v5021 = vpow.pop %v5020
      %v5022 = vmul.f32 %v4911, 1.442695
      %v5023 = vpow.pop %v5022
      %v5024 = vmul.f32 %v4912, 1.442695
      %v5025 = vpow.pop %v5024
      %v5026 = vmul.f32 %v4913, 1.442695
      %v5027 = vpow.pop %v5026
      %v5028 = vmul.f32 %v4914, 1.442695
      %v5029 = vpow.pop %v5028
      %v5030 = vmul.f32 %v4915, 1.442695
      %v5031 = vpow.pop %v5030
      %v5032 = vmul.f32 %v4916, 1.442695
      %v5033 = vpow.pop %v5032
      %v5034 = vmul.f32 %v4917, 1.442695
      %v5035 = vpow.pop %v5034
      %v5036 = vmul.f32 %v4918, 1.442695
      %v5037 = vpow.pop %v5036
      %v5038 = vmul.f32 %v4919, 1.442695
      %v5039 = vpow.pop %v5038
      %v5040 = vmul.f32 %v4920, 1.442695
      %v5041 = vpow.pop %v5040
      %v5042 = vmul.f32 %v4921, 1.442695
      %v5043 = vpow.pop %v5042
      %v5044 = vmul.f32 %v4922, 1.442695
      %v5045 = vpow.pop %v5044
      %v5046 = vmul.f32 %v4923, 1.442695
      %v5047 = vpow.pop %v5046
      %v5048 = vmul.f32 %v4924, 1.442695
      %v5049 = vpow.pop %v5048
      %v5050 = vmul.f32 %v4925, 1.442695
      %v5051 = vpow.pop %v5050
      %v5052 = vmul.f32 %v4926, 1.442695
      %v5053 = vpow.pop %v5052
      %v5054 = vmul.f32 %v4927, 1.442695
      %v5055 = vpow.pop %v5054
      %v5056 = vadd.f32 %v4929, %v4931
      %5057 = vadd.xlane.f32.xlu0 %v5056
      %v5058 = vpop.xlane.xlu0 %5057
      %v5059 = vadd.f32 %v4933, %v4935
      %5060 = vadd.xlane.f32.xlu0 %v5059
      %v5061 = vpop.xlane.xlu0 %5060
      %v5062 = vadd.f32 %v4937, %v4939
      %5063 = vadd.xlane.f32.xlu0 %v5062
      %v5064 = vpop.xlane.xlu0 %5063
      %v5065 = vadd.f32 %v4941, %v4943
      %5066 = vadd.xlane.f32.xlu0 %v5065
      %v5067 = vpop.xlane.xlu0 %5066
      %v5068 = vadd.f32 %v4945, %v4947
      %5069 = vadd.xlane.f32.xlu0 %v5068
      %v5070 = vpop.xlane.xlu0 %5069
      %v5071 = vadd.f32 %v4949, %v4951
      %5072 = vadd.xlane.f32.xlu0 %v5071
      %v5073 = vpop.xlane.xlu0 %5072
      %v5074 = vadd.f32 %v4953, %v4955
      %5075 = vadd.xlane.f32.xlu0 %v5074
      %v5076 = vpop.xlane.xlu0 %5075
      %v5077 = vadd.f32 %v4957, %v4959
      %5078 = vadd.xlane.f32.xlu0 %v5077
      %v5079 = vpop.xlane.xlu0 %5078
      %v5080 = vadd.f32 %v4961, %v4963
      %5081 = vadd.xlane.f32.xlu0 %v5080
      %v5082 = vpop.xlane.xlu0 %5081
      %v5083 = vadd.f32 %v4965, %v4967
      %5084 = vadd.xlane.f32.xlu0 %v5083
      %v5085 = vpop.xlane.xlu0 %5084
      %v5086 = vadd.f32 %v4969, %v4971
      %5087 = vadd.xlane.f32.xlu0 %v5086
      %v5088 = vpop.xlane.xlu0 %5087
      %v5089 = vadd.f32 %v4973, %v4975
      %5090 = vadd.xlane.f32.xlu0 %v5089
      %v5091 = vpop.xlane.xlu0 %5090
      %v5092 = vadd.f32 %v4977, %v4979
      %5093 = vadd.xlane.f32.xlu0 %v5092
      %v5094 = vpop.xlane.xlu0 %5093
      %v5095 = vadd.f32 %v4981, %v4983
      %5096 = vadd.xlane.f32.xlu0 %v5095
      %v5097 = vpop.xlane.xlu0 %5096
      %v5098 = vadd.f32 %v4985, %v4987
      %5099 = vadd.xlane.f32.xlu0 %v5098
      %v5100 = vpop.xlane.xlu0 %5099
      %v5101 = vadd.f32 %v4989, %v4991
      %5102 = vadd.xlane.f32.xlu0 %v5101
      %v5103 = vpop.xlane.xlu0 %5102
      %v5104 = vadd.f32 %v4993, %v4995
      %5105 = vadd.xlane.f32.xlu0 %v5104
      %v5106 = vpop.xlane.xlu0 %5105
      %v5107 = vadd.f32 %v4997, %v4999
      %5108 = vadd.xlane.f32.xlu0 %v5107
      %v5109 = vpop.xlane.xlu0 %5108
      %v5110 = vadd.f32 %v5001, %v5003
      %5111 = vadd.xlane.f32.xlu0 %v5110
      %v5112 = vpop.xlane.xlu0 %5111
      %v5113 = vadd.f32 %v5005, %v5007
      %5114 = vadd.xlane.f32.xlu0 %v5113
      %v5115 = vpop.xlane.xlu0 %5114
      %v5116 = vadd.f32 %v5009, %v5011
      %5117 = vadd.xlane.f32.xlu0 %v5116
      %v5118 = vpop.xlane.xlu0 %5117
      %v5119 = vadd.f32 %v5013, %v5015
      %5120 = vadd.xlane.f32.xlu0 %v5119
      %v5121 = vpop.xlane.xlu0 %5120
      %v5122 = vadd.f32 %v5017, %v5019
      %5123 = vadd.xlane.f32.xlu0 %v5122
      %v5124 = vpop.xlane.xlu0 %5123
      %v5125 = vadd.f32 %v5021, %v5023
      %5126 = vadd.xlane.f32.xlu0 %v5125
      %v5127 = vpop.xlane.xlu0 %5126
      %v5128 = vadd.f32 %v5025, %v5027
      %5129 = vadd.xlane.f32.xlu0 %v5128
      %v5130 = vpop.xlane.xlu0 %5129
      %v5131 = vadd.f32 %v5029, %v5031
      %5132 = vadd.xlane.f32.xlu0 %v5131
      %v5133 = vpop.xlane.xlu0 %5132
      %v5134 = vadd.f32 %v5033, %v5035
      %5135 = vadd.xlane.f32.xlu0 %v5134
      %v5136 = vpop.xlane.xlu0 %5135
      %v5137 = vadd.f32 %v5037, %v5039
      %5138 = vadd.xlane.f32.xlu0 %v5137
      %v5139 = vpop.xlane.xlu0 %5138
      %v5140 = vadd.f32 %v5041, %v5043
      %5141 = vadd.xlane.f32.xlu0 %v5140
      %v5142 = vpop.xlane.xlu0 %5141
      %v5143 = vadd.f32 %v5045, %v5047
      %5144 = vadd.xlane.f32.xlu0 %v5143
      %v5145 = vpop.xlane.xlu0 %5144
      %v5146 = vadd.f32 %v5049, %v5051
      %5147 = vadd.xlane.f32.xlu0 %v5146
      %v5148 = vpop.xlane.xlu0 %5147
      %v5149 = vadd.f32 %v5053, %v5055
      %5150 = vadd.xlane.f32.xlu0 %v5149
      %v5151 = vpop.xlane.xlu0 %5150
      %v5152 = vrcp.pop %v5058
      %v5153 = vrcp.pop %v5061
      %v5154 = vrcp.pop %v5064
      %v5155 = vrcp.pop %v5067
      %v5156 = vrcp.pop %v5070
      %v5157 = vrcp.pop %v5073
      %v5158 = vrcp.pop %v5076
      %v5159 = vrcp.pop %v5079
      %v5160 = vrcp.pop %v5082
      %v5161 = vrcp.pop %v5085
      %v5162 = vrcp.pop %v5088
      %v5163 = vrcp.pop %v5091
      %v5164 = vrcp.pop %v5094
      %v5165 = vrcp.pop %v5097
      %v5166 = vrcp.pop %v5100
      %v5167 = vrcp.pop %v5103
      %v5168 = vrcp.pop %v5106
      %v5169 = vrcp.pop %v5109
      %v5170 = vrcp.pop %v5112
      %v5171 = vrcp.pop %v5115
      %v5172 = vrcp.pop %v5118
      %v5173 = vrcp.pop %v5121
      %v5174 = vrcp.pop %v5124
      %v5175 = vrcp.pop %v5127
      %v5176 = vrcp.pop %v5130
      %v5177 = vrcp.pop %v5133
      %v5178 = vrcp.pop %v5136
      %v5179 = vrcp.pop %v5139
      %v5180 = vrcp.pop %v5142
      %v5181 = vrcp.pop %v5145
      %v5182 = vrcp.pop %v5148
      %v5183 = vrcp.pop %v5151
      %v5184 = vmul.f32 %v4929, %v5152
      %v5185 = vmul.f32 %v4931, %v5152
      %v5186 = vmul.f32 %v4933, %v5153
      %v5187 = vmul.f32 %v4935, %v5153
      %v5188 = vmul.f32 %v4937, %v5154
      %v5189 = vmul.f32 %v4939, %v5154
      %v5190 = vmul.f32 %v4941, %v5155
      %v5191 = vmul.f32 %v4943, %v5155
      %v5192 = vmul.f32 %v4945, %v5156
      %v5193 = vmul.f32 %v4947, %v5156
      %v5194 = vmul.f32 %v4949, %v5157
      %v5195 = vmul.f32 %v4951, %v5157
      %v5196 = vmul.f32 %v4953, %v5158
      %v5197 = vmul.f32 %v4955, %v5158
      %v5198 = vmul.f32 %v4957, %v5159
      %v5199 = vmul.f32 %v4959, %v5159
      %v5200 = vmul.f32 %v4961, %v5160
      %v5201 = vmul.f32 %v4963, %v5160
      %v5202 = vmul.f32 %v4965, %v5161
      %v5203 = vmul.f32 %v4967, %v5161
      %v5204 = vmul.f32 %v4969, %v5162
      %v5205 = vmul.f32 %v4971, %v5162
      %v5206 = vmul.f32 %v4973, %v5163
      %v5207 = vmul.f32 %v4975, %v5163
      %v5208 = vmul.f32 %v4977, %v5164
      %v5209 = vmul.f32 %v4979, %v5164
      %v5210 = vmul.f32 %v4981, %v5165
      %v5211 = vmul.f32 %v4983, %v5165
      %v5212 = vmul.f32 %v4985, %v5166
      %v5213 = vmul.f32 %v4987, %v5166
      %v5214 = vmul.f32 %v4989, %v5167
      %v5215 = vmul.f32 %v4991, %v5167
      %v5216 = vmul.f32 %v4993, %v5168
      %v5217 = vmul.f32 %v4995, %v5168
      %v5218 = vmul.f32 %v4997, %v5169
      %v5219 = vmul.f32 %v4999, %v5169
      %v5220 = vmul.f32 %v5001, %v5170
      %v5221 = vmul.f32 %v5003, %v5170
      %v5222 = vmul.f32 %v5005, %v5171
      %v5223 = vmul.f32 %v5007, %v5171
      %v5224 = vmul.f32 %v5009, %v5172
      %v5225 = vmul.f32 %v5011, %v5172
      %v5226 = vmul.f32 %v5013, %v5173
      %v5227 = vmul.f32 %v5015, %v5173
      %v5228 = vmul.f32 %v5017, %v5174
      %v5229 = vmul.f32 %v5019, %v5174
      %v5230 = vmul.f32 %v5021, %v5175
      %v5231 = vmul.f32 %v5023, %v5175
      %v5232 = vmul.f32 %v5025, %v5176
      %v5233 = vmul.f32 %v5027, %v5176
      %v5234 = vmul.f32 %v5029, %v5177
      %v5235 = vmul.f32 %v5031, %v5177
      %v5236 = vmul.f32 %v5033, %v5178
      %v5237 = vmul.f32 %v5035, %v5178
      %v5238 = vmul.f32 %v5037, %v5179
      %v5239 = vmul.f32 %v5039, %v5179
      %v5240 = vmul.f32 %v5041, %v5180
      %v5241 = vmul.f32 %v5043, %v5180
      %v5242 = vmul.f32 %v5045, %v5181
      %v5243 = vmul.f32 %v5047, %v5181
      %v5244 = vmul.f32 %v5049, %v5182
      %v5245 = vmul.f32 %v5051, %v5182
      %v5246 = vmul.f32 %v5053, %v5183
      %v5247 = vmul.f32 %v5055, %v5183
      %5248 = vrot.lane.b32.xlu0 %v1242, 124
      %v5249 = vpop.permute.xlu0 %5248
      %5250 = vrot.lane.b32.xlu0 %v1247, 124
      %v5251 = vpop.permute.xlu0 %5250
      %5252 = vrot.lane.b32.xlu0 %v1252, 124
      %v5253 = vpop.permute.xlu0 %5252
      %5254 = vrot.lane.b32.xlu0 %v1257, 124
      %v5255 = vpop.permute.xlu0 %5254
      %5256 = vrot.lane.b32.xlu0 %v1262, 124
      %v5257 = vpop.permute.xlu0 %5256
      %5258 = vrot.lane.b32.xlu0 %v1267, 124
      %v5259 = vpop.permute.xlu0 %5258
      %5260 = vrot.lane.b32.xlu0 %v1272, 124
      %v5261 = vpop.permute.xlu0 %5260
      %5262 = vrot.lane.b32.xlu0 %v1277, 124
      %v5263 = vpop.permute.xlu0 %5262
      %5264 = vrot.lane.b32.xlu0 %v1282, 124
      %v5265 = vpop.permute.xlu0 %5264
      %5266 = vrot.lane.b32.xlu0 %v1287, 124
      %v5267 = vpop.permute.xlu0 %5266
      %5268 = vrot.lane.b32.xlu0 %v1292, 124
      %v5269 = vpop.permute.xlu0 %5268
      %5270 = vrot.lane.b32.xlu0 %v1297, 124
      %v5271 = vpop.permute.xlu0 %5270
      %5272 = vrot.lane.b32.xlu0 %v1302, 124
      %v5273 = vpop.permute.xlu0 %5272
      %5274 = vrot.lane.b32.xlu0 %v1307, 124
      %v5275 = vpop.permute.xlu0 %5274
      %5276 = vrot.lane.b32.xlu0 %v1312, 124
      %v5277 = vpop.permute.xlu0 %5276
      %5278 = vrot.lane.b32.xlu0 %v1317, 124
      %v5279 = vpop.permute.xlu0 %5278
      %5280 = vrot.lane.b32.xlu0 %v1322, 124
      %v5281 = vpop.permute.xlu0 %5280
      %5282 = vrot.lane.b32.xlu0 %v1327, 124
      %v5283 = vpop.permute.xlu0 %5282
      %5284 = vrot.lane.b32.xlu0 %v1332, 124
      %v5285 = vpop.permute.xlu0 %5284
      %5286 = vrot.lane.b32.xlu0 %v1337, 124
      %v5287 = vpop.permute.xlu0 %5286
      %5288 = vrot.lane.b32.xlu0 %v1342, 124
      %v5289 = vpop.permute.xlu0 %5288
      %5290 = vrot.lane.b32.xlu0 %v1347, 124
      %v5291 = vpop.permute.xlu0 %5290
      %5292 = vrot.lane.b32.xlu0 %v1352, 124
      %v5293 = vpop.permute.xlu0 %5292
      %5294 = vrot.lane.b32.xlu0 %v1357, 124
      %v5295 = vpop.permute.xlu0 %5294
      %5296 = vrot.lane.b32.xlu0 %v1362, 124
      %v5297 = vpop.permute.xlu0 %5296
      %5298 = vrot.lane.b32.xlu0 %v1367, 124
      %v5299 = vpop.permute.xlu0 %5298
      %5300 = vrot.lane.b32.xlu0 %v1372, 124
      %v5301 = vpop.permute.xlu0 %5300
      %5302 = vrot.lane.b32.xlu0 %v1377, 124
      %v5303 = vpop.permute.xlu0 %5302
      %5304 = vrot.lane.b32.xlu0 %v1382, 124
      %v5305 = vpop.permute.xlu0 %5304
      %5306 = vrot.lane.b32.xlu0 %v1387, 124
      %v5307 = vpop.permute.xlu0 %5306
      %5308 = vrot.lane.b32.xlu0 %v1392, 124
      %v5309 = vpop.permute.xlu0 %5308
      %5310 = vrot.lane.b32.xlu0 %v1397, 124
      %v5311 = vpop.permute.xlu0 %5310
      %5344 = vmatprep.subr.mxu0 0.0
      %5345 = vmatpush1.msra.mxu0 %v5279
      %5346 = vmatprep.subr.mxu0 0.0
      %5347 = vmatpush1.msra.mxu0 %v5277
      %5348 = vmatprep.subr.mxu0 0.0
      %5349 = vmatpush1.msra.mxu0 %v5275
      %5350 = vmatprep.subr.mxu0 0.0
      %5351 = vmatpush1.msra.mxu0 %v5273
      %5352 = vmatprep.subr.mxu0 0.0
      %5353 = vmatpush1.msra.mxu0 %v5271
      %5354 = vmatprep.subr.mxu0 0.0
      %5355 = vmatpush1.msra.mxu0 %v5269
      %5356 = vmatprep.subr.mxu0 0.0
      %5357 = vmatpush1.msra.mxu0 %v5267
      %5358 = vmatprep.subr.mxu0 0.0
      %5359 = vmatpush1.msra.mxu0 %v5265
      %5360 = vmatprep.subr.mxu0 0.0
      %5361 = vmatpush1.msra.mxu0 %v5263
      %5362 = vmatprep.subr.mxu0 0.0
      %5363 = vmatpush1.msra.mxu0 %v5261
      %5364 = vmatprep.subr.mxu0 0.0
      %5365 = vmatpush1.msra.mxu0 %v5259
      %5366 = vmatprep.subr.mxu0 0.0
      %5367 = vmatpush1.msra.mxu0 %v5257
      %5368 = vmatprep.subr.mxu0 0.0
      %5369 = vmatpush1.msra.mxu0 %v5255
      %5370 = vmatprep.subr.mxu0 0.0
      %5371 = vmatpush1.msra.mxu0 %v5253
      %5372 = vmatprep.subr.mxu0 0.0
      %5373 = vmatpush1.msra.mxu0 %v5251
      %5374 = vmatprep.subr.mxu0 0.0
      %5375 = vmatpush1.msra.mxu0 %v5249
      %5376 = vmatprep.subr.mxu0 0.0
      %5377 = vmatpush2.msra.mxu0 %v5311
      %5378 = vmatprep.subr.mxu0 0.0
      %5379 = vmatpush2.msra.mxu0 %v5309
      %5380 = vmatprep.subr.mxu0 0.0
      %5381 = vmatpush2.msra.mxu0 %v5307
      %5382 = vmatprep.subr.mxu0 0.0
      %5383 = vmatpush2.msra.mxu0 %v5305
      %5384 = vmatprep.subr.mxu0 0.0
      %5385 = vmatpush2.msra.mxu0 %v5303
      %5386 = vmatprep.subr.mxu0 0.0
      %5387 = vmatpush2.msra.mxu0 %v5301
      %5388 = vmatprep.subr.mxu0 0.0
      %5389 = vmatpush2.msra.mxu0 %v5299
      %5390 = vmatprep.subr.mxu0 0.0
      %5391 = vmatpush2.msra.mxu0 %v5297
      %5392 = vmatprep.subr.mxu0 0.0
      %5393 = vmatpush2.msra.mxu0 %v5295
      %5394 = vmatprep.subr.mxu0 0.0
      %5395 = vmatpush2.msra.mxu0 %v5293
      %5396 = vmatprep.subr.mxu0 0.0
      %5397 = vmatpush2.msra.mxu0 %v5291
      %5398 = vmatprep.subr.mxu0 0.0
      %5399 = vmatpush2.msra.mxu0 %v5289
      %5400 = vmatprep.subr.mxu0 0.0
      %5401 = vmatpush2.msra.mxu0 %v5287
      %5402 = vmatprep.subr.mxu0 0.0
      %5403 = vmatpush2.msra.mxu0 %v5285
      %5404 = vmatprep.subr.mxu0 0.0
      %5405 = vmatpush2.msra.mxu0 %v5283
      %5406 = vmatprep.subr.mxu0 0.0
      %5407 = vmatpush2.msra.mxu0 %v5281
      %5408 = vmatprep.mubr.f32.mxu0 %v5185
      %5409 = vmatmul.mubr.f32.gmra.mxu0 %v5184
      %v5410 = vpop.f32.mrf.mxu0
      %v5411 = vadd.f32 0.0, %v5410
      %v5412 = vpop.f32.mrf.mxu0
      %5413 = vmatprep.mubr.f32.mxu0 %v5187
      %5414 = vmatmul.mubr.f32.gmra.mxu0 %v5186
      %v5415 = vpop.f32.mrf.mxu0
      %v5416 = vadd.f32 0.0, %v5415
      %v5417 = vpop.f32.mrf.mxu0
      %5418 = vmatprep.mubr.f32.mxu0 %v5189
      %5419 = vmatmul.mubr.f32.gmra.mxu0 %v5188
      %v5420 = vpop.f32.mrf.mxu0
      %v5421 = vadd.f32 0.0, %v5420
      %v5422 = vpop.f32.mrf.mxu0
      %5423 = vmatprep.mubr.f32.mxu0 %v5191
      %5424 = vmatmul.mubr.f32.gmra.mxu0 %v5190
      %v5425 = vpop.f32.mrf.mxu0
      %v5426 = vadd.f32 0.0, %v5425
      %v5427 = vpop.f32.mrf.mxu0
      %5428 = vmatprep.mubr.f32.mxu0 %v5193
      %5429 = vmatmul.mubr.f32.gmra.mxu0 %v5192
      %v5430 = vpop.f32.mrf.mxu0
      %v5431 = vadd.f32 0.0, %v5430
      %v5432 = vpop.f32.mrf.mxu0
      %5433 = vmatprep.mubr.f32.mxu0 %v5195
      %5434 = vmatmul.mubr.f32.gmra.mxu0 %v5194
      %v5435 = vpop.f32.mrf.mxu0
      %v5436 = vadd.f32 0.0, %v5435
      %v5437 = vpop.f32.mrf.mxu0
      %5438 = vmatprep.mubr.f32.mxu0 %v5197
      %5439 = vmatmul.mubr.f32.gmra.mxu0 %v5196
      %v5440 = vpop.f32.mrf.mxu0
      %v5441 = vadd.f32 0.0, %v5440
      %v5442 = vpop.f32.mrf.mxu0
      %5443 = vmatprep.mubr.f32.mxu0 %v5199
      %5444 = vmatmul.mubr.f32.gmra.mxu0 %v5198
      %v5445 = vpop.f32.mrf.mxu0
      %v5446 = vadd.f32 0.0, %v5445
      %v5447 = vpop.f32.mrf.mxu0
      %5448 = vmatprep.mubr.f32.mxu0 %v5201
      %5449 = vmatmul.mubr.f32.gmra.mxu0 %v5200
      %v5450 = vpop.f32.mrf.mxu0
      %v5451 = vadd.f32 0.0, %v5450
      %v5452 = vpop.f32.mrf.mxu0
      %5453 = vmatprep.mubr.f32.mxu0 %v5203
      %5454 = vmatmul.mubr.f32.gmra.mxu0 %v5202
      %v5455 = vpop.f32.mrf.mxu0
      %v5456 = vadd.f32 0.0, %v5455
      %v5457 = vpop.f32.mrf.mxu0
      %5458 = vmatprep.mubr.f32.mxu0 %v5205
      %5459 = vmatmul.mubr.f32.gmra.mxu0 %v5204
      %v5460 = vpop.f32.mrf.mxu0
      %v5461 = vadd.f32 0.0, %v5460
      %v5462 = vpop.f32.mrf.mxu0
      %5463 = vmatprep.mubr.f32.mxu0 %v5207
      %5464 = vmatmul.mubr.f32.gmra.mxu0 %v5206
      %v5465 = vpop.f32.mrf.mxu0
      %v5466 = vadd.f32 0.0, %v5465
      %v5467 = vpop.f32.mrf.mxu0
      %5468 = vmatprep.mubr.f32.mxu0 %v5209
      %5469 = vmatmul.mubr.f32.gmra.mxu0 %v5208
      %v5470 = vpop.f32.mrf.mxu0
      %v5471 = vadd.f32 0.0, %v5470
      %v5472 = vpop.f32.mrf.mxu0
      %5473 = vmatprep.mubr.f32.mxu0 %v5211
      %5474 = vmatmul.mubr.f32.gmra.mxu0 %v5210
      %v5475 = vpop.f32.mrf.mxu0
      %v5476 = vadd.f32 0.0, %v5475
      %v5477 = vpop.f32.mrf.mxu0
      %5478 = vmatprep.mubr.f32.mxu0 %v5213
      %5479 = vmatmul.mubr.f32.gmra.mxu0 %v5212
      %v5480 = vpop.f32.mrf.mxu0
      %v5481 = vadd.f32 0.0, %v5480
      %v5482 = vpop.f32.mrf.mxu0
      %5483 = vmatprep.mubr.f32.mxu0 %v5215
      %5484 = vmatmul.mubr.f32.gmra.mxu0 %v5214
      %v5485 = vpop.f32.mrf.mxu0
      %v5486 = vadd.f32 0.0, %v5485
      %v5487 = vpop.f32.mrf.mxu0
      %5488 = vmatprep.mubr.f32.mxu0 %v5217
      %5489 = vmatmul.mubr.f32.gmra.mxu0 %v5216
      %v5490 = vpop.f32.mrf.mxu0
      %v5491 = vadd.f32 0.0, %v5490
      %v5492 = vpop.f32.mrf.mxu0
      %5493 = vmatprep.mubr.f32.mxu0 %v5219
      %5494 = vmatmul.mubr.f32.gmra.mxu0 %v5218
      %v5495 = vpop.f32.mrf.mxu0
      %v5496 = vadd.f32 0.0, %v5495
      %v5497 = vpop.f32.mrf.mxu0
      %5498 = vmatprep.mubr.f32.mxu0 %v5221
      %5499 = vmatmul.mubr.f32.gmra.mxu0 %v5220
      %v5500 = vpop.f32.mrf.mxu0
      %v5501 = vadd.f32 0.0, %v5500
      %v5502 = vpop.f32.mrf.mxu0
      %5503 = vmatprep.mubr.f32.mxu0 %v5223
      %5504 = vmatmul.mubr.f32.gmra.mxu0 %v5222
      %v5505 = vpop.f32.mrf.mxu0
      %v5506 = vadd.f32 0.0, %v5505
      %v5507 = vpop.f32.mrf.mxu0
      %5508 = vmatprep.mubr.f32.mxu0 %v5225
      %5509 = vmatmul.mubr.f32.gmra.mxu0 %v5224
      %v5510 = vpop.f32.mrf.mxu0
      %v5511 = vadd.f32 0.0, %v5510
      %v5512 = vpop.f32.mrf.mxu0
      %5513 = vmatprep.mubr.f32.mxu0 %v5227
      %5514 = vmatmul.mubr.f32.gmra.mxu0 %v5226
      %v5515 = vpop.f32.mrf.mxu0
      %v5516 = vadd.f32 0.0, %v5515
      %v5517 = vpop.f32.mrf.mxu0
      %5518 = vmatprep.mubr.f32.mxu0 %v5229
      %5519 = vmatmul.mubr.f32.gmra.mxu0 %v5228
      %v5520 = vpop.f32.mrf.mxu0
      %v5521 = vadd.f32 0.0, %v5520
      %v5522 = vpop.f32.mrf.mxu0
      %5523 = vmatprep.mubr.f32.mxu0 %v5231
      %5524 = vmatmul.mubr.f32.gmra.mxu0 %v5230
      %v5525 = vpop.f32.mrf.mxu0
      %v5526 = vadd.f32 0.0, %v5525
      %v5527 = vpop.f32.mrf.mxu0
      %5528 = vmatprep.mubr.f32.mxu0 %v5233
      %5529 = vmatmul.mubr.f32.gmra.mxu0 %v5232
      %v5530 = vpop.f32.mrf.mxu0
      %v5531 = vadd.f32 0.0, %v5530
      %v5532 = vpop.f32.mrf.mxu0
      %5533 = vmatprep.mubr.f32.mxu0 %v5235
      %5534 = vmatmul.mubr.f32.gmra.mxu0 %v5234
      %v5535 = vpop.f32.mrf.mxu0
      %v5536 = vadd.f32 0.0, %v5535
      %v5537 = vpop.f32.mrf.mxu0
      %5538 = vmatprep.mubr.f32.mxu0 %v5237
      %5539 = vmatmul.mubr.f32.gmra.mxu0 %v5236
      %v5540 = vpop.f32.mrf.mxu0
      %v5541 = vadd.f32 0.0, %v5540
      %v5542 = vpop.f32.mrf.mxu0
      %5543 = vmatprep.mubr.f32.mxu0 %v5239
      %5544 = vmatmul.mubr.f32.gmra.mxu0 %v5238
      %v5545 = vpop.f32.mrf.mxu0
      %v5546 = vadd.f32 0.0, %v5545
      %v5547 = vpop.f32.mrf.mxu0
      %5548 = vmatprep.mubr.f32.mxu0 %v5241
      %5549 = vmatmul.mubr.f32.gmra.mxu0 %v5240
      %v5550 = vpop.f32.mrf.mxu0
      %v5551 = vadd.f32 0.0, %v5550
      %v5552 = vpop.f32.mrf.mxu0
      %5553 = vmatprep.mubr.f32.mxu0 %v5243
      %5554 = vmatmul.mubr.f32.gmra.mxu0 %v5242
      %v5555 = vpop.f32.mrf.mxu0
      %v5556 = vadd.f32 0.0, %v5555
      %v5557 = vpop.f32.mrf.mxu0
      %5558 = vmatprep.mubr.f32.mxu0 %v5245
      %5559 = vmatmul.mubr.f32.gmra.mxu0 %v5244
      %v5560 = vpop.f32.mrf.mxu0
      %v5561 = vadd.f32 0.0, %v5560
      %v5562 = vpop.f32.mrf.mxu0
      %5563 = vmatprep.mubr.f32.mxu0 %v5247
      %5564 = vmatmul.mubr.f32.gmra.mxu0 %v5246
      %v5565 = vpop.f32.mrf.mxu0
      %v5566 = vadd.f32 0.0, %v5565
      %v5567 = vpop.f32.mrf.mxu0
      %5568 = vdwg.mxu0
      %5569 = vrot.lane.b32.xlu0 %v1400, 124
      %v5570 = vpop.permute.xlu0 %5569
      %v5571 = vsel %vm1409, %v5570, 0
      %v5574 = vsel %vm1409, %v5411, 0
      %v5577 = vsel %vm1409, %v5416, 0
      %v5580 = vsel %vm1409, %v5421, 0
      %v5583 = vsel %vm1409, %v5426, 0
      %v5586 = vsel %vm1409, %v5431, 0
      %v5589 = vsel %vm1409, %v5436, 0
      %v5592 = vsel %vm1409, %v5441, 0
      %v5595 = vsel %vm1409, %v5446, 0
      %v5598 = vsel %vm1409, %v5451, 0
      %v5601 = vsel %vm1409, %v5456, 0
      %v5604 = vsel %vm1409, %v5461, 0
      %v5607 = vsel %vm1409, %v5466, 0
      %v5610 = vsel %vm1409, %v5471, 0
      %v5613 = vsel %vm1409, %v5476, 0
      %v5616 = vsel %vm1409, %v5481, 0
      %v5619 = vsel %vm1409, %v5486, 0
      %v5622 = vsel %vm1409, %v5491, 0
      %v5625 = vsel %vm1409, %v5496, 0
      %v5628 = vsel %vm1409, %v5501, 0
      %v5631 = vsel %vm1409, %v5506, 0
      %v5634 = vsel %vm1409, %v5511, 0
      %v5637 = vsel %vm1409, %v5516, 0
      %v5640 = vsel %vm1409, %v5521, 0
      %v5643 = vsel %vm1409, %v5526, 0
      %v5646 = vsel %vm1409, %v5531, 0
      %v5649 = vsel %vm1409, %v5536, 0
      %v5652 = vsel %vm1409, %v5541, 0
      %v5655 = vsel %vm1409, %v5546, 0
      %v5658 = vsel %vm1409, %v5551, 0
      %v5661 = vsel %vm1409, %v5556, 0
      %v5664 = vsel %vm1409, %v5561, 0
      %v5667 = vsel %vm1409, %v5566, 0
      %5669 = vmatprep.subr.mxu0 0.0
      %5670 = vmatpush1.xpose.msra.mxu0 %v5619
      %5671 = vmatprep.subr.mxu0 0.0
      %5672 = vmatpush1.xpose.msra.mxu0 %v5616
      %5673 = vmatprep.subr.mxu0 0.0
      %5674 = vmatpush1.xpose.msra.mxu0 %v5613
      %5675 = vmatprep.subr.mxu0 0.0
      %5676 = vmatpush1.xpose.msra.mxu0 %v5610
      %5677 = vmatprep.subr.mxu0 0.0
      %5678 = vmatpush1.xpose.msra.mxu0 %v5607
      %5679 = vmatprep.subr.mxu0 0.0
      %5680 = vmatpush1.xpose.msra.mxu0 %v5604
      %5681 = vmatprep.subr.mxu0 0.0
      %5682 = vmatpush1.xpose.msra.mxu0 %v5601
      %5683 = vmatprep.subr.mxu0 0.0
      %5684 = vmatpush1.xpose.msra.mxu0 %v5598
      %5685 = vmatprep.subr.mxu0 0.0
      %5686 = vmatpush1.xpose.msra.mxu0 %v5595
      %5687 = vmatprep.subr.mxu0 0.0
      %5688 = vmatpush1.xpose.msra.mxu0 %v5592
      %5689 = vmatprep.subr.mxu0 0.0
      %5690 = vmatpush1.xpose.msra.mxu0 %v5589
      %5691 = vmatprep.subr.mxu0 0.0
      %5692 = vmatpush1.xpose.msra.mxu0 %v5586
      %5693 = vmatprep.subr.mxu0 0.0
      %5694 = vmatpush1.xpose.msra.mxu0 %v5583
      %5695 = vmatprep.subr.mxu0 0.0
      %5696 = vmatpush1.xpose.msra.mxu0 %v5580
      %5697 = vmatprep.subr.mxu0 0.0
      %5698 = vmatpush1.xpose.msra.mxu0 %v5577
      %5699 = vmatprep.subr.mxu0 0.0
      %5700 = vmatpush1.xpose.msra.mxu0 %v5574
      %5701 = vmatprep.subr.mxu0 0.0
      %5702 = vmatpush2.xpose.msra.mxu0 %v5667
      %5703 = vmatprep.subr.mxu0 0.0
      %5704 = vmatpush2.xpose.msra.mxu0 %v5664
      %5705 = vmatprep.subr.mxu0 0.0
      %5706 = vmatpush2.xpose.msra.mxu0 %v5661
      %5707 = vmatprep.subr.mxu0 0.0
      %5708 = vmatpush2.xpose.msra.mxu0 %v5658
      %5709 = vmatprep.subr.mxu0 0.0
      %5710 = vmatpush2.xpose.msra.mxu0 %v5655
      %5711 = vmatprep.subr.mxu0 0.0
      %5712 = vmatpush2.xpose.msra.mxu0 %v5652
      %5713 = vmatprep.subr.mxu0 0.0
      %5714 = vmatpush2.xpose.msra.mxu0 %v5649
      %5715 = vmatprep.subr.mxu0 0.0
      %5716 = vmatpush2.xpose.msra.mxu0 %v5646
      %5717 = vmatprep.subr.mxu0 0.0
      %5718 = vmatpush2.xpose.msra.mxu0 %v5643
      %5719 = vmatprep.subr.mxu0 0.0
      %5720 = vmatpush2.xpose.msra.mxu0 %v5640
      %5721 = vmatprep.subr.mxu0 0.0
      %5722 = vmatpush2.xpose.msra.mxu0 %v5637
      %5723 = vmatprep.subr.mxu0 0.0
      %5724 = vmatpush2.xpose.msra.mxu0 %v5634
      %5725 = vmatprep.subr.mxu0 0.0
      %5726 = vmatpush2.xpose.msra.mxu0 %v5631
      %5727 = vmatprep.subr.mxu0 0.0
      %5728 = vmatpush2.xpose.msra.mxu0 %v5628
      %5729 = vmatprep.subr.mxu0 0.0
      %5730 = vmatpush2.xpose.msra.mxu0 %v5625
      %5731 = vmatprep.subr.mxu0 0.0
      %5732 = vmatpush2.xpose.msra.mxu0 %v5622
      %5733 = vmatprep.mubr.f32.mxu0 0.0
      %5734 = vmatmul.mubr.f32.gmra.mxu0 %v5571
      %v5735 = vpop.f32.mrf.mxu0
      %v5736 = vadd.f32 0.0, %v5735
      %v5737 = vpop.f32.mrf.mxu0
      %v5738 = vadd.f32 0.0, %v5737
      %5739 = vdwg.mxu0
      %v5740 = vadd.f32 %v4253, %v5736
      %v5741 = vadd.f32 %v4254, %v5738
      %5742 = vrot.lane.b32.xlu0 %v790, 122
      %v5743 = vpop.permute.xlu0 %5742
      %5744 = vrot.lane.b32.xlu0 %v795, 122
      %v5745 = vpop.permute.xlu0 %5744
      %5746 = vrot.lane.b32.xlu0 %v800, 122
      %v5747 = vpop.permute.xlu0 %5746
      %5748 = vrot.lane.b32.xlu0 %v805, 122
      %v5749 = vpop.permute.xlu0 %5748
      %5750 = vrot.lane.b32.xlu0 %v810, 122
      %v5751 = vpop.permute.xlu0 %5750
      %5752 = vrot.lane.b32.xlu0 %v815, 122
      %v5753 = vpop.permute.xlu0 %5752
      %5754 = vrot.lane.b32.xlu0 %v820, 122
      %v5755 = vpop.permute.xlu0 %5754
      %5756 = vrot.lane.b32.xlu0 %v825, 122
      %v5757 = vpop.permute.xlu0 %5756
      %5758 = vrot.lane.b32.xlu0 %v830, 122
      %v5759 = vpop.permute.xlu0 %5758
      %5760 = vrot.lane.b32.xlu0 %v835, 122
      %v5761 = vpop.permute.xlu0 %5760
      %5762 = vrot.lane.b32.xlu0 %v840, 122
      %v5763 = vpop.permute.xlu0 %5762
      %5764 = vrot.lane.b32.xlu0 %v845, 122
      %v5765 = vpop.permute.xlu0 %5764
      %5766 = vrot.lane.b32.xlu0 %v850, 122
      %v5767 = vpop.permute.xlu0 %5766
      %5768 = vrot.lane.b32.xlu0 %v855, 122
      %v5769 = vpop.permute.xlu0 %5768
      %5770 = vrot.lane.b32.xlu0 %v860, 122
      %v5771 = vpop.permute.xlu0 %5770
      %5772 = vrot.lane.b32.xlu0 %v865, 122
      %v5773 = vpop.permute.xlu0 %5772
      %5774 = vrot.lane.b32.xlu0 %v870, 122
      %v5775 = vpop.permute.xlu0 %5774
      %5776 = vrot.lane.b32.xlu0 %v875, 122
      %v5777 = vpop.permute.xlu0 %5776
      %5778 = vrot.lane.b32.xlu0 %v880, 122
      %v5779 = vpop.permute.xlu0 %5778
      %5780 = vrot.lane.b32.xlu0 %v885, 122
      %v5781 = vpop.permute.xlu0 %5780
      %5782 = vrot.lane.b32.xlu0 %v890, 122
      %v5783 = vpop.permute.xlu0 %5782
      %5784 = vrot.lane.b32.xlu0 %v895, 122
      %v5785 = vpop.permute.xlu0 %5784
      %5786 = vrot.lane.b32.xlu0 %v900, 122
      %v5787 = vpop.permute.xlu0 %5786
      %5788 = vrot.lane.b32.xlu0 %v905, 122
      %v5789 = vpop.permute.xlu0 %5788
      %5790 = vrot.lane.b32.xlu0 %v910, 122
      %v5791 = vpop.permute.xlu0 %5790
      %5792 = vrot.lane.b32.xlu0 %v915, 122
      %v5793 = vpop.permute.xlu0 %5792
      %5794 = vrot.lane.b32.xlu0 %v920, 122
      %v5795 = vpop.permute.xlu0 %5794
      %5796 = vrot.lane.b32.xlu0 %v925, 122
      %v5797 = vpop.permute.xlu0 %5796
      %5798 = vrot.lane.b32.xlu0 %v930, 122
      %v5799 = vpop.permute.xlu0 %5798
      %5800 = vrot.lane.b32.xlu0 %v935, 122
      %v5801 = vpop.permute.xlu0 %5800
      %5802 = vrot.lane.b32.xlu0 %v940, 122
      %v5803 = vpop.permute.xlu0 %5802
      %5804 = vrot.lane.b32.xlu0 %v945, 122
      %v5805 = vpop.permute.xlu0 %5804
      %5806 = vrot.lane.b32.xlu0 %v1016, 122
      %v5807 = vpop.permute.xlu0 %5806
      %5808 = vrot.lane.b32.xlu0 %v1021, 122
      %v5809 = vpop.permute.xlu0 %5808
      %5810 = vrot.lane.b32.xlu0 %v1026, 122
      %v5811 = vpop.permute.xlu0 %5810
      %5812 = vrot.lane.b32.xlu0 %v1031, 122
      %v5813 = vpop.permute.xlu0 %5812
      %5814 = vrot.lane.b32.xlu0 %v1036, 122
      %v5815 = vpop.permute.xlu0 %5814
      %5816 = vrot.lane.b32.xlu0 %v1041, 122
      %v5817 = vpop.permute.xlu0 %5816
      %5818 = vrot.lane.b32.xlu0 %v1046, 122
      %v5819 = vpop.permute.xlu0 %5818
      %5820 = vrot.lane.b32.xlu0 %v1051, 122
      %v5821 = vpop.permute.xlu0 %5820
      %5822 = vrot.lane.b32.xlu0 %v1056, 122
      %v5823 = vpop.permute.xlu0 %5822
      %5824 = vrot.lane.b32.xlu0 %v1061, 122
      %v5825 = vpop.permute.xlu0 %5824
      %5826 = vrot.lane.b32.xlu0 %v1066, 122
      %v5827 = vpop.permute.xlu0 %5826
      %5828 = vrot.lane.b32.xlu0 %v1071, 122
      %v5829 = vpop.permute.xlu0 %5828
      %5830 = vrot.lane.b32.xlu0 %v1076, 122
      %v5831 = vpop.permute.xlu0 %5830
      %5832 = vrot.lane.b32.xlu0 %v1081, 122
      %v5833 = vpop.permute.xlu0 %5832
      %5834 = vrot.lane.b32.xlu0 %v1086, 122
      %v5835 = vpop.permute.xlu0 %5834
      %5836 = vrot.lane.b32.xlu0 %v1091, 122
      %v5837 = vpop.permute.xlu0 %5836
      %5838 = vrot.lane.b32.xlu0 %v1096, 122
      %v5839 = vpop.permute.xlu0 %5838
      %5840 = vrot.lane.b32.xlu0 %v1101, 122
      %v5841 = vpop.permute.xlu0 %5840
      %5842 = vrot.lane.b32.xlu0 %v1106, 122
      %v5843 = vpop.permute.xlu0 %5842
      %5844 = vrot.lane.b32.xlu0 %v1111, 122
      %v5845 = vpop.permute.xlu0 %5844
      %5846 = vrot.lane.b32.xlu0 %v1116, 122
      %v5847 = vpop.permute.xlu0 %5846
      %5848 = vrot.lane.b32.xlu0 %v1121, 122
      %v5849 = vpop.permute.xlu0 %5848
      %5850 = vrot.lane.b32.xlu0 %v1126, 122
      %v5851 = vpop.permute.xlu0 %5850
      %5852 = vrot.lane.b32.xlu0 %v1131, 122
      %v5853 = vpop.permute.xlu0 %5852
      %5854 = vrot.lane.b32.xlu0 %v1136, 122
      %v5855 = vpop.permute.xlu0 %5854
      %5856 = vrot.lane.b32.xlu0 %v1141, 122
      %v5857 = vpop.permute.xlu0 %5856
      %5858 = vrot.lane.b32.xlu0 %v1146, 122
      %v5859 = vpop.permute.xlu0 %5858
      %5860 = vrot.lane.b32.xlu0 %v1151, 122
      %v5861 = vpop.permute.xlu0 %5860
      %5862 = vrot.lane.b32.xlu0 %v1156, 122
      %v5863 = vpop.permute.xlu0 %5862
      %5864 = vrot.lane.b32.xlu0 %v1161, 122
      %v5865 = vpop.permute.xlu0 %5864
      %5866 = vrot.lane.b32.xlu0 %v1166, 122
      %v5867 = vpop.permute.xlu0 %5866
      %5868 = vrot.lane.b32.xlu0 %v1171, 122
      %v5869 = vpop.permute.xlu0 %5868
      %v5870 = vsel %vm1409, %v5743, 0
      %v5872 = vsel %vm1409, %v5745, 0
      %v5874 = vsel %vm1409, %v5747, 0
      %v5876 = vsel %vm1409, %v5749, 0
      %v5878 = vsel %vm1409, %v5751, 0
      %v5880 = vsel %vm1409, %v5753, 0
      %v5882 = vsel %vm1409, %v5755, 0
      %v5884 = vsel %vm1409, %v5757, 0
      %v5886 = vsel %vm1409, %v5759, 0
      %v5888 = vsel %vm1409, %v5761, 0
      %v5890 = vsel %vm1409, %v5763, 0
      %v5892 = vsel %vm1409, %v5765, 0
      %v5894 = vsel %vm1409, %v5767, 0
      %v5896 = vsel %vm1409, %v5769, 0
      %v5898 = vsel %vm1409, %v5771, 0
      %v5900 = vsel %vm1409, %v5773, 0
      %v5902 = vsel %vm1409, %v5775, 0
      %v5904 = vsel %vm1409, %v5777, 0
      %v5906 = vsel %vm1409, %v5779, 0
      %v5908 = vsel %vm1409, %v5781, 0
      %v5910 = vsel %vm1409, %v5783, 0
      %v5912 = vsel %vm1409, %v5785, 0
      %v5914 = vsel %vm1409, %v5787, 0
      %v5916 = vsel %vm1409, %v5789, 0
      %v5918 = vsel %vm1409, %v5791, 0
      %v5920 = vsel %vm1409, %v5793, 0
      %v5922 = vsel %vm1409, %v5795, 0
      %v5924 = vsel %vm1409, %v5797, 0
      %v5926 = vsel %vm1409, %v5799, 0
      %v5928 = vsel %vm1409, %v5801, 0
      %v5930 = vsel %vm1409, %v5803, 0
      %v5932 = vsel %vm1409, %v5805, 0
      %v5934 = vsel %vm1409, %v5807, 0
      %v5936 = vsel %vm1409, %v5809, 0
      %v5938 = vsel %vm1409, %v5811, 0
      %v5940 = vsel %vm1409, %v5813, 0
      %v5942 = vsel %vm1409, %v5815, 0
      %v5944 = vsel %vm1409, %v5817, 0
      %v5946 = vsel %vm1409, %v5819, 0
      %v5948 = vsel %vm1409, %v5821, 0
      %v5950 = vsel %vm1409, %v5823, 0
      %v5952 = vsel %vm1409, %v5825, 0
      %v5954 = vsel %vm1409, %v5827, 0
      %v5956 = vsel %vm1409, %v5829, 0
      %v5958 = vsel %vm1409, %v5831, 0
      %v5960 = vsel %vm1409, %v5833, 0
      %v5962 = vsel %vm1409, %v5835, 0
      %v5964 = vsel %vm1409, %v5837, 0
      %v5966 = vsel %vm1409, %v5839, 0
      %v5968 = vsel %vm1409, %v5841, 0
      %v5970 = vsel %vm1409, %v5843, 0
      %v5972 = vsel %vm1409, %v5845, 0
      %v5974 = vsel %vm1409, %v5847, 0
      %v5976 = vsel %vm1409, %v5849, 0
      %v5978 = vsel %vm1409, %v5851, 0
      %v5980 = vsel %vm1409, %v5853, 0
      %v5982 = vsel %vm1409, %v5855, 0
      %v5984 = vsel %vm1409, %v5857, 0
      %v5986 = vsel %vm1409, %v5859, 0
      %v5988 = vsel %vm1409, %v5861, 0
      %v5990 = vsel %vm1409, %v5863, 0
      %v5992 = vsel %vm1409, %v5865, 0
      %v5994 = vsel %vm1409, %v5867, 0
      %v5996 = vsel %vm1409, %v5869, 0
      %5998 = vmatprep.subr.mxu0 0.0
      %5999 = vmatpush1.xpose.msra.mxu0 %v5964
      %6000 = vmatprep.subr.mxu0 0.0
      %6001 = vmatpush1.xpose.msra.mxu0 %v5962
      %6002 = vmatprep.subr.mxu0 0.0
      %6003 = vmatpush1.xpose.msra.mxu0 %v5960
      %6004 = vmatprep.subr.mxu0 0.0
      %6005 = vmatpush1.xpose.msra.mxu0 %v5958
      %6006 = vmatprep.subr.mxu0 0.0
      %6007 = vmatpush1.xpose.msra.mxu0 %v5956
      %6008 = vmatprep.subr.mxu0 0.0
      %6009 = vmatpush1.xpose.msra.mxu0 %v5954
      %6010 = vmatprep.subr.mxu0 0.0
      %6011 = vmatpush1.xpose.msra.mxu0 %v5952
      %6012 = vmatprep.subr.mxu0 0.0
      %6013 = vmatpush1.xpose.msra.mxu0 %v5950
      %6014 = vmatprep.subr.mxu0 0.0
      %6015 = vmatpush1.xpose.msra.mxu0 %v5948
      %6016 = vmatprep.subr.mxu0 0.0
      %6017 = vmatpush1.xpose.msra.mxu0 %v5946
      %6018 = vmatprep.subr.mxu0 0.0
      %6019 = vmatpush1.xpose.msra.mxu0 %v5944
      %6020 = vmatprep.subr.mxu0 0.0
      %6021 = vmatpush1.xpose.msra.mxu0 %v5942
      %6022 = vmatprep.subr.mxu0 0.0
      %6023 = vmatpush1.xpose.msra.mxu0 %v5940
      %6024 = vmatprep.subr.mxu0 0.0
      %6025 = vmatpush1.xpose.msra.mxu0 %v5938
      %6026 = vmatprep.subr.mxu0 0.0
      %6027 = vmatpush1.xpose.msra.mxu0 %v5936
      %6028 = vmatprep.subr.mxu0 0.0
      %6029 = vmatpush1.xpose.msra.mxu0 %v5934
      %6030 = vmatprep.subr.mxu0 0.0
      %6031 = vmatpush2.xpose.msra.mxu0 %v5996
      %6032 = vmatprep.subr.mxu0 0.0
      %6033 = vmatpush2.xpose.msra.mxu0 %v5994
      %6034 = vmatprep.subr.mxu0 0.0
      %6035 = vmatpush2.xpose.msra.mxu0 %v5992
      %6036 = vmatprep.subr.mxu0 0.0
      %6037 = vmatpush2.xpose.msra.mxu0 %v5990
      %6038 = vmatprep.subr.mxu0 0.0
      %6039 = vmatpush2.xpose.msra.mxu0 %v5988
      %6040 = vmatprep.subr.mxu0 0.0
      %6041 = vmatpush2.xpose.msra.mxu0 %v5986
      %6042 = vmatprep.subr.mxu0 0.0
      %6043 = vmatpush2.xpose.msra.mxu0 %v5984
      %6044 = vmatprep.subr.mxu0 0.0
      %6045 = vmatpush2.xpose.msra.mxu0 %v5982
      %6046 = vmatprep.subr.mxu0 0.0
      %6047 = vmatpush2.xpose.msra.mxu0 %v5980
      %6048 = vmatprep.subr.mxu0 0.0
      %6049 = vmatpush2.xpose.msra.mxu0 %v5978
      %6050 = vmatprep.subr.mxu0 0.0
      %6051 = vmatpush2.xpose.msra.mxu0 %v5976
      %6052 = vmatprep.subr.mxu0 0.0
      %6053 = vmatpush2.xpose.msra.mxu0 %v5974
      %6054 = vmatprep.subr.mxu0 0.0
      %6055 = vmatpush2.xpose.msra.mxu0 %v5972
      %6056 = vmatprep.subr.mxu0 0.0
      %6057 = vmatpush2.xpose.msra.mxu0 %v5970
      %6058 = vmatprep.subr.mxu0 0.0
      %6059 = vmatpush2.xpose.msra.mxu0 %v5968
      %6060 = vmatprep.subr.mxu0 0.0
      %6061 = vmatpush2.xpose.msra.mxu0 %v5966
      %6062 = vmatprep.mubr.f32.mxu0 0.0
      %6063 = vmatmul.mubr.f32.gmra.mxu0 %v5870
      %v6064 = vpop.f32.mrf.mxu0
      %v6065 = vadd.f32 0.0, %v6064
      %v6066 = vpop.f32.mrf.mxu0
      %v6067 = vadd.f32 0.0, %v6066
      %6068 = vmatprep.mubr.f32.mxu0 0.0
      %6069 = vmatmul.mubr.f32.gmra.mxu0 %v5872
      %v6070 = vpop.f32.mrf.mxu0
      %v6071 = vadd.f32 0.0, %v6070
      %v6072 = vpop.f32.mrf.mxu0
      %v6073 = vadd.f32 0.0, %v6072
      %6074 = vmatprep.mubr.f32.mxu0 0.0
      %6075 = vmatmul.mubr.f32.gmra.mxu0 %v5874
      %v6076 = vpop.f32.mrf.mxu0
      %v6077 = vadd.f32 0.0, %v6076
      %v6078 = vpop.f32.mrf.mxu0
      %v6079 = vadd.f32 0.0, %v6078
      %6080 = vmatprep.mubr.f32.mxu0 0.0
      %6081 = vmatmul.mubr.f32.gmra.mxu0 %v5876
      %v6082 = vpop.f32.mrf.mxu0
      %v6083 = vadd.f32 0.0, %v6082
      %v6084 = vpop.f32.mrf.mxu0
      %v6085 = vadd.f32 0.0, %v6084
      %6086 = vmatprep.mubr.f32.mxu0 0.0
      %6087 = vmatmul.mubr.f32.gmra.mxu0 %v5878
      %v6088 = vpop.f32.mrf.mxu0
      %v6089 = vadd.f32 0.0, %v6088
      %v6090 = vpop.f32.mrf.mxu0
      %v6091 = vadd.f32 0.0, %v6090
      %6092 = vmatprep.mubr.f32.mxu0 0.0
      %6093 = vmatmul.mubr.f32.gmra.mxu0 %v5880
      %v6094 = vpop.f32.mrf.mxu0
      %v6095 = vadd.f32 0.0, %v6094
      %v6096 = vpop.f32.mrf.mxu0
      %v6097 = vadd.f32 0.0, %v6096
      %6098 = vmatprep.mubr.f32.mxu0 0.0
      %6099 = vmatmul.mubr.f32.gmra.mxu0 %v5882
      %v6100 = vpop.f32.mrf.mxu0
      %v6101 = vadd.f32 0.0, %v6100
      %v6102 = vpop.f32.mrf.mxu0
      %v6103 = vadd.f32 0.0, %v6102
      %6104 = vmatprep.mubr.f32.mxu0 0.0
      %6105 = vmatmul.mubr.f32.gmra.mxu0 %v5884
      %v6106 = vpop.f32.mrf.mxu0
      %v6107 = vadd.f32 0.0, %v6106
      %v6108 = vpop.f32.mrf.mxu0
      %v6109 = vadd.f32 0.0, %v6108
      %6110 = vmatprep.mubr.f32.mxu0 0.0
      %6111 = vmatmul.mubr.f32.gmra.mxu0 %v5886
      %v6112 = vpop.f32.mrf.mxu0
      %v6113 = vadd.f32 0.0, %v6112
      %v6114 = vpop.f32.mrf.mxu0
      %v6115 = vadd.f32 0.0, %v6114
      %6116 = vmatprep.mubr.f32.mxu0 0.0
      %6117 = vmatmul.mubr.f32.gmra.mxu0 %v5888
      %v6118 = vpop.f32.mrf.mxu0
      %v6119 = vadd.f32 0.0, %v6118
      %v6120 = vpop.f32.mrf.mxu0
      %v6121 = vadd.f32 0.0, %v6120
      %6122 = vmatprep.mubr.f32.mxu0 0.0
      %6123 = vmatmul.mubr.f32.gmra.mxu0 %v5890
      %v6124 = vpop.f32.mrf.mxu0
      %v6125 = vadd.f32 0.0, %v6124
      %v6126 = vpop.f32.mrf.mxu0
      %v6127 = vadd.f32 0.0, %v6126
      %6128 = vmatprep.mubr.f32.mxu0 0.0
      %6129 = vmatmul.mubr.f32.gmra.mxu0 %v5892
      %v6130 = vpop.f32.mrf.mxu0
      %v6131 = vadd.f32 0.0, %v6130
      %v6132 = vpop.f32.mrf.mxu0
      %v6133 = vadd.f32 0.0, %v6132
      %6134 = vmatprep.mubr.f32.mxu0 0.0
      %6135 = vmatmul.mubr.f32.gmra.mxu0 %v5894
      %v6136 = vpop.f32.mrf.mxu0
      %v6137 = vadd.f32 0.0, %v6136
      %v6138 = vpop.f32.mrf.mxu0
      %v6139 = vadd.f32 0.0, %v6138
      %6140 = vmatprep.mubr.f32.mxu0 0.0
      %6141 = vmatmul.mubr.f32.gmra.mxu0 %v5896
      %v6142 = vpop.f32.mrf.mxu0
      %v6143 = vadd.f32 0.0, %v6142
      %v6144 = vpop.f32.mrf.mxu0
      %v6145 = vadd.f32 0.0, %v6144
      %6146 = vmatprep.mubr.f32.mxu0 0.0
      %6147 = vmatmul.mubr.f32.gmra.mxu0 %v5898
      %v6148 = vpop.f32.mrf.mxu0
      %v6149 = vadd.f32 0.0, %v6148
      %v6150 = vpop.f32.mrf.mxu0
      %v6151 = vadd.f32 0.0, %v6150
      %6152 = vmatprep.mubr.f32.mxu0 0.0
      %6153 = vmatmul.mubr.f32.gmra.mxu0 %v5900
      %v6154 = vpop.f32.mrf.mxu0
      %v6155 = vadd.f32 0.0, %v6154
      %v6156 = vpop.f32.mrf.mxu0
      %v6157 = vadd.f32 0.0, %v6156
      %6158 = vmatprep.mubr.f32.mxu0 0.0
      %6159 = vmatmul.mubr.f32.gmra.mxu0 %v5902
      %v6160 = vpop.f32.mrf.mxu0
      %v6161 = vadd.f32 0.0, %v6160
      %v6162 = vpop.f32.mrf.mxu0
      %v6163 = vadd.f32 0.0, %v6162
      %6164 = vmatprep.mubr.f32.mxu0 0.0
      %6165 = vmatmul.mubr.f32.gmra.mxu0 %v5904
      %v6166 = vpop.f32.mrf.mxu0
      %v6167 = vadd.f32 0.0, %v6166
      %v6168 = vpop.f32.mrf.mxu0
      %v6169 = vadd.f32 0.0, %v6168
      %6170 = vmatprep.mubr.f32.mxu0 0.0
      %6171 = vmatmul.mubr.f32.gmra.mxu0 %v5906
      %v6172 = vpop.f32.mrf.mxu0
      %v6173 = vadd.f32 0.0, %v6172
      %v6174 = vpop.f32.mrf.mxu0
      %v6175 = vadd.f32 0.0, %v6174
      %6176 = vmatprep.mubr.f32.mxu0 0.0
      %6177 = vmatmul.mubr.f32.gmra.mxu0 %v5908
      %v6178 = vpop.f32.mrf.mxu0
      %v6179 = vadd.f32 0.0, %v6178
      %v6180 = vpop.f32.mrf.mxu0
      %v6181 = vadd.f32 0.0, %v6180
      %6182 = vmatprep.mubr.f32.mxu0 0.0
      %6183 = vmatmul.mubr.f32.gmra.mxu0 %v5910
      %v6184 = vpop.f32.mrf.mxu0
      %v6185 = vadd.f32 0.0, %v6184
      %v6186 = vpop.f32.mrf.mxu0
      %v6187 = vadd.f32 0.0, %v6186
      %6188 = vmatprep.mubr.f32.mxu0 0.0
      %6189 = vmatmul.mubr.f32.gmra.mxu0 %v5912
      %v6190 = vpop.f32.mrf.mxu0
      %v6191 = vadd.f32 0.0, %v6190
      %v6192 = vpop.f32.mrf.mxu0
      %v6193 = vadd.f32 0.0, %v6192
      %6194 = vmatprep.mubr.f32.mxu0 0.0
      %6195 = vmatmul.mubr.f32.gmra.mxu0 %v5914
      %v6196 = vpop.f32.mrf.mxu0
      %v6197 = vadd.f32 0.0, %v6196
      %v6198 = vpop.f32.mrf.mxu0
      %v6199 = vadd.f32 0.0, %v6198
      %6200 = vmatprep.mubr.f32.mxu0 0.0
      %6201 = vmatmul.mubr.f32.gmra.mxu0 %v5916
      %v6202 = vpop.f32.mrf.mxu0
      %v6203 = vadd.f32 0.0, %v6202
      %v6204 = vpop.f32.mrf.mxu0
      %v6205 = vadd.f32 0.0, %v6204
      %6206 = vmatprep.mubr.f32.mxu0 0.0
      %6207 = vmatmul.mubr.f32.gmra.mxu0 %v5918
      %v6208 = vpop.f32.mrf.mxu0
      %v6209 = vadd.f32 0.0, %v6208
      %v6210 = vpop.f32.mrf.mxu0
      %v6211 = vadd.f32 0.0, %v6210
      %6212 = vmatprep.mubr.f32.mxu0 0.0
      %6213 = vmatmul.mubr.f32.gmra.mxu0 %v5920
      %v6214 = vpop.f32.mrf.mxu0
      %v6215 = vadd.f32 0.0, %v6214
      %v6216 = vpop.f32.mrf.mxu0
      %v6217 = vadd.f32 0.0, %v6216
      %6218 = vmatprep.mubr.f32.mxu0 0.0
      %6219 = vmatmul.mubr.f32.gmra.mxu0 %v5922
      %v6220 = vpop.f32.mrf.mxu0
      %v6221 = vadd.f32 0.0, %v6220
      %v6222 = vpop.f32.mrf.mxu0
      %v6223 = vadd.f32 0.0, %v6222
      %6224 = vmatprep.mubr.f32.mxu0 0.0
      %6225 = vmatmul.mubr.f32.gmra.mxu0 %v5924
      %v6226 = vpop.f32.mrf.mxu0
      %v6227 = vadd.f32 0.0, %v6226
      %v6228 = vpop.f32.mrf.mxu0
      %v6229 = vadd.f32 0.0, %v6228
      %6230 = vmatprep.mubr.f32.mxu0 0.0
      %6231 = vmatmul.mubr.f32.gmra.mxu0 %v5926
      %v6232 = vpop.f32.mrf.mxu0
      %v6233 = vadd.f32 0.0, %v6232
      %v6234 = vpop.f32.mrf.mxu0
      %v6235 = vadd.f32 0.0, %v6234
      %6236 = vmatprep.mubr.f32.mxu0 0.0
      %6237 = vmatmul.mubr.f32.gmra.mxu0 %v5928
      %v6238 = vpop.f32.mrf.mxu0
      %v6239 = vadd.f32 0.0, %v6238
      %v6240 = vpop.f32.mrf.mxu0
      %v6241 = vadd.f32 0.0, %v6240
      %6242 = vmatprep.mubr.f32.mxu0 0.0
      %6243 = vmatmul.mubr.f32.gmra.mxu0 %v5930
      %v6244 = vpop.f32.mrf.mxu0
      %v6245 = vadd.f32 0.0, %v6244
      %v6246 = vpop.f32.mrf.mxu0
      %v6247 = vadd.f32 0.0, %v6246
      %6248 = vmatprep.mubr.f32.mxu0 0.0
      %6249 = vmatmul.mubr.f32.gmra.mxu0 %v5932
      %v6250 = vpop.f32.mrf.mxu0
      %v6251 = vadd.f32 0.0, %v6250
      %v6252 = vpop.f32.mrf.mxu0
      %v6253 = vadd.f32 0.0, %v6252
      %6254 = vdwg.mxu0
      %v6255 = vmax.f32 %v6065, %v6067
      %6256 = vmax.xlane.f32.xlu0 %v6255
      %v6257 = vpop.xlane.xlu0 %6256
      %v6258 = vmax.f32 %v6071, %v6073
      %6259 = vmax.xlane.f32.xlu0 %v6258
      %v6260 = vpop.xlane.xlu0 %6259
      %v6261 = vmax.f32 %v6077, %v6079
      %6262 = vmax.xlane.f32.xlu0 %v6261
      %v6263 = vpop.xlane.xlu0 %6262
      %v6264 = vmax.f32 %v6083, %v6085
      %6265 = vmax.xlane.f32.xlu0 %v6264
      %v6266 = vpop.xlane.xlu0 %6265
      %v6267 = vmax.f32 %v6089, %v6091
      %6268 = vmax.xlane.f32.xlu0 %v6267
      %v6269 = vpop.xlane.xlu0 %6268
      %v6270 = vmax.f32 %v6095, %v6097
      %6271 = vmax.xlane.f32.xlu0 %v6270
      %v6272 = vpop.xlane.xlu0 %6271
      %v6273 = vmax.f32 %v6101, %v6103
      %6274 = vmax.xlane.f32.xlu0 %v6273
      %v6275 = vpop.xlane.xlu0 %6274
      %v6276 = vmax.f32 %v6107, %v6109
      %6277 = vmax.xlane.f32.xlu0 %v6276
      %v6278 = vpop.xlane.xlu0 %6277
      %v6279 = vmax.f32 %v6113, %v6115
      %6280 = vmax.xlane.f32.xlu0 %v6279
      %v6281 = vpop.xlane.xlu0 %6280
      %v6282 = vmax.f32 %v6119, %v6121
      %6283 = vmax.xlane.f32.xlu0 %v6282
      %v6284 = vpop.xlane.xlu0 %6283
      %v6285 = vmax.f32 %v6125, %v6127
      %6286 = vmax.xlane.f32.xlu0 %v6285
      %v6287 = vpop.xlane.xlu0 %6286
      %v6288 = vmax.f32 %v6131, %v6133
      %6289 = vmax.xlane.f32.xlu0 %v6288
      %v6290 = vpop.xlane.xlu0 %6289
      %v6291 = vmax.f32 %v6137, %v6139
      %6292 = vmax.xlane.f32.xlu0 %v6291
      %v6293 = vpop.xlane.xlu0 %6292
      %v6294 = vmax.f32 %v6143, %v6145
      %6295 = vmax.xlane.f32.xlu0 %v6294
      %v6296 = vpop.xlane.xlu0 %6295
      %v6297 = vmax.f32 %v6149, %v6151
      %6298 = vmax.xlane.f32.xlu0 %v6297
      %v6299 = vpop.xlane.xlu0 %6298
      %v6300 = vmax.f32 %v6155, %v6157
      %6301 = vmax.xlane.f32.xlu0 %v6300
      %v6302 = vpop.xlane.xlu0 %6301
      %v6303 = vmax.f32 %v6161, %v6163
      %6304 = vmax.xlane.f32.xlu0 %v6303
      %v6305 = vpop.xlane.xlu0 %6304
      %v6306 = vmax.f32 %v6167, %v6169
      %6307 = vmax.xlane.f32.xlu0 %v6306
      %v6308 = vpop.xlane.xlu0 %6307
      %v6309 = vmax.f32 %v6173, %v6175
      %6310 = vmax.xlane.f32.xlu0 %v6309
      %v6311 = vpop.xlane.xlu0 %6310
      %v6312 = vmax.f32 %v6179, %v6181
      %6313 = vmax.xlane.f32.xlu0 %v6312
      %v6314 = vpop.xlane.xlu0 %6313
      %v6315 = vmax.f32 %v6185, %v6187
      %6316 = vmax.xlane.f32.xlu0 %v6315
      %v6317 = vpop.xlane.xlu0 %6316
      %v6318 = vmax.f32 %v6191, %v6193
      %6319 = vmax.xlane.f32.xlu0 %v6318
      %v6320 = vpop.xlane.xlu0 %6319
      %v6321 = vmax.f32 %v6197, %v6199
      %6322 = vmax.xlane.f32.xlu0 %v6321
      %v6323 = vpop.xlane.xlu0 %6322
      %v6324 = vmax.f32 %v6203, %v6205
      %6325 = vmax.xlane.f32.xlu0 %v6324
      %v6326 = vpop.xlane.xlu0 %6325
      %v6327 = vmax.f32 %v6209, %v6211
      %6328 = vmax.xlane.f32.xlu0 %v6327
      %v6329 = vpop.xlane.xlu0 %6328
      %v6330 = vmax.f32 %v6215, %v6217
      %6331 = vmax.xlane.f32.xlu0 %v6330
      %v6332 = vpop.xlane.xlu0 %6331
      %v6333 = vmax.f32 %v6221, %v6223
      %6334 = vmax.xlane.f32.xlu0 %v6333
      %v6335 = vpop.xlane.xlu0 %6334
      %v6336 = vmax.f32 %v6227, %v6229
      %6337 = vmax.xlane.f32.xlu0 %v6336
      %v6338 = vpop.xlane.xlu0 %6337
      %v6339 = vmax.f32 %v6233, %v6235
      %6340 = vmax.xlane.f32.xlu0 %v6339
      %v6341 = vpop.xlane.xlu0 %6340
      %v6342 = vmax.f32 %v6239, %v6241
      %6343 = vmax.xlane.f32.xlu0 %v6342
      %v6344 = vpop.xlane.xlu0 %6343
      %v6345 = vmax.f32 %v6245, %v6247
      %6346 = vmax.xlane.f32.xlu0 %v6345
      %v6347 = vpop.xlane.xlu0 %6346
      %v6348 = vmax.f32 %v6251, %v6253
      %6349 = vmax.xlane.f32.xlu0 %v6348
      %v6350 = vpop.xlane.xlu0 %6349
      %v6351 = vsub.f32 %v6065, %v6257
      %v6352 = vsub.f32 %v6067, %v6257
      %v6353 = vsub.f32 %v6071, %v6260
      %v6354 = vsub.f32 %v6073, %v6260
      %v6355 = vsub.f32 %v6077, %v6263
      %v6356 = vsub.f32 %v6079, %v6263
      %v6357 = vsub.f32 %v6083, %v6266
      %v6358 = vsub.f32 %v6085, %v6266
      %v6359 = vsub.f32 %v6089, %v6269
      %v6360 = vsub.f32 %v6091, %v6269
      %v6361 = vsub.f32 %v6095, %v6272
      %v6362 = vsub.f32 %v6097, %v6272
      %v6363 = vsub.f32 %v6101, %v6275
      %v6364 = vsub.f32 %v6103, %v6275
      %v6365 = vsub.f32 %v6107, %v6278
      %v6366 = vsub.f32 %v6109, %v6278
      %v6367 = vsub.f32 %v6113, %v6281
      %v6368 = vsub.f32 %v6115, %v6281
      %v6369 = vsub.f32 %v6119, %v6284
      %v6370 = vsub.f32 %v6121, %v6284
      %v6371 = vsub.f32 %v6125, %v6287
      %v6372 = vsub.f32 %v6127, %v6287
      %v6373 = vsub.f32 %v6131, %v6290
      %v6374 = vsub.f32 %v6133, %v6290
      %v6375 = vsub.f32 %v6137, %v6293
      %v6376 = vsub.f32 %v6139, %v6293
      %v6377 = vsub.f32 %v6143, %v6296
      %v6378 = vsub.f32 %v6145, %v6296
      %v6379 = vsub.f32 %v6149, %v6299
      %v6380 = vsub.f32 %v6151, %v6299
      %v6381 = vsub.f32 %v6155, %v6302
      %v6382 = vsub.f32 %v6157, %v6302
      %v6383 = vsub.f32 %v6161, %v6305
      %v6384 = vsub.f32 %v6163, %v6305
      %v6385 = vsub.f32 %v6167, %v6308
      %v6386 = vsub.f32 %v6169, %v6308
      %v6387 = vsub.f32 %v6173, %v6311
      %v6388 = vsub.f32 %v6175, %v6311
      %v6389 = vsub.f32 %v6179, %v6314
      %v6390 = vsub.f32 %v6181, %v6314
      %v6391 = vsub.f32 %v6185, %v6317
      %v6392 = vsub.f32 %v6187, %v6317
      %v6393 = vsub.f32 %v6191, %v6320
      %v6394 = vsub.f32 %v6193, %v6320
      %v6395 = vsub.f32 %v6197, %v6323
      %v6396 = vsub.f32 %v6199, %v6323
      %v6397 = vsub.f32 %v6203, %v6326
      %v6398 = vsub.f32 %v6205, %v6326
      %v6399 = vsub.f32 %v6209, %v6329
      %v6400 = vsub.f32 %v6211, %v6329
      %v6401 = vsub.f32 %v6215, %v6332
      %v6402 = vsub.f32 %v6217, %v6332
      %v6403 = vsub.f32 %v6221, %v6335
      %v6404 = vsub.f32 %v6223, %v6335
      %v6405 = vsub.f32 %v6227, %v6338
      %v6406 = vsub.f32 %v6229, %v6338
      %v6407 = vsub.f32 %v6233, %v6341
      %v6408 = vsub.f32 %v6235, %v6341
      %v6409 = vsub.f32 %v6239, %v6344
      %v6410 = vsub.f32 %v6241, %v6344
      %v6411 = vsub.f32 %v6245, %v6347
      %v6412 = vsub.f32 %v6247, %v6347
      %v6413 = vsub.f32 %v6251, %v6350
      %v6414 = vsub.f32 %v6253, %v6350
      %v6415 = vmul.f32 %v6351, 1.442695
      %v6416 = vpow.pop %v6415
      %v6417 = vmul.f32 %v6352, 1.442695
      %v6418 = vpow.pop %v6417
      %v6419 = vmul.f32 %v6353, 1.442695
      %v6420 = vpow.pop %v6419
      %v6421 = vmul.f32 %v6354, 1.442695
      %v6422 = vpow.pop %v6421
      %v6423 = vmul.f32 %v6355, 1.442695
      %v6424 = vpow.pop %v6423
      %v6425 = vmul.f32 %v6356, 1.442695
      %v6426 = vpow.pop %v6425
      %v6427 = vmul.f32 %v6357, 1.442695
      %v6428 = vpow.pop %v6427
      %v6429 = vmul.f32 %v6358, 1.442695
      %v6430 = vpow.pop %v6429
      %v6431 = vmul.f32 %v6359, 1.442695
      %v6432 = vpow.pop %v6431
      %v6433 = vmul.f32 %v6360, 1.442695
      %v6434 = vpow.pop %v6433
      %v6435 = vmul.f32 %v6361, 1.442695
      %v6436 = vpow.pop %v6435
      %v6437 = vmul.f32 %v6362, 1.442695
      %v6438 = vpow.pop %v6437
      %v6439 = vmul.f32 %v6363, 1.442695
      %v6440 = vpow.pop %v6439
      %v6441 = vmul.f32 %v6364, 1.442695
      %v6442 = vpow.pop %v6441
      %v6443 = vmul.f32 %v6365, 1.442695
      %v6444 = vpow.pop %v6443
      %v6445 = vmul.f32 %v6366, 1.442695
      %v6446 = vpow.pop %v6445
      %v6447 = vmul.f32 %v6367, 1.442695
      %v6448 = vpow.pop %v6447
      %v6449 = vmul.f32 %v6368, 1.442695
      %v6450 = vpow.pop %v6449
      %v6451 = vmul.f32 %v6369, 1.442695
      %v6452 = vpow.pop %v6451
      %v6453 = vmul.f32 %v6370, 1.442695
      %v6454 = vpow.pop %v6453
      %v6455 = vmul.f32 %v6371, 1.442695
      %v6456 = vpow.pop %v6455
      %v6457 = vmul.f32 %v6372, 1.442695
      %v6458 = vpow.pop %v6457
      %v6459 = vmul.f32 %v6373, 1.442695
      %v6460 = vpow.pop %v6459
      %v6461 = vmul.f32 %v6374, 1.442695
      %v6462 = vpow.pop %v6461
      %v6463 = vmul.f32 %v6375, 1.442695
      %v6464 = vpow.pop %v6463
      %v6465 = vmul.f32 %v6376, 1.442695
      %v6466 = vpow.pop %v6465
      %v6467 = vmul.f32 %v6377, 1.442695
      %v6468 = vpow.pop %v6467
      %v6469 = vmul.f32 %v6378, 1.442695
      %v6470 = vpow.pop %v6469
      %v6471 = vmul.f32 %v6379, 1.442695
      %v6472 = vpow.pop %v6471
      %v6473 = vmul.f32 %v6380, 1.442695
      %v6474 = vpow.pop %v6473
      %v6475 = vmul.f32 %v6381, 1.442695
      %v6476 = vpow.pop %v6475
      %v6477 = vmul.f32 %v6382, 1.442695
      %v6478 = vpow.pop %v6477
      %v6479 = vmul.f32 %v6383, 1.442695
      %v6480 = vpow.pop %v6479
      %v6481 = vmul.f32 %v6384, 1.442695
      %v6482 = vpow.pop %v6481
      %v6483 = vmul.f32 %v6385, 1.442695
      %v6484 = vpow.pop %v6483
      %v6485 = vmul.f32 %v6386, 1.442695
      %v6486 = vpow.pop %v6485
      %v6487 = vmul.f32 %v6387, 1.442695
      %v6488 = vpow.pop %v6487
      %v6489 = vmul.f32 %v6388, 1.442695
      %v6490 = vpow.pop %v6489
      %v6491 = vmul.f32 %v6389, 1.442695
      %v6492 = vpow.pop %v6491
      %v6493 = vmul.f32 %v6390, 1.442695
      %v6494 = vpow.pop %v6493
      %v6495 = vmul.f32 %v6391, 1.442695
      %v6496 = vpow.pop %v6495
      %v6497 = vmul.f32 %v6392, 1.442695
      %v6498 = vpow.pop %v6497
      %v6499 = vmul.f32 %v6393, 1.442695
      %v6500 = vpow.pop %v6499
      %v6501 = vmul.f32 %v6394, 1.442695
      %v6502 = vpow.pop %v6501
      %v6503 = vmul.f32 %v6395, 1.442695
      %v6504 = vpow.pop %v6503
      %v6505 = vmul.f32 %v6396, 1.442695
      %v6506 = vpow.pop %v6505
      %v6507 = vmul.f32 %v6397, 1.442695
      %v6508 = vpow.pop %v6507
      %v6509 = vmul.f32 %v6398, 1.442695
      %v6510 = vpow.pop %v6509
      %v6511 = vmul.f32 %v6399, 1.442695
      %v6512 = vpow.pop %v6511
      %v6513 = vmul.f32 %v6400, 1.442695
      %v6514 = vpow.pop %v6513
      %v6515 = vmul.f32 %v6401, 1.442695
      %v6516 = vpow.pop %v6515
      %v6517 = vmul.f32 %v6402, 1.442695
      %v6518 = vpow.pop %v6517
      %v6519 = vmul.f32 %v6403, 1.442695
      %v6520 = vpow.pop %v6519
      %v6521 = vmul.f32 %v6404, 1.442695
      %v6522 = vpow.pop %v6521
      %v6523 = vmul.f32 %v6405, 1.442695
      %v6524 = vpow.pop %v6523
      %v6525 = vmul.f32 %v6406, 1.442695
      %v6526 = vpow.pop %v6525
      %v6527 = vmul.f32 %v6407, 1.442695
      %v6528 = vpow.pop %v6527
      %v6529 = vmul.f32 %v6408, 1.442695
      %v6530 = vpow.pop %v6529
      %v6531 = vmul.f32 %v6409, 1.442695
      %v6532 = vpow.pop %v6531
      %v6533 = vmul.f32 %v6410, 1.442695
      %v6534 = vpow.pop %v6533
      %v6535 = vmul.f32 %v6411, 1.442695
      %v6536 = vpow.pop %v6535
      %v6537 = vmul.f32 %v6412, 1.442695
      %v6538 = vpow.pop %v6537
      %v6539 = vmul.f32 %v6413, 1.442695
      %v6540 = vpow.pop %v6539
      %v6541 = vmul.f32 %v6414, 1.442695
      %v6542 = vpow.pop %v6541
      %v6543 = vadd.f32 %v6416, %v6418
      %6544 = vadd.xlane.f32.xlu0 %v6543
      %v6545 = vpop.xlane.xlu0 %6544
      %v6546 = vadd.f32 %v6420, %v6422
      %6547 = vadd.xlane.f32.xlu0 %v6546
      %v6548 = vpop.xlane.xlu0 %6547
      %v6549 = vadd.f32 %v6424, %v6426
      %6550 = vadd.xlane.f32.xlu0 %v6549
      %v6551 = vpop.xlane.xlu0 %6550
      %v6552 = vadd.f32 %v6428, %v6430
      %6553 = vadd.xlane.f32.xlu0 %v6552
      %v6554 = vpop.xlane.xlu0 %6553
      %v6555 = vadd.f32 %v6432, %v6434
      %6556 = vadd.xlane.f32.xlu0 %v6555
      %v6557 = vpop.xlane.xlu0 %6556
      %v6558 = vadd.f32 %v6436, %v6438
      %6559 = vadd.xlane.f32.xlu0 %v6558
      %v6560 = vpop.xlane.xlu0 %6559
      %v6561 = vadd.f32 %v6440, %v6442
      %6562 = vadd.xlane.f32.xlu0 %v6561
      %v6563 = vpop.xlane.xlu0 %6562
      %v6564 = vadd.f32 %v6444, %v6446
      %6565 = vadd.xlane.f32.xlu0 %v6564
      %v6566 = vpop.xlane.xlu0 %6565
      %v6567 = vadd.f32 %v6448, %v6450
      %6568 = vadd.xlane.f32.xlu0 %v6567
      %v6569 = vpop.xlane.xlu0 %6568
      %v6570 = vadd.f32 %v6452, %v6454
      %6571 = vadd.xlane.f32.xlu0 %v6570
      %v6572 = vpop.xlane.xlu0 %6571
      %v6573 = vadd.f32 %v6456, %v6458
      %6574 = vadd.xlane.f32.xlu0 %v6573
      %v6575 = vpop.xlane.xlu0 %6574
      %v6576 = vadd.f32 %v6460, %v6462
      %6577 = vadd.xlane.f32.xlu0 %v6576
      %v6578 = vpop.xlane.xlu0 %6577
      %v6579 = vadd.f32 %v6464, %v6466
      %6580 = vadd.xlane.f32.xlu0 %v6579
      %v6581 = vpop.xlane.xlu0 %6580
      %v6582 = vadd.f32 %v6468, %v6470
      %6583 = vadd.xlane.f32.xlu0 %v6582
      %v6584 = vpop.xlane.xlu0 %6583
      %v6585 = vadd.f32 %v6472, %v6474
      %6586 = vadd.xlane.f32.xlu0 %v6585
      %v6587 = vpop.xlane.xlu0 %6586
      %v6588 = vadd.f32 %v6476, %v6478
      %6589 = vadd.xlane.f32.xlu0 %v6588
      %v6590 = vpop.xlane.xlu0 %6589
      %v6591 = vadd.f32 %v6480, %v6482
      %6592 = vadd.xlane.f32.xlu0 %v6591
      %v6593 = vpop.xlane.xlu0 %6592
      %v6594 = vadd.f32 %v6484, %v6486
      %6595 = vadd.xlane.f32.xlu0 %v6594
      %v6596 = vpop.xlane.xlu0 %6595
      %v6597 = vadd.f32 %v6488, %v6490
      %6598 = vadd.xlane.f32.xlu0 %v6597
      %v6599 = vpop.xlane.xlu0 %6598
      %v6600 = vadd.f32 %v6492, %v6494
      %6601 = vadd.xlane.f32.xlu0 %v6600
      %v6602 = vpop.xlane.xlu0 %6601
      %v6603 = vadd.f32 %v6496, %v6498
      %6604 = vadd.xlane.f32.xlu0 %v6603
      %v6605 = vpop.xlane.xlu0 %6604
      %v6606 = vadd.f32 %v6500, %v6502
      %6607 = vadd.xlane.f32.xlu0 %v6606
      %v6608 = vpop.xlane.xlu0 %6607
      %v6609 = vadd.f32 %v6504, %v6506
      %6610 = vadd.xlane.f32.xlu0 %v6609
      %v6611 = vpop.xlane.xlu0 %6610
      %v6612 = vadd.f32 %v6508, %v6510
      %6613 = vadd.xlane.f32.xlu0 %v6612
      %v6614 = vpop.xlane.xlu0 %6613
      %v6615 = vadd.f32 %v6512, %v6514
      %6616 = vadd.xlane.f32.xlu0 %v6615
      %v6617 = vpop.xlane.xlu0 %6616
      %v6618 = vadd.f32 %v6516, %v6518
      %6619 = vadd.xlane.f32.xlu0 %v6618
      %v6620 = vpop.xlane.xlu0 %6619
      %v6621 = vadd.f32 %v6520, %v6522
      %6622 = vadd.xlane.f32.xlu0 %v6621
      %v6623 = vpop.xlane.xlu0 %6622
      %v6624 = vadd.f32 %v6524, %v6526
      %6625 = vadd.xlane.f32.xlu0 %v6624
      %v6626 = vpop.xlane.xlu0 %6625
      %v6627 = vadd.f32 %v6528, %v6530
      %6628 = vadd.xlane.f32.xlu0 %v6627
      %v6629 = vpop.xlane.xlu0 %6628
      %v6630 = vadd.f32 %v6532, %v6534
      %6631 = vadd.xlane.f32.xlu0 %v6630
      %v6632 = vpop.xlane.xlu0 %6631
      %v6633 = vadd.f32 %v6536, %v6538
      %6634 = vadd.xlane.f32.xlu0 %v6633
      %v6635 = vpop.xlane.xlu0 %6634
      %v6636 = vadd.f32 %v6540, %v6542
      %6637 = vadd.xlane.f32.xlu0 %v6636
      %v6638 = vpop.xlane.xlu0 %6637
      %v6639 = vrcp.pop %v6545
      %v6640 = vrcp.pop %v6548
      %v6641 = vrcp.pop %v6551
      %v6642 = vrcp.pop %v6554
      %v6643 = vrcp.pop %v6557
      %v6644 = vrcp.pop %v6560
      %v6645 = vrcp.pop %v6563
      %v6646 = vrcp.pop %v6566
      %v6647 = vrcp.pop %v6569
      %v6648 = vrcp.pop %v6572
      %v6649 = vrcp.pop %v6575
      %v6650 = vrcp.pop %v6578
      %v6651 = vrcp.pop %v6581
      %v6652 = vrcp.pop %v6584
      %v6653 = vrcp.pop %v6587
      %v6654 = vrcp.pop %v6590
      %v6655 = vrcp.pop %v6593
      %v6656 = vrcp.pop %v6596
      %v6657 = vrcp.pop %v6599
      %v6658 = vrcp.pop %v6602
      %v6659 = vrcp.pop %v6605
      %v6660 = vrcp.pop %v6608
      %v6661 = vrcp.pop %v6611
      %v6662 = vrcp.pop %v6614
      %v6663 = vrcp.pop %v6617
      %v6664 = vrcp.pop %v6620
      %v6665 = vrcp.pop %v6623
      %v6666 = vrcp.pop %v6626
      %v6667 = vrcp.pop %v6629
      %v6668 = vrcp.pop %v6632
      %v6669 = vrcp.pop %v6635
      %v6670 = vrcp.pop %v6638
      %v6671 = vmul.f32 %v6416, %v6639
      %v6672 = vmul.f32 %v6418, %v6639
      %v6673 = vmul.f32 %v6420, %v6640
      %v6674 = vmul.f32 %v6422, %v6640
      %v6675 = vmul.f32 %v6424, %v6641
      %v6676 = vmul.f32 %v6426, %v6641
      %v6677 = vmul.f32 %v6428, %v6642
      %v6678 = vmul.f32 %v6430, %v6642
      %v6679 = vmul.f32 %v6432, %v6643
      %v6680 = vmul.f32 %v6434, %v6643
      %v6681 = vmul.f32 %v6436, %v6644
      %v6682 = vmul.f32 %v6438, %v6644
      %v6683 = vmul.f32 %v6440, %v6645
      %v6684 = vmul.f32 %v6442, %v6645
      %v6685 = vmul.f32 %v6444, %v6646
      %v6686 = vmul.f32 %v6446, %v6646
      %v6687 = vmul.f32 %v6448, %v6647
      %v6688 = vmul.f32 %v6450, %v6647
      %v6689 = vmul.f32 %v6452, %v6648
      %v6690 = vmul.f32 %v6454, %v6648
      %v6691 = vmul.f32 %v6456, %v6649
      %v6692 = vmul.f32 %v6458, %v6649
      %v6693 = vmul.f32 %v6460, %v6650
      %v6694 = vmul.f32 %v6462, %v6650
      %v6695 = vmul.f32 %v6464, %v6651
      %v6696 = vmul.f32 %v6466, %v6651
      %v6697 = vmul.f32 %v6468, %v6652
      %v6698 = vmul.f32 %v6470, %v6652
      %v6699 = vmul.f32 %v6472, %v6653
      %v6700 = vmul.f32 %v6474, %v6653
      %v6701 = vmul.f32 %v6476, %v6654
      %v6702 = vmul.f32 %v6478, %v6654
      %v6703 = vmul.f32 %v6480, %v6655
      %v6704 = vmul.f32 %v6482, %v6655
      %v6705 = vmul.f32 %v6484, %v6656
      %v6706 = vmul.f32 %v6486, %v6656
      %v6707 = vmul.f32 %v6488, %v6657
      %v6708 = vmul.f32 %v6490, %v6657
      %v6709 = vmul.f32 %v6492, %v6658
      %v6710 = vmul.f32 %v6494, %v6658
      %v6711 = vmul.f32 %v6496, %v6659
      %v6712 = vmul.f32 %v6498, %v6659
      %v6713 = vmul.f32 %v6500, %v6660
      %v6714 = vmul.f32 %v6502, %v6660
      %v6715 = vmul.f32 %v6504, %v6661
      %v6716 = vmul.f32 %v6506, %v6661
      %v6717 = vmul.f32 %v6508, %v6662
      %v6718 = vmul.f32 %v6510, %v6662
      %v6719 = vmul.f32 %v6512, %v6663
      %v6720 = vmul.f32 %v6514, %v6663
      %v6721 = vmul.f32 %v6516, %v6664
      %v6722 = vmul.f32 %v6518, %v6664
      %v6723 = vmul.f32 %v6520, %v6665
      %v6724 = vmul.f32 %v6522, %v6665
      %v6725 = vmul.f32 %v6524, %v6666
      %v6726 = vmul.f32 %v6526, %v6666
      %v6727 = vmul.f32 %v6528, %v6667
      %v6728 = vmul.f32 %v6530, %v6667
      %v6729 = vmul.f32 %v6532, %v6668
      %v6730 = vmul.f32 %v6534, %v6668
      %v6731 = vmul.f32 %v6536, %v6669
      %v6732 = vmul.f32 %v6538, %v6669
      %v6733 = vmul.f32 %v6540, %v6670
      %v6734 = vmul.f32 %v6542, %v6670
      %6735 = vrot.lane.b32.xlu0 %v1242, 122
      %v6736 = vpop.permute.xlu0 %6735
      %6737 = vrot.lane.b32.xlu0 %v1247, 122
      %v6738 = vpop.permute.xlu0 %6737
      %6739 = vrot.lane.b32.xlu0 %v1252, 122
      %v6740 = vpop.permute.xlu0 %6739
      %6741 = vrot.lane.b32.xlu0 %v1257, 122
      %v6742 = vpop.permute.xlu0 %6741
      %6743 = vrot.lane.b32.xlu0 %v1262, 122
      %v6744 = vpop.permute.xlu0 %6743
      %6745 = vrot.lane.b32.xlu0 %v1267, 122
      %v6746 = vpop.permute.xlu0 %6745
      %6747 = vrot.lane.b32.xlu0 %v1272, 122
      %v6748 = vpop.permute.xlu0 %6747
      %6749 = vrot.lane.b32.xlu0 %v1277, 122
      %v6750 = vpop.permute.xlu0 %6749
      %6751 = vrot.lane.b32.xlu0 %v1282, 122
      %v6752 = vpop.permute.xlu0 %6751
      %6753 = vrot.lane.b32.xlu0 %v1287, 122
      %v6754 = vpop.permute.xlu0 %6753
      %6755 = vrot.lane.b32.xlu0 %v1292, 122
      %v6756 = vpop.permute.xlu0 %6755
      %6757 = vrot.lane.b32.xlu0 %v1297, 122
      %v6758 = vpop.permute.xlu0 %6757
      %6759 = vrot.lane.b32.xlu0 %v1302, 122
      %v6760 = vpop.permute.xlu0 %6759
      %6761 = vrot.lane.b32.xlu0 %v1307, 122
      %v6762 = vpop.permute.xlu0 %6761
      %6763 = vrot.lane.b32.xlu0 %v1312, 122
      %v6764 = vpop.permute.xlu0 %6763
      %6765 = vrot.lane.b32.xlu0 %v1317, 122
      %v6766 = vpop.permute.xlu0 %6765
      %6767 = vrot.lane.b32.xlu0 %v1322, 122
      %v6768 = vpop.permute.xlu0 %6767
      %6769 = vrot.lane.b32.xlu0 %v1327, 122
      %v6770 = vpop.permute.xlu0 %6769
      %6771 = vrot.lane.b32.xlu0 %v1332, 122
      %v6772 = vpop.permute.xlu0 %6771
      %6773 = vrot.lane.b32.xlu0 %v1337, 122
      %v6774 = vpop.permute.xlu0 %6773
      %6775 = vrot.lane.b32.xlu0 %v1342, 122
      %v6776 = vpop.permute.xlu0 %6775
      %6777 = vrot.lane.b32.xlu0 %v1347, 122
      %v6778 = vpop.permute.xlu0 %6777
      %6779 = vrot.lane.b32.xlu0 %v1352, 122
      %v6780 = vpop.permute.xlu0 %6779
      %6781 = vrot.lane.b32.xlu0 %v1357, 122
      %v6782 = vpop.permute.xlu0 %6781
      %6783 = vrot.lane.b32.xlu0 %v1362, 122
      %v6784 = vpop.permute.xlu0 %6783
      %6785 = vrot.lane.b32.xlu0 %v1367, 122
      %v6786 = vpop.permute.xlu0 %6785
      %6787 = vrot.lane.b32.xlu0 %v1372, 122
      %v6788 = vpop.permute.xlu0 %6787
      %6789 = vrot.lane.b32.xlu0 %v1377, 122
      %v6790 = vpop.permute.xlu0 %6789
      %6791 = vrot.lane.b32.xlu0 %v1382, 122
      %v6792 = vpop.permute.xlu0 %6791
      %6793 = vrot.lane.b32.xlu0 %v1387, 122
      %v6794 = vpop.permute.xlu0 %6793
      %6795 = vrot.lane.b32.xlu0 %v1392, 122
      %v6796 = vpop.permute.xlu0 %6795
      %6797 = vrot.lane.b32.xlu0 %v1397, 122
      %v6798 = vpop.permute.xlu0 %6797
      %6831 = vmatprep.subr.mxu0 0.0
      %6832 = vmatpush1.msra.mxu0 %v6766
      %6833 = vmatprep.subr.mxu0 0.0
      %6834 = vmatpush1.msra.mxu0 %v6764
      %6835 = vmatprep.subr.mxu0 0.0
      %6836 = vmatpush1.msra.mxu0 %v6762
      %6837 = vmatprep.subr.mxu0 0.0
      %6838 = vmatpush1.msra.mxu0 %v6760
      %6839 = vmatprep.subr.mxu0 0.0
      %6840 = vmatpush1.msra.mxu0 %v6758
      %6841 = vmatprep.subr.mxu0 0.0
      %6842 = vmatpush1.msra.mxu0 %v6756
      %6843 = vmatprep.subr.mxu0 0.0
      %6844 = vmatpush1.msra.mxu0 %v6754
      %6845 = vmatprep.subr.mxu0 0.0
      %6846 = vmatpush1.msra.mxu0 %v6752
      %6847 = vmatprep.subr.mxu0 0.0
      %6848 = vmatpush1.msra.mxu0 %v6750
      %6849 = vmatprep.subr.mxu0 0.0
      %6850 = vmatpush1.msra.mxu0 %v6748
      %6851 = vmatprep.subr.mxu0 0.0
      %6852 = vmatpush1.msra.mxu0 %v6746
      %6853 = vmatprep.subr.mxu0 0.0
      %6854 = vmatpush1.msra.mxu0 %v6744
      %6855 = vmatprep.subr.mxu0 0.0
      %6856 = vmatpush1.msra.mxu0 %v6742
      %6857 = vmatprep.subr.mxu0 0.0
      %6858 = vmatpush1.msra.mxu0 %v6740
      %6859 = vmatprep.subr.mxu0 0.0
      %6860 = vmatpush1.msra.mxu0 %v6738
      %6861 = vmatprep.subr.mxu0 0.0
      %6862 = vmatpush1.msra.mxu0 %v6736
      %6863 = vmatprep.subr.mxu0 0.0
      %6864 = vmatpush2.msra.mxu0 %v6798
      %6865 = vmatprep.subr.mxu0 0.0
      %6866 = vmatpush2.msra.mxu0 %v6796
      %6867 = vmatprep.subr.mxu0 0.0
      %6868 = vmatpush2.msra.mxu0 %v6794
      %6869 = vmatprep.subr.mxu0 0.0
      %6870 = vmatpush2.msra.mxu0 %v6792
      %6871 = vmatprep.subr.mxu0 0.0
      %6872 = vmatpush2.msra.mxu0 %v6790
      %6873 = vmatprep.subr.mxu0 0.0
      %6874 = vmatpush2.msra.mxu0 %v6788
      %6875 = vmatprep.subr.mxu0 0.0
      %6876 = vmatpush2.msra.mxu0 %v6786
      %6877 = vmatprep.subr.mxu0 0.0
      %6878 = vmatpush2.msra.mxu0 %v6784
      %6879 = vmatprep.subr.mxu0 0.0
      %6880 = vmatpush2.msra.mxu0 %v6782
      %6881 = vmatprep.subr.mxu0 0.0
      %6882 = vmatpush2.msra.mxu0 %v6780
      %6883 = vmatprep.subr.mxu0 0.0
      %6884 = vmatpush2.msra.mxu0 %v6778
      %6885 = vmatprep.subr.mxu0 0.0
      %6886 = vmatpush2.msra.mxu0 %v6776
      %6887 = vmatprep.subr.mxu0 0.0
      %6888 = vmatpush2.msra.mxu0 %v6774
      %6889 = vmatprep.subr.mxu0 0.0
      %6890 = vmatpush2.msra.mxu0 %v6772
      %6891 = vmatprep.subr.mxu0 0.0
      %6892 = vmatpush2.msra.mxu0 %v6770
      %6893 = vmatprep.subr.mxu0 0.0
      %6894 = vmatpush2.msra.mxu0 %v6768
      %6895 = vmatprep.mubr.f32.mxu0 %v6672
      %6896 = vmatmul.mubr.f32.gmra.mxu0 %v6671
      %v6897 = vpop.f32.mrf.mxu0
      %v6898 = vadd.f32 0.0, %v6897
      %v6899 = vpop.f32.mrf.mxu0
      %6900 = vmatprep.mubr.f32.mxu0 %v6674
      %6901 = vmatmul.mubr.f32.gmra.mxu0 %v6673
      %v6902 = vpop.f32.mrf.mxu0
      %v6903 = vadd.f32 0.0, %v6902
      %v6904 = vpop.f32.mrf.mxu0
      %6905 = vmatprep.mubr.f32.mxu0 %v6676
      %6906 = vmatmul.mubr.f32.gmra.mxu0 %v6675
      %v6907 = vpop.f32.mrf.mxu0
      %v6908 = vadd.f32 0.0, %v6907
      %v6909 = vpop.f32.mrf.mxu0
      %6910 = vmatprep.mubr.f32.mxu0 %v6678
      %6911 = vmatmul.mubr.f32.gmra.mxu0 %v6677
      %v6912 = vpop.f32.mrf.mxu0
      %v6913 = vadd.f32 0.0, %v6912
      %v6914 = vpop.f32.mrf.mxu0
      %6915 = vmatprep.mubr.f32.mxu0 %v6680
      %6916 = vmatmul.mubr.f32.gmra.mxu0 %v6679
      %v6917 = vpop.f32.mrf.mxu0
      %v6918 = vadd.f32 0.0, %v6917
      %v6919 = vpop.f32.mrf.mxu0
      %6920 = vmatprep.mubr.f32.mxu0 %v6682
      %6921 = vmatmul.mubr.f32.gmra.mxu0 %v6681
      %v6922 = vpop.f32.mrf.mxu0
      %v6923 = vadd.f32 0.0, %v6922
      %v6924 = vpop.f32.mrf.mxu0
      %6925 = vmatprep.mubr.f32.mxu0 %v6684
      %6926 = vmatmul.mubr.f32.gmra.mxu0 %v6683
      %v6927 = vpop.f32.mrf.mxu0
      %v6928 = vadd.f32 0.0, %v6927
      %v6929 = vpop.f32.mrf.mxu0
      %6930 = vmatprep.mubr.f32.mxu0 %v6686
      %6931 = vmatmul.mubr.f32.gmra.mxu0 %v6685
      %v6932 = vpop.f32.mrf.mxu0
      %v6933 = vadd.f32 0.0, %v6932
      %v6934 = vpop.f32.mrf.mxu0
      %6935 = vmatprep.mubr.f32.mxu0 %v6688
      %6936 = vmatmul.mubr.f32.gmra.mxu0 %v6687
      %v6937 = vpop.f32.mrf.mxu0
      %v6938 = vadd.f32 0.0, %v6937
      %v6939 = vpop.f32.mrf.mxu0
      %6940 = vmatprep.mubr.f32.mxu0 %v6690
      %6941 = vmatmul.mubr.f32.gmra.mxu0 %v6689
      %v6942 = vpop.f32.mrf.mxu0
      %v6943 = vadd.f32 0.0, %v6942
      %v6944 = vpop.f32.mrf.mxu0
      %6945 = vmatprep.mubr.f32.mxu0 %v6692
      %6946 = vmatmul.mubr.f32.gmra.mxu0 %v6691
      %v6947 = vpop.f32.mrf.mxu0
      %v6948 = vadd.f32 0.0, %v6947
      %v6949 = vpop.f32.mrf.mxu0
      %6950 = vmatprep.mubr.f32.mxu0 %v6694
      %6951 = vmatmul.mubr.f32.gmra.mxu0 %v6693
      %v6952 = vpop.f32.mrf.mxu0
      %v6953 = vadd.f32 0.0, %v6952
      %v6954 = vpop.f32.mrf.mxu0
      %6955 = vmatprep.mubr.f32.mxu0 %v6696
      %6956 = vmatmul.mubr.f32.gmra.mxu0 %v6695
      %v6957 = vpop.f32.mrf.mxu0
      %v6958 = vadd.f32 0.0, %v6957
      %v6959 = vpop.f32.mrf.mxu0
      %6960 = vmatprep.mubr.f32.mxu0 %v6698
      %6961 = vmatmul.mubr.f32.gmra.mxu0 %v6697
      %v6962 = vpop.f32.mrf.mxu0
      %v6963 = vadd.f32 0.0, %v6962
      %v6964 = vpop.f32.mrf.mxu0
      %6965 = vmatprep.mubr.f32.mxu0 %v6700
      %6966 = vmatmul.mubr.f32.gmra.mxu0 %v6699
      %v6967 = vpop.f32.mrf.mxu0
      %v6968 = vadd.f32 0.0, %v6967
      %v6969 = vpop.f32.mrf.mxu0
      %6970 = vmatprep.mubr.f32.mxu0 %v6702
      %6971 = vmatmul.mubr.f32.gmra.mxu0 %v6701
      %v6972 = vpop.f32.mrf.mxu0
      %v6973 = vadd.f32 0.0, %v6972
      %v6974 = vpop.f32.mrf.mxu0
      %6975 = vmatprep.mubr.f32.mxu0 %v6704
      %6976 = vmatmul.mubr.f32.gmra.mxu0 %v6703
      %v6977 = vpop.f32.mrf.mxu0
      %v6978 = vadd.f32 0.0, %v6977
      %v6979 = vpop.f32.mrf.mxu0
      %6980 = vmatprep.mubr.f32.mxu0 %v6706
      %6981 = vmatmul.mubr.f32.gmra.mxu0 %v6705
      %v6982 = vpop.f32.mrf.mxu0
      %v6983 = vadd.f32 0.0, %v6982
      %v6984 = vpop.f32.mrf.mxu0
      %6985 = vmatprep.mubr.f32.mxu0 %v6708
      %6986 = vmatmul.mubr.f32.gmra.mxu0 %v6707
      %v6987 = vpop.f32.mrf.mxu0
      %v6988 = vadd.f32 0.0, %v6987
      %v6989 = vpop.f32.mrf.mxu0
      %6990 = vmatprep.mubr.f32.mxu0 %v6710
      %6991 = vmatmul.mubr.f32.gmra.mxu0 %v6709
      %v6992 = vpop.f32.mrf.mxu0
      %v6993 = vadd.f32 0.0, %v6992
      %v6994 = vpop.f32.mrf.mxu0
      %6995 = vmatprep.mubr.f32.mxu0 %v6712
      %6996 = vmatmul.mubr.f32.gmra.mxu0 %v6711
      %v6997 = vpop.f32.mrf.mxu0
      %v6998 = vadd.f32 0.0, %v6997
      %v6999 = vpop.f32.mrf.mxu0
      %7000 = vmatprep.mubr.f32.mxu0 %v6714
      %7001 = vmatmul.mubr.f32.gmra.mxu0 %v6713
      %v7002 = vpop.f32.mrf.mxu0
      %v7003 = vadd.f32 0.0, %v7002
      %v7004 = vpop.f32.mrf.mxu0
      %7005 = vmatprep.mubr.f32.mxu0 %v6716
      %7006 = vmatmul.mubr.f32.gmra.mxu0 %v6715
      %v7007 = vpop.f32.mrf.mxu0
      %v7008 = vadd.f32 0.0, %v7007
      %v7009 = vpop.f32.mrf.mxu0
      %7010 = vmatprep.mubr.f32.mxu0 %v6718
      %7011 = vmatmul.mubr.f32.gmra.mxu0 %v6717
      %v7012 = vpop.f32.mrf.mxu0
      %v7013 = vadd.f32 0.0, %v7012
      %v7014 = vpop.f32.mrf.mxu0
      %7015 = vmatprep.mubr.f32.mxu0 %v6720
      %7016 = vmatmul.mubr.f32.gmra.mxu0 %v6719
      %v7017 = vpop.f32.mrf.mxu0
      %v7018 = vadd.f32 0.0, %v7017
      %v7019 = vpop.f32.mrf.mxu0
      %7020 = vmatprep.mubr.f32.mxu0 %v6722
      %7021 = vmatmul.mubr.f32.gmra.mxu0 %v6721
      %v7022 = vpop.f32.mrf.mxu0
      %v7023 = vadd.f32 0.0, %v7022
      %v7024 = vpop.f32.mrf.mxu0
      %7025 = vmatprep.mubr.f32.mxu0 %v6724
      %7026 = vmatmul.mubr.f32.gmra.mxu0 %v6723
      %v7027 = vpop.f32.mrf.mxu0
      %v7028 = vadd.f32 0.0, %v7027
      %v7029 = vpop.f32.mrf.mxu0
      %7030 = vmatprep.mubr.f32.mxu0 %v6726
      %7031 = vmatmul.mubr.f32.gmra.mxu0 %v6725
      %v7032 = vpop.f32.mrf.mxu0
      %v7033 = vadd.f32 0.0, %v7032
      %v7034 = vpop.f32.mrf.mxu0
      %7035 = vmatprep.mubr.f32.mxu0 %v6728
      %7036 = vmatmul.mubr.f32.gmra.mxu0 %v6727
      %v7037 = vpop.f32.mrf.mxu0
      %v7038 = vadd.f32 0.0, %v7037
      %v7039 = vpop.f32.mrf.mxu0
      %7040 = vmatprep.mubr.f32.mxu0 %v6730
      %7041 = vmatmul.mubr.f32.gmra.mxu0 %v6729
      %v7042 = vpop.f32.mrf.mxu0
      %v7043 = vadd.f32 0.0, %v7042
      %v7044 = vpop.f32.mrf.mxu0
      %7045 = vmatprep.mubr.f32.mxu0 %v6732
      %7046 = vmatmul.mubr.f32.gmra.mxu0 %v6731
      %v7047 = vpop.f32.mrf.mxu0
      %v7048 = vadd.f32 0.0, %v7047
      %v7049 = vpop.f32.mrf.mxu0
      %7050 = vmatprep.mubr.f32.mxu0 %v6734
      %7051 = vmatmul.mubr.f32.gmra.mxu0 %v6733
      %v7052 = vpop.f32.mrf.mxu0
      %v7053 = vadd.f32 0.0, %v7052
      %v7054 = vpop.f32.mrf.mxu0
      %7055 = vdwg.mxu0
      %7056 = vrot.lane.b32.xlu0 %v1400, 122
      %v7057 = vpop.permute.xlu0 %7056
      %v7058 = vsel %vm1409, %v7057, 0
      %v7061 = vsel %vm1409, %v6898, 0
      %v7064 = vsel %vm1409, %v6903, 0
      %v7067 = vsel %vm1409, %v6908, 0
      %v7070 = vsel %vm1409, %v6913, 0
      %v7073 = vsel %vm1409, %v6918, 0
      %v7076 = vsel %vm1409, %v6923, 0
      %v7079 = vsel %vm1409, %v6928, 0
      %v7082 = vsel %vm1409, %v6933, 0
      %v7085 = vsel %vm1409, %v6938, 0
      %v7088 = vsel %vm1409, %v6943, 0
      %v7091 = vsel %vm1409, %v6948, 0
      %v7094 = vsel %vm1409, %v6953, 0
      %v7097 = vsel %vm1409, %v6958, 0
      %v7100 = vsel %vm1409, %v6963, 0
      %v7103 = vsel %vm1409, %v6968, 0
      %v7106 = vsel %vm1409, %v6973, 0
      %v7109 = vsel %vm1409, %v6978, 0
      %v7112 = vsel %vm1409, %v6983, 0
      %v7115 = vsel %vm1409, %v6988, 0
      %v7118 = vsel %vm1409, %v6993, 0
      %v7121 = vsel %vm1409, %v6998, 0
      %v7124 = vsel %vm1409, %v7003, 0
      %v7127 = vsel %vm1409, %v7008, 0
      %v7130 = vsel %vm1409, %v7013, 0
      %v7133 = vsel %vm1409, %v7018, 0
      %v7136 = vsel %vm1409, %v7023, 0
      %v7139 = vsel %vm1409, %v7028, 0
      %v7142 = vsel %vm1409, %v7033, 0
      %v7145 = vsel %vm1409, %v7038, 0
      %v7148 = vsel %vm1409, %v7043, 0
      %v7151 = vsel %vm1409, %v7048, 0
      %v7154 = vsel %vm1409, %v7053, 0
      %7156 = vmatprep.subr.mxu0 0.0
      %7157 = vmatpush1.xpose.msra.mxu0 %v7106
      %7158 = vmatprep.subr.mxu0 0.0
      %7159 = vmatpush1.xpose.msra.mxu0 %v7103
      %7160 = vmatprep.subr.mxu0 0.0
      %7161 = vmatpush1.xpose.msra.mxu0 %v7100
      %7162 = vmatprep.subr.mxu0 0.0
      %7163 = vmatpush1.xpose.msra.mxu0 %v7097
      %7164 = vmatprep.subr.mxu0 0.0
      %7165 = vmatpush1.xpose.msra.mxu0 %v7094
      %7166 = vmatprep.subr.mxu0 0.0
      %7167 = vmatpush1.xpose.msra.mxu0 %v7091
      %7168 = vmatprep.subr.mxu0 0.0
      %7169 = vmatpush1.xpose.msra.mxu0 %v7088
      %7170 = vmatprep.subr.mxu0 0.0
      %7171 = vmatpush1.xpose.msra.mxu0 %v7085
      %7172 = vmatprep.subr.mxu0 0.0
      %7173 = vmatpush1.xpose.msra.mxu0 %v7082
      %7174 = vmatprep.subr.mxu0 0.0
      %7175 = vmatpush1.xpose.msra.mxu0 %v7079
      %7176 = vmatprep.subr.mxu0 0.0
      %7177 = vmatpush1.xpose.msra.mxu0 %v7076
      %7178 = vmatprep.subr.mxu0 0.0
      %7179 = vmatpush1.xpose.msra.mxu0 %v7073
      %7180 = vmatprep.subr.mxu0 0.0
      %7181 = vmatpush1.xpose.msra.mxu0 %v7070
      %7182 = vmatprep.subr.mxu0 0.0
      %7183 = vmatpush1.xpose.msra.mxu0 %v7067
      %7184 = vmatprep.subr.mxu0 0.0
      %7185 = vmatpush1.xpose.msra.mxu0 %v7064
      %7186 = vmatprep.subr.mxu0 0.0
      %7187 = vmatpush1.xpose.msra.mxu0 %v7061
      %7188 = vmatprep.subr.mxu0 0.0
      %7189 = vmatpush2.xpose.msra.mxu0 %v7154
      %7190 = vmatprep.subr.mxu0 0.0
      %7191 = vmatpush2.xpose.msra.mxu0 %v7151
      %7192 = vmatprep.subr.mxu0 0.0
      %7193 = vmatpush2.xpose.msra.mxu0 %v7148
      %7194 = vmatprep.subr.mxu0 0.0
      %7195 = vmatpush2.xpose.msra.mxu0 %v7145
      %7196 = vmatprep.subr.mxu0 0.0
      %7197 = vmatpush2.xpose.msra.mxu0 %v7142
      %7198 = vmatprep.subr.mxu0 0.0
      %7199 = vmatpush2.xpose.msra.mxu0 %v7139
      %7200 = vmatprep.subr.mxu0 0.0
      %7201 = vmatpush2.xpose.msra.mxu0 %v7136
      %7202 = vmatprep.subr.mxu0 0.0
      %7203 = vmatpush2.xpose.msra.mxu0 %v7133
      %7204 = vmatprep.subr.mxu0 0.0
      %7205 = vmatpush2.xpose.msra.mxu0 %v7130
      %7206 = vmatprep.subr.mxu0 0.0
      %7207 = vmatpush2.xpose.msra.mxu0 %v7127
      %7208 = vmatprep.subr.mxu0 0.0
      %7209 = vmatpush2.xpose.msra.mxu0 %v7124
      %7210 = vmatprep.subr.mxu0 0.0
      %7211 = vmatpush2.xpose.msra.mxu0 %v7121
      %7212 = vmatprep.subr.mxu0 0.0
      %7213 = vmatpush2.xpose.msra.mxu0 %v7118
      %7214 = vmatprep.subr.mxu0 0.0
      %7215 = vmatpush2.xpose.msra.mxu0 %v7115
      %7216 = vmatprep.subr.mxu0 0.0
      %7217 = vmatpush2.xpose.msra.mxu0 %v7112
      %7218 = vmatprep.subr.mxu0 0.0
      %7219 = vmatpush2.xpose.msra.mxu0 %v7109
      %7220 = vmatprep.mubr.f32.mxu0 0.0
      %7221 = vmatmul.mubr.f32.gmra.mxu0 %v7058
      %v7222 = vpop.f32.mrf.mxu0
      %v7223 = vadd.f32 0.0, %v7222
      %v7224 = vpop.f32.mrf.mxu0
      %v7225 = vadd.f32 0.0, %v7224
      %7226 = vdwg.mxu0
      %v7227 = vadd.f32 %v5740, %v7223
      %v7228 = vadd.f32 %v5741, %v7225
      %7229 = vst [vmem:[%s352] sm:$0xff] %v7227
      %7230 = vst [vmem:[%s352 + $0x8] sm:$0xff] %v7228
      %p7231 = scmp.lt.s32.totalorder %s20, 1
      %s7232 = scalar_select %p7231, %s20, 1
      %s7233 = smul.addr %s7232, 2
      %s7234 = smul.addr %s7233, 8
      %s7235 = scalar_lea.vmem %s9, %s7234
      // Predicated region
      $region57: #{conv_block_2d.1} parent=55 // pred_check
        %p7236 = pneg %p237
      $region58: #{conv_block_2d.1} parent=55 // pred_check_branch
        %7238 = sbr.rel (%p7236) target = $region60
      $region59: #{conv_block_2d.1} parent=55 // pred_region
        _
      $region60: #{conv_block_2d.1} parent=55 // pred_fallthru
        _
    $region56: #{conv_block_2d.1} parent=5 // pred_fallthru
      _
    %p7239 = scmp.le.s32.totalorder 2, %s15
    // Predicated region
    $region61: #{conv_block_2d.1} parent=5 // pred_check
      %p7240 = pneg %p7239
    $region62: #{conv_block_2d.1} parent=5 // pred_check_branch
      %7242 = sbr.rel (%p7240) target = $region64
    $region63: #{conv_block_2d.1} parent=5 // pred_region
      %s7243 = ssub.s32 %s15, 2
      // Predicated region
      $region65: #{conv_block_2d.1} parent=63 // pred_check
        %p7244 = pneg %p243
      $region66: #{conv_block_2d.1} parent=63 // pred_check_branch
        %7246 = sbr.rel (%p7244) target = $region68
      $region67: #{conv_block_2d.1} parent=63 // pred_region
        %p7247 = scmp.lt.s32.totalorder %s21, 1
        %s7248 = scalar_select %p7247, %s21, 1
        %s7249 = smul.addr %s7248, 2
        %s7250 = smul.addr %s7249, 8
        %s7251 = scalar_lea.vmem %s9, %s7250
      $region68: #{conv_block_2d.1} parent=63 // pred_fallthru
        _
    $region64: #{conv_block_2d.1} parent=5 // pred_fallthru
      _
  $region6: #{conv_block_2d.1} parent=0 // loop_footer
    %s19 = sadd.s32 1, %s15
  $region7: #{conv_block_2d.1} parent=0 // loop_footer_branch
    %14 = sbr.rel target = $region3
  $region8: #{conv_block_2d.1} parent=0 // loop_exit
    _

</llo_original>
